<compile_context>
chip_gen: v7x
topology: tpu7x:2x2x1
jax: 0.10.0
libtpu: 0.0.40
codegen_flags: <defaults>
</compile_context>

<pallas_src>
import jax
import jax.numpy as jnp
from jax.experimental import pallas as pl
from jax.experimental.pallas import tpu as pltpu

IMAGE_SIZE = 784
HIDDEN_DIM = 400
Z_DIM = 20
Z_PAD = 128          # latent width padded to one full lane group


def _round_up(x, m):
    return ((x + m - 1) // m) * m


def vae_forward_kernel(
    x_ref, eps_ref,
    w1_ref, b1_ref,
    w23_ref, b23_ref,
    w4_ref, b4_ref,
    w5_ref, b5_ref,
    rec_ref, mulv_ref,
):
    x = x_ref[...]          # (TB, 784)  bf16
    eps = eps_ref[...]      # (TB, 128)  f32 (zero beyond Z_DIM)

    # ---- encode: fc1 + relu, fused & lane-padded fc2|fc3 head ----
    h = jnp.dot(x, w1_ref[...], preferred_element_type=jnp.float32) + b1_ref[...]
    h = jnp.maximum(h, 0.0)                                          # relu (f32)

    mulv = jnp.dot(h.astype(jnp.bfloat16), w23_ref[...],
                   preferred_element_type=jnp.float32) + b23_ref[...]  # (TB, 256)
    mu = mulv[:, :Z_PAD]          # vreg-boundary slice (free)
    log_var = mulv[:, Z_PAD:]

    # ---- reparameterize (f32 elementwise); padded cols stay exactly 0 ----
    std = jnp.exp(log_var * 0.5)
    z = mu + eps * std            # (TB, 128)

    # ---- decode: fc4 (K=128) + relu, fc5 + sigmoid ----
    h2 = jnp.dot(z.astype(jnp.bfloat16), w4_ref[...],
                 preferred_element_type=jnp.float32) + b4_ref[...]
    h2 = jnp.maximum(h2, 0.0)
    logits = jnp.dot(h2.astype(jnp.bfloat16), w5_ref[...],
                     preferred_element_type=jnp.float32) + b5_ref[...]

    rec_ref[...] = jax.nn.sigmoid(logits).astype(rec_ref.dtype)      # bf16 out
    mulv_ref[...] = mulv.astype(mulv_ref.dtype)                      # f32 out


def vae_forward(x, eps, params, *, block_b=512):
    """x: (B, 784) float, eps: (B, 20) float, params: dict (see init_params).

    Returns (rec bf16, mu f32, log_var f32)."""
    B = x.shape[0]

    # bf16 input stream (weights are already bf16; matmuls accumulate in f32).
    x = x.astype(jnp.bfloat16)
    # Pad eps to the 128-lane latent width (zeros beyond Z_DIM).
    eps_p = jnp.pad(eps.astype(jnp.float32), ((0, 0), (0, Z_PAD - Z_DIM)))

    # Tile selection: minimize zero-row padding and aim for >=2 grid steps so
    # the parallel batch axis can shard across both TensorCores on v7x.
    n_tiles = max(pl.cdiv(B, block_b), 2 if B >= 16 else 1)
    tb = _round_up(pl.cdiv(B, n_tiles), 8)
    b_pad = _round_up(B, tb)
    if b_pad != B:
        x = jnp.pad(x, ((0, b_pad - B), (0, 0)))
        eps_p = jnp.pad(eps_p, ((0, b_pad - B), (0, 0)))
    grid = (b_pad // tb,)

    out_shapes = (
        jax.ShapeDtypeStruct((b_pad, IMAGE_SIZE), jnp.bfloat16),   # rec
        jax.ShapeDtypeStruct((b_pad, 2 * Z_PAD), jnp.float32),     # mu | log_var
    )

    # Advisory cost estimate for the XLA scheduler.
    matmul_flops = 2 * b_pad * (
        IMAGE_SIZE * HIDDEN_DIM          # fc1
        + HIDDEN_DIM * 2 * Z_PAD         # fused fc2|fc3 (padded)
        + Z_PAD * HIDDEN_DIM             # fc4 (padded K)
        + HIDDEN_DIM * IMAGE_SIZE        # fc5
    )
    weight_bytes = 2 * (IMAGE_SIZE * HIDDEN_DIM + HIDDEN_DIM * 2 * Z_PAD
                        + Z_PAD * HIDDEN_DIM + HIDDEN_DIM * IMAGE_SIZE)
    act_bytes = b_pad * (2 * IMAGE_SIZE     # x  (bf16)
                         + 4 * Z_PAD        # eps (f32)
                         + 2 * IMAGE_SIZE   # rec (bf16)
                         + 4 * 2 * Z_PAD)   # mulv (f32)
    cost = pl.CostEstimate(
        flops=matmul_flops,
        transcendentals=b_pad * (Z_PAD + IMAGE_SIZE),
        bytes_accessed=weight_bytes + act_bytes,
    )

    def make_call(single_buffer_weights):
        row_spec = lambda f: pl.BlockSpec((tb, f), lambda i: (i, 0))
        if single_buffer_weights:
            # Weights never change block index -> single-buffer to save VMEM.
            const_spec = lambda r, c: pl.BlockSpec(
                (r, c), lambda i: (0, 0), pipeline_mode=pl.Buffered(1))
        else:
            const_spec = lambda r, c: pl.BlockSpec((r, c), lambda i: (0, 0))

        in_specs = [
            row_spec(IMAGE_SIZE),                     # x
            row_spec(Z_PAD),                          # eps (padded)
            const_spec(IMAGE_SIZE, HIDDEN_DIM),       # w1
            const_spec(1, HIDDEN_DIM),                # b1
            const_spec(HIDDEN_DIM, 2 * Z_PAD),        # w23 (fused, padded)
            const_spec(1, 2 * Z_PAD),                 # b23
            const_spec(Z_PAD, HIDDEN_DIM),            # w4 (padded rows)
            const_spec(1, HIDDEN_DIM),                # b4
            const_spec(HIDDEN_DIM, IMAGE_SIZE),       # w5
            const_spec(1, IMAGE_SIZE),                # b5
        ]
        out_specs = (
            row_spec(IMAGE_SIZE),                     # rec
            row_spec(2 * Z_PAD),                      # mu | log_var (merged)
        )
        return pl.pallas_call(
            vae_forward_kernel,
            out_shape=out_shapes,
            grid=grid,
            in_specs=in_specs,
            out_specs=out_specs,
            compiler_params=pltpu.CompilerParams(
                dimension_semantics=("parallel",),
                vmem_limit_bytes=32 * 1024 * 1024,
            ),
            cost_estimate=cost,
        )

    args = (
        x, eps_p,
        params["w1"], params["b1"],
        params["w23"], params["b23"],
        params["w4"], params["b4"],
        params["w5"], params["b5"],
    )
    try:
        rec, mulv = make_call(True)(*args)
    except Exception:
        # Fallback if this JAX build rejects pipeline_mode=pl.Buffered(1).
        rec, mulv = make_call(False)(*args)

    rec = rec[:B]
    mu = mulv[:B, :Z_DIM]
    log_var = mulv[:B, Z_PAD:Z_PAD + Z_DIM]
    return rec, mu, log_var


def init_params(key):
    """Deterministic parameter init (Linear weights ~ U(-1/sqrt(fan_in), ...)).

    Weights are stored (in_features, out_features) in bfloat16 (MXU-native);
    biases are (1, out_features) in float32.  fc2/fc3 are packed into a fused,
    128-lane padded head w23/b23 (mu cols [0,128), log_var cols [128,256));
    fc4's weight is padded with zero rows to a K=128 contraction.
    """
    def linear(key, fan_in, fan_out):
        kw, kb = jax.random.split(key)
        bound = 1.0 / jnp.sqrt(fan_in)
        w = jax.random.uniform(kw, (fan_in, fan_out), jnp.float32, -bound, bound)
        b = jax.random.uniform(kb, (1, fan_out), jnp.float32, -bound, bound)
        return w, b

    keys = jax.random.split(key, 5)
    w1, b1 = linear(keys[0], IMAGE_SIZE, HIDDEN_DIM)
    w2, b2 = linear(keys[1], HIDDEN_DIM, Z_DIM)
    w3, b3 = linear(keys[2], HIDDEN_DIM, Z_DIM)
    w4, b4 = linear(keys[3], Z_DIM, HIDDEN_DIM)
    w5, b5 = linear(keys[4], HIDDEN_DIM, IMAGE_SIZE)

    w23 = jnp.zeros((HIDDEN_DIM, 2 * Z_PAD), jnp.float32)
    w23 = w23.at[:, :Z_DIM].set(w2).at[:, Z_PAD:Z_PAD + Z_DIM].set(w3)
    b23 = jnp.zeros((1, 2 * Z_PAD), jnp.float32)
    b23 = b23.at[:, :Z_DIM].set(b2[0]).at[:, Z_PAD:Z_PAD + Z_DIM].set(b3[0])

    w4p = jnp.zeros((Z_PAD, HIDDEN_DIM), jnp.float32).at[:Z_DIM].set(w4)

    bf16 = jnp.bfloat16
    return dict(
        w1=w1.astype(bf16), b1=b1,
        w23=w23.astype(bf16), b23=b23,
        w4=w4p.astype(bf16), b4=b4,
        w5=w5.astype(bf16), b5=b5,
    )


def vae_forward_ref(x, eps, p):
    """Pure-JAX reference mirroring the PyTorch forward with the same
    bf16-weight / f32-accumulation / lane-padding numerics as the kernel."""
    def mm(a, w):
        return jnp.dot(a.astype(jnp.bfloat16), w,
                       preferred_element_type=jnp.float32)

    h = jax.nn.relu(mm(x, p["w1"]) + p["b1"])
    mulv = mm(h, p["w23"]) + p["b23"]
    mu = mulv[:, :Z_DIM]
    log_var = mulv[:, Z_PAD:Z_PAD + Z_DIM]
    std = jnp.exp(log_var / 2.0)
    z = mu + eps * std
    z_full = jnp.zeros((x.shape[0], Z_PAD), jnp.float32).at[:, :Z_DIM].set(z)
    h2 = jax.nn.relu(mm(z_full, p["w4"]) + p["b4"])
    rec = jax.nn.sigmoid(mm(h2, p["w5"]) + p["b5"])
    return rec, mu, log_var


if __name__ == "__main__":
    key = jax.random.PRNGKey(0)
    k_param, k_x, k_eps = jax.random.split(key, 3)

    B = 8
    params = init_params(k_param)
    x = jax.random.uniform(k_x, (B, IMAGE_SIZE), jnp.float32)   # MNIST-like pixels in [0,1)
    eps = jax.random.normal(k_eps, (B, Z_DIM), jnp.float32)     # reparameterization noise

    rec, mu, log_var = vae_forward(x, eps, params)
    jax.block_until_ready((rec, mu, log_var))

    # sanity check against pure-JAX reference (same mixed-precision scheme)
    rec_r, mu_r, lv_r = vae_forward_ref(x, eps, params)
    assert rec.shape == (B, IMAGE_SIZE) and rec.dtype == jnp.bfloat16
    assert mu.shape == (B, Z_DIM) and log_var.shape == (B, Z_DIM)
    assert jnp.allclose(rec.astype(jnp.float32), rec_r, atol=8e-3, rtol=2e-2)
    assert jnp.allclose(mu, mu_r, atol=2e-3, rtol=2e-3)
    assert jnp.allclose(log_var, lv_r, atol=2e-3, rtol=2e-3)

    print("KERNEL_OK")
</pallas_src>

<mosaic_0001>
module attributes {stable_mosaic.version = 11 : i64} {
  func.func @vae_forward_kernel(%arg0: i32, %arg1: memref<8x784xbf16, #tpu.memory_space<vmem>>, %arg2: memref<8x128xf32, #tpu.memory_space<vmem>>, %arg3: memref<784x400xbf16, #tpu.memory_space<vmem>>, %arg4: memref<1x400xf32, #tpu.memory_space<vmem>>, %arg5: memref<400x256xbf16, #tpu.memory_space<vmem>>, %arg6: memref<1x256xf32, #tpu.memory_space<vmem>>, %arg7: memref<128x400xbf16, #tpu.memory_space<vmem>>, %arg8: memref<1x400xf32, #tpu.memory_space<vmem>>, %arg9: memref<400x784xbf16, #tpu.memory_space<vmem>>, %arg10: memref<1x784xf32, #tpu.memory_space<vmem>>, %arg11: memref<8x784xbf16, #tpu.memory_space<vmem>>, %arg12: memref<8x256xf32, #tpu.memory_space<vmem>>) attributes {dimension_semantics = [#tpu.dimension_semantics<parallel>], iteration_bounds = array<i64: 1>, scalar_prefetch = 0 : i64, scratch_operands = 0 : i64, tpu.core_type = #tpu.core_type<tc>, window_params = [{transform_indices = @transform_0, window_bounds = array<i64: 8, 784>}, {transform_indices = @transform_1, window_bounds = array<i64: 8, 128>}, {pipeline_mode = #tpu.pipeline_mode<synchronous>, transform_indices = @transform_2, window_bounds = array<i64: 784, 400>}, {pipeline_mode = #tpu.pipeline_mode<synchronous>, transform_indices = @transform_3, window_bounds = array<i64: 1, 400>}, {pipeline_mode = #tpu.pipeline_mode<synchronous>, transform_indices = @transform_4, window_bounds = array<i64: 400, 256>}, {pipeline_mode = #tpu.pipeline_mode<synchronous>, transform_indices = @transform_5, window_bounds = array<i64: 1, 256>}, {pipeline_mode = #tpu.pipeline_mode<synchronous>, transform_indices = @transform_6, window_bounds = array<i64: 128, 400>}, {pipeline_mode = #tpu.pipeline_mode<synchronous>, transform_indices = @transform_7, window_bounds = array<i64: 1, 400>}, {pipeline_mode = #tpu.pipeline_mode<synchronous>, transform_indices = @transform_8, window_bounds = array<i64: 400, 784>}, {pipeline_mode = #tpu.pipeline_mode<synchronous>, transform_indices = @transform_9, window_bounds = array<i64: 1, 784>}, {transform_indices = @transform_10, window_bounds = array<i64: 8, 784>}, {transform_indices = @transform_11, window_bounds = array<i64: 8, 256>}]} {
    %c0 = arith.constant 0 : index
    %c0_0 = arith.constant 0 : index
    %0 = vector.load %arg1[%c0, %c0_0] : memref<8x784xbf16, #tpu.memory_space<vmem>>, vector<8x784xbf16>
    %c0_1 = arith.constant 0 : index
    %c0_2 = arith.constant 0 : index
    %1 = vector.load %arg2[%c0_1, %c0_2] : memref<8x128xf32, #tpu.memory_space<vmem>>, vector<8x128xf32>
    %c0_3 = arith.constant 0 : index
    %c0_4 = arith.constant 0 : index
    %2 = vector.load %arg3[%c0_3, %c0_4] : memref<784x400xbf16, #tpu.memory_space<vmem>>, vector<784x400xbf16>
    %cst = arith.constant dense<0.000000e+00> : vector<8x400xf32>
    %3 = tpu.matmul %0, %2, %cst {dimension_numbers = #tpu.dot_dimension_numbers<[1], [0], [0], [1], [0, 0, 1, 1], [], []>} : vector<8x784xbf16>, vector<784x400xbf16>, vector<8x400xf32> -> vector<8x400xf32>
    %c0_5 = arith.constant 0 : index
    %c0_6 = arith.constant 0 : index
    %4 = vector.load %arg4[%c0_5, %c0_6] : memref<1x400xf32, #tpu.memory_space<vmem>>, vector<1x400xf32>
    %5 = vector.broadcast %4 : vector<1x400xf32> to vector<8x400xf32>
    %6 = arith.addf %3, %5 : vector<8x400xf32>
    %cst_7 = arith.constant 0.000000e+00 : f32
    %7 = vector.broadcast %cst_7 : f32 to vector<8x400xf32>
    %8 = arith.maximumf %6, %7 : vector<8x400xf32>
    %9 = arith.truncf %8 : vector<8x400xf32> to vector<8x400xbf16>
    %c0_8 = arith.constant 0 : index
    %c0_9 = arith.constant 0 : index
    %10 = vector.load %arg5[%c0_8, %c0_9] : memref<400x256xbf16, #tpu.memory_space<vmem>>, vector<400x256xbf16>
    %cst_10 = arith.constant dense<0.000000e+00> : vector<8x256xf32>
    %11 = tpu.matmul %9, %10, %cst_10 {dimension_numbers = #tpu.dot_dimension_numbers<[1], [0], [0], [1], [0, 0, 1, 1], [], []>} : vector<8x400xbf16>, vector<400x256xbf16>, vector<8x256xf32> -> vector<8x256xf32>
    %c0_11 = arith.constant 0 : index
    %c0_12 = arith.constant 0 : index
    %12 = vector.load %arg6[%c0_11, %c0_12] : memref<1x256xf32, #tpu.memory_space<vmem>>, vector<1x256xf32>
    %13 = vector.broadcast %12 : vector<1x256xf32> to vector<8x256xf32>
    %14 = arith.addf %11, %13 : vector<8x256xf32>
    %15 = vector.extract_strided_slice %14 {offsets = [0, 0], sizes = [8, 128], strides = [1, 1]} : vector<8x256xf32> to vector<8x128xf32>
    %16 = vector.extract_strided_slice %14 {offsets = [0, 128], sizes = [8, 128], strides = [1, 1]} : vector<8x256xf32> to vector<8x128xf32>
    %cst_13 = arith.constant 5.000000e-01 : f32
    %17 = vector.broadcast %cst_13 : f32 to vector<8x128xf32>
    %18 = arith.mulf %16, %17 : vector<8x128xf32>
    %19 = math.exp %18 : vector<8x128xf32>
    %20 = arith.mulf %1, %19 : vector<8x128xf32>
    %21 = arith.addf %15, %20 : vector<8x128xf32>
    %22 = arith.truncf %21 : vector<8x128xf32> to vector<8x128xbf16>
    %c0_14 = arith.constant 0 : index
    %c0_15 = arith.constant 0 : index
    %23 = vector.load %arg7[%c0_14, %c0_15] : memref<128x400xbf16, #tpu.memory_space<vmem>>, vector<128x400xbf16>
    %cst_16 = arith.constant dense<0.000000e+00> : vector<8x400xf32>
    %24 = tpu.matmul %22, %23, %cst_16 {dimension_numbers = #tpu.dot_dimension_numbers<[1], [0], [0], [1], [0, 0, 1, 1], [], []>} : vector<8x128xbf16>, vector<128x400xbf16>, vector<8x400xf32> -> vector<8x400xf32>
    %c0_17 = arith.constant 0 : index
    %c0_18 = arith.constant 0 : index
    %25 = vector.load %arg8[%c0_17, %c0_18] : memref<1x400xf32, #tpu.memory_space<vmem>>, vector<1x400xf32>
    %26 = vector.broadcast %25 : vector<1x400xf32> to vector<8x400xf32>
    %27 = arith.addf %24, %26 : vector<8x400xf32>
    %cst_19 = arith.constant 0.000000e+00 : f32
    %28 = vector.broadcast %cst_19 : f32 to vector<8x400xf32>
    %29 = arith.maximumf %27, %28 : vector<8x400xf32>
    %30 = arith.truncf %29 : vector<8x400xf32> to vector<8x400xbf16>
    %c0_20 = arith.constant 0 : index
    %c0_21 = arith.constant 0 : index
    %31 = vector.load %arg9[%c0_20, %c0_21] : memref<400x784xbf16, #tpu.memory_space<vmem>>, vector<400x784xbf16>
    %cst_22 = arith.constant dense<0.000000e+00> : vector<8x784xf32>
    %32 = tpu.matmul %30, %31, %cst_22 {dimension_numbers = #tpu.dot_dimension_numbers<[1], [0], [0], [1], [0, 0, 1, 1], [], []>} : vector<8x400xbf16>, vector<400x784xbf16>, vector<8x784xf32> -> vector<8x784xf32>
    %c0_23 = arith.constant 0 : index
    %c0_24 = arith.constant 0 : index
    %33 = vector.load %arg10[%c0_23, %c0_24] : memref<1x784xf32, #tpu.memory_space<vmem>>, vector<1x784xf32>
    %34 = vector.broadcast %33 : vector<1x784xf32> to vector<8x784xf32>
    %35 = arith.addf %32, %34 : vector<8x784xf32>
    %36 = arith.negf %35 : vector<8x784xf32>
    %37 = math.exp %36 : vector<8x784xf32>
    %cst_25 = arith.constant 1.000000e+00 : f32
    %38 = vector.broadcast %cst_25 : f32 to vector<8x784xf32>
    %39 = arith.addf %38, %37 : vector<8x784xf32>
    %40 = arith.divf %38, %39 : vector<8x784xf32>
    %41 = arith.truncf %40 : vector<8x784xf32> to vector<8x784xbf16>
    %c0_26 = arith.constant 0 : index
    %c0_27 = arith.constant 0 : index
    %42 = vector.load %arg11[%c0_26, %c0_27] : memref<8x784xbf16, #tpu.memory_space<vmem>>, vector<8x784xbf16>
    tpu.vector_store %arg11[%c0_26, %c0_27], %41 {strides = array<i32>} : memref<8x784xbf16, #tpu.memory_space<vmem>>, vector<8x784xbf16>,
    %c0_28 = arith.constant 0 : index
    %c0_29 = arith.constant 0 : index
    %43 = vector.load %arg12[%c0_28, %c0_29] : memref<8x256xf32, #tpu.memory_space<vmem>>, vector<8x256xf32>
    tpu.vector_store %arg12[%c0_28, %c0_29], %14 {strides = array<i32>} : memref<8x256xf32, #tpu.memory_space<vmem>>, vector<8x256xf32>,
    return
  }
  func.func @transform_0(%arg0: i32) -> (i32, i32) {
    %c0_i32 = arith.constant 0 : i32
    %c0_i32_0 = arith.constant 0 : i32
    return %arg0, %c0_i32 : i32, i32
  }
  func.func @transform_1(%arg0: i32) -> (i32, i32) {
    %c0_i32 = arith.constant 0 : i32
    %c0_i32_0 = arith.constant 0 : i32
    return %arg0, %c0_i32 : i32, i32
  }
  func.func @transform_2(%arg0: i32) -> (i32, i32) {
    %c0_i32 = arith.constant 0 : i32
    %c0_i32_0 = arith.constant 0 : i32
    %c0_i32_1 = arith.constant 0 : i32
    return %c0_i32, %c0_i32_0 : i32, i32
  }
  func.func @transform_3(%arg0: i32) -> (i32, i32) {
    %c0_i32 = arith.constant 0 : i32
    %c0_i32_0 = arith.constant 0 : i32
    %c0_i32_1 = arith.constant 0 : i32
    return %c0_i32, %c0_i32_0 : i32, i32
  }
  func.func @transform_4(%arg0: i32) -> (i32, i32) {
    %c0_i32 = arith.constant 0 : i32
    %c0_i32_0 = arith.constant 0 : i32
    %c0_i32_1 = arith.constant 0 : i32
    return %c0_i32, %c0_i32_0 : i32, i32
  }
  func.func @transform_5(%arg0: i32) -> (i32, i32) {
    %c0_i32 = arith.constant 0 : i32
    %c0_i32_0 = arith.constant 0 : i32
    %c0_i32_1 = arith.constant 0 : i32
    return %c0_i32, %c0_i32_0 : i32, i32
  }
  func.func @transform_6(%arg0: i32) -> (i32, i32) {
    %c0_i32 = arith.constant 0 : i32
    %c0_i32_0 = arith.constant 0 : i32
    %c0_i32_1 = arith.constant 0 : i32
    return %c0_i32, %c0_i32_0 : i32, i32
  }
  func.func @transform_7(%arg0: i32) -> (i32, i32) {
    %c0_i32 = arith.constant 0 : i32
    %c0_i32_0 = arith.constant 0 : i32
    %c0_i32_1 = arith.constant 0 : i32
    return %c0_i32, %c0_i32_0 : i32, i32
  }
  func.func @transform_8(%arg0: i32) -> (i32, i32) {
    %c0_i32 = arith.constant 0 : i32
    %c0_i32_0 = arith.constant 0 : i32
    %c0_i32_1 = arith.constant 0 : i32
    return %c0_i32, %c0_i32_0 : i32, i32
  }
  func.func @transform_9(%arg0: i32) -> (i32, i32) {
    %c0_i32 = arith.constant 0 : i32
    %c0_i32_0 = arith.constant 0 : i32
    %c0_i32_1 = arith.constant 0 : i32
    return %c0_i32, %c0_i32_0 : i32, i32
  }
  func.func @transform_10(%arg0: i32) -> (i32, i32) {
    %c0_i32 = arith.constant 0 : i32
    %c0_i32_0 = arith.constant 0 : i32
    return %arg0, %c0_i32 : i32, i32
  }
  func.func @transform_11(%arg0: i32) -> (i32, i32) {
    %c0_i32 = arith.constant 0 : i32
    %c0_i32_0 = arith.constant 0 : i32
    return %arg0, %c0_i32 : i32, i32
  }
}

module attributes {stable_mosaic.version = 11 : i64} {
  func.func @vae_forward_kernel(%arg0: i32, %arg1: memref<8x784xbf16, #tpu.memory_space<vmem>>, %arg2: memref<8x128xf32, #tpu.memory_space<vmem>>, %arg3: memref<784x400xbf16, #tpu.memory_space<vmem>>, %arg4: memref<1x400xf32, #tpu.memory_space<vmem>>, %arg5: memref<400x256xbf16, #tpu.memory_space<vmem>>, %arg6: memref<1x256xf32, #tpu.memory_space<vmem>>, %arg7: memref<128x400xbf16, #tpu.memory_space<vmem>>, %arg8: memref<1x400xf32, #tpu.memory_space<vmem>>, %arg9: memref<400x784xbf16, #tpu.memory_space<vmem>>, %arg10: memref<1x784xf32, #tpu.memory_space<vmem>>, %arg11: memref<8x784xbf16, #tpu.memory_space<vmem>>, %arg12: memref<8x256xf32, #tpu.memory_space<vmem>>) attributes {dimension_semantics = [#tpu.dimension_semantics<parallel>], iteration_bounds = array<i64: 1>, scalar_prefetch = 0 : i64, scratch_operands = 0 : i64, tpu.core_type = #tpu.core_type<tc>, window_params = [{transform_indices = @transform_0, window_bounds = array<i64: 8, 784>}, {transform_indices = @transform_1, window_bounds = array<i64: 8, 128>}, {pipeline_mode = #tpu.pipeline_mode<synchronous>, transform_indices = @transform_2, window_bounds = array<i64: 784, 400>}, {pipeline_mode = #tpu.pipeline_mode<synchronous>, transform_indices = @transform_3, window_bounds = array<i64: 1, 400>}, {pipeline_mode = #tpu.pipeline_mode<synchronous>, transform_indices = @transform_4, window_bounds = array<i64: 400, 256>}, {pipeline_mode = #tpu.pipeline_mode<synchronous>, transform_indices = @transform_5, window_bounds = array<i64: 1, 256>}, {pipeline_mode = #tpu.pipeline_mode<synchronous>, transform_indices = @transform_6, window_bounds = array<i64: 128, 400>}, {pipeline_mode = #tpu.pipeline_mode<synchronous>, transform_indices = @transform_7, window_bounds = array<i64: 1, 400>}, {pipeline_mode = #tpu.pipeline_mode<synchronous>, transform_indices = @transform_8, window_bounds = array<i64: 400, 784>}, {pipeline_mode = #tpu.pipeline_mode<synchronous>, transform_indices = @transform_9, window_bounds = array<i64: 1, 784>}, {transform_indices = @transform_10, window_bounds = array<i64: 8, 784>}, {transform_indices = @transform_11, window_bounds = array<i64: 8, 256>}]} {
    %c0 = arith.constant 0 : index
    %c0_0 = arith.constant 0 : index
    %0 = vector.load %arg1[%c0, %c0_0] : memref<8x784xbf16, #tpu.memory_space<vmem>>, vector<8x784xbf16>
    %c0_1 = arith.constant 0 : index
    %c0_2 = arith.constant 0 : index
    %1 = vector.load %arg2[%c0_1, %c0_2] : memref<8x128xf32, #tpu.memory_space<vmem>>, vector<8x128xf32>
    %c0_3 = arith.constant 0 : index
    %c0_4 = arith.constant 0 : index
    %2 = vector.load %arg3[%c0_3, %c0_4] : memref<784x400xbf16, #tpu.memory_space<vmem>>, vector<784x400xbf16>
    %cst = arith.constant dense<0.000000e+00> : vector<8x400xf32>
    %3 = tpu.matmul %0, %2, %cst {dimension_numbers = #tpu.dot_dimension_numbers<[1], [0], [0], [1], [0, 0, 1, 1], [], []>} : vector<8x784xbf16>, vector<784x400xbf16>, vector<8x400xf32> -> vector<8x400xf32>
    %c0_5 = arith.constant 0 : index
    %c0_6 = arith.constant 0 : index
    %4 = vector.load %arg4[%c0_5, %c0_6] : memref<1x400xf32, #tpu.memory_space<vmem>>, vector<1x400xf32>
    %5 = vector.broadcast %4 : vector<1x400xf32> to vector<8x400xf32>
    %6 = arith.addf %3, %5 : vector<8x400xf32>
    %cst_7 = arith.constant 0.000000e+00 : f32
    %7 = vector.broadcast %cst_7 : f32 to vector<8x400xf32>
    %8 = arith.maximumf %6, %7 : vector<8x400xf32>
    %9 = arith.truncf %8 : vector<8x400xf32> to vector<8x400xbf16>
    %c0_8 = arith.constant 0 : index
    %c0_9 = arith.constant 0 : index
    %10 = vector.load %arg5[%c0_8, %c0_9] : memref<400x256xbf16, #tpu.memory_space<vmem>>, vector<400x256xbf16>
    %cst_10 = arith.constant dense<0.000000e+00> : vector<8x256xf32>
    %11 = tpu.matmul %9, %10, %cst_10 {dimension_numbers = #tpu.dot_dimension_numbers<[1], [0], [0], [1], [0, 0, 1, 1], [], []>} : vector<8x400xbf16>, vector<400x256xbf16>, vector<8x256xf32> -> vector<8x256xf32>
    %c0_11 = arith.constant 0 : index
    %c0_12 = arith.constant 0 : index
    %12 = vector.load %arg6[%c0_11, %c0_12] : memref<1x256xf32, #tpu.memory_space<vmem>>, vector<1x256xf32>
    %13 = vector.broadcast %12 : vector<1x256xf32> to vector<8x256xf32>
    %14 = arith.addf %11, %13 : vector<8x256xf32>
    %15 = vector.extract_strided_slice %14 {offsets = [0, 0], sizes = [8, 128], strides = [1, 1]} : vector<8x256xf32> to vector<8x128xf32>
    %16 = vector.extract_strided_slice %14 {offsets = [0, 128], sizes = [8, 128], strides = [1, 1]} : vector<8x256xf32> to vector<8x128xf32>
    %cst_13 = arith.constant 5.000000e-01 : f32
    %17 = vector.broadcast %cst_13 : f32 to vector<8x128xf32>
    %18 = arith.mulf %16, %17 : vector<8x128xf32>
    %19 = math.exp %18 : vector<8x128xf32>
    %20 = arith.mulf %1, %19 : vector<8x128xf32>
    %21 = arith.addf %15, %20 : vector<8x128xf32>
    %22 = arith.truncf %21 : vector<8x128xf32> to vector<8x128xbf16>
    %c0_14 = arith.constant 0 : index
    %c0_15 = arith.constant 0 : index
    %23 = vector.load %arg7[%c0_14, %c0_15] : memref<128x400xbf16, #tpu.memory_space<vmem>>, vector<128x400xbf16>
    %cst_16 = arith.constant dense<0.000000e+00> : vector<8x400xf32>
    %24 = tpu.matmul %22, %23, %cst_16 {dimension_numbers = #tpu.dot_dimension_numbers<[1], [0], [0], [1], [0, 0, 1, 1], [], []>} : vector<8x128xbf16>, vector<128x400xbf16>, vector<8x400xf32> -> vector<8x400xf32>
    %c0_17 = arith.constant 0 : index
    %c0_18 = arith.constant 0 : index
    %25 = vector.load %arg8[%c0_17, %c0_18] : memref<1x400xf32, #tpu.memory_space<vmem>>, vector<1x400xf32>
    %26 = vector.broadcast %25 : vector<1x400xf32> to vector<8x400xf32>
    %27 = arith.addf %24, %26 : vector<8x400xf32>
    %cst_19 = arith.constant 0.000000e+00 : f32
    %28 = vector.broadcast %cst_19 : f32 to vector<8x400xf32>
    %29 = arith.maximumf %27, %28 : vector<8x400xf32>
    %30 = arith.truncf %29 : vector<8x400xf32> to vector<8x400xbf16>
    %c0_20 = arith.constant 0 : index
    %c0_21 = arith.constant 0 : index
    %31 = vector.load %arg9[%c0_20, %c0_21] : memref<400x784xbf16, #tpu.memory_space<vmem>>, vector<400x784xbf16>
    %cst_22 = arith.constant dense<0.000000e+00> : vector<8x784xf32>
    %32 = tpu.matmul %30, %31, %cst_22 {dimension_numbers = #tpu.dot_dimension_numbers<[1], [0], [0], [1], [0, 0, 1, 1], [], []>} : vector<8x400xbf16>, vector<400x784xbf16>, vector<8x784xf32> -> vector<8x784xf32>
    %c0_23 = arith.constant 0 : index
    %c0_24 = arith.constant 0 : index
    %33 = vector.load %arg10[%c0_23, %c0_24] : memref<1x784xf32, #tpu.memory_space<vmem>>, vector<1x784xf32>
    %34 = vector.broadcast %33 : vector<1x784xf32> to vector<8x784xf32>
    %35 = arith.addf %32, %34 : vector<8x784xf32>
    %36 = arith.negf %35 : vector<8x784xf32>
    %37 = math.exp %36 : vector<8x784xf32>
    %cst_25 = arith.constant 1.000000e+00 : f32
    %38 = vector.broadcast %cst_25 : f32 to vector<8x784xf32>
    %39 = arith.addf %38, %37 : vector<8x784xf32>
    %40 = arith.divf %38, %39 : vector<8x784xf32>
    %41 = arith.truncf %40 : vector<8x784xf32> to vector<8x784xbf16>
    %c0_26 = arith.constant 0 : index
    %c0_27 = arith.constant 0 : index
    %42 = vector.load %arg11[%c0_26, %c0_27] : memref<8x784xbf16, #tpu.memory_space<vmem>>, vector<8x784xbf16>
    tpu.vector_store %arg11[%c0_26, %c0_27], %41 {strides = array<i32>} : memref<8x784xbf16, #tpu.memory_space<vmem>>, vector<8x784xbf16>,
    %c0_28 = arith.constant 0 : index
    %c0_29 = arith.constant 0 : index
    %43 = vector.load %arg12[%c0_28, %c0_29] : memref<8x256xf32, #tpu.memory_space<vmem>>, vector<8x256xf32>
    tpu.vector_store %arg12[%c0_28, %c0_29], %14 {strides = array<i32>} : memref<8x256xf32, #tpu.memory_space<vmem>>, vector<8x256xf32>,
    return
  }
  func.func @transform_0(%arg0: i32) -> (i32, i32) {
    %c0_i32 = arith.constant 0 : i32
    %c0_i32_0 = arith.constant 0 : i32
    return %arg0, %c0_i32 : i32, i32
  }
  func.func @transform_1(%arg0: i32) -> (i32, i32) {
    %c0_i32 = arith.constant 0 : i32
    %c0_i32_0 = arith.constant 0 : i32
    return %arg0, %c0_i32 : i32, i32
  }
  func.func @transform_2(%arg0: i32) -> (i32, i32) {
    %c0_i32 = arith.constant 0 : i32
    %c0_i32_0 = arith.constant 0 : i32
    %c0_i32_1 = arith.constant 0 : i32
    return %c0_i32, %c0_i32_0 : i32, i32
  }
  func.func @transform_3(%arg0: i32) -> (i32, i32) {
    %c0_i32 = arith.constant 0 : i32
    %c0_i32_0 = arith.constant 0 : i32
    %c0_i32_1 = arith.constant 0 : i32
    return %c0_i32, %c0_i32_0 : i32, i32
  }
  func.func @transform_4(%arg0: i32) -> (i32, i32) {
    %c0_i32 = arith.constant 0 : i32
    %c0_i32_0 = arith.constant 0 : i32
    %c0_i32_1 = arith.constant 0 : i32
    return %c0_i32, %c0_i32_0 : i32, i32
  }
  func.func @transform_5(%arg0: i32) -> (i32, i32) {
    %c0_i32 = arith.constant 0 : i32
    %c0_i32_0 = arith.constant 0 : i32
    %c0_i32_1 = arith.constant 0 : i32
    return %c0_i32, %c0_i32_0 : i32, i32
  }
  func.func @transform_6(%arg0: i32) -> (i32, i32) {
    %c0_i32 = arith.constant 0 : i32
    %c0_i32_0 = arith.constant 0 : i32
    %c0_i32_1 = arith.constant 0 : i32
    return %c0_i32, %c0_i32_0 : i32, i32
  }
  func.func @transform_7(%arg0: i32) -> (i32, i32) {
    %c0_i32 = arith.constant 0 : i32
    %c0_i32_0 = arith.constant 0 : i32
    %c0_i32_1 = arith.constant 0 : i32
    return %c0_i32, %c0_i32_0 : i32, i32
  }
  func.func @transform_8(%arg0: i32) -> (i32, i32) {
    %c0_i32 = arith.constant 0 : i32
    %c0_i32_0 = arith.constant 0 : i32
    %c0_i32_1 = arith.constant 0 : i32
    return %c0_i32, %c0_i32_0 : i32, i32
  }
  func.func @transform_9(%arg0: i32) -> (i32, i32) {
    %c0_i32 = arith.constant 0 : i32
    %c0_i32_0 = arith.constant 0 : i32
    %c0_i32_1 = arith.constant 0 : i32
    return %c0_i32, %c0_i32_0 : i32, i32
  }
  func.func @transform_10(%arg0: i32) -> (i32, i32) {
    %c0_i32 = arith.constant 0 : i32
    %c0_i32_0 = arith.constant 0 : i32
    return %arg0, %c0_i32 : i32, i32
  }
  func.func @transform_11(%arg0: i32) -> (i32, i32) {
    %c0_i32 = arith.constant 0 : i32
    %c0_i32_0 = arith.constant 0 : i32
    return %arg0, %c0_i32 : i32, i32
  }
}

</mosaic_0001>

<llo_original>
// kernel: tpu_custom_call.1
$region0: #{tpu_custom_call.1}
  #allocation0 [shape = 'u32[]', space=smem, size = 0x4, offset = 0x4, fixed_abs, tag = 'smem constant byte address 0x4 - core index']
  #allocation1 [shape = 'u32[144,128]{1,0:T(1,128)}', space=vmem, size = 0x12000, scoped, tag = 'internal scratch']
  %s0 = inlined_call_operand.vmem [shape: bf16[8,784], index: 0, kind: input, shape index: {}]
  %s1 = inlined_call_operand.vmem [shape: f32[8,128], index: 1, kind: input, shape index: {}]
  %s2 = inlined_call_operand.vmem [shape: bf16[784,400], index: 2, kind: input, shape index: {}]
  %s3 = inlined_call_operand.vmem [shape: f32[1,400], index: 3, kind: input, shape index: {}]
  %s4 = inlined_call_operand.vmem [shape: bf16[400,256], index: 4, kind: input, shape index: {}]
  %s5 = inlined_call_operand.vmem [shape: f32[1,256], index: 5, kind: input, shape index: {}]
  %s6 = inlined_call_operand.vmem [shape: bf16[128,400], index: 6, kind: input, shape index: {}]
  %s7 = inlined_call_operand.vmem [shape: f32[1,400], index: 7, kind: input, shape index: {}]
  %s8 = inlined_call_operand.vmem [shape: bf16[400,784], index: 8, kind: input, shape index: {}]
  %s9 = inlined_call_operand.vmem [shape: f32[1,784], index: 9, kind: input, shape index: {}]
  %s10 = inlined_call_operand.hbm [shape: bf16[8,784], index: 10, kind: output, shape index: {0}]
  %s11 = inlined_call_operand.hbm [shape: f32[8,256], index: 11, kind: output, shape index: {1}]
  %12 = xla_tuple %s10, %s11
  %s13 = sld [smem:[#allocation0]]
  $region58: #{tpu_custom_call.1} parent=0
    _
  %s15 = ssub.s32 1, %s13
  %s16 = scalar_select 0, %s15, %s13
  $region1: #{tpu_custom_call.1} parent=0
    #allocation2 [shape = 'u8[14336]{0}', space=vmem, size = 0x3800, scoped, tag = 'output window, operand 0, single buffered']
    #allocation3 [shape = 's32[1]{0}', space=sflag, size = 0x4, scoped, tag = 'scoped memory for tpu_custom_call.1']
    #allocation4 [shape = 'u8[8192]{0}', space=vmem, size = 0x2000, scoped, tag = 'output window, operand 1, single buffered']
    #allocation5 [shape = 's32[1]{0}', space=sflag, size = 0x4, scoped, tag = 'scoped memory for tpu_custom_call.1']
    %17 = vsyncpa [#allocation3], 0
    %18 = vsyncpa [#allocation5], 0
    // Predicated region
    $region2: #{tpu_custom_call.1} parent=1 // pred_check
      _
    $region3: #{tpu_custom_call.1} parent=1 // pred_check_branch
      %20 = sbr.rel (0) target = $region5
    $region4: #{tpu_custom_call.1} parent=1 // pred_region
      _
    $region5: #{tpu_custom_call.1} parent=1 // pred_fallthru
      _
    // Predicated region
    $region6: #{tpu_custom_call.1} parent=1 // pred_check
      _
    $region7: #{tpu_custom_call.1} parent=1 // pred_check_branch
      %22 = sbr.rel (0) target = $region9
    $region8: #{tpu_custom_call.1} parent=1 // pred_region
      _
    $region9: #{tpu_custom_call.1} parent=1 // pred_fallthru
      _
    // Predicated region
    $region10: #{tpu_custom_call.1} parent=1 // pred_check
      _
    $region11: #{tpu_custom_call.1} parent=1 // pred_check_branch
      %24 = sbr.rel (0) target = $region13
    $region12: #{tpu_custom_call.1} parent=1 // pred_region
      _
    $region13: #{tpu_custom_call.1} parent=1 // pred_fallthru
      _
    // Predicated region
    $region14: #{tpu_custom_call.1} parent=1 // pred_check
      _
    $region15: #{tpu_custom_call.1} parent=1 // pred_check_branch
      %26 = sbr.rel (0) target = $region17
    $region16: #{tpu_custom_call.1} parent=1 // pred_region
      _
    $region17: #{tpu_custom_call.1} parent=1 // pred_fallthru
      _
    // Predicated region
    $region18: #{tpu_custom_call.1} parent=1 // pred_check
      _
    $region19: #{tpu_custom_call.1} parent=1 // pred_check_branch
      %28 = sbr.rel (0) target = $region21
    $region20: #{tpu_custom_call.1} parent=1 // pred_region
      _
    $region21: #{tpu_custom_call.1} parent=1 // pred_fallthru
      _
    // Predicated region
    $region22: #{tpu_custom_call.1} parent=1 // pred_check
      _
    $region23: #{tpu_custom_call.1} parent=1 // pred_check_branch
      %30 = sbr.rel (0) target = $region25
    $region24: #{tpu_custom_call.1} parent=1 // pred_region
      _
    $region25: #{tpu_custom_call.1} parent=1 // pred_fallthru
      _
    // Predicated region
    $region26: #{tpu_custom_call.1} parent=1 // pred_check
      _
    $region27: #{tpu_custom_call.1} parent=1 // pred_check_branch
      %32 = sbr.rel (0) target = $region29
    $region28: #{tpu_custom_call.1} parent=1 // pred_region
      _
    $region29: #{tpu_custom_call.1} parent=1 // pred_fallthru
      _
    // Predicated region
    $region30: #{tpu_custom_call.1} parent=1 // pred_check
      _
    $region31: #{tpu_custom_call.1} parent=1 // pred_check_branch
      %34 = sbr.rel (0) target = $region33
    $region32: #{tpu_custom_call.1} parent=1 // pred_region
      _
    $region33: #{tpu_custom_call.1} parent=1 // pred_fallthru
      _
    // Predicated region
    $region34: #{tpu_custom_call.1} parent=1 // pred_check
      _
    $region35: #{tpu_custom_call.1} parent=1 // pred_check_branch
      %36 = sbr.rel (0) target = $region37
    $region36: #{tpu_custom_call.1} parent=1 // pred_region
      _
    $region37: #{tpu_custom_call.1} parent=1 // pred_fallthru
      _
    // Predicated region
    $region38: #{tpu_custom_call.1} parent=1 // pred_check
      _
    $region39: #{tpu_custom_call.1} parent=1 // pred_check_branch
      %38 = sbr.rel (0) target = $region41
    $region40: #{tpu_custom_call.1} parent=1 // pred_region
      _
    $region41: #{tpu_custom_call.1} parent=1 // pred_fallthru
      _
    %v40 = vld [vmem:[%s0] sm:$0xff]
    %v41 = vld [vmem:[%s0 + $0x8] sm:$0xff]
    %v42 = vld [vmem:[%s0 + $0x10] sm:$0xff]
    %v43 = vld [vmem:[%s0 + $0x18] sm:$0xf]
    %v44 = vld [vmem:[%s1] sm:$0xff]
    %v45 = vld [vmem:[%s2] sm:$0xff]
    %v46 = vld [vmem:[%s2 + $0x8] sm:$0xff]
    %v47 = vld [vmem:[%s2 + $0x10] sm:$0xff]
    %v48 = vld [vmem:[%s2 + $0x18] sm:$0xff]
    %v49 = vld [vmem:[%s2 + $0x20] sm:$0xff]
    %v50 = vld [vmem:[%s2 + $0x28] sm:$0xff]
    %v51 = vld [vmem:[%s2 + $0x30] sm:$0xff]
    %v52 = vld [vmem:[%s2 + $0x38] sm:$0xff]
    %v53 = vld [vmem:[%s2 + $0x40] sm:$0xff]
    %v54 = vld [vmem:[%s2 + $0x48] sm:$0xff]
    %v55 = vld [vmem:[%s2 + $0x50] sm:$0xff]
    %v56 = vld [vmem:[%s2 + $0x58] sm:$0xff]
    %v57 = vld [vmem:[%s2 + $0x60] sm:$0xff]
    %v58 = vld [vmem:[%s2 + $0x68] sm:$0xff]
    %v59 = vld [vmem:[%s2 + $0x70] sm:$0xff]
    %v60 = vld [vmem:[%s2 + $0x78] sm:$0xff]
    %v61 = vld [vmem:[%s2 + $0x80] sm:$0xff]
    %v62 = vld [vmem:[%s2 + $0x88] sm:$0xff]
    %v63 = vld [vmem:[%s2 + $0x90] sm:$0xff]
    %v64 = vld [vmem:[%s2 + $0x98] sm:$0xff]
    %v65 = vld [vmem:[%s2 + $0xa0] sm:$0xff]
    %v66 = vld [vmem:[%s2 + $0xa8] sm:$0xff]
    %v67 = vld [vmem:[%s2 + $0xb0] sm:$0xff]
    %v68 = vld [vmem:[%s2 + $0xb8] sm:$0xff]
    %v69 = vld [vmem:[%s2 + $0xc0] sm:$0xff]
    %v70 = vld [vmem:[%s2 + $0xc8] sm:$0xff]
    %v71 = vld [vmem:[%s2 + $0xd0] sm:$0xff]
    %v72 = vld [vmem:[%s2 + $0xd8] sm:$0xff]
    %v73 = vld [vmem:[%s2 + $0xe0] sm:$0xff]
    %v74 = vld [vmem:[%s2 + $0xe8] sm:$0xff]
    %v75 = vld [vmem:[%s2 + $0xf0] sm:$0xff]
    %v76 = vld [vmem:[%s2 + $0xf8] sm:$0xff]
    %v77 = vld [vmem:[%s2 + $0x100] sm:$0xff]
    %v78 = vld [vmem:[%s2 + $0x108] sm:$0xff]
    %v79 = vld [vmem:[%s2 + $0x110] sm:$0xff]
    %v80 = vld [vmem:[%s2 + $0x118] sm:$0xff]
    %v81 = vld [vmem:[%s2 + $0x120] sm:$0xff]
    %v82 = vld [vmem:[%s2 + $0x128] sm:$0xff]
    %v83 = vld [vmem:[%s2 + $0x130] sm:$0xff]
    %v84 = vld [vmem:[%s2 + $0x138] sm:$0xff]
    %v85 = vld [vmem:[%s2 + $0x140] sm:$0xff]
    %v86 = vld [vmem:[%s2 + $0x148] sm:$0xff]
    %v87 = vld [vmem:[%s2 + $0x150] sm:$0xff]
    %v88 = vld [vmem:[%s2 + $0x158] sm:$0xff]
    %v89 = vld [vmem:[%s2 + $0x160] sm:$0xff]
    %v90 = vld [vmem:[%s2 + $0x168] sm:$0xff]
    %v91 = vld [vmem:[%s2 + $0x170] sm:$0xff]
    %v92 = vld [vmem:[%s2 + $0x178] sm:$0xff]
    %v93 = vld [vmem:[%s2 + $0x180] sm:$0xff]
    %v94 = vld [vmem:[%s2 + $0x188] sm:$0xff]
    %v95 = vld [vmem:[%s2 + $0x190] sm:$0xff]
    %v96 = vld [vmem:[%s2 + $0x198] sm:$0xff]
    %v97 = vld [vmem:[%s2 + $0x1a0] sm:$0xff]
    %v98 = vld [vmem:[%s2 + $0x1a8] sm:$0xff]
    %v99 = vld [vmem:[%s2 + $0x1b0] sm:$0xff]
    %v100 = vld [vmem:[%s2 + $0x1b8] sm:$0xff]
    %v101 = vld [vmem:[%s2 + $0x1c0] sm:$0xff]
    %v102 = vld [vmem:[%s2 + $0x1c8] sm:$0xff]
    %v103 = vld [vmem:[%s2 + $0x1d0] sm:$0xff]
    %v104 = vld [vmem:[%s2 + $0x1d8] sm:$0xff]
    %v105 = vld [vmem:[%s2 + $0x1e0] sm:$0xff]
    %v106 = vld [vmem:[%s2 + $0x1e8] sm:$0xff]
    %v107 = vld [vmem:[%s2 + $0x1f0] sm:$0xff]
    %v108 = vld [vmem:[%s2 + $0x1f8] sm:$0xff]
    %v109 = vld [vmem:[%s2 + $0x200] sm:$0xff]
    %v110 = vld [vmem:[%s2 + $0x208] sm:$0xff]
    %v111 = vld [vmem:[%s2 + $0x210] sm:$0xff]
    %v112 = vld [vmem:[%s2 + $0x218] sm:$0xff]
    %v113 = vld [vmem:[%s2 + $0x220] sm:$0xff]
    %v114 = vld [vmem:[%s2 + $0x228] sm:$0xff]
    %v115 = vld [vmem:[%s2 + $0x230] sm:$0xff]
    %v116 = vld [vmem:[%s2 + $0x238] sm:$0xff]
    %v117 = vld [vmem:[%s2 + $0x240] sm:$0xff]
    %v118 = vld [vmem:[%s2 + $0x248] sm:$0xff]
    %v119 = vld [vmem:[%s2 + $0x250] sm:$0xff]
    %v120 = vld [vmem:[%s2 + $0x258] sm:$0xff]
    %v121 = vld [vmem:[%s2 + $0x260] sm:$0xff]
    %v122 = vld [vmem:[%s2 + $0x268] sm:$0xff]
    %v123 = vld [vmem:[%s2 + $0x270] sm:$0xff]
    %v124 = vld [vmem:[%s2 + $0x278] sm:$0xff]
    %v125 = vld [vmem:[%s2 + $0x280] sm:$0xff]
    %v126 = vld [vmem:[%s2 + $0x288] sm:$0xff]
    %v127 = vld [vmem:[%s2 + $0x290] sm:$0xff]
    %v128 = vld [vmem:[%s2 + $0x298] sm:$0xff]
    %v129 = vld [vmem:[%s2 + $0x2a0] sm:$0xff]
    %v130 = vld [vmem:[%s2 + $0x2a8] sm:$0xff]
    %v131 = vld [vmem:[%s2 + $0x2b0] sm:$0xff]
    %v132 = vld [vmem:[%s2 + $0x2b8] sm:$0xff]
    %v133 = vld [vmem:[%s2 + $0x2c0] sm:$0xff]
    %v134 = vld [vmem:[%s2 + $0x2c8] sm:$0xff]
    %v135 = vld [vmem:[%s2 + $0x2d0] sm:$0xff]
    %v136 = vld [vmem:[%s2 + $0x2d8] sm:$0xff]
    %v137 = vld [vmem:[%s2 + $0x2e0] sm:$0xff]
    %v138 = vld [vmem:[%s2 + $0x2e8] sm:$0xff]
    %v139 = vld [vmem:[%s2 + $0x2f0] sm:$0xff]
    %v140 = vld [vmem:[%s2 + $0x2f8] sm:$0xff]
    %v141 = vld [vmem:[%s2 + $0x300] sm:$0xff]
    %v142 = vld [vmem:[%s2 + $0x308] sm:$0xff]
    %v143 = vld [vmem:[%s2 + $0x310] sm:$0xff]
    %v144 = vld [vmem:[%s2 + $0x318] sm:$0xff]
    %v145 = vld [vmem:[%s2 + $0x320] sm:$0xff]
    %v146 = vld [vmem:[%s2 + $0x328] sm:$0xff]
    %v147 = vld [vmem:[%s2 + $0x330] sm:$0xff]
    %v148 = vld [vmem:[%s2 + $0x338] sm:$0xff]
    %v149 = vld [vmem:[%s2 + $0x340] sm:$0xff]
    %v150 = vld [vmem:[%s2 + $0x348] sm:$0xff]
    %v151 = vld [vmem:[%s2 + $0x350] sm:$0xff]
    %v152 = vld [vmem:[%s2 + $0x358] sm:$0xff]
    %v153 = vld [vmem:[%s2 + $0x360] sm:$0xff]
    %v154 = vld [vmem:[%s2 + $0x368] sm:$0xff]
    %v155 = vld [vmem:[%s2 + $0x370] sm:$0xff]
    %v156 = vld [vmem:[%s2 + $0x378] sm:$0xff]
    %v157 = vld [vmem:[%s2 + $0x380] sm:$0xff]
    %v158 = vld [vmem:[%s2 + $0x388] sm:$0xff]
    %v159 = vld [vmem:[%s2 + $0x390] sm:$0xff]
    %v160 = vld [vmem:[%s2 + $0x398] sm:$0xff]
    %v161 = vld [vmem:[%s2 + $0x3a0] sm:$0xff]
    %v162 = vld [vmem:[%s2 + $0x3a8] sm:$0xff]
    %v163 = vld [vmem:[%s2 + $0x3b0] sm:$0xff]
    %v164 = vld [vmem:[%s2 + $0x3b8] sm:$0xff]
    %v165 = vld [vmem:[%s2 + $0x3c0] sm:$0xff]
    %v166 = vld [vmem:[%s2 + $0x3c8] sm:$0xff]
    %v167 = vld [vmem:[%s2 + $0x3d0] sm:$0xff]
    %v168 = vld [vmem:[%s2 + $0x3d8] sm:$0xff]
    %v169 = vld [vmem:[%s2 + $0x3e0] sm:$0xff]
    %v170 = vld [vmem:[%s2 + $0x3e8] sm:$0xff]
    %v171 = vld [vmem:[%s2 + $0x3f0] sm:$0xff]
    %v172 = vld [vmem:[%s2 + $0x3f8] sm:$0xff]
    %v173 = vld [vmem:[%s2 + $0x400] sm:$0xff]
    %v174 = vld [vmem:[%s2 + $0x408] sm:$0xff]
    %v175 = vld [vmem:[%s2 + $0x410] sm:$0xff]
    %v176 = vld [vmem:[%s2 + $0x418] sm:$0xff]
    %v177 = vld [vmem:[%s2 + $0x420] sm:$0xff]
    %v178 = vld [vmem:[%s2 + $0x428] sm:$0xff]
    %v179 = vld [vmem:[%s2 + $0x430] sm:$0xff]
    %v180 = vld [vmem:[%s2 + $0x438] sm:$0xff]
    %v181 = vld [vmem:[%s2 + $0x440] sm:$0xff]
    %v182 = vld [vmem:[%s2 + $0x448] sm:$0xff]
    %v183 = vld [vmem:[%s2 + $0x450] sm:$0xff]
    %v184 = vld [vmem:[%s2 + $0x458] sm:$0xff]
    %v185 = vld [vmem:[%s2 + $0x460] sm:$0xff]
    %v186 = vld [vmem:[%s2 + $0x468] sm:$0xff]
    %v187 = vld [vmem:[%s2 + $0x470] sm:$0xff]
    %v188 = vld [vmem:[%s2 + $0x478] sm:$0xff]
    %v189 = vld [vmem:[%s2 + $0x480] sm:$0xff]
    %v190 = vld [vmem:[%s2 + $0x488] sm:$0xff]
    %v191 = vld [vmem:[%s2 + $0x490] sm:$0xff]
    %v192 = vld [vmem:[%s2 + $0x498] sm:$0xff]
    %v193 = vld [vmem:[%s2 + $0x4a0] sm:$0xff]
    %v194 = vld [vmem:[%s2 + $0x4a8] sm:$0xff]
    %v195 = vld [vmem:[%s2 + $0x4b0] sm:$0xff]
    %v196 = vld [vmem:[%s2 + $0x4b8] sm:$0xff]
    %v197 = vld [vmem:[%s2 + $0x4c0] sm:$0xff]
    %v198 = vld [vmem:[%s2 + $0x4c8] sm:$0xff]
    %v199 = vld [vmem:[%s2 + $0x4d0] sm:$0xff]
    %v200 = vld [vmem:[%s2 + $0x4d8] sm:$0xff]
    %v201 = vld [vmem:[%s2 + $0x4e0] sm:$0xff]
    %v202 = vld [vmem:[%s2 + $0x4e8] sm:$0xff]
    %v203 = vld [vmem:[%s2 + $0x4f0] sm:$0xff]
    %v204 = vld [vmem:[%s2 + $0x4f8] sm:$0xff]
    %v205 = vld [vmem:[%s2 + $0x500] sm:$0xff]
    %v206 = vld [vmem:[%s2 + $0x508] sm:$0xff]
    %v207 = vld [vmem:[%s2 + $0x510] sm:$0xff]
    %v208 = vld [vmem:[%s2 + $0x518] sm:$0xff]
    %v209 = vld [vmem:[%s2 + $0x520] sm:$0xff]
    %v210 = vld [vmem:[%s2 + $0x528] sm:$0xff]
    %v211 = vld [vmem:[%s2 + $0x530] sm:$0xff]
    %v212 = vld [vmem:[%s2 + $0x538] sm:$0xff]
    %v213 = vld [vmem:[%s2 + $0x540] sm:$0xff]
    %v214 = vld [vmem:[%s2 + $0x548] sm:$0xff]
    %v215 = vld [vmem:[%s2 + $0x550] sm:$0xff]
    %v216 = vld [vmem:[%s2 + $0x558] sm:$0xff]
    %v217 = vld [vmem:[%s2 + $0x560] sm:$0xff]
    %v218 = vld [vmem:[%s2 + $0x568] sm:$0xff]
    %v219 = vld [vmem:[%s2 + $0x570] sm:$0xff]
    %v220 = vld [vmem:[%s2 + $0x578] sm:$0xff]
    %v221 = vld [vmem:[%s2 + $0x580] sm:$0xff]
    %v222 = vld [vmem:[%s2 + $0x588] sm:$0xff]
    %v223 = vld [vmem:[%s2 + $0x590] sm:$0xff]
    %v224 = vld [vmem:[%s2 + $0x598] sm:$0xff]
    %v225 = vld [vmem:[%s2 + $0x5a0] sm:$0xff]
    %v226 = vld [vmem:[%s2 + $0x5a8] sm:$0xff]
    %v227 = vld [vmem:[%s2 + $0x5b0] sm:$0xff]
    %v228 = vld [vmem:[%s2 + $0x5b8] sm:$0xff]
    %v229 = vld [vmem:[%s2 + $0x5c0] sm:$0xff]
    %v230 = vld [vmem:[%s2 + $0x5c8] sm:$0xff]
    %v231 = vld [vmem:[%s2 + $0x5d0] sm:$0xff]
    %v232 = vld [vmem:[%s2 + $0x5d8] sm:$0xff]
    %v233 = vld [vmem:[%s2 + $0x5e0] sm:$0xff]
    %v234 = vld [vmem:[%s2 + $0x5e8] sm:$0xff]
    %v235 = vld [vmem:[%s2 + $0x5f0] sm:$0xff]
    %v236 = vld [vmem:[%s2 + $0x5f8] sm:$0xff]
    %v237 = vld [vmem:[%s2 + $0x600] sm:$0xff]
    %v238 = vld [vmem:[%s2 + $0x608] sm:$0xff]
    %v239 = vld [vmem:[%s2 + $0x610] sm:$0xff]
    %v240 = vld [vmem:[%s2 + $0x618] sm:$0xff]
    %v241 = vld [vmem:[%s3] sm:$0xf]
    %v243 = vlaneseq
    %v244 = vshrl.u32 %v243, 7
    %v245 = vsub.s32 0, %v244
    %v246 = vrot.slane %v241, %v245
    %v247 = vlaneseq
    %v248 = vshrl.u32 %v247, 7
    %v249 = vsub.s32 1, %v248
    %v250 = vrot.slane %v241, %v249
    %v251 = vlaneseq
    %v252 = vshrl.u32 %v251, 7
    %v253 = vsub.s32 2, %v252
    %v254 = vrot.slane %v241, %v253
    %v255 = vlaneseq
    %v256 = vshrl.u32 %v255, 7
    %v257 = vsub.s32 3, %v256
    %v258 = vrot.slane %v241, %v257
    %v267 = vunpack.c.l.b16 %v40
    %v268 = vunpack.c.h.b16 %v40
    %v269 = vunpack.c.l.b16 %v41
    %v270 = vunpack.c.h.b16 %v41
    %v271 = vunpack.c.l.b16 %v42
    %v272 = vunpack.c.h.b16 %v42
    %v273 = vunpack.c.l.b16 %v43
    %v274 = vpack.c.b16 %v267, %v267
    %v275 = vpack.c.b16 %v268, %v268
    %v276 = vpack.c.b16 %v269, %v269
    %v277 = vpack.c.b16 %v270, %v270
    %v278 = vpack.c.b16 %v271, %v271
    %v279 = vpack.c.b16 %v272, %v272
    %v280 = vpack.c.b16 %v273, %v273
    %v483 = vunpack.c.l.b16 %v45
    %v484 = vunpack.c.h.b16 %v45
    %v485 = vunpack.c.l.b16 %v46
    %v486 = vunpack.c.h.b16 %v46
    %v487 = vunpack.c.l.b16 %v47
    %v488 = vunpack.c.h.b16 %v47
    %v489 = vunpack.c.l.b16 %v48
    %v490 = vunpack.c.h.b16 %v48
    %v491 = vunpack.c.l.b16 %v49
    %v492 = vunpack.c.h.b16 %v49
    %v493 = vunpack.c.l.b16 %v50
    %v494 = vunpack.c.h.b16 %v50
    %v495 = vunpack.c.l.b16 %v51
    %v496 = vunpack.c.h.b16 %v51
    %v497 = vunpack.c.l.b16 %v52
    %v498 = vunpack.c.h.b16 %v52
    %v499 = vunpack.c.l.b16 %v53
    %v500 = vunpack.c.h.b16 %v53
    %v501 = vunpack.c.l.b16 %v54
    %v502 = vunpack.c.h.b16 %v54
    %v503 = vunpack.c.l.b16 %v55
    %v504 = vunpack.c.h.b16 %v55
    %v505 = vunpack.c.l.b16 %v56
    %v506 = vunpack.c.h.b16 %v56
    %v507 = vunpack.c.l.b16 %v57
    %v508 = vunpack.c.h.b16 %v57
    %v509 = vunpack.c.l.b16 %v58
    %v510 = vunpack.c.h.b16 %v58
    %v511 = vunpack.c.l.b16 %v59
    %v512 = vunpack.c.h.b16 %v59
    %v513 = vunpack.c.l.b16 %v60
    %v514 = vunpack.c.h.b16 %v60
    %v515 = vunpack.c.l.b16 %v61
    %v516 = vunpack.c.h.b16 %v61
    %v517 = vunpack.c.l.b16 %v62
    %v518 = vunpack.c.h.b16 %v62
    %v519 = vunpack.c.l.b16 %v63
    %v520 = vunpack.c.h.b16 %v63
    %v521 = vunpack.c.l.b16 %v64
    %v522 = vunpack.c.h.b16 %v64
    %v523 = vunpack.c.l.b16 %v65
    %v524 = vunpack.c.h.b16 %v65
    %v525 = vunpack.c.l.b16 %v66
    %v526 = vunpack.c.h.b16 %v66
    %v527 = vunpack.c.l.b16 %v67
    %v528 = vunpack.c.h.b16 %v67
    %v529 = vunpack.c.l.b16 %v68
    %v530 = vunpack.c.h.b16 %v68
    %v531 = vunpack.c.l.b16 %v69
    %v532 = vunpack.c.h.b16 %v69
    %v533 = vunpack.c.l.b16 %v70
    %v534 = vunpack.c.h.b16 %v70
    %v535 = vunpack.c.l.b16 %v71
    %v536 = vunpack.c.h.b16 %v71
    %v537 = vunpack.c.l.b16 %v72
    %v538 = vunpack.c.h.b16 %v72
    %v539 = vunpack.c.l.b16 %v73
    %v540 = vunpack.c.h.b16 %v73
    %v541 = vunpack.c.l.b16 %v74
    %v542 = vunpack.c.h.b16 %v74
    %v543 = vunpack.c.l.b16 %v75
    %v544 = vunpack.c.h.b16 %v75
    %v545 = vunpack.c.l.b16 %v76
    %v546 = vunpack.c.h.b16 %v76
    %v547 = vunpack.c.l.b16 %v77
    %v548 = vunpack.c.h.b16 %v77
    %v549 = vunpack.c.l.b16 %v78
    %v550 = vunpack.c.h.b16 %v78
    %v551 = vunpack.c.l.b16 %v79
    %v552 = vunpack.c.h.b16 %v79
    %v553 = vunpack.c.l.b16 %v80
    %v554 = vunpack.c.h.b16 %v80
    %v555 = vunpack.c.l.b16 %v81
    %v556 = vunpack.c.h.b16 %v81
    %v557 = vunpack.c.l.b16 %v82
    %v558 = vunpack.c.h.b16 %v82
    %v559 = vunpack.c.l.b16 %v83
    %v560 = vunpack.c.h.b16 %v83
    %v561 = vunpack.c.l.b16 %v84
    %v562 = vunpack.c.h.b16 %v84
    %v563 = vunpack.c.l.b16 %v85
    %v564 = vunpack.c.h.b16 %v85
    %v565 = vunpack.c.l.b16 %v86
    %v566 = vunpack.c.h.b16 %v86
    %v567 = vunpack.c.l.b16 %v87
    %v568 = vunpack.c.h.b16 %v87
    %v569 = vunpack.c.l.b16 %v88
    %v570 = vunpack.c.h.b16 %v88
    %v571 = vunpack.c.l.b16 %v89
    %v572 = vunpack.c.h.b16 %v89
    %v573 = vunpack.c.l.b16 %v90
    %v574 = vunpack.c.h.b16 %v90
    %v575 = vunpack.c.l.b16 %v91
    %v576 = vunpack.c.h.b16 %v91
    %v577 = vunpack.c.l.b16 %v92
    %v578 = vunpack.c.h.b16 %v92
    %v579 = vunpack.c.l.b16 %v93
    %v580 = vunpack.c.h.b16 %v93
    %v581 = vunpack.c.l.b16 %v94
    %v582 = vunpack.c.h.b16 %v94
    %v583 = vunpack.c.l.b16 %v95
    %v584 = vunpack.c.h.b16 %v95
    %v585 = vunpack.c.l.b16 %v96
    %v586 = vunpack.c.h.b16 %v96
    %v587 = vunpack.c.l.b16 %v97
    %v588 = vunpack.c.h.b16 %v97
    %v589 = vunpack.c.l.b16 %v98
    %v590 = vunpack.c.h.b16 %v98
    %v591 = vunpack.c.l.b16 %v99
    %v592 = vunpack.c.h.b16 %v99
    %v593 = vunpack.c.l.b16 %v100
    %v594 = vunpack.c.h.b16 %v100
    %v595 = vunpack.c.l.b16 %v101
    %v596 = vunpack.c.h.b16 %v101
    %v597 = vunpack.c.l.b16 %v102
    %v598 = vunpack.c.h.b16 %v102
    %v599 = vunpack.c.l.b16 %v103
    %v600 = vunpack.c.h.b16 %v103
    %v601 = vunpack.c.l.b16 %v104
    %v602 = vunpack.c.h.b16 %v104
    %v603 = vunpack.c.l.b16 %v105
    %v604 = vunpack.c.h.b16 %v105
    %v605 = vunpack.c.l.b16 %v106
    %v606 = vunpack.c.h.b16 %v106
    %v607 = vunpack.c.l.b16 %v107
    %v608 = vunpack.c.h.b16 %v107
    %v609 = vunpack.c.l.b16 %v108
    %v610 = vunpack.c.h.b16 %v108
    %v611 = vunpack.c.l.b16 %v109
    %v612 = vunpack.c.h.b16 %v109
    %v613 = vunpack.c.l.b16 %v110
    %v614 = vunpack.c.h.b16 %v110
    %v615 = vunpack.c.l.b16 %v111
    %v616 = vunpack.c.h.b16 %v111
    %v617 = vunpack.c.l.b16 %v112
    %v618 = vunpack.c.h.b16 %v112
    %v619 = vunpack.c.l.b16 %v113
    %v620 = vunpack.c.h.b16 %v113
    %v621 = vunpack.c.l.b16 %v114
    %v622 = vunpack.c.h.b16 %v114
    %v623 = vunpack.c.l.b16 %v115
    %v624 = vunpack.c.h.b16 %v115
    %v625 = vunpack.c.l.b16 %v116
    %v626 = vunpack.c.h.b16 %v116
    %v627 = vunpack.c.l.b16 %v117
    %v628 = vunpack.c.h.b16 %v117
    %v629 = vunpack.c.l.b16 %v118
    %v630 = vunpack.c.h.b16 %v118
    %v631 = vunpack.c.l.b16 %v119
    %v632 = vunpack.c.h.b16 %v119
    %v633 = vunpack.c.l.b16 %v120
    %v634 = vunpack.c.h.b16 %v120
    %v635 = vunpack.c.l.b16 %v121
    %v636 = vunpack.c.h.b16 %v121
    %v637 = vunpack.c.l.b16 %v122
    %v638 = vunpack.c.h.b16 %v122
    %v639 = vunpack.c.l.b16 %v123
    %v640 = vunpack.c.h.b16 %v123
    %v641 = vunpack.c.l.b16 %v124
    %v642 = vunpack.c.h.b16 %v124
    %v643 = vunpack.c.l.b16 %v125
    %v644 = vunpack.c.h.b16 %v125
    %v645 = vunpack.c.l.b16 %v126
    %v646 = vunpack.c.h.b16 %v126
    %v647 = vunpack.c.l.b16 %v127
    %v648 = vunpack.c.h.b16 %v127
    %v649 = vunpack.c.l.b16 %v128
    %v650 = vunpack.c.h.b16 %v128
    %v651 = vunpack.c.l.b16 %v129
    %v652 = vunpack.c.h.b16 %v129
    %v653 = vunpack.c.l.b16 %v130
    %v654 = vunpack.c.h.b16 %v130
    %v655 = vunpack.c.l.b16 %v131
    %v656 = vunpack.c.h.b16 %v131
    %v657 = vunpack.c.l.b16 %v132
    %v658 = vunpack.c.h.b16 %v132
    %v659 = vunpack.c.l.b16 %v133
    %v660 = vunpack.c.h.b16 %v133
    %v661 = vunpack.c.l.b16 %v134
    %v662 = vunpack.c.h.b16 %v134
    %v663 = vunpack.c.l.b16 %v135
    %v664 = vunpack.c.h.b16 %v135
    %v665 = vunpack.c.l.b16 %v136
    %v666 = vunpack.c.h.b16 %v136
    %v667 = vunpack.c.l.b16 %v137
    %v668 = vunpack.c.h.b16 %v137
    %v669 = vunpack.c.l.b16 %v138
    %v670 = vunpack.c.h.b16 %v138
    %v671 = vunpack.c.l.b16 %v139
    %v672 = vunpack.c.h.b16 %v139
    %v673 = vunpack.c.l.b16 %v140
    %v674 = vunpack.c.h.b16 %v140
    %v675 = vunpack.c.l.b16 %v141
    %v676 = vunpack.c.h.b16 %v141
    %v677 = vunpack.c.l.b16 %v142
    %v678 = vunpack.c.h.b16 %v142
    %v679 = vunpack.c.l.b16 %v143
    %v680 = vunpack.c.h.b16 %v143
    %v681 = vunpack.c.l.b16 %v144
    %v682 = vunpack.c.h.b16 %v144
    %v683 = vunpack.c.l.b16 %v145
    %v684 = vunpack.c.h.b16 %v145
    %v685 = vunpack.c.l.b16 %v146
    %v686 = vunpack.c.h.b16 %v146
    %v687 = vunpack.c.l.b16 %v147
    %v688 = vunpack.c.h.b16 %v147
    %v689 = vunpack.c.l.b16 %v148
    %v690 = vunpack.c.h.b16 %v148
    %v691 = vunpack.c.l.b16 %v149
    %v692 = vunpack.c.h.b16 %v149
    %v693 = vunpack.c.l.b16 %v150
    %v694 = vunpack.c.h.b16 %v150
    %v695 = vunpack.c.l.b16 %v151
    %v696 = vunpack.c.h.b16 %v151
    %v697 = vunpack.c.l.b16 %v152
    %v698 = vunpack.c.h.b16 %v152
    %v699 = vunpack.c.l.b16 %v153
    %v700 = vunpack.c.h.b16 %v153
    %v701 = vunpack.c.l.b16 %v154
    %v702 = vunpack.c.h.b16 %v154
    %v703 = vunpack.c.l.b16 %v155
    %v704 = vunpack.c.h.b16 %v155
    %v705 = vunpack.c.l.b16 %v156
    %v706 = vunpack.c.h.b16 %v156
    %v707 = vunpack.c.l.b16 %v157
    %v708 = vunpack.c.h.b16 %v157
    %v709 = vunpack.c.l.b16 %v158
    %v710 = vunpack.c.h.b16 %v158
    %v711 = vunpack.c.l.b16 %v159
    %v712 = vunpack.c.h.b16 %v159
    %v713 = vunpack.c.l.b16 %v160
    %v714 = vunpack.c.h.b16 %v160
    %v715 = vunpack.c.l.b16 %v161
    %v716 = vunpack.c.h.b16 %v161
    %v717 = vunpack.c.l.b16 %v162
    %v718 = vunpack.c.h.b16 %v162
    %v719 = vunpack.c.l.b16 %v163
    %v720 = vunpack.c.h.b16 %v163
    %v721 = vunpack.c.l.b16 %v164
    %v722 = vunpack.c.h.b16 %v164
    %v723 = vunpack.c.l.b16 %v165
    %v724 = vunpack.c.h.b16 %v165
    %v725 = vunpack.c.l.b16 %v166
    %v726 = vunpack.c.h.b16 %v166
    %v727 = vunpack.c.l.b16 %v167
    %v728 = vunpack.c.h.b16 %v167
    %v729 = vunpack.c.l.b16 %v168
    %v730 = vunpack.c.h.b16 %v168
    %v731 = vunpack.c.l.b16 %v169
    %v732 = vunpack.c.h.b16 %v169
    %v733 = vunpack.c.l.b16 %v170
    %v734 = vunpack.c.h.b16 %v170
    %v735 = vunpack.c.l.b16 %v171
    %v736 = vunpack.c.h.b16 %v171
    %v737 = vunpack.c.l.b16 %v172
    %v738 = vunpack.c.h.b16 %v172
    %v739 = vunpack.c.l.b16 %v173
    %v740 = vunpack.c.h.b16 %v173
    %v741 = vunpack.c.l.b16 %v174
    %v742 = vunpack.c.h.b16 %v174
    %v743 = vunpack.c.l.b16 %v175
    %v744 = vunpack.c.h.b16 %v175
    %v745 = vunpack.c.l.b16 %v176
    %v746 = vunpack.c.h.b16 %v176
    %v747 = vunpack.c.l.b16 %v177
    %v748 = vunpack.c.h.b16 %v177
    %v749 = vunpack.c.l.b16 %v178
    %v750 = vunpack.c.h.b16 %v178
    %v751 = vunpack.c.l.b16 %v179
    %v752 = vunpack.c.h.b16 %v179
    %v753 = vunpack.c.l.b16 %v180
    %v754 = vunpack.c.h.b16 %v180
    %v755 = vunpack.c.l.b16 %v181
    %v756 = vunpack.c.h.b16 %v181
    %v757 = vunpack.c.l.b16 %v182
    %v758 = vunpack.c.h.b16 %v182
    %v759 = vunpack.c.l.b16 %v183
    %v760 = vunpack.c.h.b16 %v183
    %v761 = vunpack.c.l.b16 %v184
    %v762 = vunpack.c.h.b16 %v184
    %v763 = vunpack.c.l.b16 %v185
    %v764 = vunpack.c.h.b16 %v185
    %v765 = vunpack.c.l.b16 %v186
    %v766 = vunpack.c.h.b16 %v186
    %v767 = vunpack.c.l.b16 %v187
    %v768 = vunpack.c.h.b16 %v187
    %v769 = vunpack.c.l.b16 %v188
    %v770 = vunpack.c.h.b16 %v188
    %v771 = vunpack.c.l.b16 %v189
    %v772 = vunpack.c.h.b16 %v189
    %v773 = vunpack.c.l.b16 %v190
    %v774 = vunpack.c.h.b16 %v190
    %v775 = vunpack.c.l.b16 %v191
    %v776 = vunpack.c.h.b16 %v191
    %v777 = vunpack.c.l.b16 %v192
    %v778 = vunpack.c.h.b16 %v192
    %v779 = vunpack.c.l.b16 %v193
    %v780 = vunpack.c.h.b16 %v193
    %v781 = vunpack.c.l.b16 %v194
    %v782 = vunpack.c.h.b16 %v194
    %v783 = vunpack.c.l.b16 %v195
    %v784 = vunpack.c.h.b16 %v195
    %v785 = vunpack.c.l.b16 %v196
    %v786 = vunpack.c.h.b16 %v196
    %v787 = vunpack.c.l.b16 %v197
    %v788 = vunpack.c.h.b16 %v197
    %v789 = vunpack.c.l.b16 %v198
    %v790 = vunpack.c.h.b16 %v198
    %v791 = vunpack.c.l.b16 %v199
    %v792 = vunpack.c.h.b16 %v199
    %v793 = vunpack.c.l.b16 %v200
    %v794 = vunpack.c.h.b16 %v200
    %v795 = vunpack.c.l.b16 %v201
    %v796 = vunpack.c.h.b16 %v201
    %v797 = vunpack.c.l.b16 %v202
    %v798 = vunpack.c.h.b16 %v202
    %v799 = vunpack.c.l.b16 %v203
    %v800 = vunpack.c.h.b16 %v203
    %v801 = vunpack.c.l.b16 %v204
    %v802 = vunpack.c.h.b16 %v204
    %v803 = vunpack.c.l.b16 %v205
    %v804 = vunpack.c.h.b16 %v205
    %v805 = vunpack.c.l.b16 %v206
    %v806 = vunpack.c.h.b16 %v206
    %v807 = vunpack.c.l.b16 %v207
    %v808 = vunpack.c.h.b16 %v207
    %v809 = vunpack.c.l.b16 %v208
    %v810 = vunpack.c.h.b16 %v208
    %v811 = vunpack.c.l.b16 %v209
    %v812 = vunpack.c.h.b16 %v209
    %v813 = vunpack.c.l.b16 %v210
    %v814 = vunpack.c.h.b16 %v210
    %v815 = vunpack.c.l.b16 %v211
    %v816 = vunpack.c.h.b16 %v211
    %v817 = vunpack.c.l.b16 %v212
    %v818 = vunpack.c.h.b16 %v212
    %v819 = vunpack.c.l.b16 %v213
    %v820 = vunpack.c.h.b16 %v213
    %v821 = vunpack.c.l.b16 %v214
    %v822 = vunpack.c.h.b16 %v214
    %v823 = vunpack.c.l.b16 %v215
    %v824 = vunpack.c.h.b16 %v215
    %v825 = vunpack.c.l.b16 %v216
    %v826 = vunpack.c.h.b16 %v216
    %v827 = vunpack.c.l.b16 %v217
    %v828 = vunpack.c.h.b16 %v217
    %v829 = vunpack.c.l.b16 %v218
    %v830 = vunpack.c.h.b16 %v218
    %v831 = vunpack.c.l.b16 %v219
    %v832 = vunpack.c.h.b16 %v219
    %v833 = vunpack.c.l.b16 %v220
    %v834 = vunpack.c.h.b16 %v220
    %v835 = vunpack.c.l.b16 %v221
    %v836 = vunpack.c.h.b16 %v221
    %v837 = vunpack.c.l.b16 %v222
    %v838 = vunpack.c.h.b16 %v222
    %v839 = vunpack.c.l.b16 %v223
    %v840 = vunpack.c.h.b16 %v223
    %v841 = vunpack.c.l.b16 %v224
    %v842 = vunpack.c.h.b16 %v224
    %v843 = vunpack.c.l.b16 %v225
    %v844 = vunpack.c.h.b16 %v225
    %v845 = vunpack.c.l.b16 %v226
    %v846 = vunpack.c.h.b16 %v226
    %v847 = vunpack.c.l.b16 %v227
    %v848 = vunpack.c.h.b16 %v227
    %v849 = vunpack.c.l.b16 %v228
    %v850 = vunpack.c.h.b16 %v228
    %v851 = vunpack.c.l.b16 %v229
    %v852 = vunpack.c.h.b16 %v229
    %v853 = vunpack.c.l.b16 %v230
    %v854 = vunpack.c.h.b16 %v230
    %v855 = vunpack.c.l.b16 %v231
    %v856 = vunpack.c.h.b16 %v231
    %v857 = vunpack.c.l.b16 %v232
    %v858 = vunpack.c.h.b16 %v232
    %v859 = vunpack.c.l.b16 %v233
    %v860 = vunpack.c.h.b16 %v233
    %v861 = vunpack.c.l.b16 %v234
    %v862 = vunpack.c.h.b16 %v234
    %v863 = vunpack.c.l.b16 %v235
    %v864 = vunpack.c.h.b16 %v235
    %v865 = vunpack.c.l.b16 %v236
    %v866 = vunpack.c.h.b16 %v236
    %v867 = vunpack.c.l.b16 %v237
    %v868 = vunpack.c.h.b16 %v237
    %v869 = vunpack.c.l.b16 %v238
    %v870 = vunpack.c.h.b16 %v238
    %v871 = vunpack.c.l.b16 %v239
    %v872 = vunpack.c.h.b16 %v239
    %v873 = vunpack.c.l.b16 %v240
    %v874 = vunpack.c.h.b16 %v240
    %v875 = vpack.c.b16 %v487, %v483
    %v876 = vpack.c.b16 %v488, %v484
    %v877 = vpack.c.b16 %v489, %v485
    %v878 = vpack.c.b16 %v490, %v486
    %v879 = vpack.c.b16 %v495, %v491
    %v880 = vpack.c.b16 %v496, %v492
    %v881 = vpack.c.b16 %v497, %v493
    %v882 = vpack.c.b16 %v498, %v494
    %v883 = vpack.c.b16 %v503, %v499
    %v884 = vpack.c.b16 %v504, %v500
    %v885 = vpack.c.b16 %v505, %v501
    %v886 = vpack.c.b16 %v506, %v502
    %v887 = vpack.c.b16 %v511, %v507
    %v888 = vpack.c.b16 %v512, %v508
    %v889 = vpack.c.b16 %v513, %v509
    %v890 = vpack.c.b16 %v514, %v510
    %v891 = vpack.c.b16 %v519, %v515
    %v892 = vpack.c.b16 %v520, %v516
    %v893 = vpack.c.b16 %v521, %v517
    %v894 = vpack.c.b16 %v522, %v518
    %v895 = vpack.c.b16 %v527, %v523
    %v896 = vpack.c.b16 %v528, %v524
    %v897 = vpack.c.b16 %v529, %v525
    %v898 = vpack.c.b16 %v530, %v526
    %v899 = vpack.c.b16 %v535, %v531
    %v900 = vpack.c.b16 %v536, %v532
    %v901 = vpack.c.b16 %v537, %v533
    %v902 = vpack.c.b16 %v538, %v534
    %v903 = vpack.c.b16 %v543, %v539
    %v904 = vpack.c.b16 %v544, %v540
    %v905 = vpack.c.b16 %v545, %v541
    %v906 = vpack.c.b16 %v546, %v542
    %v907 = vpack.c.b16 %v551, %v547
    %v908 = vpack.c.b16 %v552, %v548
    %v909 = vpack.c.b16 %v553, %v549
    %v910 = vpack.c.b16 %v554, %v550
    %v911 = vpack.c.b16 %v559, %v555
    %v912 = vpack.c.b16 %v560, %v556
    %v913 = vpack.c.b16 %v561, %v557
    %v914 = vpack.c.b16 %v562, %v558
    %v915 = vpack.c.b16 %v567, %v563
    %v916 = vpack.c.b16 %v568, %v564
    %v917 = vpack.c.b16 %v569, %v565
    %v918 = vpack.c.b16 %v570, %v566
    %v919 = vpack.c.b16 %v575, %v571
    %v920 = vpack.c.b16 %v576, %v572
    %v921 = vpack.c.b16 %v577, %v573
    %v922 = vpack.c.b16 %v578, %v574
    %v923 = vpack.c.b16 %v583, %v579
    %v924 = vpack.c.b16 %v584, %v580
    %v925 = vpack.c.b16 %v585, %v581
    %v926 = vpack.c.b16 %v586, %v582
    %v927 = vpack.c.b16 %v591, %v587
    %v928 = vpack.c.b16 %v592, %v588
    %v929 = vpack.c.b16 %v593, %v589
    %v930 = vpack.c.b16 %v594, %v590
    %v931 = vpack.c.b16 %v599, %v595
    %v932 = vpack.c.b16 %v600, %v596
    %v933 = vpack.c.b16 %v601, %v597
    %v934 = vpack.c.b16 %v602, %v598
    %v935 = vpack.c.b16 %v607, %v603
    %v936 = vpack.c.b16 %v608, %v604
    %v937 = vpack.c.b16 %v609, %v605
    %v938 = vpack.c.b16 %v610, %v606
    %v939 = vpack.c.b16 %v615, %v611
    %v940 = vpack.c.b16 %v616, %v612
    %v941 = vpack.c.b16 %v617, %v613
    %v942 = vpack.c.b16 %v618, %v614
    %v943 = vpack.c.b16 %v623, %v619
    %v944 = vpack.c.b16 %v624, %v620
    %v945 = vpack.c.b16 %v625, %v621
    %v946 = vpack.c.b16 %v626, %v622
    %v947 = vpack.c.b16 %v631, %v627
    %v948 = vpack.c.b16 %v632, %v628
    %v949 = vpack.c.b16 %v633, %v629
    %v950 = vpack.c.b16 %v634, %v630
    %v951 = vpack.c.b16 %v639, %v635
    %v952 = vpack.c.b16 %v640, %v636
    %v953 = vpack.c.b16 %v641, %v637
    %v954 = vpack.c.b16 %v642, %v638
    %v955 = vpack.c.b16 %v647, %v643
    %v956 = vpack.c.b16 %v648, %v644
    %v957 = vpack.c.b16 %v649, %v645
    %v958 = vpack.c.b16 %v650, %v646
    %v959 = vpack.c.b16 %v655, %v651
    %v960 = vpack.c.b16 %v656, %v652
    %v961 = vpack.c.b16 %v657, %v653
    %v962 = vpack.c.b16 %v658, %v654
    %v963 = vpack.c.b16 %v663, %v659
    %v964 = vpack.c.b16 %v664, %v660
    %v965 = vpack.c.b16 %v665, %v661
    %v966 = vpack.c.b16 %v666, %v662
    %v967 = vpack.c.b16 %v671, %v667
    %v968 = vpack.c.b16 %v672, %v668
    %v969 = vpack.c.b16 %v673, %v669
    %v970 = vpack.c.b16 %v674, %v670
    %v971 = vpack.c.b16 %v679, %v675
    %v972 = vpack.c.b16 %v680, %v676
    %v973 = vpack.c.b16 %v681, %v677
    %v974 = vpack.c.b16 %v682, %v678
    %v975 = vpack.c.b16 %v687, %v683
    %v976 = vpack.c.b16 %v688, %v684
    %v977 = vpack.c.b16 %v689, %v685
    %v978 = vpack.c.b16 %v690, %v686
    %v979 = vpack.c.b16 %v695, %v691
    %v980 = vpack.c.b16 %v696, %v692
    %v981 = vpack.c.b16 %v697, %v693
    %v982 = vpack.c.b16 %v698, %v694
    %v983 = vpack.c.b16 %v703, %v699
    %v984 = vpack.c.b16 %v704, %v700
    %v985 = vpack.c.b16 %v705, %v701
    %v986 = vpack.c.b16 %v706, %v702
    %v987 = vpack.c.b16 %v711, %v707
    %v988 = vpack.c.b16 %v712, %v708
    %v989 = vpack.c.b16 %v713, %v709
    %v990 = vpack.c.b16 %v714, %v710
    %v991 = vpack.c.b16 %v719, %v715
    %v992 = vpack.c.b16 %v720, %v716
    %v993 = vpack.c.b16 %v721, %v717
    %v994 = vpack.c.b16 %v722, %v718
    %v995 = vpack.c.b16 %v727, %v723
    %v996 = vpack.c.b16 %v728, %v724
    %v997 = vpack.c.b16 %v729, %v725
    %v998 = vpack.c.b16 %v730, %v726
    %v999 = vpack.c.b16 %v735, %v731
    %v1000 = vpack.c.b16 %v736, %v732
    %v1001 = vpack.c.b16 %v737, %v733
    %v1002 = vpack.c.b16 %v738, %v734
    %v1003 = vpack.c.b16 %v743, %v739
    %v1004 = vpack.c.b16 %v744, %v740
    %v1005 = vpack.c.b16 %v745, %v741
    %v1006 = vpack.c.b16 %v746, %v742
    %v1007 = vpack.c.b16 %v751, %v747
    %v1008 = vpack.c.b16 %v752, %v748
    %v1009 = vpack.c.b16 %v753, %v749
    %v1010 = vpack.c.b16 %v754, %v750
    %v1011 = vpack.c.b16 %v759, %v755
    %v1012 = vpack.c.b16 %v760, %v756
    %v1013 = vpack.c.b16 %v761, %v757
    %v1014 = vpack.c.b16 %v762, %v758
    %v1015 = vpack.c.b16 %v767, %v763
    %v1016 = vpack.c.b16 %v768, %v764
    %v1017 = vpack.c.b16 %v769, %v765
    %v1018 = vpack.c.b16 %v770, %v766
    %v1019 = vpack.c.b16 %v775, %v771
    %v1020 = vpack.c.b16 %v776, %v772
    %v1021 = vpack.c.b16 %v777, %v773
    %v1022 = vpack.c.b16 %v778, %v774
    %v1023 = vpack.c.b16 %v783, %v779
    %v1024 = vpack.c.b16 %v784, %v780
    %v1025 = vpack.c.b16 %v785, %v781
    %v1026 = vpack.c.b16 %v786, %v782
    %v1027 = vpack.c.b16 %v791, %v787
    %v1028 = vpack.c.b16 %v792, %v788
    %v1029 = vpack.c.b16 %v793, %v789
    %v1030 = vpack.c.b16 %v794, %v790
    %v1031 = vpack.c.b16 %v799, %v795
    %v1032 = vpack.c.b16 %v800, %v796
    %v1033 = vpack.c.b16 %v801, %v797
    %v1034 = vpack.c.b16 %v802, %v798
    %v1035 = vpack.c.b16 %v807, %v803
    %v1036 = vpack.c.b16 %v808, %v804
    %v1037 = vpack.c.b16 %v809, %v805
    %v1038 = vpack.c.b16 %v810, %v806
    %v1039 = vpack.c.b16 %v815, %v811
    %v1040 = vpack.c.b16 %v816, %v812
    %v1041 = vpack.c.b16 %v817, %v813
    %v1042 = vpack.c.b16 %v818, %v814
    %v1043 = vpack.c.b16 %v823, %v819
    %v1044 = vpack.c.b16 %v824, %v820
    %v1045 = vpack.c.b16 %v825, %v821
    %v1046 = vpack.c.b16 %v826, %v822
    %v1047 = vpack.c.b16 %v831, %v827
    %v1048 = vpack.c.b16 %v832, %v828
    %v1049 = vpack.c.b16 %v833, %v829
    %v1050 = vpack.c.b16 %v834, %v830
    %v1051 = vpack.c.b16 %v839, %v835
    %v1052 = vpack.c.b16 %v840, %v836
    %v1053 = vpack.c.b16 %v841, %v837
    %v1054 = vpack.c.b16 %v842, %v838
    %v1055 = vpack.c.b16 %v847, %v843
    %v1056 = vpack.c.b16 %v848, %v844
    %v1057 = vpack.c.b16 %v849, %v845
    %v1058 = vpack.c.b16 %v850, %v846
    %v1059 = vpack.c.b16 %v855, %v851
    %v1060 = vpack.c.b16 %v856, %v852
    %v1061 = vpack.c.b16 %v857, %v853
    %v1062 = vpack.c.b16 %v858, %v854
    %v1063 = vpack.c.b16 %v863, %v859
    %v1064 = vpack.c.b16 %v864, %v860
    %v1065 = vpack.c.b16 %v865, %v861
    %v1066 = vpack.c.b16 %v866, %v862
    %v1067 = vpack.c.b16 %v871, %v867
    %v1068 = vpack.c.b16 %v872, %v868
    %v1069 = vpack.c.b16 %v873, %v869
    %v1070 = vpack.c.b16 %v874, %v870
    %vm1267 = vcmask 130048
    %v1269 = vsel %vm1267, %v280, 0
    %1271 = vmatprep.subr.bf16.mxu0 %v876
    %1272 = vmatpush1.bf16.msra.mxu0 %v875
    %1273 = vmatprep.subr.bf16.mxu0 %v880
    %1274 = vmatpush1.bf16.msra.mxu0 %v879
    %1275 = vmatprep.subr.bf16.mxu0 %v884
    %1276 = vmatpush1.bf16.msra.mxu0 %v883
    %1277 = vmatprep.subr.bf16.mxu0 %v888
    %1278 = vmatpush1.bf16.msra.mxu0 %v887
    %1279 = vmatprep.subr.bf16.mxu0 %v892
    %1280 = vmatpush1.bf16.msra.mxu0 %v891
    %1281 = vmatprep.subr.bf16.mxu0 %v896
    %1282 = vmatpush1.bf16.msra.mxu0 %v895
    %1283 = vmatprep.subr.bf16.mxu0 %v900
    %1284 = vmatpush1.bf16.msra.mxu0 %v899
    %1285 = vmatprep.subr.bf16.mxu0 %v904
    %1286 = vmatpush1.bf16.msra.mxu0 %v903
    %1287 = vmatprep.subr.bf16.mxu0 %v908
    %1288 = vmatpush1.bf16.msra.mxu0 %v907
    %1289 = vmatprep.subr.bf16.mxu0 %v912
    %1290 = vmatpush1.bf16.msra.mxu0 %v911
    %1291 = vmatprep.subr.bf16.mxu0 %v916
    %1292 = vmatpush1.bf16.msra.mxu0 %v915
    %1293 = vmatprep.subr.bf16.mxu0 %v920
    %1294 = vmatpush1.bf16.msra.mxu0 %v919
    %1295 = vmatprep.subr.bf16.mxu0 %v924
    %1296 = vmatpush1.bf16.msra.mxu0 %v923
    %1297 = vmatprep.subr.bf16.mxu0 %v928
    %1298 = vmatpush1.bf16.msra.mxu0 %v927
    %1299 = vmatprep.subr.bf16.mxu0 %v932
    %1300 = vmatpush1.bf16.msra.mxu0 %v931
    %1301 = vmatprep.subr.bf16.mxu0 %v936
    %1302 = vmatpush1.bf16.msra.mxu0 %v935
    %1303 = vmatprep.mubr.bf16.mxu0 %v275
    %1304 = vmatmul.mubr.bf16.gmra.mrb[0].mxu0 %v274
    %v1305 = vpop.f32.mrb[0].mxu0
    %v1306 = vadd.f32 %v246, %v1305
    %v1307 = vpop.f32.mrb[0].mxu0
    %v1308 = vadd.f32 %v250, %v1307
    %v1309 = vpop.f32.mrb[0].mxu0
    %v1310 = vpop.f32.mrb[0].mxu0
    %1311 = vdwg.mxu0
    %1312 = vmatprep.subr.bf16.mxu0 %v940
    %1313 = vmatpush1.bf16.msra.mxu0 %v939
    %1314 = vmatprep.subr.bf16.mxu0 %v944
    %1315 = vmatpush1.bf16.msra.mxu0 %v943
    %1316 = vmatprep.subr.bf16.mxu0 %v948
    %1317 = vmatpush1.bf16.msra.mxu0 %v947
    %1318 = vmatprep.subr.bf16.mxu0 %v952
    %1319 = vmatpush1.bf16.msra.mxu0 %v951
    %1320 = vmatprep.subr.bf16.mxu0 %v956
    %1321 = vmatpush1.bf16.msra.mxu0 %v955
    %1322 = vmatprep.subr.bf16.mxu0 %v960
    %1323 = vmatpush1.bf16.msra.mxu0 %v959
    %1324 = vmatprep.subr.bf16.mxu0 %v964
    %1325 = vmatpush1.bf16.msra.mxu0 %v963
    %1326 = vmatprep.subr.bf16.mxu0 %v968
    %1327 = vmatpush1.bf16.msra.mxu0 %v967
    %1328 = vmatprep.subr.bf16.mxu0 %v972
    %1329 = vmatpush1.bf16.msra.mxu0 %v971
    %1330 = vmatprep.subr.bf16.mxu0 %v976
    %1331 = vmatpush1.bf16.msra.mxu0 %v975
    %1332 = vmatprep.subr.bf16.mxu0 %v980
    %1333 = vmatpush1.bf16.msra.mxu0 %v979
    %1334 = vmatprep.subr.bf16.mxu0 %v984
    %1335 = vmatpush1.bf16.msra.mxu0 %v983
    %1336 = vmatprep.subr.bf16.mxu0 %v988
    %1337 = vmatpush1.bf16.msra.mxu0 %v987
    %1338 = vmatprep.subr.bf16.mxu0 %v992
    %1339 = vmatpush1.bf16.msra.mxu0 %v991
    %1340 = vmatprep.subr.bf16.mxu0 %v996
    %1341 = vmatpush1.bf16.msra.mxu0 %v995
    %1342 = vmatprep.subr.bf16.mxu0 %v1000
    %1343 = vmatpush1.bf16.msra.mxu0 %v999
    %1344 = vmatprep.mubr.bf16.mxu0 %v277
    %1345 = vmatmul.mubr.bf16.gmra.mrb[0].mxu0 %v276
    %v1346 = vpop.f32.mrb[0].mxu0
    %v1347 = vadd.f32 %v1306, %v1346
    %v1348 = vpop.f32.mrb[0].mxu0
    %v1349 = vadd.f32 %v1308, %v1348
    %v1350 = vpop.f32.mrb[0].mxu0
    %v1351 = vpop.f32.mrb[0].mxu0
    %1352 = vdwg.mxu0
    %1353 = vmatprep.subr.bf16.mxu0 %v1004
    %1354 = vmatpush1.bf16.msra.mxu0 %v1003
    %1355 = vmatprep.subr.bf16.mxu0 %v1008
    %1356 = vmatpush1.bf16.msra.mxu0 %v1007
    %1357 = vmatprep.subr.bf16.mxu0 %v1012
    %1358 = vmatpush1.bf16.msra.mxu0 %v1011
    %1359 = vmatprep.subr.bf16.mxu0 %v1016
    %1360 = vmatpush1.bf16.msra.mxu0 %v1015
    %1361 = vmatprep.subr.bf16.mxu0 %v1020
    %1362 = vmatpush1.bf16.msra.mxu0 %v1019
    %1363 = vmatprep.subr.bf16.mxu0 %v1024
    %1364 = vmatpush1.bf16.msra.mxu0 %v1023
    %1365 = vmatprep.subr.bf16.mxu0 %v1028
    %1366 = vmatpush1.bf16.msra.mxu0 %v1027
    %1367 = vmatprep.subr.bf16.mxu0 %v1032
    %1368 = vmatpush1.bf16.msra.mxu0 %v1031
    %1369 = vmatprep.subr.bf16.mxu0 %v1036
    %1370 = vmatpush1.bf16.msra.mxu0 %v1035
    %1371 = vmatprep.subr.bf16.mxu0 %v1040
    %1372 = vmatpush1.bf16.msra.mxu0 %v1039
    %1373 = vmatprep.subr.bf16.mxu0 %v1044
    %1374 = vmatpush1.bf16.msra.mxu0 %v1043
    %1375 = vmatprep.subr.bf16.mxu0 %v1048
    %1376 = vmatpush1.bf16.msra.mxu0 %v1047
    %1377 = vmatprep.subr.bf16.mxu0 %v1052
    %1378 = vmatpush1.bf16.msra.mxu0 %v1051
    %1379 = vmatprep.subr.bf16.mxu0 %v1056
    %1380 = vmatpush1.bf16.msra.mxu0 %v1055
    %1381 = vmatprep.subr.bf16.mxu0 %v1060
    %1382 = vmatpush1.bf16.msra.mxu0 %v1059
    %1383 = vmatprep.subr.bf16.mxu0 %v1064
    %1384 = vmatpush1.bf16.msra.mxu0 %v1063
    %1385 = vmatprep.mubr.bf16.mxu0 %v279
    %1386 = vmatmul.mubr.bf16.gmra.mrb[0].mxu0 %v278
    %v1387 = vpop.f32.mrb[0].mxu0
    %v1388 = vadd.f32 %v1347, %v1387
    %v1389 = vpop.f32.mrb[0].mxu0
    %v1390 = vadd.f32 %v1349, %v1389
    %v1391 = vpop.f32.mrb[0].mxu0
    %v1392 = vpop.f32.mrb[0].mxu0
    %1393 = vdwg.mxu0
    %1394 = vmatprep.subr.bf16.mxu0 %v1068
    %1395 = vmatpush1.bf16.msra.mxu0 %v1067
    %1396 = vmatprep.subr.bf16.mxu0 0
    %1397 = vmatpush1.bf16.msra.mxu0 0
    %1398 = vmatprep.subr.bf16.mxu0 0
    %1399 = vmatpush1.bf16.msra.mxu0 0
    %1400 = vmatprep.subr.bf16.mxu0 0
    %1401 = vmatpush1.bf16.msra.mxu0 0
    %1402 = vmatprep.subr.bf16.mxu0 0
    %1403 = vmatpush1.bf16.msra.mxu0 0
    %1404 = vmatprep.subr.bf16.mxu0 0
    %1405 = vmatpush1.bf16.msra.mxu0 0
    %1406 = vmatprep.subr.bf16.mxu0 0
    %1407 = vmatpush1.bf16.msra.mxu0 0
    %1408 = vmatprep.subr.bf16.mxu0 0
    %1409 = vmatpush1.bf16.msra.mxu0 0
    %1410 = vmatprep.subr.bf16.mxu0 0
    %1411 = vmatpush1.bf16.msra.mxu0 0
    %1412 = vmatprep.subr.bf16.mxu0 0
    %1413 = vmatpush1.bf16.msra.mxu0 0
    %1414 = vmatprep.subr.bf16.mxu0 0
    %1415 = vmatpush1.bf16.msra.mxu0 0
    %1416 = vmatprep.subr.bf16.mxu0 0
    %1417 = vmatpush1.bf16.msra.mxu0 0
    %1418 = vmatprep.subr.bf16.mxu0 0
    %1419 = vmatpush1.bf16.msra.mxu0 0
    %1420 = vmatprep.subr.bf16.mxu0 0
    %1421 = vmatpush1.bf16.msra.mxu0 0
    %1422 = vmatprep.subr.bf16.mxu0 0
    %1423 = vmatpush1.bf16.msra.mxu0 0
    %1424 = vmatprep.subr.bf16.mxu0 0
    %1425 = vmatpush1.bf16.msra.mxu0 0
    %1426 = vmatprep.mubr.bf16.mxu0 0
    %1427 = vmatmul.mubr.bf16.gmra.mrb[0].mxu0 %v1269
    %v1428 = vpop.f32.mrb[0].mxu0
    %v1429 = vadd.f32 %v1388, %v1428
    %v1430 = vpop.f32.mrb[0].mxu0
    %v1431 = vadd.f32 %v1390, %v1430
    %v1432 = vpop.f32.mrb[0].mxu0
    %v1433 = vpop.f32.mrb[0].mxu0
    %1434 = vdwg.mxu0
    %1435 = vmatprep.subr.bf16.mxu0 %v878
    %1436 = vmatpush1.bf16.msra.mxu0 %v877
    %1437 = vmatprep.subr.bf16.mxu0 %v882
    %1438 = vmatpush1.bf16.msra.mxu0 %v881
    %1439 = vmatprep.subr.bf16.mxu0 %v886
    %1440 = vmatpush1.bf16.msra.mxu0 %v885
    %1441 = vmatprep.subr.bf16.mxu0 %v890
    %1442 = vmatpush1.bf16.msra.mxu0 %v889
    %1443 = vmatprep.subr.bf16.mxu0 %v894
    %1444 = vmatpush1.bf16.msra.mxu0 %v893
    %1445 = vmatprep.subr.bf16.mxu0 %v898
    %1446 = vmatpush1.bf16.msra.mxu0 %v897
    %1447 = vmatprep.subr.bf16.mxu0 %v902
    %1448 = vmatpush1.bf16.msra.mxu0 %v901
    %1449 = vmatprep.subr.bf16.mxu0 %v906
    %1450 = vmatpush1.bf16.msra.mxu0 %v905
    %1451 = vmatprep.subr.bf16.mxu0 %v910
    %1452 = vmatpush1.bf16.msra.mxu0 %v909
    %1453 = vmatprep.subr.bf16.mxu0 %v914
    %1454 = vmatpush1.bf16.msra.mxu0 %v913
    %1455 = vmatprep.subr.bf16.mxu0 %v918
    %1456 = vmatpush1.bf16.msra.mxu0 %v917
    %1457 = vmatprep.subr.bf16.mxu0 %v922
    %1458 = vmatpush1.bf16.msra.mxu0 %v921
    %1459 = vmatprep.subr.bf16.mxu0 %v926
    %1460 = vmatpush1.bf16.msra.mxu0 %v925
    %1461 = vmatprep.subr.bf16.mxu0 %v930
    %1462 = vmatpush1.bf16.msra.mxu0 %v929
    %1463 = vmatprep.subr.bf16.mxu0 %v934
    %1464 = vmatpush1.bf16.msra.mxu0 %v933
    %1465 = vmatprep.subr.bf16.mxu0 %v938
    %1466 = vmatpush1.bf16.msra.mxu0 %v937
    %1467 = vmatprep.mubr.bf16.mxu0 %v275
    %1468 = vmatmul.mubr.bf16.gmra.mrb[0].mxu0 %v274
    %v1469 = vpop.f32.mrb[0].mxu0
    %v1470 = vadd.f32 %v254, %v1469
    %v1471 = vpop.f32.mrb[0].mxu0
    %v1472 = vadd.f32 %v258, %v1471
    %v1473 = vpop.f32.mrb[0].mxu0
    %v1474 = vpop.f32.mrb[0].mxu0
    %1475 = vdwg.mxu0
    %1476 = vmatprep.subr.bf16.mxu0 %v942
    %1477 = vmatpush1.bf16.msra.mxu0 %v941
    %1478 = vmatprep.subr.bf16.mxu0 %v946
    %1479 = vmatpush1.bf16.msra.mxu0 %v945
    %1480 = vmatprep.subr.bf16.mxu0 %v950
    %1481 = vmatpush1.bf16.msra.mxu0 %v949
    %1482 = vmatprep.subr.bf16.mxu0 %v954
    %1483 = vmatpush1.bf16.msra.mxu0 %v953
    %1484 = vmatprep.subr.bf16.mxu0 %v958
    %1485 = vmatpush1.bf16.msra.mxu0 %v957
    %1486 = vmatprep.subr.bf16.mxu0 %v962
    %1487 = vmatpush1.bf16.msra.mxu0 %v961
    %1488 = vmatprep.subr.bf16.mxu0 %v966
    %1489 = vmatpush1.bf16.msra.mxu0 %v965
    %1490 = vmatprep.subr.bf16.mxu0 %v970
    %1491 = vmatpush1.bf16.msra.mxu0 %v969
    %1492 = vmatprep.subr.bf16.mxu0 %v974
    %1493 = vmatpush1.bf16.msra.mxu0 %v973
    %1494 = vmatprep.subr.bf16.mxu0 %v978
    %1495 = vmatpush1.bf16.msra.mxu0 %v977
    %1496 = vmatprep.subr.bf16.mxu0 %v982
    %1497 = vmatpush1.bf16.msra.mxu0 %v981
    %1498 = vmatprep.subr.bf16.mxu0 %v986
    %1499 = vmatpush1.bf16.msra.mxu0 %v985
    %1500 = vmatprep.subr.bf16.mxu0 %v990
    %1501 = vmatpush1.bf16.msra.mxu0 %v989
    %1502 = vmatprep.subr.bf16.mxu0 %v994
    %1503 = vmatpush1.bf16.msra.mxu0 %v993
    %1504 = vmatprep.subr.bf16.mxu0 %v998
    %1505 = vmatpush1.bf16.msra.mxu0 %v997
    %1506 = vmatprep.subr.bf16.mxu0 %v1002
    %1507 = vmatpush1.bf16.msra.mxu0 %v1001
    %1508 = vmatprep.mubr.bf16.mxu0 %v277
    %1509 = vmatmul.mubr.bf16.gmra.mrb[0].mxu0 %v276
    %v1510 = vpop.f32.mrb[0].mxu0
    %v1511 = vadd.f32 %v1470, %v1510
    %v1512 = vpop.f32.mrb[0].mxu0
    %v1513 = vadd.f32 %v1472, %v1512
    %v1514 = vpop.f32.mrb[0].mxu0
    %v1515 = vpop.f32.mrb[0].mxu0
    %1516 = vdwg.mxu0
    %1517 = vmatprep.subr.bf16.mxu0 %v1006
    %1518 = vmatpush1.bf16.msra.mxu0 %v1005
    %1519 = vmatprep.subr.bf16.mxu0 %v1010
    %1520 = vmatpush1.bf16.msra.mxu0 %v1009
    %1521 = vmatprep.subr.bf16.mxu0 %v1014
    %1522 = vmatpush1.bf16.msra.mxu0 %v1013
    %1523 = vmatprep.subr.bf16.mxu0 %v1018
    %1524 = vmatpush1.bf16.msra.mxu0 %v1017
    %1525 = vmatprep.subr.bf16.mxu0 %v1022
    %1526 = vmatpush1.bf16.msra.mxu0 %v1021
    %1527 = vmatprep.subr.bf16.mxu0 %v1026
    %1528 = vmatpush1.bf16.msra.mxu0 %v1025
    %1529 = vmatprep.subr.bf16.mxu0 %v1030
    %1530 = vmatpush1.bf16.msra.mxu0 %v1029
    %1531 = vmatprep.subr.bf16.mxu0 %v1034
    %1532 = vmatpush1.bf16.msra.mxu0 %v1033
    %1533 = vmatprep.subr.bf16.mxu0 %v1038
    %1534 = vmatpush1.bf16.msra.mxu0 %v1037
    %1535 = vmatprep.subr.bf16.mxu0 %v1042
    %1536 = vmatpush1.bf16.msra.mxu0 %v1041
    %1537 = vmatprep.subr.bf16.mxu0 %v1046
    %1538 = vmatpush1.bf16.msra.mxu0 %v1045
    %1539 = vmatprep.subr.bf16.mxu0 %v1050
    %1540 = vmatpush1.bf16.msra.mxu0 %v1049
    %1541 = vmatprep.subr.bf16.mxu0 %v1054
    %1542 = vmatpush1.bf16.msra.mxu0 %v1053
    %1543 = vmatprep.subr.bf16.mxu0 %v1058
    %1544 = vmatpush1.bf16.msra.mxu0 %v1057
    %1545 = vmatprep.subr.bf16.mxu0 %v1062
    %1546 = vmatpush1.bf16.msra.mxu0 %v1061
    %1547 = vmatprep.subr.bf16.mxu0 %v1066
    %1548 = vmatpush1.bf16.msra.mxu0 %v1065
    %1549 = vmatprep.mubr.bf16.mxu0 %v279
    %1550 = vmatmul.mubr.bf16.gmra.mrb[0].mxu0 %v278
    %v1551 = vpop.f32.mrb[0].mxu0
    %v1552 = vadd.f32 %v1511, %v1551
    %v1553 = vpop.f32.mrb[0].mxu0
    %v1554 = vadd.f32 %v1513, %v1553
    %v1555 = vpop.f32.mrb[0].mxu0
    %v1556 = vpop.f32.mrb[0].mxu0
    %1557 = vdwg.mxu0
    %1558 = vmatprep.subr.bf16.mxu0 %v1070
    %1559 = vmatpush1.bf16.msra.mxu0 %v1069
    %1560 = vmatprep.subr.bf16.mxu0 0
    %1561 = vmatpush1.bf16.msra.mxu0 0
    %1562 = vmatprep.subr.bf16.mxu0 0
    %1563 = vmatpush1.bf16.msra.mxu0 0
    %1564 = vmatprep.subr.bf16.mxu0 0
    %1565 = vmatpush1.bf16.msra.mxu0 0
    %1566 = vmatprep.subr.bf16.mxu0 0
    %1567 = vmatpush1.bf16.msra.mxu0 0
    %1568 = vmatprep.subr.bf16.mxu0 0
    %1569 = vmatpush1.bf16.msra.mxu0 0
    %1570 = vmatprep.subr.bf16.mxu0 0
    %1571 = vmatpush1.bf16.msra.mxu0 0
    %1572 = vmatprep.subr.bf16.mxu0 0
    %1573 = vmatpush1.bf16.msra.mxu0 0
    %1574 = vmatprep.subr.bf16.mxu0 0
    %1575 = vmatpush1.bf16.msra.mxu0 0
    %1576 = vmatprep.subr.bf16.mxu0 0
    %1577 = vmatpush1.bf16.msra.mxu0 0
    %1578 = vmatprep.subr.bf16.mxu0 0
    %1579 = vmatpush1.bf16.msra.mxu0 0
    %1580 = vmatprep.subr.bf16.mxu0 0
    %1581 = vmatpush1.bf16.msra.mxu0 0
    %1582 = vmatprep.subr.bf16.mxu0 0
    %1583 = vmatpush1.bf16.msra.mxu0 0
    %1584 = vmatprep.subr.bf16.mxu0 0
    %1585 = vmatpush1.bf16.msra.mxu0 0
    %1586 = vmatprep.subr.bf16.mxu0 0
    %1587 = vmatpush1.bf16.msra.mxu0 0
    %1588 = vmatprep.subr.bf16.mxu0 0
    %1589 = vmatpush1.bf16.msra.mxu0 0
    %1590 = vmatprep.mubr.bf16.mxu0 0
    %1591 = vmatmul.mubr.bf16.gmra.mrb[0].mxu0 %v1269
    %v1592 = vpop.f32.mrb[0].mxu0
    %v1593 = vadd.f32 %v1552, %v1592
    %v1594 = vpop.f32.mrb[0].mxu0
    %v1595 = vadd.f32 %v1554, %v1594
    %v1596 = vpop.f32.mrb[0].mxu0
    %v1597 = vpop.f32.mrb[0].mxu0
    %1598 = vdwg.mxu0
    %v1599 = vmax.f32 %v1429, 0.0
    %v1600 = vmax.f32 %v1431, 0.0
    %v1601 = vmax.f32 %v1593, 0.0
    %v1602 = vmax.f32 %v1595, 0.0
    %v1603 = vpack.c.bf16 %v1599, %v1599
    %v1604 = vpack.c.bf16 %v1600, %v1600
    %v1605 = vpack.c.bf16 %v1601, %v1601
    %v1606 = vpack.c.bf16 %v1602, %v1602
    %v1607 = vld [vmem:[%s4] sm:$0xff]
    %v1608 = vld [vmem:[%s4 + $0x8] sm:$0xff]
    %v1609 = vld [vmem:[%s4 + $0x10] sm:$0xff]
    %v1610 = vld [vmem:[%s4 + $0x18] sm:$0xff]
    %v1611 = vld [vmem:[%s4 + $0x20] sm:$0xff]
    %v1612 = vld [vmem:[%s4 + $0x28] sm:$0xff]
    %v1613 = vld [vmem:[%s4 + $0x30] sm:$0xff]
    %v1614 = vld [vmem:[%s4 + $0x38] sm:$0xff]
    %v1615 = vld [vmem:[%s4 + $0x40] sm:$0xff]
    %v1616 = vld [vmem:[%s4 + $0x48] sm:$0xff]
    %v1617 = vld [vmem:[%s4 + $0x50] sm:$0xff]
    %v1618 = vld [vmem:[%s4 + $0x58] sm:$0xff]
    %v1619 = vld [vmem:[%s4 + $0x60] sm:$0xff]
    %v1620 = vld [vmem:[%s4 + $0x68] sm:$0xff]
    %v1621 = vld [vmem:[%s4 + $0x70] sm:$0xff]
    %v1622 = vld [vmem:[%s4 + $0x78] sm:$0xff]
    %v1623 = vld [vmem:[%s4 + $0x80] sm:$0xff]
    %v1624 = vld [vmem:[%s4 + $0x88] sm:$0xff]
    %v1625 = vld [vmem:[%s4 + $0x90] sm:$0xff]
    %v1626 = vld [vmem:[%s4 + $0x98] sm:$0xff]
    %v1627 = vld [vmem:[%s4 + $0xa0] sm:$0xff]
    %v1628 = vld [vmem:[%s4 + $0xa8] sm:$0xff]
    %v1629 = vld [vmem:[%s4 + $0xb0] sm:$0xff]
    %v1630 = vld [vmem:[%s4 + $0xb8] sm:$0xff]
    %v1631 = vld [vmem:[%s4 + $0xc0] sm:$0xff]
    %v1632 = vld [vmem:[%s4 + $0xc8] sm:$0xff]
    %v1633 = vld [vmem:[%s4 + $0xd0] sm:$0xff]
    %v1634 = vld [vmem:[%s4 + $0xd8] sm:$0xff]
    %v1635 = vld [vmem:[%s4 + $0xe0] sm:$0xff]
    %v1636 = vld [vmem:[%s4 + $0xe8] sm:$0xff]
    %v1637 = vld [vmem:[%s4 + $0xf0] sm:$0xff]
    %v1638 = vld [vmem:[%s4 + $0xf8] sm:$0xff]
    %v1639 = vld [vmem:[%s4 + $0x100] sm:$0xff]
    %v1640 = vld [vmem:[%s4 + $0x108] sm:$0xff]
    %v1641 = vld [vmem:[%s4 + $0x110] sm:$0xff]
    %v1642 = vld [vmem:[%s4 + $0x118] sm:$0xff]
    %v1643 = vld [vmem:[%s4 + $0x120] sm:$0xff]
    %v1644 = vld [vmem:[%s4 + $0x128] sm:$0xff]
    %v1645 = vld [vmem:[%s4 + $0x130] sm:$0xff]
    %v1646 = vld [vmem:[%s4 + $0x138] sm:$0xff]
    %v1647 = vld [vmem:[%s4 + $0x140] sm:$0xff]
    %v1648 = vld [vmem:[%s4 + $0x148] sm:$0xff]
    %v1649 = vld [vmem:[%s4 + $0x150] sm:$0xff]
    %v1650 = vld [vmem:[%s4 + $0x158] sm:$0xff]
    %v1651 = vld [vmem:[%s4 + $0x160] sm:$0xff]
    %v1652 = vld [vmem:[%s4 + $0x168] sm:$0xff]
    %v1653 = vld [vmem:[%s4 + $0x170] sm:$0xff]
    %v1654 = vld [vmem:[%s4 + $0x178] sm:$0xff]
    %v1655 = vld [vmem:[%s4 + $0x180] sm:$0xff]
    %v1656 = vld [vmem:[%s4 + $0x188] sm:$0xff]
    %v1657 = vld [vmem:[%s5] sm:$0x3]
    %v1659 = vlaneseq
    %v1660 = vshrl.u32 %v1659, 7
    %v1661 = vsub.s32 0, %v1660
    %v1662 = vrot.slane %v1657, %v1661
    %v1663 = vlaneseq
    %v1664 = vshrl.u32 %v1663, 7
    %v1665 = vsub.s32 1, %v1664
    %v1666 = vrot.slane %v1657, %v1665
    %v1719 = vunpack.c.l.b16 %v1607
    %v1720 = vunpack.c.h.b16 %v1607
    %v1721 = vunpack.c.l.b16 %v1608
    %v1722 = vunpack.c.h.b16 %v1608
    %v1723 = vunpack.c.l.b16 %v1609
    %v1724 = vunpack.c.h.b16 %v1609
    %v1725 = vunpack.c.l.b16 %v1610
    %v1726 = vunpack.c.h.b16 %v1610
    %v1727 = vunpack.c.l.b16 %v1611
    %v1728 = vunpack.c.h.b16 %v1611
    %v1729 = vunpack.c.l.b16 %v1612
    %v1730 = vunpack.c.h.b16 %v1612
    %v1731 = vunpack.c.l.b16 %v1613
    %v1732 = vunpack.c.h.b16 %v1613
    %v1733 = vunpack.c.l.b16 %v1614
    %v1734 = vunpack.c.h.b16 %v1614
    %v1735 = vunpack.c.l.b16 %v1615
    %v1736 = vunpack.c.h.b16 %v1615
    %v1737 = vunpack.c.l.b16 %v1616
    %v1738 = vunpack.c.h.b16 %v1616
    %v1739 = vunpack.c.l.b16 %v1617
    %v1740 = vunpack.c.h.b16 %v1617
    %v1741 = vunpack.c.l.b16 %v1618
    %v1742 = vunpack.c.h.b16 %v1618
    %v1743 = vunpack.c.l.b16 %v1619
    %v1744 = vunpack.c.h.b16 %v1619
    %v1745 = vunpack.c.l.b16 %v1620
    %v1746 = vunpack.c.h.b16 %v1620
    %v1747 = vunpack.c.l.b16 %v1621
    %v1748 = vunpack.c.h.b16 %v1621
    %v1749 = vunpack.c.l.b16 %v1622
    %v1750 = vunpack.c.h.b16 %v1622
    %v1751 = vunpack.c.l.b16 %v1623
    %v1752 = vunpack.c.h.b16 %v1623
    %v1753 = vunpack.c.l.b16 %v1624
    %v1754 = vunpack.c.h.b16 %v1624
    %v1755 = vunpack.c.l.b16 %v1625
    %v1756 = vunpack.c.h.b16 %v1625
    %v1757 = vunpack.c.l.b16 %v1626
    %v1758 = vunpack.c.h.b16 %v1626
    %v1759 = vunpack.c.l.b16 %v1627
    %v1760 = vunpack.c.h.b16 %v1627
    %v1761 = vunpack.c.l.b16 %v1628
    %v1762 = vunpack.c.h.b16 %v1628
    %v1763 = vunpack.c.l.b16 %v1629
    %v1764 = vunpack.c.h.b16 %v1629
    %v1765 = vunpack.c.l.b16 %v1630
    %v1766 = vunpack.c.h.b16 %v1630
    %v1767 = vunpack.c.l.b16 %v1631
    %v1768 = vunpack.c.h.b16 %v1631
    %v1769 = vunpack.c.l.b16 %v1632
    %v1770 = vunpack.c.h.b16 %v1632
    %v1771 = vunpack.c.l.b16 %v1633
    %v1772 = vunpack.c.h.b16 %v1633
    %v1773 = vunpack.c.l.b16 %v1634
    %v1774 = vunpack.c.h.b16 %v1634
    %v1775 = vunpack.c.l.b16 %v1635
    %v1776 = vunpack.c.h.b16 %v1635
    %v1777 = vunpack.c.l.b16 %v1636
    %v1778 = vunpack.c.h.b16 %v1636
    %v1779 = vunpack.c.l.b16 %v1637
    %v1780 = vunpack.c.h.b16 %v1637
    %v1781 = vunpack.c.l.b16 %v1638
    %v1782 = vunpack.c.h.b16 %v1638
    %v1783 = vunpack.c.l.b16 %v1639
    %v1784 = vunpack.c.h.b16 %v1639
    %v1785 = vunpack.c.l.b16 %v1640
    %v1786 = vunpack.c.h.b16 %v1640
    %v1787 = vunpack.c.l.b16 %v1641
    %v1788 = vunpack.c.h.b16 %v1641
    %v1789 = vunpack.c.l.b16 %v1642
    %v1790 = vunpack.c.h.b16 %v1642
    %v1791 = vunpack.c.l.b16 %v1643
    %v1792 = vunpack.c.h.b16 %v1643
    %v1793 = vunpack.c.l.b16 %v1644
    %v1794 = vunpack.c.h.b16 %v1644
    %v1795 = vunpack.c.l.b16 %v1645
    %v1796 = vunpack.c.h.b16 %v1645
    %v1797 = vunpack.c.l.b16 %v1646
    %v1798 = vunpack.c.h.b16 %v1646
    %v1799 = vunpack.c.l.b16 %v1647
    %v1800 = vunpack.c.h.b16 %v1647
    %v1801 = vunpack.c.l.b16 %v1648
    %v1802 = vunpack.c.h.b16 %v1648
    %v1803 = vunpack.c.l.b16 %v1649
    %v1804 = vunpack.c.h.b16 %v1649
    %v1805 = vunpack.c.l.b16 %v1650
    %v1806 = vunpack.c.h.b16 %v1650
    %v1807 = vunpack.c.l.b16 %v1651
    %v1808 = vunpack.c.h.b16 %v1651
    %v1809 = vunpack.c.l.b16 %v1652
    %v1810 = vunpack.c.h.b16 %v1652
    %v1811 = vunpack.c.l.b16 %v1653
    %v1812 = vunpack.c.h.b16 %v1653
    %v1813 = vunpack.c.l.b16 %v1654
    %v1814 = vunpack.c.h.b16 %v1654
    %v1815 = vunpack.c.l.b16 %v1655
    %v1816 = vunpack.c.h.b16 %v1655
    %v1817 = vunpack.c.l.b16 %v1656
    %v1818 = vunpack.c.h.b16 %v1656
    %v1819 = vpack.c.b16 %v1721, %v1719
    %v1820 = vpack.c.b16 %v1722, %v1720
    %v1821 = vpack.c.b16 %v1725, %v1723
    %v1822 = vpack.c.b16 %v1726, %v1724
    %v1823 = vpack.c.b16 %v1729, %v1727
    %v1824 = vpack.c.b16 %v1730, %v1728
    %v1825 = vpack.c.b16 %v1733, %v1731
    %v1826 = vpack.c.b16 %v1734, %v1732
    %v1827 = vpack.c.b16 %v1737, %v1735
    %v1828 = vpack.c.b16 %v1738, %v1736
    %v1829 = vpack.c.b16 %v1741, %v1739
    %v1830 = vpack.c.b16 %v1742, %v1740
    %v1831 = vpack.c.b16 %v1745, %v1743
    %v1832 = vpack.c.b16 %v1746, %v1744
    %v1833 = vpack.c.b16 %v1749, %v1747
    %v1834 = vpack.c.b16 %v1750, %v1748
    %v1835 = vpack.c.b16 %v1753, %v1751
    %v1836 = vpack.c.b16 %v1754, %v1752
    %v1837 = vpack.c.b16 %v1757, %v1755
    %v1838 = vpack.c.b16 %v1758, %v1756
    %v1839 = vpack.c.b16 %v1761, %v1759
    %v1840 = vpack.c.b16 %v1762, %v1760
    %v1841 = vpack.c.b16 %v1765, %v1763
    %v1842 = vpack.c.b16 %v1766, %v1764
    %v1843 = vpack.c.b16 %v1769, %v1767
    %v1844 = vpack.c.b16 %v1770, %v1768
    %v1845 = vpack.c.b16 %v1773, %v1771
    %v1846 = vpack.c.b16 %v1774, %v1772
    %v1847 = vpack.c.b16 %v1777, %v1775
    %v1848 = vpack.c.b16 %v1778, %v1776
    %v1849 = vpack.c.b16 %v1781, %v1779
    %v1850 = vpack.c.b16 %v1782, %v1780
    %v1851 = vpack.c.b16 %v1785, %v1783
    %v1852 = vpack.c.b16 %v1786, %v1784
    %v1853 = vpack.c.b16 %v1789, %v1787
    %v1854 = vpack.c.b16 %v1790, %v1788
    %v1855 = vpack.c.b16 %v1793, %v1791
    %v1856 = vpack.c.b16 %v1794, %v1792
    %v1857 = vpack.c.b16 %v1797, %v1795
    %v1858 = vpack.c.b16 %v1798, %v1796
    %v1859 = vpack.c.b16 %v1801, %v1799
    %v1860 = vpack.c.b16 %v1802, %v1800
    %v1861 = vpack.c.b16 %v1805, %v1803
    %v1862 = vpack.c.b16 %v1806, %v1804
    %v1863 = vpack.c.b16 %v1809, %v1807
    %v1864 = vpack.c.b16 %v1810, %v1808
    %v1865 = vpack.c.b16 %v1813, %v1811
    %v1866 = vpack.c.b16 %v1814, %v1812
    %v1867 = vpack.c.b16 %v1817, %v1815
    %v1868 = vpack.c.b16 %v1818, %v1816
    %v1920 = vsel %vm1267, %v1606, 0
    %1922 = vmatprep.subr.bf16.mxu0 %v1820
    %1923 = vmatpush1.bf16.msra.mxu0 %v1819
    %1924 = vmatprep.subr.bf16.mxu0 %v1822
    %1925 = vmatpush1.bf16.msra.mxu0 %v1821
    %1926 = vmatprep.subr.bf16.mxu0 %v1824
    %1927 = vmatpush1.bf16.msra.mxu0 %v1823
    %1928 = vmatprep.subr.bf16.mxu0 %v1826
    %1929 = vmatpush1.bf16.msra.mxu0 %v1825
    %1930 = vmatprep.subr.bf16.mxu0 %v1828
    %1931 = vmatpush1.bf16.msra.mxu0 %v1827
    %1932 = vmatprep.subr.bf16.mxu0 %v1830
    %1933 = vmatpush1.bf16.msra.mxu0 %v1829
    %1934 = vmatprep.subr.bf16.mxu0 %v1832
    %1935 = vmatpush1.bf16.msra.mxu0 %v1831
    %1936 = vmatprep.subr.bf16.mxu0 %v1834
    %1937 = vmatpush1.bf16.msra.mxu0 %v1833
    %1938 = vmatprep.subr.bf16.mxu0 %v1836
    %1939 = vmatpush1.bf16.msra.mxu0 %v1835
    %1940 = vmatprep.subr.bf16.mxu0 %v1838
    %1941 = vmatpush1.bf16.msra.mxu0 %v1837
    %1942 = vmatprep.subr.bf16.mxu0 %v1840
    %1943 = vmatpush1.bf16.msra.mxu0 %v1839
    %1944 = vmatprep.subr.bf16.mxu0 %v1842
    %1945 = vmatpush1.bf16.msra.mxu0 %v1841
    %1946 = vmatprep.subr.bf16.mxu0 %v1844
    %1947 = vmatpush1.bf16.msra.mxu0 %v1843
    %1948 = vmatprep.subr.bf16.mxu0 %v1846
    %1949 = vmatpush1.bf16.msra.mxu0 %v1845
    %1950 = vmatprep.subr.bf16.mxu0 %v1848
    %1951 = vmatpush1.bf16.msra.mxu0 %v1847
    %1952 = vmatprep.subr.bf16.mxu0 %v1850
    %1953 = vmatpush1.bf16.msra.mxu0 %v1849
    %1954 = vmatprep.mubr.bf16.mxu0 %v1604
    %1955 = vmatmul.mubr.bf16.gmra.mrb[0].mxu0 %v1603
    %v1956 = vpop.f32.mrb[0].mxu0
    %v1957 = vadd.f32 %v1662, %v1956
    %v1958 = vpop.f32.mrb[0].mxu0
    %v1959 = vadd.f32 %v1666, %v1958
    %v1960 = vpop.f32.mrb[0].mxu0
    %v1961 = vpop.f32.mrb[0].mxu0
    %1962 = vdwg.mxu0
    %1963 = vmatprep.subr.bf16.mxu0 %v1852
    %1964 = vmatpush1.bf16.msra.mxu0 %v1851
    %1965 = vmatprep.subr.bf16.mxu0 %v1854
    %1966 = vmatpush1.bf16.msra.mxu0 %v1853
    %1967 = vmatprep.subr.bf16.mxu0 %v1856
    %1968 = vmatpush1.bf16.msra.mxu0 %v1855
    %1969 = vmatprep.subr.bf16.mxu0 %v1858
    %1970 = vmatpush1.bf16.msra.mxu0 %v1857
    %1971 = vmatprep.subr.bf16.mxu0 %v1860
    %1972 = vmatpush1.bf16.msra.mxu0 %v1859
    %1973 = vmatprep.subr.bf16.mxu0 %v1862
    %1974 = vmatpush1.bf16.msra.mxu0 %v1861
    %1975 = vmatprep.subr.bf16.mxu0 %v1864
    %1976 = vmatpush1.bf16.msra.mxu0 %v1863
    %1977 = vmatprep.subr.bf16.mxu0 %v1866
    %1978 = vmatpush1.bf16.msra.mxu0 %v1865
    %1979 = vmatprep.subr.bf16.mxu0 %v1868
    %1980 = vmatpush1.bf16.msra.mxu0 %v1867
    %1981 = vmatprep.subr.bf16.mxu0 0
    %1982 = vmatpush1.bf16.msra.mxu0 0
    %1983 = vmatprep.subr.bf16.mxu0 0
    %1984 = vmatpush1.bf16.msra.mxu0 0
    %1985 = vmatprep.subr.bf16.mxu0 0
    %1986 = vmatpush1.bf16.msra.mxu0 0
    %1987 = vmatprep.subr.bf16.mxu0 0
    %1988 = vmatpush1.bf16.msra.mxu0 0
    %1989 = vmatprep.subr.bf16.mxu0 0
    %1990 = vmatpush1.bf16.msra.mxu0 0
    %1991 = vmatprep.subr.bf16.mxu0 0
    %1992 = vmatpush1.bf16.msra.mxu0 0
    %1993 = vmatprep.subr.bf16.mxu0 0
    %1994 = vmatpush1.bf16.msra.mxu0 0
    %1995 = vmatprep.mubr.bf16.mxu0 %v1920
    %1996 = vmatmul.mubr.bf16.gmra.mrb[0].mxu0 %v1605
    %v1997 = vpop.f32.mrb[0].mxu0
    %v1998 = vadd.f32 %v1957, %v1997
    %v1999 = vpop.f32.mrb[0].mxu0
    %v2000 = vadd.f32 %v1959, %v1999
    %v2001 = vpop.f32.mrb[0].mxu0
    %v2002 = vpop.f32.mrb[0].mxu0
    %2003 = vdwg.mxu0
    %v2004 = vmul.f32 %v2000, 0.5
    %v2005 = vmul.f32 %v2004, 1.442695
    %v2006 = vpow.pop %v2005
    %v2007 = vmul.f32 %v44, %v2006
    %v2008 = vadd.f32 %v1998, %v2007
    %v2009 = vpack.c.bf16 %v2008, %v2008
    %v2010 = vld [vmem:[%s6] sm:$0xff]
    %v2011 = vld [vmem:[%s6 + $0x8] sm:$0xff]
    %v2012 = vld [vmem:[%s6 + $0x10] sm:$0xff]
    %v2013 = vld [vmem:[%s6 + $0x18] sm:$0xff]
    %v2014 = vld [vmem:[%s6 + $0x20] sm:$0xff]
    %v2015 = vld [vmem:[%s6 + $0x28] sm:$0xff]
    %v2016 = vld [vmem:[%s6 + $0x30] sm:$0xff]
    %v2017 = vld [vmem:[%s6 + $0x38] sm:$0xff]
    %v2018 = vld [vmem:[%s6 + $0x40] sm:$0xff]
    %v2019 = vld [vmem:[%s6 + $0x48] sm:$0xff]
    %v2020 = vld [vmem:[%s6 + $0x50] sm:$0xff]
    %v2021 = vld [vmem:[%s6 + $0x58] sm:$0xff]
    %v2022 = vld [vmem:[%s6 + $0x60] sm:$0xff]
    %v2023 = vld [vmem:[%s6 + $0x68] sm:$0xff]
    %v2024 = vld [vmem:[%s6 + $0x70] sm:$0xff]
    %v2025 = vld [vmem:[%s6 + $0x78] sm:$0xff]
    %v2026 = vld [vmem:[%s6 + $0x80] sm:$0xff]
    %v2027 = vld [vmem:[%s6 + $0x88] sm:$0xff]
    %v2028 = vld [vmem:[%s6 + $0x90] sm:$0xff]
    %v2029 = vld [vmem:[%s6 + $0x98] sm:$0xff]
    %v2030 = vld [vmem:[%s6 + $0xa0] sm:$0xff]
    %v2031 = vld [vmem:[%s6 + $0xa8] sm:$0xff]
    %v2032 = vld [vmem:[%s6 + $0xb0] sm:$0xff]
    %v2033 = vld [vmem:[%s6 + $0xb8] sm:$0xff]
    %v2034 = vld [vmem:[%s6 + $0xc0] sm:$0xff]
    %v2035 = vld [vmem:[%s6 + $0xc8] sm:$0xff]
    %v2036 = vld [vmem:[%s6 + $0xd0] sm:$0xff]
    %v2037 = vld [vmem:[%s6 + $0xd8] sm:$0xff]
    %v2038 = vld [vmem:[%s6 + $0xe0] sm:$0xff]
    %v2039 = vld [vmem:[%s6 + $0xe8] sm:$0xff]
    %v2040 = vld [vmem:[%s6 + $0xf0] sm:$0xff]
    %v2041 = vld [vmem:[%s6 + $0xf8] sm:$0xff]
    %v2042 = vld [vmem:[%s7] sm:$0xf]
    %v2044 = vlaneseq
    %v2045 = vshrl.u32 %v2044, 7
    %v2046 = vsub.s32 0, %v2045
    %v2047 = vrot.slane %v2042, %v2046
    %v2048 = vlaneseq
    %v2049 = vshrl.u32 %v2048, 7
    %v2050 = vsub.s32 1, %v2049
    %v2051 = vrot.slane %v2042, %v2050
    %v2052 = vlaneseq
    %v2053 = vshrl.u32 %v2052, 7
    %v2054 = vsub.s32 2, %v2053
    %v2055 = vrot.slane %v2042, %v2054
    %v2056 = vlaneseq
    %v2057 = vshrl.u32 %v2056, 7
    %v2058 = vsub.s32 3, %v2057
    %v2059 = vrot.slane %v2042, %v2058
    %v2096 = vunpack.c.l.b16 %v2010
    %v2097 = vunpack.c.h.b16 %v2010
    %v2098 = vunpack.c.l.b16 %v2011
    %v2099 = vunpack.c.h.b16 %v2011
    %v2100 = vunpack.c.l.b16 %v2012
    %v2101 = vunpack.c.h.b16 %v2012
    %v2102 = vunpack.c.l.b16 %v2013
    %v2103 = vunpack.c.h.b16 %v2013
    %v2104 = vunpack.c.l.b16 %v2014
    %v2105 = vunpack.c.h.b16 %v2014
    %v2106 = vunpack.c.l.b16 %v2015
    %v2107 = vunpack.c.h.b16 %v2015
    %v2108 = vunpack.c.l.b16 %v2016
    %v2109 = vunpack.c.h.b16 %v2016
    %v2110 = vunpack.c.l.b16 %v2017
    %v2111 = vunpack.c.h.b16 %v2017
    %v2112 = vunpack.c.l.b16 %v2018
    %v2113 = vunpack.c.h.b16 %v2018
    %v2114 = vunpack.c.l.b16 %v2019
    %v2115 = vunpack.c.h.b16 %v2019
    %v2116 = vunpack.c.l.b16 %v2020
    %v2117 = vunpack.c.h.b16 %v2020
    %v2118 = vunpack.c.l.b16 %v2021
    %v2119 = vunpack.c.h.b16 %v2021
    %v2120 = vunpack.c.l.b16 %v2022
    %v2121 = vunpack.c.h.b16 %v2022
    %v2122 = vunpack.c.l.b16 %v2023
    %v2123 = vunpack.c.h.b16 %v2023
    %v2124 = vunpack.c.l.b16 %v2024
    %v2125 = vunpack.c.h.b16 %v2024
    %v2126 = vunpack.c.l.b16 %v2025
    %v2127 = vunpack.c.h.b16 %v2025
    %v2128 = vunpack.c.l.b16 %v2026
    %v2129 = vunpack.c.h.b16 %v2026
    %v2130 = vunpack.c.l.b16 %v2027
    %v2131 = vunpack.c.h.b16 %v2027
    %v2132 = vunpack.c.l.b16 %v2028
    %v2133 = vunpack.c.h.b16 %v2028
    %v2134 = vunpack.c.l.b16 %v2029
    %v2135 = vunpack.c.h.b16 %v2029
    %v2136 = vunpack.c.l.b16 %v2030
    %v2137 = vunpack.c.h.b16 %v2030
    %v2138 = vunpack.c.l.b16 %v2031
    %v2139 = vunpack.c.h.b16 %v2031
    %v2140 = vunpack.c.l.b16 %v2032
    %v2141 = vunpack.c.h.b16 %v2032
    %v2142 = vunpack.c.l.b16 %v2033
    %v2143 = vunpack.c.h.b16 %v2033
    %v2144 = vunpack.c.l.b16 %v2034
    %v2145 = vunpack.c.h.b16 %v2034
    %v2146 = vunpack.c.l.b16 %v2035
    %v2147 = vunpack.c.h.b16 %v2035
    %v2148 = vunpack.c.l.b16 %v2036
    %v2149 = vunpack.c.h.b16 %v2036
    %v2150 = vunpack.c.l.b16 %v2037
    %v2151 = vunpack.c.h.b16 %v2037
    %v2152 = vunpack.c.l.b16 %v2038
    %v2153 = vunpack.c.h.b16 %v2038
    %v2154 = vunpack.c.l.b16 %v2039
    %v2155 = vunpack.c.h.b16 %v2039
    %v2156 = vunpack.c.l.b16 %v2040
    %v2157 = vunpack.c.h.b16 %v2040
    %v2158 = vunpack.c.l.b16 %v2041
    %v2159 = vunpack.c.h.b16 %v2041
    %v2160 = vpack.c.b16 %v2100, %v2096
    %v2161 = vpack.c.b16 %v2101, %v2097
    %v2162 = vpack.c.b16 %v2102, %v2098
    %v2163 = vpack.c.b16 %v2103, %v2099
    %v2164 = vpack.c.b16 %v2108, %v2104
    %v2165 = vpack.c.b16 %v2109, %v2105
    %v2166 = vpack.c.b16 %v2110, %v2106
    %v2167 = vpack.c.b16 %v2111, %v2107
    %v2168 = vpack.c.b16 %v2116, %v2112
    %v2169 = vpack.c.b16 %v2117, %v2113
    %v2170 = vpack.c.b16 %v2118, %v2114
    %v2171 = vpack.c.b16 %v2119, %v2115
    %v2172 = vpack.c.b16 %v2124, %v2120
    %v2173 = vpack.c.b16 %v2125, %v2121
    %v2174 = vpack.c.b16 %v2126, %v2122
    %v2175 = vpack.c.b16 %v2127, %v2123
    %v2176 = vpack.c.b16 %v2132, %v2128
    %v2177 = vpack.c.b16 %v2133, %v2129
    %v2178 = vpack.c.b16 %v2134, %v2130
    %v2179 = vpack.c.b16 %v2135, %v2131
    %v2180 = vpack.c.b16 %v2140, %v2136
    %v2181 = vpack.c.b16 %v2141, %v2137
    %v2182 = vpack.c.b16 %v2142, %v2138
    %v2183 = vpack.c.b16 %v2143, %v2139
    %v2184 = vpack.c.b16 %v2148, %v2144
    %v2185 = vpack.c.b16 %v2149, %v2145
    %v2186 = vpack.c.b16 %v2150, %v2146
    %v2187 = vpack.c.b16 %v2151, %v2147
    %v2188 = vpack.c.b16 %v2156, %v2152
    %v2189 = vpack.c.b16 %v2157, %v2153
    %v2190 = vpack.c.b16 %v2158, %v2154
    %v2191 = vpack.c.b16 %v2159, %v2155
    %2224 = vmatprep.subr.bf16.mxu0 %v2161
    %2225 = vmatpush1.bf16.msra.mxu0 %v2160
    %2226 = vmatprep.subr.bf16.mxu0 %v2165
    %2227 = vmatpush1.bf16.msra.mxu0 %v2164
    %2228 = vmatprep.subr.bf16.mxu0 %v2169
    %2229 = vmatpush1.bf16.msra.mxu0 %v2168
    %2230 = vmatprep.subr.bf16.mxu0 %v2173
    %2231 = vmatpush1.bf16.msra.mxu0 %v2172
    %2232 = vmatprep.subr.bf16.mxu0 %v2177
    %2233 = vmatpush1.bf16.msra.mxu0 %v2176
    %2234 = vmatprep.subr.bf16.mxu0 %v2181
    %2235 = vmatpush1.bf16.msra.mxu0 %v2180
    %2236 = vmatprep.subr.bf16.mxu0 %v2185
    %2237 = vmatpush1.bf16.msra.mxu0 %v2184
    %2238 = vmatprep.subr.bf16.mxu0 %v2189
    %2239 = vmatpush1.bf16.msra.mxu0 %v2188
    %2240 = vmatprep.subr.bf16.mxu0 0
    %2241 = vmatpush1.bf16.msra.mxu0 0
    %2242 = vmatprep.subr.bf16.mxu0 0
    %2243 = vmatpush1.bf16.msra.mxu0 0
    %2244 = vmatprep.subr.bf16.mxu0 0
    %2245 = vmatpush1.bf16.msra.mxu0 0
    %2246 = vmatprep.subr.bf16.mxu0 0
    %2247 = vmatpush1.bf16.msra.mxu0 0
    %2248 = vmatprep.subr.bf16.mxu0 0
    %2249 = vmatpush1.bf16.msra.mxu0 0
    %2250 = vmatprep.subr.bf16.mxu0 0
    %2251 = vmatpush1.bf16.msra.mxu0 0
    %2252 = vmatprep.subr.bf16.mxu0 0
    %2253 = vmatpush1.bf16.msra.mxu0 0
    %2254 = vmatprep.subr.bf16.mxu0 0
    %2255 = vmatpush1.bf16.msra.mxu0 0
    %2256 = vmatprep.mubr.bf16.mxu0 0
    %2257 = vmatmul.mubr.bf16.gmra.mrb[0].mxu0 %v2009
    %v2258 = vpop.f32.mrb[0].mxu0
    %v2259 = vadd.f32 %v2047, %v2258
    %v2260 = vpop.f32.mrb[0].mxu0
    %v2261 = vadd.f32 %v2051, %v2260
    %v2262 = vpop.f32.mrb[0].mxu0
    %v2263 = vpop.f32.mrb[0].mxu0
    %2264 = vdwg.mxu0
    %2265 = vmatprep.subr.bf16.mxu0 %v2163
    %2266 = vmatpush1.bf16.msra.mxu0 %v2162
    %2267 = vmatprep.subr.bf16.mxu0 %v2167
    %2268 = vmatpush1.bf16.msra.mxu0 %v2166
    %2269 = vmatprep.subr.bf16.mxu0 %v2171
    %2270 = vmatpush1.bf16.msra.mxu0 %v2170
    %2271 = vmatprep.subr.bf16.mxu0 %v2175
    %2272 = vmatpush1.bf16.msra.mxu0 %v2174
    %2273 = vmatprep.subr.bf16.mxu0 %v2179
    %2274 = vmatpush1.bf16.msra.mxu0 %v2178
    %2275 = vmatprep.subr.bf16.mxu0 %v2183
    %2276 = vmatpush1.bf16.msra.mxu0 %v2182
    %2277 = vmatprep.subr.bf16.mxu0 %v2187
    %2278 = vmatpush1.bf16.msra.mxu0 %v2186
    %2279 = vmatprep.subr.bf16.mxu0 %v2191
    %2280 = vmatpush1.bf16.msra.mxu0 %v2190
    %2281 = vmatprep.subr.bf16.mxu0 0
    %2282 = vmatpush1.bf16.msra.mxu0 0
    %2283 = vmatprep.subr.bf16.mxu0 0
    %2284 = vmatpush1.bf16.msra.mxu0 0
    %2285 = vmatprep.subr.bf16.mxu0 0
    %2286 = vmatpush1.bf16.msra.mxu0 0
    %2287 = vmatprep.subr.bf16.mxu0 0
    %2288 = vmatpush1.bf16.msra.mxu0 0
    %2289 = vmatprep.subr.bf16.mxu0 0
    %2290 = vmatpush1.bf16.msra.mxu0 0
    %2291 = vmatprep.subr.bf16.mxu0 0
    %2292 = vmatpush1.bf16.msra.mxu0 0
    %2293 = vmatprep.subr.bf16.mxu0 0
    %2294 = vmatpush1.bf16.msra.mxu0 0
    %2295 = vmatprep.subr.bf16.mxu0 0
    %2296 = vmatpush1.bf16.msra.mxu0 0
    %2297 = vmatprep.mubr.bf16.mxu0 0
    %2298 = vmatmul.mubr.bf16.gmra.mrb[0].mxu0 %v2009
    %v2299 = vpop.f32.mrb[0].mxu0
    %v2300 = vadd.f32 %v2055, %v2299
    %v2301 = vpop.f32.mrb[0].mxu0
    %v2302 = vadd.f32 %v2059, %v2301
    %v2303 = vpop.f32.mrb[0].mxu0
    %v2304 = vpop.f32.mrb[0].mxu0
    %2305 = vdwg.mxu0
    %v2306 = vmax.f32 %v2259, 0.0
    %v2307 = vmax.f32 %v2261, 0.0
    %v2308 = vmax.f32 %v2300, 0.0
    %v2309 = vmax.f32 %v2302, 0.0
    %v2310 = vpack.c.bf16 %v2306, %v2306
    %v2311 = vpack.c.bf16 %v2307, %v2307
    %v2312 = vpack.c.bf16 %v2308, %v2308
    %v2313 = vpack.c.bf16 %v2309, %v2309
    %v2314 = vld [vmem:[%s8] sm:$0xff]
    %v2315 = vld [vmem:[%s8 + $0x8] sm:$0xff]
    %v2316 = vld [vmem:[%s8 + $0x10] sm:$0xff]
    %v2317 = vld [vmem:[%s8 + $0x18] sm:$0xf]
    %v2318 = vld [vmem:[%s8 + $0x1c] sm:$0xff]
    %v2319 = vld [vmem:[%s8 + $0x24] sm:$0xff]
    %v2320 = vld [vmem:[%s8 + $0x2c] sm:$0xff]
    %v2321 = vld [vmem:[%s8 + $0x34] sm:$0xf]
    %v2322 = vld [vmem:[%s8 + $0x38] sm:$0xff]
    %v2323 = vld [vmem:[%s8 + $0x40] sm:$0xff]
    %v2324 = vld [vmem:[%s8 + $0x48] sm:$0xff]
    %v2325 = vld [vmem:[%s8 + $0x50] sm:$0xf]
    %v2326 = vld [vmem:[%s8 + $0x54] sm:$0xff]
    %v2327 = vld [vmem:[%s8 + $0x5c] sm:$0xff]
    %v2328 = vld [vmem:[%s8 + $0x64] sm:$0xff]
    %v2329 = vld [vmem:[%s8 + $0x6c] sm:$0xf]
    %v2330 = vld [vmem:[%s8 + $0x70] sm:$0xff]
    %v2331 = vld [vmem:[%s8 + $0x78] sm:$0xff]
    %v2332 = vld [vmem:[%s8 + $0x80] sm:$0xff]
    %v2333 = vld [vmem:[%s8 + $0x88] sm:$0xf]
    %v2334 = vld [vmem:[%s8 + $0x8c] sm:$0xff]
    %v2335 = vld [vmem:[%s8 + $0x94] sm:$0xff]
    %v2336 = vld [vmem:[%s8 + $0x9c] sm:$0xff]
    %v2337 = vld [vmem:[%s8 + $0xa4] sm:$0xf]
    %v2338 = vld [vmem:[%s8 + $0xa8] sm:$0xff]
    %v2339 = vld [vmem:[%s8 + $0xb0] sm:$0xff]
    %v2340 = vld [vmem:[%s8 + $0xb8] sm:$0xff]
    %v2341 = vld [vmem:[%s8 + $0xc0] sm:$0xf]
    %v2342 = vld [vmem:[%s8 + $0xc4] sm:$0xff]
    %v2343 = vld [vmem:[%s8 + $0xcc] sm:$0xff]
    %v2344 = vld [vmem:[%s8 + $0xd4] sm:$0xff]
    %v2345 = vld [vmem:[%s8 + $0xdc] sm:$0xf]
    %v2346 = vld [vmem:[%s8 + $0xe0] sm:$0xff]
    %v2347 = vld [vmem:[%s8 + $0xe8] sm:$0xff]
    %v2348 = vld [vmem:[%s8 + $0xf0] sm:$0xff]
    %v2349 = vld [vmem:[%s8 + $0xf8] sm:$0xf]
    %v2350 = vld [vmem:[%s8 + $0xfc] sm:$0xff]
    %v2351 = vld [vmem:[%s8 + $0x104] sm:$0xff]
    %v2352 = vld [vmem:[%s8 + $0x10c] sm:$0xff]
    %v2353 = vld [vmem:[%s8 + $0x114] sm:$0xf]
    %v2354 = vld [vmem:[%s8 + $0x118] sm:$0xff]
    %v2355 = vld [vmem:[%s8 + $0x120] sm:$0xff]
    %v2356 = vld [vmem:[%s8 + $0x128] sm:$0xff]
    %v2357 = vld [vmem:[%s8 + $0x130] sm:$0xf]
    %v2358 = vld [vmem:[%s8 + $0x134] sm:$0xff]
    %v2359 = vld [vmem:[%s8 + $0x13c] sm:$0xff]
    %v2360 = vld [vmem:[%s8 + $0x144] sm:$0xff]
    %v2361 = vld [vmem:[%s8 + $0x14c] sm:$0xf]
    %v2362 = vld [vmem:[%s8 + $0x150] sm:$0xff]
    %v2363 = vld [vmem:[%s8 + $0x158] sm:$0xff]
    %v2364 = vld [vmem:[%s8 + $0x160] sm:$0xff]
    %v2365 = vld [vmem:[%s8 + $0x168] sm:$0xf]
    %v2366 = vld [vmem:[%s8 + $0x16c] sm:$0xff]
    %v2367 = vld [vmem:[%s8 + $0x174] sm:$0xff]
    %v2368 = vld [vmem:[%s8 + $0x17c] sm:$0xff]
    %v2369 = vld [vmem:[%s8 + $0x184] sm:$0xf]
    %v2370 = vld [vmem:[%s8 + $0x188] sm:$0xff]
    %v2371 = vld [vmem:[%s8 + $0x190] sm:$0xff]
    %v2372 = vld [vmem:[%s8 + $0x198] sm:$0xff]
    %v2373 = vld [vmem:[%s8 + $0x1a0] sm:$0xf]
    %v2374 = vld [vmem:[%s8 + $0x1a4] sm:$0xff]
    %v2375 = vld [vmem:[%s8 + $0x1ac] sm:$0xff]
    %v2376 = vld [vmem:[%s8 + $0x1b4] sm:$0xff]
    %v2377 = vld [vmem:[%s8 + $0x1bc] sm:$0xf]
    %v2378 = vld [vmem:[%s8 + $0x1c0] sm:$0xff]
    %v2379 = vld [vmem:[%s8 + $0x1c8] sm:$0xff]
    %v2380 = vld [vmem:[%s8 + $0x1d0] sm:$0xff]
    %v2381 = vld [vmem:[%s8 + $0x1d8] sm:$0xf]
    %v2382 = vld [vmem:[%s8 + $0x1dc] sm:$0xff]
    %v2383 = vld [vmem:[%s8 + $0x1e4] sm:$0xff]
    %v2384 = vld [vmem:[%s8 + $0x1ec] sm:$0xff]
    %v2385 = vld [vmem:[%s8 + $0x1f4] sm:$0xf]
    %v2386 = vld [vmem:[%s8 + $0x1f8] sm:$0xff]
    %v2387 = vld [vmem:[%s8 + $0x200] sm:$0xff]
    %v2388 = vld [vmem:[%s8 + $0x208] sm:$0xff]
    %v2389 = vld [vmem:[%s8 + $0x210] sm:$0xf]
    %v2390 = vld [vmem:[%s8 + $0x214] sm:$0xff]
    %v2391 = vld [vmem:[%s8 + $0x21c] sm:$0xff]
    %v2392 = vld [vmem:[%s8 + $0x224] sm:$0xff]
    %v2393 = vld [vmem:[%s8 + $0x22c] sm:$0xf]
    %v2394 = vld [vmem:[%s8 + $0x230] sm:$0xff]
    %v2395 = vld [vmem:[%s8 + $0x238] sm:$0xff]
    %v2396 = vld [vmem:[%s8 + $0x240] sm:$0xff]
    %v2397 = vld [vmem:[%s8 + $0x248] sm:$0xf]
    %v2398 = vld [vmem:[%s8 + $0x24c] sm:$0xff]
    %v2399 = vld [vmem:[%s8 + $0x254] sm:$0xff]
    %v2400 = vld [vmem:[%s8 + $0x25c] sm:$0xff]
    %v2401 = vld [vmem:[%s8 + $0x264] sm:$0xf]
    %v2402 = vld [vmem:[%s8 + $0x268] sm:$0xff]
    %v2403 = vld [vmem:[%s8 + $0x270] sm:$0xff]
    %v2404 = vld [vmem:[%s8 + $0x278] sm:$0xff]
    %v2405 = vld [vmem:[%s8 + $0x280] sm:$0xf]
    %v2406 = vld [vmem:[%s8 + $0x284] sm:$0xff]
    %v2407 = vld [vmem:[%s8 + $0x28c] sm:$0xff]
    %v2408 = vld [vmem:[%s8 + $0x294] sm:$0xff]
    %v2409 = vld [vmem:[%s8 + $0x29c] sm:$0xf]
    %v2410 = vld [vmem:[%s8 + $0x2a0] sm:$0xff]
    %v2411 = vld [vmem:[%s8 + $0x2a8] sm:$0xff]
    %v2412 = vld [vmem:[%s8 + $0x2b0] sm:$0xff]
    %v2413 = vld [vmem:[%s8 + $0x2b8] sm:$0xf]
    %v2414 = vld [vmem:[%s8 + $0x2bc] sm:$0xff]
    %v2415 = vld [vmem:[%s8 + $0x2c4] sm:$0xff]
    %v2416 = vld [vmem:[%s8 + $0x2cc] sm:$0xff]
    %v2417 = vld [vmem:[%s8 + $0x2d4] sm:$0xf]
    %v2418 = vld [vmem:[%s8 + $0x2d8] sm:$0xff]
    %v2419 = vld [vmem:[%s8 + $0x2e0] sm:$0xff]
    %v2420 = vld [vmem:[%s8 + $0x2e8] sm:$0xff]
    %v2421 = vld [vmem:[%s8 + $0x2f0] sm:$0xf]
    %v2422 = vld [vmem:[%s8 + $0x2f4] sm:$0xff]
    %v2423 = vld [vmem:[%s8 + $0x2fc] sm:$0xff]
    %v2424 = vld [vmem:[%s8 + $0x304] sm:$0xff]
    %v2425 = vld [vmem:[%s8 + $0x30c] sm:$0xf]
    %v2426 = vld [vmem:[%s8 + $0x310] sm:$0xff]
    %v2427 = vld [vmem:[%s8 + $0x318] sm:$0xff]
    %v2428 = vld [vmem:[%s8 + $0x320] sm:$0xff]
    %v2429 = vld [vmem:[%s8 + $0x328] sm:$0xf]
    %v2430 = vld [vmem:[%s8 + $0x32c] sm:$0xff]
    %v2431 = vld [vmem:[%s8 + $0x334] sm:$0xff]
    %v2432 = vld [vmem:[%s8 + $0x33c] sm:$0xff]
    %v2433 = vld [vmem:[%s8 + $0x344] sm:$0xf]
    %v2434 = vld [vmem:[%s8 + $0x348] sm:$0xff]
    %v2435 = vld [vmem:[%s8 + $0x350] sm:$0xff]
    %v2436 = vld [vmem:[%s8 + $0x358] sm:$0xff]
    %v2437 = vld [vmem:[%s8 + $0x360] sm:$0xf]
    %v2438 = vld [vmem:[%s8 + $0x364] sm:$0xff]
    %v2439 = vld [vmem:[%s8 + $0x36c] sm:$0xff]
    %v2440 = vld [vmem:[%s8 + $0x374] sm:$0xff]
    %v2441 = vld [vmem:[%s8 + $0x37c] sm:$0xf]
    %v2442 = vld [vmem:[%s8 + $0x380] sm:$0xff]
    %v2443 = vld [vmem:[%s8 + $0x388] sm:$0xff]
    %v2444 = vld [vmem:[%s8 + $0x390] sm:$0xff]
    %v2445 = vld [vmem:[%s8 + $0x398] sm:$0xf]
    %v2446 = vld [vmem:[%s8 + $0x39c] sm:$0xff]
    %v2447 = vld [vmem:[%s8 + $0x3a4] sm:$0xff]
    %v2448 = vld [vmem:[%s8 + $0x3ac] sm:$0xff]
    %v2449 = vld [vmem:[%s8 + $0x3b4] sm:$0xf]
    %v2450 = vld [vmem:[%s8 + $0x3b8] sm:$0xff]
    %v2451 = vld [vmem:[%s8 + $0x3c0] sm:$0xff]
    %v2452 = vld [vmem:[%s8 + $0x3c8] sm:$0xff]
    %v2453 = vld [vmem:[%s8 + $0x3d0] sm:$0xf]
    %v2454 = vld [vmem:[%s8 + $0x3d4] sm:$0xff]
    %v2455 = vld [vmem:[%s8 + $0x3dc] sm:$0xff]
    %v2456 = vld [vmem:[%s8 + $0x3e4] sm:$0xff]
    %v2457 = vld [vmem:[%s8 + $0x3ec] sm:$0xf]
    %v2458 = vld [vmem:[%s8 + $0x3f0] sm:$0xff]
    %v2459 = vld [vmem:[%s8 + $0x3f8] sm:$0xff]
    %v2460 = vld [vmem:[%s8 + $0x400] sm:$0xff]
    %v2461 = vld [vmem:[%s8 + $0x408] sm:$0xf]
    %v2462 = vld [vmem:[%s8 + $0x40c] sm:$0xff]
    %v2463 = vld [vmem:[%s8 + $0x414] sm:$0xff]
    %v2464 = vld [vmem:[%s8 + $0x41c] sm:$0xff]
    %v2465 = vld [vmem:[%s8 + $0x424] sm:$0xf]
    %v2466 = vld [vmem:[%s8 + $0x428] sm:$0xff]
    %v2467 = vld [vmem:[%s8 + $0x430] sm:$0xff]
    %v2468 = vld [vmem:[%s8 + $0x438] sm:$0xff]
    %v2469 = vld [vmem:[%s8 + $0x440] sm:$0xf]
    %v2470 = vld [vmem:[%s8 + $0x444] sm:$0xff]
    %v2471 = vld [vmem:[%s8 + $0x44c] sm:$0xff]
    %v2472 = vld [vmem:[%s8 + $0x454] sm:$0xff]
    %v2473 = vld [vmem:[%s8 + $0x45c] sm:$0xf]
    %v2474 = vld [vmem:[%s8 + $0x460] sm:$0xff]
    %v2475 = vld [vmem:[%s8 + $0x468] sm:$0xff]
    %v2476 = vld [vmem:[%s8 + $0x470] sm:$0xff]
    %v2477 = vld [vmem:[%s8 + $0x478] sm:$0xf]
    %v2478 = vld [vmem:[%s8 + $0x47c] sm:$0xff]
    %v2479 = vld [vmem:[%s8 + $0x484] sm:$0xff]
    %v2480 = vld [vmem:[%s8 + $0x48c] sm:$0xff]
    %v2481 = vld [vmem:[%s8 + $0x494] sm:$0xf]
    %v2482 = vld [vmem:[%s8 + $0x498] sm:$0xff]
    %v2483 = vld [vmem:[%s8 + $0x4a0] sm:$0xff]
    %v2484 = vld [vmem:[%s8 + $0x4a8] sm:$0xff]
    %v2485 = vld [vmem:[%s8 + $0x4b0] sm:$0xf]
    %v2486 = vld [vmem:[%s8 + $0x4b4] sm:$0xff]
    %v2487 = vld [vmem:[%s8 + $0x4bc] sm:$0xff]
    %v2488 = vld [vmem:[%s8 + $0x4c4] sm:$0xff]
    %v2489 = vld [vmem:[%s8 + $0x4cc] sm:$0xf]
    %v2490 = vld [vmem:[%s8 + $0x4d0] sm:$0xff]
    %v2491 = vld [vmem:[%s8 + $0x4d8] sm:$0xff]
    %v2492 = vld [vmem:[%s8 + $0x4e0] sm:$0xff]
    %v2493 = vld [vmem:[%s8 + $0x4e8] sm:$0xf]
    %v2494 = vld [vmem:[%s8 + $0x4ec] sm:$0xff]
    %v2495 = vld [vmem:[%s8 + $0x4f4] sm:$0xff]
    %v2496 = vld [vmem:[%s8 + $0x4fc] sm:$0xff]
    %v2497 = vld [vmem:[%s8 + $0x504] sm:$0xf]
    %v2498 = vld [vmem:[%s8 + $0x508] sm:$0xff]
    %v2499 = vld [vmem:[%s8 + $0x510] sm:$0xff]
    %v2500 = vld [vmem:[%s8 + $0x518] sm:$0xff]
    %v2501 = vld [vmem:[%s8 + $0x520] sm:$0xf]
    %v2502 = vld [vmem:[%s8 + $0x524] sm:$0xff]
    %v2503 = vld [vmem:[%s8 + $0x52c] sm:$0xff]
    %v2504 = vld [vmem:[%s8 + $0x534] sm:$0xff]
    %v2505 = vld [vmem:[%s8 + $0x53c] sm:$0xf]
    %v2506 = vld [vmem:[%s8 + $0x540] sm:$0xff]
    %v2507 = vld [vmem:[%s8 + $0x548] sm:$0xff]
    %v2508 = vld [vmem:[%s8 + $0x550] sm:$0xff]
    %v2509 = vld [vmem:[%s8 + $0x558] sm:$0xf]
    %v2510 = vld [vmem:[%s8 + $0x55c] sm:$0xff]
    %v2511 = vld [vmem:[%s8 + $0x564] sm:$0xff]
    %v2512 = vld [vmem:[%s8 + $0x56c] sm:$0xff]
    %v2513 = vld [vmem:[%s8 + $0x574] sm:$0xf]
    %v2514 = vld [vmem:[%s9] sm:$0x7f]
    %v2516 = vlaneseq
    %v2517 = vshrl.u32 %v2516, 7
    %v2518 = vsub.s32 0, %v2517
    %v2519 = vrot.slane %v2514, %v2518
    %v2520 = vlaneseq
    %v2521 = vshrl.u32 %v2520, 7
    %v2522 = vsub.s32 1, %v2521
    %v2523 = vrot.slane %v2514, %v2522
    %v2524 = vlaneseq
    %v2525 = vshrl.u32 %v2524, 7
    %v2526 = vsub.s32 2, %v2525
    %v2527 = vrot.slane %v2514, %v2526
    %v2528 = vlaneseq
    %v2529 = vshrl.u32 %v2528, 7
    %v2530 = vsub.s32 3, %v2529
    %v2531 = vrot.slane %v2514, %v2530
    %v2532 = vlaneseq
    %v2533 = vshrl.u32 %v2532, 7
    %v2534 = vsub.s32 4, %v2533
    %v2535 = vrot.slane %v2514, %v2534
    %v2536 = vlaneseq
    %v2537 = vshrl.u32 %v2536, 7
    %v2538 = vsub.s32 5, %v2537
    %v2539 = vrot.slane %v2514, %v2538
    %v2540 = vlaneseq
    %v2541 = vshrl.u32 %v2540, 7
    %v2542 = vsub.s32 6, %v2541
    %v2543 = vrot.slane %v2514, %v2542
    %v2751 = vunpack.c.l.b16 %v2314
    %v2752 = vunpack.c.h.b16 %v2314
    %v2753 = vunpack.c.l.b16 %v2315
    %v2754 = vunpack.c.h.b16 %v2315
    %v2755 = vunpack.c.l.b16 %v2316
    %v2756 = vunpack.c.h.b16 %v2316
    %v2757 = vunpack.c.l.b16 %v2317
    %v2758 = vunpack.c.l.b16 %v2318
    %v2759 = vunpack.c.h.b16 %v2318
    %v2760 = vunpack.c.l.b16 %v2319
    %v2761 = vunpack.c.h.b16 %v2319
    %v2762 = vunpack.c.l.b16 %v2320
    %v2763 = vunpack.c.h.b16 %v2320
    %v2764 = vunpack.c.l.b16 %v2321
    %v2765 = vunpack.c.l.b16 %v2322
    %v2766 = vunpack.c.h.b16 %v2322
    %v2767 = vunpack.c.l.b16 %v2323
    %v2768 = vunpack.c.h.b16 %v2323
    %v2769 = vunpack.c.l.b16 %v2324
    %v2770 = vunpack.c.h.b16 %v2324
    %v2771 = vunpack.c.l.b16 %v2325
    %v2772 = vunpack.c.l.b16 %v2326
    %v2773 = vunpack.c.h.b16 %v2326
    %v2774 = vunpack.c.l.b16 %v2327
    %v2775 = vunpack.c.h.b16 %v2327
    %v2776 = vunpack.c.l.b16 %v2328
    %v2777 = vunpack.c.h.b16 %v2328
    %v2778 = vunpack.c.l.b16 %v2329
    %v2779 = vunpack.c.l.b16 %v2330
    %v2780 = vunpack.c.h.b16 %v2330
    %v2781 = vunpack.c.l.b16 %v2331
    %v2782 = vunpack.c.h.b16 %v2331
    %v2783 = vunpack.c.l.b16 %v2332
    %v2784 = vunpack.c.h.b16 %v2332
    %v2785 = vunpack.c.l.b16 %v2333
    %v2786 = vunpack.c.l.b16 %v2334
    %v2787 = vunpack.c.h.b16 %v2334
    %v2788 = vunpack.c.l.b16 %v2335
    %v2789 = vunpack.c.h.b16 %v2335
    %v2790 = vunpack.c.l.b16 %v2336
    %v2791 = vunpack.c.h.b16 %v2336
    %v2792 = vunpack.c.l.b16 %v2337
    %v2793 = vunpack.c.l.b16 %v2338
    %v2794 = vunpack.c.h.b16 %v2338
    %v2795 = vunpack.c.l.b16 %v2339
    %v2796 = vunpack.c.h.b16 %v2339
    %v2797 = vunpack.c.l.b16 %v2340
    %v2798 = vunpack.c.h.b16 %v2340
    %v2799 = vunpack.c.l.b16 %v2341
    %v2800 = vunpack.c.l.b16 %v2342
    %v2801 = vunpack.c.h.b16 %v2342
    %v2802 = vunpack.c.l.b16 %v2343
    %v2803 = vunpack.c.h.b16 %v2343
    %v2804 = vunpack.c.l.b16 %v2344
    %v2805 = vunpack.c.h.b16 %v2344
    %v2806 = vunpack.c.l.b16 %v2345
    %v2807 = vunpack.c.l.b16 %v2346
    %v2808 = vunpack.c.h.b16 %v2346
    %v2809 = vunpack.c.l.b16 %v2347
    %v2810 = vunpack.c.h.b16 %v2347
    %v2811 = vunpack.c.l.b16 %v2348
    %v2812 = vunpack.c.h.b16 %v2348
    %v2813 = vunpack.c.l.b16 %v2349
    %v2814 = vunpack.c.l.b16 %v2350
    %v2815 = vunpack.c.h.b16 %v2350
    %v2816 = vunpack.c.l.b16 %v2351
    %v2817 = vunpack.c.h.b16 %v2351
    %v2818 = vunpack.c.l.b16 %v2352
    %v2819 = vunpack.c.h.b16 %v2352
    %v2820 = vunpack.c.l.b16 %v2353
    %v2821 = vunpack.c.l.b16 %v2354
    %v2822 = vunpack.c.h.b16 %v2354
    %v2823 = vunpack.c.l.b16 %v2355
    %v2824 = vunpack.c.h.b16 %v2355
    %v2825 = vunpack.c.l.b16 %v2356
    %v2826 = vunpack.c.h.b16 %v2356
    %v2827 = vunpack.c.l.b16 %v2357
    %v2828 = vunpack.c.l.b16 %v2358
    %v2829 = vunpack.c.h.b16 %v2358
    %v2830 = vunpack.c.l.b16 %v2359
    %v2831 = vunpack.c.h.b16 %v2359
    %v2832 = vunpack.c.l.b16 %v2360
    %v2833 = vunpack.c.h.b16 %v2360
    %v2834 = vunpack.c.l.b16 %v2361
    %v2835 = vunpack.c.l.b16 %v2362
    %v2836 = vunpack.c.h.b16 %v2362
    %v2837 = vunpack.c.l.b16 %v2363
    %v2838 = vunpack.c.h.b16 %v2363
    %v2839 = vunpack.c.l.b16 %v2364
    %v2840 = vunpack.c.h.b16 %v2364
    %v2841 = vunpack.c.l.b16 %v2365
    %v2842 = vunpack.c.l.b16 %v2366
    %v2843 = vunpack.c.h.b16 %v2366
    %v2844 = vunpack.c.l.b16 %v2367
    %v2845 = vunpack.c.h.b16 %v2367
    %v2846 = vunpack.c.l.b16 %v2368
    %v2847 = vunpack.c.h.b16 %v2368
    %v2848 = vunpack.c.l.b16 %v2369
    %v2849 = vunpack.c.l.b16 %v2370
    %v2850 = vunpack.c.h.b16 %v2370
    %v2851 = vunpack.c.l.b16 %v2371
    %v2852 = vunpack.c.h.b16 %v2371
    %v2853 = vunpack.c.l.b16 %v2372
    %v2854 = vunpack.c.h.b16 %v2372
    %v2855 = vunpack.c.l.b16 %v2373
    %v2856 = vunpack.c.l.b16 %v2374
    %v2857 = vunpack.c.h.b16 %v2374
    %v2858 = vunpack.c.l.b16 %v2375
    %v2859 = vunpack.c.h.b16 %v2375
    %v2860 = vunpack.c.l.b16 %v2376
    %v2861 = vunpack.c.h.b16 %v2376
    %v2862 = vunpack.c.l.b16 %v2377
    %v2863 = vunpack.c.l.b16 %v2378
    %v2864 = vunpack.c.h.b16 %v2378
    %v2865 = vunpack.c.l.b16 %v2379
    %v2866 = vunpack.c.h.b16 %v2379
    %v2867 = vunpack.c.l.b16 %v2380
    %v2868 = vunpack.c.h.b16 %v2380
    %v2869 = vunpack.c.l.b16 %v2381
    %v2870 = vunpack.c.l.b16 %v2382
    %v2871 = vunpack.c.h.b16 %v2382
    %v2872 = vunpack.c.l.b16 %v2383
    %v2873 = vunpack.c.h.b16 %v2383
    %v2874 = vunpack.c.l.b16 %v2384
    %v2875 = vunpack.c.h.b16 %v2384
    %v2876 = vunpack.c.l.b16 %v2385
    %v2877 = vunpack.c.l.b16 %v2386
    %v2878 = vunpack.c.h.b16 %v2386
    %v2879 = vunpack.c.l.b16 %v2387
    %v2880 = vunpack.c.h.b16 %v2387
    %v2881 = vunpack.c.l.b16 %v2388
    %v2882 = vunpack.c.h.b16 %v2388
    %v2883 = vunpack.c.l.b16 %v2389
    %v2884 = vunpack.c.l.b16 %v2390
    %v2885 = vunpack.c.h.b16 %v2390
    %v2886 = vunpack.c.l.b16 %v2391
    %v2887 = vunpack.c.h.b16 %v2391
    %v2888 = vunpack.c.l.b16 %v2392
    %v2889 = vunpack.c.h.b16 %v2392
    %v2890 = vunpack.c.l.b16 %v2393
    %v2891 = vunpack.c.l.b16 %v2394
    %v2892 = vunpack.c.h.b16 %v2394
    %v2893 = vunpack.c.l.b16 %v2395
    %v2894 = vunpack.c.h.b16 %v2395
    %v2895 = vunpack.c.l.b16 %v2396
    %v2896 = vunpack.c.h.b16 %v2396
    %v2897 = vunpack.c.l.b16 %v2397
    %v2898 = vunpack.c.l.b16 %v2398
    %v2899 = vunpack.c.h.b16 %v2398
    %v2900 = vunpack.c.l.b16 %v2399
    %v2901 = vunpack.c.h.b16 %v2399
    %v2902 = vunpack.c.l.b16 %v2400
    %v2903 = vunpack.c.h.b16 %v2400
    %v2904 = vunpack.c.l.b16 %v2401
    %v2905 = vunpack.c.l.b16 %v2402
    %v2906 = vunpack.c.h.b16 %v2402
    %v2907 = vunpack.c.l.b16 %v2403
    %v2908 = vunpack.c.h.b16 %v2403
    %v2909 = vunpack.c.l.b16 %v2404
    %v2910 = vunpack.c.h.b16 %v2404
    %v2911 = vunpack.c.l.b16 %v2405
    %v2912 = vunpack.c.l.b16 %v2406
    %v2913 = vunpack.c.h.b16 %v2406
    %v2914 = vunpack.c.l.b16 %v2407
    %v2915 = vunpack.c.h.b16 %v2407
    %v2916 = vunpack.c.l.b16 %v2408
    %v2917 = vunpack.c.h.b16 %v2408
    %v2918 = vunpack.c.l.b16 %v2409
    %v2919 = vunpack.c.l.b16 %v2410
    %v2920 = vunpack.c.h.b16 %v2410
    %v2921 = vunpack.c.l.b16 %v2411
    %v2922 = vunpack.c.h.b16 %v2411
    %v2923 = vunpack.c.l.b16 %v2412
    %v2924 = vunpack.c.h.b16 %v2412
    %v2925 = vunpack.c.l.b16 %v2413
    %v2926 = vunpack.c.l.b16 %v2414
    %v2927 = vunpack.c.h.b16 %v2414
    %v2928 = vunpack.c.l.b16 %v2415
    %v2929 = vunpack.c.h.b16 %v2415
    %v2930 = vunpack.c.l.b16 %v2416
    %v2931 = vunpack.c.h.b16 %v2416
    %v2932 = vunpack.c.l.b16 %v2417
    %v2933 = vunpack.c.l.b16 %v2418
    %v2934 = vunpack.c.h.b16 %v2418
    %v2935 = vunpack.c.l.b16 %v2419
    %v2936 = vunpack.c.h.b16 %v2419
    %v2937 = vunpack.c.l.b16 %v2420
    %v2938 = vunpack.c.h.b16 %v2420
    %v2939 = vunpack.c.l.b16 %v2421
    %v2940 = vunpack.c.l.b16 %v2422
    %v2941 = vunpack.c.h.b16 %v2422
    %v2942 = vunpack.c.l.b16 %v2423
    %v2943 = vunpack.c.h.b16 %v2423
    %v2944 = vunpack.c.l.b16 %v2424
    %v2945 = vunpack.c.h.b16 %v2424
    %v2946 = vunpack.c.l.b16 %v2425
    %v2947 = vunpack.c.l.b16 %v2426
    %v2948 = vunpack.c.h.b16 %v2426
    %v2949 = vunpack.c.l.b16 %v2427
    %v2950 = vunpack.c.h.b16 %v2427
    %v2951 = vunpack.c.l.b16 %v2428
    %v2952 = vunpack.c.h.b16 %v2428
    %v2953 = vunpack.c.l.b16 %v2429
    %v2954 = vunpack.c.l.b16 %v2430
    %v2955 = vunpack.c.h.b16 %v2430
    %v2956 = vunpack.c.l.b16 %v2431
    %v2957 = vunpack.c.h.b16 %v2431
    %v2958 = vunpack.c.l.b16 %v2432
    %v2959 = vunpack.c.h.b16 %v2432
    %v2960 = vunpack.c.l.b16 %v2433
    %v2961 = vunpack.c.l.b16 %v2434
    %v2962 = vunpack.c.h.b16 %v2434
    %v2963 = vunpack.c.l.b16 %v2435
    %v2964 = vunpack.c.h.b16 %v2435
    %v2965 = vunpack.c.l.b16 %v2436
    %v2966 = vunpack.c.h.b16 %v2436
    %v2967 = vunpack.c.l.b16 %v2437
    %v2968 = vunpack.c.l.b16 %v2438
    %v2969 = vunpack.c.h.b16 %v2438
    %v2970 = vunpack.c.l.b16 %v2439
    %v2971 = vunpack.c.h.b16 %v2439
    %v2972 = vunpack.c.l.b16 %v2440
    %v2973 = vunpack.c.h.b16 %v2440
    %v2974 = vunpack.c.l.b16 %v2441
    %v2975 = vunpack.c.l.b16 %v2442
    %v2976 = vunpack.c.h.b16 %v2442
    %v2977 = vunpack.c.l.b16 %v2443
    %v2978 = vunpack.c.h.b16 %v2443
    %v2979 = vunpack.c.l.b16 %v2444
    %v2980 = vunpack.c.h.b16 %v2444
    %v2981 = vunpack.c.l.b16 %v2445
    %v2982 = vunpack.c.l.b16 %v2446
    %v2983 = vunpack.c.h.b16 %v2446
    %v2984 = vunpack.c.l.b16 %v2447
    %v2985 = vunpack.c.h.b16 %v2447
    %v2986 = vunpack.c.l.b16 %v2448
    %v2987 = vunpack.c.h.b16 %v2448
    %v2988 = vunpack.c.l.b16 %v2449
    %v2989 = vunpack.c.l.b16 %v2450
    %v2990 = vunpack.c.h.b16 %v2450
    %v2991 = vunpack.c.l.b16 %v2451
    %v2992 = vunpack.c.h.b16 %v2451
    %v2993 = vunpack.c.l.b16 %v2452
    %v2994 = vunpack.c.h.b16 %v2452
    %v2995 = vunpack.c.l.b16 %v2453
    %v2996 = vunpack.c.l.b16 %v2454
    %v2997 = vunpack.c.h.b16 %v2454
    %v2998 = vunpack.c.l.b16 %v2455
    %v2999 = vunpack.c.h.b16 %v2455
    %v3000 = vunpack.c.l.b16 %v2456
    %v3001 = vunpack.c.h.b16 %v2456
    %v3002 = vunpack.c.l.b16 %v2457
    %v3003 = vunpack.c.l.b16 %v2458
    %v3004 = vunpack.c.h.b16 %v2458
    %v3005 = vunpack.c.l.b16 %v2459
    %v3006 = vunpack.c.h.b16 %v2459
    %v3007 = vunpack.c.l.b16 %v2460
    %v3008 = vunpack.c.h.b16 %v2460
    %v3009 = vunpack.c.l.b16 %v2461
    %v3010 = vunpack.c.l.b16 %v2462
    %v3011 = vunpack.c.h.b16 %v2462
    %v3012 = vunpack.c.l.b16 %v2463
    %v3013 = vunpack.c.h.b16 %v2463
    %v3014 = vunpack.c.l.b16 %v2464
    %v3015 = vunpack.c.h.b16 %v2464
    %v3016 = vunpack.c.l.b16 %v2465
    %v3017 = vunpack.c.l.b16 %v2466
    %v3018 = vunpack.c.h.b16 %v2466
    %v3019 = vunpack.c.l.b16 %v2467
    %v3020 = vunpack.c.h.b16 %v2467
    %v3021 = vunpack.c.l.b16 %v2468
    %v3022 = vunpack.c.h.b16 %v2468
    %v3023 = vunpack.c.l.b16 %v2469
    %v3024 = vunpack.c.l.b16 %v2470
    %v3025 = vunpack.c.h.b16 %v2470
    %v3026 = vunpack.c.l.b16 %v2471
    %v3027 = vunpack.c.h.b16 %v2471
    %v3028 = vunpack.c.l.b16 %v2472
    %v3029 = vunpack.c.h.b16 %v2472
    %v3030 = vunpack.c.l.b16 %v2473
    %v3031 = vunpack.c.l.b16 %v2474
    %v3032 = vunpack.c.h.b16 %v2474
    %v3033 = vunpack.c.l.b16 %v2475
    %v3034 = vunpack.c.h.b16 %v2475
    %v3035 = vunpack.c.l.b16 %v2476
    %v3036 = vunpack.c.h.b16 %v2476
    %v3037 = vunpack.c.l.b16 %v2477
    %v3038 = vunpack.c.l.b16 %v2478
    %v3039 = vunpack.c.h.b16 %v2478
    %v3040 = vunpack.c.l.b16 %v2479
    %v3041 = vunpack.c.h.b16 %v2479
    %v3042 = vunpack.c.l.b16 %v2480
    %v3043 = vunpack.c.h.b16 %v2480
    %v3044 = vunpack.c.l.b16 %v2481
    %v3045 = vunpack.c.l.b16 %v2482
    %v3046 = vunpack.c.h.b16 %v2482
    %v3047 = vunpack.c.l.b16 %v2483
    %v3048 = vunpack.c.h.b16 %v2483
    %v3049 = vunpack.c.l.b16 %v2484
    %v3050 = vunpack.c.h.b16 %v2484
    %v3051 = vunpack.c.l.b16 %v2485
    %v3052 = vunpack.c.l.b16 %v2486
    %v3053 = vunpack.c.h.b16 %v2486
    %v3054 = vunpack.c.l.b16 %v2487
    %v3055 = vunpack.c.h.b16 %v2487
    %v3056 = vunpack.c.l.b16 %v2488
    %v3057 = vunpack.c.h.b16 %v2488
    %v3058 = vunpack.c.l.b16 %v2489
    %v3059 = vunpack.c.l.b16 %v2490
    %v3060 = vunpack.c.h.b16 %v2490
    %v3061 = vunpack.c.l.b16 %v2491
    %v3062 = vunpack.c.h.b16 %v2491
    %v3063 = vunpack.c.l.b16 %v2492
    %v3064 = vunpack.c.h.b16 %v2492
    %v3065 = vunpack.c.l.b16 %v2493
    %v3066 = vunpack.c.l.b16 %v2494
    %v3067 = vunpack.c.h.b16 %v2494
    %v3068 = vunpack.c.l.b16 %v2495
    %v3069 = vunpack.c.h.b16 %v2495
    %v3070 = vunpack.c.l.b16 %v2496
    %v3071 = vunpack.c.h.b16 %v2496
    %v3072 = vunpack.c.l.b16 %v2497
    %v3073 = vunpack.c.l.b16 %v2498
    %v3074 = vunpack.c.h.b16 %v2498
    %v3075 = vunpack.c.l.b16 %v2499
    %v3076 = vunpack.c.h.b16 %v2499
    %v3077 = vunpack.c.l.b16 %v2500
    %v3078 = vunpack.c.h.b16 %v2500
    %v3079 = vunpack.c.l.b16 %v2501
    %v3080 = vunpack.c.l.b16 %v2502
    %v3081 = vunpack.c.h.b16 %v2502
    %v3082 = vunpack.c.l.b16 %v2503
    %v3083 = vunpack.c.h.b16 %v2503
    %v3084 = vunpack.c.l.b16 %v2504
    %v3085 = vunpack.c.h.b16 %v2504
    %v3086 = vunpack.c.l.b16 %v2505
    %v3087 = vunpack.c.l.b16 %v2506
    %v3088 = vunpack.c.h.b16 %v2506
    %v3089 = vunpack.c.l.b16 %v2507
    %v3090 = vunpack.c.h.b16 %v2507
    %v3091 = vunpack.c.l.b16 %v2508
    %v3092 = vunpack.c.h.b16 %v2508
    %v3093 = vunpack.c.l.b16 %v2509
    %v3094 = vunpack.c.l.b16 %v2510
    %v3095 = vunpack.c.h.b16 %v2510
    %v3096 = vunpack.c.l.b16 %v2511
    %v3097 = vunpack.c.h.b16 %v2511
    %v3098 = vunpack.c.l.b16 %v2512
    %v3099 = vunpack.c.h.b16 %v2512
    %v3100 = vunpack.c.l.b16 %v2513
    %v3101 = vpack.c.b16 %v2758, %v2751
    %v3102 = vpack.c.b16 %v2759, %v2752
    %v3103 = vpack.c.b16 %v2760, %v2753
    %v3104 = vpack.c.b16 %v2761, %v2754
    %v3105 = vpack.c.b16 %v2762, %v2755
    %v3106 = vpack.c.b16 %v2763, %v2756
    %v3107 = vpack.c.b16 %v2764, %v2757
    %v3108 = vpack.c.b16 %v2772, %v2765
    %v3109 = vpack.c.b16 %v2773, %v2766
    %v3110 = vpack.c.b16 %v2774, %v2767
    %v3111 = vpack.c.b16 %v2775, %v2768
    %v3112 = vpack.c.b16 %v2776, %v2769
    %v3113 = vpack.c.b16 %v2777, %v2770
    %v3114 = vpack.c.b16 %v2778, %v2771
    %v3115 = vpack.c.b16 %v2786, %v2779
    %v3116 = vpack.c.b16 %v2787, %v2780
    %v3117 = vpack.c.b16 %v2788, %v2781
    %v3118 = vpack.c.b16 %v2789, %v2782
    %v3119 = vpack.c.b16 %v2790, %v2783
    %v3120 = vpack.c.b16 %v2791, %v2784
    %v3121 = vpack.c.b16 %v2792, %v2785
    %v3122 = vpack.c.b16 %v2800, %v2793
    %v3123 = vpack.c.b16 %v2801, %v2794
    %v3124 = vpack.c.b16 %v2802, %v2795
    %v3125 = vpack.c.b16 %v2803, %v2796
    %v3126 = vpack.c.b16 %v2804, %v2797
    %v3127 = vpack.c.b16 %v2805, %v2798
    %v3128 = vpack.c.b16 %v2806, %v2799
    %v3129 = vpack.c.b16 %v2814, %v2807
    %v3130 = vpack.c.b16 %v2815, %v2808
    %v3131 = vpack.c.b16 %v2816, %v2809
    %v3132 = vpack.c.b16 %v2817, %v2810
    %v3133 = vpack.c.b16 %v2818, %v2811
    %v3134 = vpack.c.b16 %v2819, %v2812
    %v3135 = vpack.c.b16 %v2820, %v2813
    %v3136 = vpack.c.b16 %v2828, %v2821
    %v3137 = vpack.c.b16 %v2829, %v2822
    %v3138 = vpack.c.b16 %v2830, %v2823
    %v3139 = vpack.c.b16 %v2831, %v2824
    %v3140 = vpack.c.b16 %v2832, %v2825
    %v3141 = vpack.c.b16 %v2833, %v2826
    %v3142 = vpack.c.b16 %v2834, %v2827
    %v3143 = vpack.c.b16 %v2842, %v2835
    %v3144 = vpack.c.b16 %v2843, %v2836
    %v3145 = vpack.c.b16 %v2844, %v2837
    %v3146 = vpack.c.b16 %v2845, %v2838
    %v3147 = vpack.c.b16 %v2846, %v2839
    %v3148 = vpack.c.b16 %v2847, %v2840
    %v3149 = vpack.c.b16 %v2848, %v2841
    %v3150 = vpack.c.b16 %v2856, %v2849
    %v3151 = vpack.c.b16 %v2857, %v2850
    %v3152 = vpack.c.b16 %v2858, %v2851
    %v3153 = vpack.c.b16 %v2859, %v2852
    %v3154 = vpack.c.b16 %v2860, %v2853
    %v3155 = vpack.c.b16 %v2861, %v2854
    %v3156 = vpack.c.b16 %v2862, %v2855
    %v3157 = vpack.c.b16 %v2870, %v2863
    %v3158 = vpack.c.b16 %v2871, %v2864
    %v3159 = vpack.c.b16 %v2872, %v2865
    %v3160 = vpack.c.b16 %v2873, %v2866
    %v3161 = vpack.c.b16 %v2874, %v2867
    %v3162 = vpack.c.b16 %v2875, %v2868
    %v3163 = vpack.c.b16 %v2876, %v2869
    %v3164 = vpack.c.b16 %v2884, %v2877
    %v3165 = vpack.c.b16 %v2885, %v2878
    %v3166 = vpack.c.b16 %v2886, %v2879
    %v3167 = vpack.c.b16 %v2887, %v2880
    %v3168 = vpack.c.b16 %v2888, %v2881
    %v3169 = vpack.c.b16 %v2889, %v2882
    %v3170 = vpack.c.b16 %v2890, %v2883
    %v3171 = vpack.c.b16 %v2898, %v2891
    %v3172 = vpack.c.b16 %v2899, %v2892
    %v3173 = vpack.c.b16 %v2900, %v2893
    %v3174 = vpack.c.b16 %v2901, %v2894
    %v3175 = vpack.c.b16 %v2902, %v2895
    %v3176 = vpack.c.b16 %v2903, %v2896
    %v3177 = vpack.c.b16 %v2904, %v2897
    %v3178 = vpack.c.b16 %v2912, %v2905
    %v3179 = vpack.c.b16 %v2913, %v2906
    %v3180 = vpack.c.b16 %v2914, %v2907
    %v3181 = vpack.c.b16 %v2915, %v2908
    %v3182 = vpack.c.b16 %v2916, %v2909
    %v3183 = vpack.c.b16 %v2917, %v2910
    %v3184 = vpack.c.b16 %v2918, %v2911
    %v3185 = vpack.c.b16 %v2926, %v2919
    %v3186 = vpack.c.b16 %v2927, %v2920
    %v3187 = vpack.c.b16 %v2928, %v2921
    %v3188 = vpack.c.b16 %v2929, %v2922
    %v3189 = vpack.c.b16 %v2930, %v2923
    %v3190 = vpack.c.b16 %v2931, %v2924
    %v3191 = vpack.c.b16 %v2932, %v2925
    %v3192 = vpack.c.b16 %v2940, %v2933
    %v3193 = vpack.c.b16 %v2941, %v2934
    %v3194 = vpack.c.b16 %v2942, %v2935
    %v3195 = vpack.c.b16 %v2943, %v2936
    %v3196 = vpack.c.b16 %v2944, %v2937
    %v3197 = vpack.c.b16 %v2945, %v2938
    %v3198 = vpack.c.b16 %v2946, %v2939
    %v3199 = vpack.c.b16 %v2954, %v2947
    %v3200 = vpack.c.b16 %v2955, %v2948
    %v3201 = vpack.c.b16 %v2956, %v2949
    %v3202 = vpack.c.b16 %v2957, %v2950
    %v3203 = vpack.c.b16 %v2958, %v2951
    %v3204 = vpack.c.b16 %v2959, %v2952
    %v3205 = vpack.c.b16 %v2960, %v2953
    %v3206 = vpack.c.b16 %v2968, %v2961
    %v3207 = vpack.c.b16 %v2969, %v2962
    %v3208 = vpack.c.b16 %v2970, %v2963
    %v3209 = vpack.c.b16 %v2971, %v2964
    %v3210 = vpack.c.b16 %v2972, %v2965
    %v3211 = vpack.c.b16 %v2973, %v2966
    %v3212 = vpack.c.b16 %v2974, %v2967
    %v3213 = vpack.c.b16 %v2982, %v2975
    %v3214 = vpack.c.b16 %v2983, %v2976
    %v3215 = vpack.c.b16 %v2984, %v2977
    %v3216 = vpack.c.b16 %v2985, %v2978
    %v3217 = vpack.c.b16 %v2986, %v2979
    %v3218 = vpack.c.b16 %v2987, %v2980
    %v3219 = vpack.c.b16 %v2988, %v2981
    %v3220 = vpack.c.b16 %v2996, %v2989
    %v3221 = vpack.c.b16 %v2997, %v2990
    %v3222 = vpack.c.b16 %v2998, %v2991
    %v3223 = vpack.c.b16 %v2999, %v2992
    %v3224 = vpack.c.b16 %v3000, %v2993
    %v3225 = vpack.c.b16 %v3001, %v2994
    %v3226 = vpack.c.b16 %v3002, %v2995
    %v3227 = vpack.c.b16 %v3010, %v3003
    %v3228 = vpack.c.b16 %v3011, %v3004
    %v3229 = vpack.c.b16 %v3012, %v3005
    %v3230 = vpack.c.b16 %v3013, %v3006
    %v3231 = vpack.c.b16 %v3014, %v3007
    %v3232 = vpack.c.b16 %v3015, %v3008
    %v3233 = vpack.c.b16 %v3016, %v3009
    %v3234 = vpack.c.b16 %v3024, %v3017
    %v3235 = vpack.c.b16 %v3025, %v3018
    %v3236 = vpack.c.b16 %v3026, %v3019
    %v3237 = vpack.c.b16 %v3027, %v3020
    %v3238 = vpack.c.b16 %v3028, %v3021
    %v3239 = vpack.c.b16 %v3029, %v3022
    %v3240 = vpack.c.b16 %v3030, %v3023
    %v3241 = vpack.c.b16 %v3038, %v3031
    %v3242 = vpack.c.b16 %v3039, %v3032
    %v3243 = vpack.c.b16 %v3040, %v3033
    %v3244 = vpack.c.b16 %v3041, %v3034
    %v3245 = vpack.c.b16 %v3042, %v3035
    %v3246 = vpack.c.b16 %v3043, %v3036
    %v3247 = vpack.c.b16 %v3044, %v3037
    %v3248 = vpack.c.b16 %v3052, %v3045
    %v3249 = vpack.c.b16 %v3053, %v3046
    %v3250 = vpack.c.b16 %v3054, %v3047
    %v3251 = vpack.c.b16 %v3055, %v3048
    %v3252 = vpack.c.b16 %v3056, %v3049
    %v3253 = vpack.c.b16 %v3057, %v3050
    %v3254 = vpack.c.b16 %v3058, %v3051
    %v3255 = vpack.c.b16 %v3066, %v3059
    %v3256 = vpack.c.b16 %v3067, %v3060
    %v3257 = vpack.c.b16 %v3068, %v3061
    %v3258 = vpack.c.b16 %v3069, %v3062
    %v3259 = vpack.c.b16 %v3070, %v3063
    %v3260 = vpack.c.b16 %v3071, %v3064
    %v3261 = vpack.c.b16 %v3072, %v3065
    %v3262 = vpack.c.b16 %v3080, %v3073
    %v3263 = vpack.c.b16 %v3081, %v3074
    %v3264 = vpack.c.b16 %v3082, %v3075
    %v3265 = vpack.c.b16 %v3083, %v3076
    %v3266 = vpack.c.b16 %v3084, %v3077
    %v3267 = vpack.c.b16 %v3085, %v3078
    %v3268 = vpack.c.b16 %v3086, %v3079
    %v3269 = vpack.c.b16 %v3094, %v3087
    %v3270 = vpack.c.b16 %v3095, %v3088
    %v3271 = vpack.c.b16 %v3096, %v3089
    %v3272 = vpack.c.b16 %v3097, %v3090
    %v3273 = vpack.c.b16 %v3098, %v3091
    %v3274 = vpack.c.b16 %v3099, %v3092
    %v3275 = vpack.c.b16 %v3100, %v3093
    %v3452 = vsel %vm1267, %v2313, 0
    %3454 = vmatprep.subr.bf16.mxu0 %v3102
    %3455 = vmatpush1.bf16.msra.mxu0 %v3101
    %3456 = vmatprep.subr.bf16.mxu0 %v3109
    %3457 = vmatpush1.bf16.msra.mxu0 %v3108
    %3458 = vmatprep.subr.bf16.mxu0 %v3116
    %3459 = vmatpush1.bf16.msra.mxu0 %v3115
    %3460 = vmatprep.subr.bf16.mxu0 %v3123
    %3461 = vmatpush1.bf16.msra.mxu0 %v3122
    %3462 = vmatprep.subr.bf16.mxu0 %v3130
    %3463 = vmatpush1.bf16.msra.mxu0 %v3129
    %3464 = vmatprep.subr.bf16.mxu0 %v3137
    %3465 = vmatpush1.bf16.msra.mxu0 %v3136
    %3466 = vmatprep.subr.bf16.mxu0 %v3144
    %3467 = vmatpush1.bf16.msra.mxu0 %v3143
    %3468 = vmatprep.subr.bf16.mxu0 %v3151
    %3469 = vmatpush1.bf16.msra.mxu0 %v3150
    %3470 = vmatprep.subr.bf16.mxu0 %v3158
    %3471 = vmatpush1.bf16.msra.mxu0 %v3157
    %3472 = vmatprep.subr.bf16.mxu0 %v3165
    %3473 = vmatpush1.bf16.msra.mxu0 %v3164
    %3474 = vmatprep.subr.bf16.mxu0 %v3172
    %3475 = vmatpush1.bf16.msra.mxu0 %v3171
    %3476 = vmatprep.subr.bf16.mxu0 %v3179
    %3477 = vmatpush1.bf16.msra.mxu0 %v3178
    %3478 = vmatprep.subr.bf16.mxu0 %v3186
    %3479 = vmatpush1.bf16.msra.mxu0 %v3185
    %3480 = vmatprep.subr.bf16.mxu0 %v3193
    %3481 = vmatpush1.bf16.msra.mxu0 %v3192
    %3482 = vmatprep.subr.bf16.mxu0 %v3200
    %3483 = vmatpush1.bf16.msra.mxu0 %v3199
    %3484 = vmatprep.subr.bf16.mxu0 %v3207
    %3485 = vmatpush1.bf16.msra.mxu0 %v3206
    %3486 = vmatprep.mubr.bf16.mxu0 %v2311
    %3487 = vmatmul.mubr.bf16.gmra.mrb[0].mxu0 %v2310
    %v3488 = vpop.f32.mrb[0].mxu0
    %v3489 = vadd.f32 %v2519, %v3488
    %v3490 = vpop.f32.mrb[0].mxu0
    %v3491 = vadd.f32 %v2523, %v3490
    %v3492 = vpop.f32.mrb[0].mxu0
    %v3493 = vpop.f32.mrb[0].mxu0
    %3494 = vdwg.mxu0
    %3495 = vmatprep.subr.bf16.mxu0 %v3214
    %3496 = vmatpush1.bf16.msra.mxu0 %v3213
    %3497 = vmatprep.subr.bf16.mxu0 %v3221
    %3498 = vmatpush1.bf16.msra.mxu0 %v3220
    %3499 = vmatprep.subr.bf16.mxu0 %v3228
    %3500 = vmatpush1.bf16.msra.mxu0 %v3227
    %3501 = vmatprep.subr.bf16.mxu0 %v3235
    %3502 = vmatpush1.bf16.msra.mxu0 %v3234
    %3503 = vmatprep.subr.bf16.mxu0 %v3242
    %3504 = vmatpush1.bf16.msra.mxu0 %v3241
    %3505 = vmatprep.subr.bf16.mxu0 %v3249
    %3506 = vmatpush1.bf16.msra.mxu0 %v3248
    %3507 = vmatprep.subr.bf16.mxu0 %v3256
    %3508 = vmatpush1.bf16.msra.mxu0 %v3255
    %3509 = vmatprep.subr.bf16.mxu0 %v3263
    %3510 = vmatpush1.bf16.msra.mxu0 %v3262
    %3511 = vmatprep.subr.bf16.mxu0 %v3270
    %3512 = vmatpush1.bf16.msra.mxu0 %v3269
    %3513 = vmatprep.subr.bf16.mxu0 0
    %3514 = vmatpush1.bf16.msra.mxu0 0
    %3515 = vmatprep.subr.bf16.mxu0 0
    %3516 = vmatpush1.bf16.msra.mxu0 0
    %3517 = vmatprep.subr.bf16.mxu0 0
    %3518 = vmatpush1.bf16.msra.mxu0 0
    %3519 = vmatprep.subr.bf16.mxu0 0
    %3520 = vmatpush1.bf16.msra.mxu0 0
    %3521 = vmatprep.subr.bf16.mxu0 0
    %3522 = vmatpush1.bf16.msra.mxu0 0
    %3523 = vmatprep.subr.bf16.mxu0 0
    %3524 = vmatpush1.bf16.msra.mxu0 0
    %3525 = vmatprep.subr.bf16.mxu0 0
    %3526 = vmatpush1.bf16.msra.mxu0 0
    %3527 = vmatprep.mubr.bf16.mxu0 %v3452
    %3528 = vmatmul.mubr.bf16.gmra.mrb[0].mxu0 %v2312
    %v3529 = vpop.f32.mrb[0].mxu0
    %v3530 = vadd.f32 %v3489, %v3529
    %v3531 = vpop.f32.mrb[0].mxu0
    %v3532 = vadd.f32 %v3491, %v3531
    %v3533 = vpop.f32.mrb[0].mxu0
    %v3534 = vpop.f32.mrb[0].mxu0
    %3535 = vdwg.mxu0
    %3536 = vmatprep.subr.bf16.mxu0 %v3104
    %3537 = vmatpush1.bf16.msra.mxu0 %v3103
    %3538 = vmatprep.subr.bf16.mxu0 %v3111
    %3539 = vmatpush1.bf16.msra.mxu0 %v3110
    %3540 = vmatprep.subr.bf16.mxu0 %v3118
    %3541 = vmatpush1.bf16.msra.mxu0 %v3117
    %3542 = vmatprep.subr.bf16.mxu0 %v3125
    %3543 = vmatpush1.bf16.msra.mxu0 %v3124
    %3544 = vmatprep.subr.bf16.mxu0 %v3132
    %3545 = vmatpush1.bf16.msra.mxu0 %v3131
    %3546 = vmatprep.subr.bf16.mxu0 %v3139
    %3547 = vmatpush1.bf16.msra.mxu0 %v3138
    %3548 = vmatprep.subr.bf16.mxu0 %v3146
    %3549 = vmatpush1.bf16.msra.mxu0 %v3145
    %3550 = vmatprep.subr.bf16.mxu0 %v3153
    %3551 = vmatpush1.bf16.msra.mxu0 %v3152
    %3552 = vmatprep.subr.bf16.mxu0 %v3160
    %3553 = vmatpush1.bf16.msra.mxu0 %v3159
    %3554 = vmatprep.subr.bf16.mxu0 %v3167
    %3555 = vmatpush1.bf16.msra.mxu0 %v3166
    %3556 = vmatprep.subr.bf16.mxu0 %v3174
    %3557 = vmatpush1.bf16.msra.mxu0 %v3173
    %3558 = vmatprep.subr.bf16.mxu0 %v3181
    %3559 = vmatpush1.bf16.msra.mxu0 %v3180
    %3560 = vmatprep.subr.bf16.mxu0 %v3188
    %3561 = vmatpush1.bf16.msra.mxu0 %v3187
    %3562 = vmatprep.subr.bf16.mxu0 %v3195
    %3563 = vmatpush1.bf16.msra.mxu0 %v3194
    %3564 = vmatprep.subr.bf16.mxu0 %v3202
    %3565 = vmatpush1.bf16.msra.mxu0 %v3201
    %3566 = vmatprep.subr.bf16.mxu0 %v3209
    %3567 = vmatpush1.bf16.msra.mxu0 %v3208
    %3568 = vmatprep.mubr.bf16.mxu0 %v2311
    %3569 = vmatmul.mubr.bf16.gmra.mrb[0].mxu0 %v2310
    %v3570 = vpop.f32.mrb[0].mxu0
    %v3571 = vadd.f32 %v2527, %v3570
    %v3572 = vpop.f32.mrb[0].mxu0
    %v3573 = vadd.f32 %v2531, %v3572
    %v3574 = vpop.f32.mrb[0].mxu0
    %v3575 = vpop.f32.mrb[0].mxu0
    %3576 = vdwg.mxu0
    %3577 = vmatprep.subr.bf16.mxu0 %v3216
    %3578 = vmatpush1.bf16.msra.mxu0 %v3215
    %3579 = vmatprep.subr.bf16.mxu0 %v3223
    %3580 = vmatpush1.bf16.msra.mxu0 %v3222
    %3581 = vmatprep.subr.bf16.mxu0 %v3230
    %3582 = vmatpush1.bf16.msra.mxu0 %v3229
    %3583 = vmatprep.subr.bf16.mxu0 %v3237
    %3584 = vmatpush1.bf16.msra.mxu0 %v3236
    %3585 = vmatprep.subr.bf16.mxu0 %v3244
    %3586 = vmatpush1.bf16.msra.mxu0 %v3243
    %3587 = vmatprep.subr.bf16.mxu0 %v3251
    %3588 = vmatpush1.bf16.msra.mxu0 %v3250
    %3589 = vmatprep.subr.bf16.mxu0 %v3258
    %3590 = vmatpush1.bf16.msra.mxu0 %v3257
    %3591 = vmatprep.subr.bf16.mxu0 %v3265
    %3592 = vmatpush1.bf16.msra.mxu0 %v3264
    %3593 = vmatprep.subr.bf16.mxu0 %v3272
    %3594 = vmatpush1.bf16.msra.mxu0 %v3271
    %3595 = vmatprep.subr.bf16.mxu0 0
    %3596 = vmatpush1.bf16.msra.mxu0 0
    %3597 = vmatprep.subr.bf16.mxu0 0
    %3598 = vmatpush1.bf16.msra.mxu0 0
    %3599 = vmatprep.subr.bf16.mxu0 0
    %3600 = vmatpush1.bf16.msra.mxu0 0
    %3601 = vmatprep.subr.bf16.mxu0 0
    %3602 = vmatpush1.bf16.msra.mxu0 0
    %3603 = vmatprep.subr.bf16.mxu0 0
    %3604 = vmatpush1.bf16.msra.mxu0 0
    %3605 = vmatprep.subr.bf16.mxu0 0
    %3606 = vmatpush1.bf16.msra.mxu0 0
    %3607 = vmatprep.subr.bf16.mxu0 0
    %3608 = vmatpush1.bf16.msra.mxu0 0
    %3609 = vmatprep.mubr.bf16.mxu0 %v3452
    %3610 = vmatmul.mubr.bf16.gmra.mrb[0].mxu0 %v2312
    %v3611 = vpop.f32.mrb[0].mxu0
    %v3612 = vadd.f32 %v3571, %v3611
    %v3613 = vpop.f32.mrb[0].mxu0
    %v3614 = vadd.f32 %v3573, %v3613
    %v3615 = vpop.f32.mrb[0].mxu0
    %v3616 = vpop.f32.mrb[0].mxu0
    %3617 = vdwg.mxu0
    %3618 = vmatprep.subr.bf16.mxu0 %v3106
    %3619 = vmatpush1.bf16.msra.mxu0 %v3105
    %3620 = vmatprep.subr.bf16.mxu0 %v3113
    %3621 = vmatpush1.bf16.msra.mxu0 %v3112
    %3622 = vmatprep.subr.bf16.mxu0 %v3120
    %3623 = vmatpush1.bf16.msra.mxu0 %v3119
    %3624 = vmatprep.subr.bf16.mxu0 %v3127
    %3625 = vmatpush1.bf16.msra.mxu0 %v3126
    %3626 = vmatprep.subr.bf16.mxu0 %v3134
    %3627 = vmatpush1.bf16.msra.mxu0 %v3133
    %3628 = vmatprep.subr.bf16.mxu0 %v3141
    %3629 = vmatpush1.bf16.msra.mxu0 %v3140
    %3630 = vmatprep.subr.bf16.mxu0 %v3148
    %3631 = vmatpush1.bf16.msra.mxu0 %v3147
    %3632 = vmatprep.subr.bf16.mxu0 %v3155
    %3633 = vmatpush1.bf16.msra.mxu0 %v3154
    %3634 = vmatprep.subr.bf16.mxu0 %v3162
    %3635 = vmatpush1.bf16.msra.mxu0 %v3161
    %3636 = vmatprep.subr.bf16.mxu0 %v3169
    %3637 = vmatpush1.bf16.msra.mxu0 %v3168
    %3638 = vmatprep.subr.bf16.mxu0 %v3176
    %3639 = vmatpush1.bf16.msra.mxu0 %v3175
    %3640 = vmatprep.subr.bf16.mxu0 %v3183
    %3641 = vmatpush1.bf16.msra.mxu0 %v3182
    %3642 = vmatprep.subr.bf16.mxu0 %v3190
    %3643 = vmatpush1.bf16.msra.mxu0 %v3189
    %3644 = vmatprep.subr.bf16.mxu0 %v3197
    %3645 = vmatpush1.bf16.msra.mxu0 %v3196
    %3646 = vmatprep.subr.bf16.mxu0 %v3204
    %3647 = vmatpush1.bf16.msra.mxu0 %v3203
    %3648 = vmatprep.subr.bf16.mxu0 %v3211
    %3649 = vmatpush1.bf16.msra.mxu0 %v3210
    %3650 = vmatprep.mubr.bf16.mxu0 %v2311
    %3651 = vmatmul.mubr.bf16.gmra.mrb[0].mxu0 %v2310
    %v3652 = vpop.f32.mrb[0].mxu0
    %v3653 = vadd.f32 %v2535, %v3652
    %v3654 = vpop.f32.mrb[0].mxu0
    %v3655 = vadd.f32 %v2539, %v3654
    %v3656 = vpop.f32.mrb[0].mxu0
    %v3657 = vpop.f32.mrb[0].mxu0
    %3658 = vdwg.mxu0
    %3659 = vmatprep.subr.bf16.mxu0 %v3218
    %3660 = vmatpush1.bf16.msra.mxu0 %v3217
    %3661 = vmatprep.subr.bf16.mxu0 %v3225
    %3662 = vmatpush1.bf16.msra.mxu0 %v3224
    %3663 = vmatprep.subr.bf16.mxu0 %v3232
    %3664 = vmatpush1.bf16.msra.mxu0 %v3231
    %3665 = vmatprep.subr.bf16.mxu0 %v3239
    %3666 = vmatpush1.bf16.msra.mxu0 %v3238
    %3667 = vmatprep.subr.bf16.mxu0 %v3246
    %3668 = vmatpush1.bf16.msra.mxu0 %v3245
    %3669 = vmatprep.subr.bf16.mxu0 %v3253
    %3670 = vmatpush1.bf16.msra.mxu0 %v3252
    %3671 = vmatprep.subr.bf16.mxu0 %v3260
    %3672 = vmatpush1.bf16.msra.mxu0 %v3259
    %3673 = vmatprep.subr.bf16.mxu0 %v3267
    %3674 = vmatpush1.bf16.msra.mxu0 %v3266
    %3675 = vmatprep.subr.bf16.mxu0 %v3274
    %3676 = vmatpush1.bf16.msra.mxu0 %v3273
    %3677 = vmatprep.subr.bf16.mxu0 0
    %3678 = vmatpush1.bf16.msra.mxu0 0
    %3679 = vmatprep.subr.bf16.mxu0 0
    %3680 = vmatpush1.bf16.msra.mxu0 0
    %3681 = vmatprep.subr.bf16.mxu0 0
    %3682 = vmatpush1.bf16.msra.mxu0 0
    %3683 = vmatprep.subr.bf16.mxu0 0
    %3684 = vmatpush1.bf16.msra.mxu0 0
    %3685 = vmatprep.subr.bf16.mxu0 0
    %3686 = vmatpush1.bf16.msra.mxu0 0
    %3687 = vmatprep.subr.bf16.mxu0 0
    %3688 = vmatpush1.bf16.msra.mxu0 0
    %3689 = vmatprep.subr.bf16.mxu0 0
    %3690 = vmatpush1.bf16.msra.mxu0 0
    %3691 = vmatprep.mubr.bf16.mxu0 %v3452
    %3692 = vmatmul.mubr.bf16.gmra.mrb[0].mxu0 %v2312
    %v3693 = vpop.f32.mrb[0].mxu0
    %v3694 = vadd.f32 %v3653, %v3693
    %v3695 = vpop.f32.mrb[0].mxu0
    %v3696 = vadd.f32 %v3655, %v3695
    %v3697 = vpop.f32.mrb[0].mxu0
    %v3698 = vpop.f32.mrb[0].mxu0
    %3699 = vdwg.mxu0
    %3700 = vmatprep.subr.bf16.mxu0 0
    %3701 = vmatpush1.bf16.msra.mxu0 %v3107
    %3702 = vmatprep.subr.bf16.mxu0 0
    %3703 = vmatpush1.bf16.msra.mxu0 %v3114
    %3704 = vmatprep.subr.bf16.mxu0 0
    %3705 = vmatpush1.bf16.msra.mxu0 %v3121
    %3706 = vmatprep.subr.bf16.mxu0 0
    %3707 = vmatpush1.bf16.msra.mxu0 %v3128
    %3708 = vmatprep.subr.bf16.mxu0 0
    %3709 = vmatpush1.bf16.msra.mxu0 %v3135
    %3710 = vmatprep.subr.bf16.mxu0 0
    %3711 = vmatpush1.bf16.msra.mxu0 %v3142
    %3712 = vmatprep.subr.bf16.mxu0 0
    %3713 = vmatpush1.bf16.msra.mxu0 %v3149
    %3714 = vmatprep.subr.bf16.mxu0 0
    %3715 = vmatpush1.bf16.msra.mxu0 %v3156
    %3716 = vmatprep.subr.bf16.mxu0 0
    %3717 = vmatpush1.bf16.msra.mxu0 %v3163
    %3718 = vmatprep.subr.bf16.mxu0 0
    %3719 = vmatpush1.bf16.msra.mxu0 %v3170
    %3720 = vmatprep.subr.bf16.mxu0 0
    %3721 = vmatpush1.bf16.msra.mxu0 %v3177
    %3722 = vmatprep.subr.bf16.mxu0 0
    %3723 = vmatpush1.bf16.msra.mxu0 %v3184
    %3724 = vmatprep.subr.bf16.mxu0 0
    %3725 = vmatpush1.bf16.msra.mxu0 %v3191
    %3726 = vmatprep.subr.bf16.mxu0 0
    %3727 = vmatpush1.bf16.msra.mxu0 %v3198
    %3728 = vmatprep.subr.bf16.mxu0 0
    %3729 = vmatpush1.bf16.msra.mxu0 %v3205
    %3730 = vmatprep.subr.bf16.mxu0 0
    %3731 = vmatpush1.bf16.msra.mxu0 %v3212
    %3732 = vmatprep.mubr.bf16.mxu0 %v2311
    %3733 = vmatmul.mubr.bf16.gmra.mrb[0].mxu0 %v2310
    %v3734 = vpop.f32.mrb[0].mxu0
    %v3735 = vadd.f32 %v2543, %v3734
    %v3736 = vpop.f32.mrb[0].mxu0
    %v3737 = vpop.f32.mrb[0].mxu0
    %v3738 = vpop.f32.mrb[0].mxu0
    %3739 = vdwg.mxu0
    %3740 = vmatprep.subr.bf16.mxu0 0
    %3741 = vmatpush1.bf16.msra.mxu0 %v3219
    %3742 = vmatprep.subr.bf16.mxu0 0
    %3743 = vmatpush1.bf16.msra.mxu0 %v3226
    %3744 = vmatprep.subr.bf16.mxu0 0
    %3745 = vmatpush1.bf16.msra.mxu0 %v3233
    %3746 = vmatprep.subr.bf16.mxu0 0
    %3747 = vmatpush1.bf16.msra.mxu0 %v3240
    %3748 = vmatprep.subr.bf16.mxu0 0
    %3749 = vmatpush1.bf16.msra.mxu0 %v3247
    %3750 = vmatprep.subr.bf16.mxu0 0
    %3751 = vmatpush1.bf16.msra.mxu0 %v3254
    %3752 = vmatprep.subr.bf16.mxu0 0
    %3753 = vmatpush1.bf16.msra.mxu0 %v3261
    %3754 = vmatprep.subr.bf16.mxu0 0
    %3755 = vmatpush1.bf16.msra.mxu0 %v3268
    %3756 = vmatprep.subr.bf16.mxu0 0
    %3757 = vmatpush1.bf16.msra.mxu0 %v3275
    %3758 = vmatprep.subr.bf16.mxu0 0
    %3759 = vmatpush1.bf16.msra.mxu0 0
    %3760 = vmatprep.subr.bf16.mxu0 0
    %3761 = vmatpush1.bf16.msra.mxu0 0
    %3762 = vmatprep.subr.bf16.mxu0 0
    %3763 = vmatpush1.bf16.msra.mxu0 0
    %3764 = vmatprep.subr.bf16.mxu0 0
    %3765 = vmatpush1.bf16.msra.mxu0 0
    %3766 = vmatprep.subr.bf16.mxu0 0
    %3767 = vmatpush1.bf16.msra.mxu0 0
    %3768 = vmatprep.subr.bf16.mxu0 0
    %3769 = vmatpush1.bf16.msra.mxu0 0
    %3770 = vmatprep.subr.bf16.mxu0 0
    %3771 = vmatpush1.bf16.msra.mxu0 0
    %3772 = vmatprep.mubr.bf16.mxu0 %v3452
    %3773 = vmatmul.mubr.bf16.gmra.mrb[0].mxu0 %v2312
    %v3774 = vpop.f32.mrb[0].mxu0
    %v3775 = vadd.f32 %v3735, %v3774
    %v3776 = vpop.f32.mrb[0].mxu0
    %v3777 = vpop.f32.mrb[0].mxu0
    %v3778 = vpop.f32.mrb[0].mxu0
    %3779 = vdwg.mxu0
    %v3780 = vxor.u32 %v3530, 2147483648
    %v3781 = vxor.u32 %v3532, 2147483648
    %v3782 = vxor.u32 %v3612, 2147483648
    %v3783 = vxor.u32 %v3614, 2147483648
    %v3784 = vxor.u32 %v3694, 2147483648
    %v3785 = vxor.u32 %v3696, 2147483648
    %v3786 = vxor.u32 %v3775, 2147483648
    %v3787 = vmul.f32 %v3780, 1.442695
    %v3788 = vpow.pop %v3787
    %v3789 = vmul.f32 %v3781, 1.442695
    %v3790 = vpow.pop %v3789
    %v3791 = vmul.f32 %v3782, 1.442695
    %v3792 = vpow.pop %v3791
    %v3793 = vmul.f32 %v3783, 1.442695
    %v3794 = vpow.pop %v3793
    %v3795 = vmul.f32 %v3784, 1.442695
    %v3796 = vpow.pop %v3795
    %v3797 = vmul.f32 %v3785, 1.442695
    %v3798 = vpow.pop %v3797
    %v3799 = vmul.f32 %v3786, 1.442695
    %v3800 = vpow.pop %v3799
    %v3801 = vadd.f32 %v3788, 1.0
    %v3802 = vadd.f32 %v3790, 1.0
    %v3803 = vadd.f32 %v3792, 1.0
    %v3804 = vadd.f32 %v3794, 1.0
    %v3805 = vadd.f32 %v3796, 1.0
    %v3806 = vadd.f32 %v3798, 1.0
    %v3807 = vadd.f32 %v3800, 1.0
    %v3808 = vrcp.pop %v3801
    %v3809 = vmul.f32 1.0, %v3808
    %v3810 = vrcp.pop %v3802
    %v3811 = vmul.f32 1.0, %v3810
    %v3812 = vrcp.pop %v3803
    %v3813 = vmul.f32 1.0, %v3812
    %v3814 = vrcp.pop %v3804
    %v3815 = vmul.f32 1.0, %v3814
    %v3816 = vrcp.pop %v3805
    %v3817 = vmul.f32 1.0, %v3816
    %v3818 = vrcp.pop %v3806
    %v3819 = vmul.f32 1.0, %v3818
    %v3820 = vrcp.pop %v3807
    %v3821 = vmul.f32 1.0, %v3820
    %v3822 = vpack.c.bf16 %v3809, %v3809
    %v3823 = vpack.c.bf16 %v3811, %v3811
    %v3824 = vpack.c.bf16 %v3813, %v3813
    %v3825 = vpack.c.bf16 %v3815, %v3815
    %v3826 = vpack.c.bf16 %v3817, %v3817
    %v3827 = vpack.c.bf16 %v3819, %v3819
    %v3828 = vpack.c.bf16 %v3821, %v3821
    %v3836 = vunpack.c.l.b16 %v3822
    %v3837 = vunpack.c.l.b16 %v3823
    %v3838 = vunpack.c.l.b16 %v3824
    %v3839 = vunpack.c.l.b16 %v3825
    %v3840 = vunpack.c.l.b16 %v3826
    %v3841 = vunpack.c.l.b16 %v3827
    %v3842 = vunpack.c.l.b16 %v3828
    %v3843 = vpack.c.b16 %v3837, %v3836
    %v3844 = vpack.c.b16 %v3839, %v3838
    %v3845 = vpack.c.b16 %v3841, %v3840
    %v3846 = vpack.c.b16 %v3842, %v3842
    %3851 = vst [vmem:[#allocation2] sm:$0xff] %v3843
    %3852 = vst [vmem:[#allocation2 + $0x8] sm:$0xff] %v3844
    %3853 = vst [vmem:[#allocation2 + $0x10] sm:$0xff] %v3845
    %vm3854 = vcmask 125952
    %3855 = vst.msk [vmem:[#allocation2 + $0x18] sm:$0xf] %vm3854, %v3846
    %3856 = vst [vmem:[#allocation4] sm:$0xff] %v1998
    %3857 = vst [vmem:[#allocation4 + $0x8] sm:$0xff] %v2000
    // Predicated region
    $region42: #{tpu_custom_call.1} parent=1 // pred_check
      _
    $region43: #{tpu_custom_call.1} parent=1 // pred_check_branch
      %3859 = sbr.rel (0) target = $region45
    $region44: #{tpu_custom_call.1} parent=1 // pred_region
      %s3861 = ssub.s32 448, 448
      %3862 = vsyncadd [#allocation3], %s3861
      %s3864 = sshll.u32 [#allocation2], 4
      %s3865 = int_to_ptr.vmem [resolvable:$true] %s3864
      %3867 = dma.vmem_to_hbm [thread:$0]  %s3865, 448, %s10, [#allocation3]
    $region45: #{tpu_custom_call.1} parent=1 // pred_fallthru
      _
    // Predicated region
    $region46: #{tpu_custom_call.1} parent=1 // pred_check
      _
    $region47: #{tpu_custom_call.1} parent=1 // pred_check_branch
      %3869 = sbr.rel (0) target = $region49
    $region48: #{tpu_custom_call.1} parent=1 // pred_region
      %s3871 = ssub.s32 256, 256
      %3872 = vsyncadd [#allocation5], %s3871
      %s3874 = sshll.u32 [#allocation4], 4
      %s3875 = int_to_ptr.vmem [resolvable:$true] %s3874
      %3877 = dma.vmem_to_hbm [thread:$0]  %s3875, 256, %s11, [#allocation5]
    $region49: #{tpu_custom_call.1} parent=1 // pred_fallthru
      _
    // Predicated region
    $region50: #{tpu_custom_call.1} parent=1 // pred_check
      _
    $region51: #{tpu_custom_call.1} parent=1 // pred_check_branch
      %3879 = sbr.rel (0) target = $region53
    $region52: #{tpu_custom_call.1} parent=1 // pred_region
      %3880 = dma.done [#allocation3], 448
    $region53: #{tpu_custom_call.1} parent=1 // pred_fallthru
      _
    // Predicated region
    $region54: #{tpu_custom_call.1} parent=1 // pred_check
      _
    $region55: #{tpu_custom_call.1} parent=1 // pred_check_branch
      %3882 = sbr.rel (0) target = $region57
    $region56: #{tpu_custom_call.1} parent=1 // pred_region
      %3883 = dma.done [#allocation5], 256
    $region57: #{tpu_custom_call.1} parent=1 // pred_fallthru
      _
    %3884 = vsyncpa [#allocation3], 1
    %3885 = vsyncpa [#allocation5], 1

// kernel: tpu_custom_call.1
$region0: #{tpu_custom_call.1}
  #allocation0 [shape = 'u32[]', space=smem, size = 0x4, offset = 0x4, fixed_abs, tag = 'smem constant byte address 0x4 - core index']
  #allocation1 [shape = 'u32[144,128]{1,0:T(1,128)}', space=vmem, size = 0x12000, scoped, tag = 'internal scratch']
  %s0 = inlined_call_operand.vmem [shape: bf16[8,784], index: 0, kind: input, shape index: {}]
  %s1 = inlined_call_operand.vmem [shape: f32[8,128], index: 1, kind: input, shape index: {}]
  %s2 = inlined_call_operand.vmem [shape: bf16[784,400], index: 2, kind: input, shape index: {}]
  %s3 = inlined_call_operand.vmem [shape: f32[1,400], index: 3, kind: input, shape index: {}]
  %s4 = inlined_call_operand.vmem [shape: bf16[400,256], index: 4, kind: input, shape index: {}]
  %s5 = inlined_call_operand.vmem [shape: f32[1,256], index: 5, kind: input, shape index: {}]
  %s6 = inlined_call_operand.vmem [shape: bf16[128,400], index: 6, kind: input, shape index: {}]
  %s7 = inlined_call_operand.vmem [shape: f32[1,400], index: 7, kind: input, shape index: {}]
  %s8 = inlined_call_operand.vmem [shape: bf16[400,784], index: 8, kind: input, shape index: {}]
  %s9 = inlined_call_operand.vmem [shape: f32[1,784], index: 9, kind: input, shape index: {}]
  %s10 = inlined_call_operand.hbm [shape: bf16[8,784], index: 10, kind: output, shape index: {0}]
  %s11 = inlined_call_operand.hbm [shape: f32[8,256], index: 11, kind: output, shape index: {1}]
  %12 = xla_tuple %s10, %s11
  %s13 = sld [smem:[#allocation0]]
  $region58: #{tpu_custom_call.1} parent=0
    _
  %s15 = ssub.s32 1, %s13
  %s16 = scalar_select 0, %s15, %s13
  $region1: #{tpu_custom_call.1} parent=0
    #allocation2 [shape = 'u8[14336]{0}', space=vmem, size = 0x3800, scoped, tag = 'output window, operand 0, single buffered']
    #allocation3 [shape = 's32[1]{0}', space=sflag, size = 0x4, scoped, tag = 'scoped memory for tpu_custom_call.1']
    #allocation4 [shape = 'u8[8192]{0}', space=vmem, size = 0x2000, scoped, tag = 'output window, operand 1, single buffered']
    #allocation5 [shape = 's32[1]{0}', space=sflag, size = 0x4, scoped, tag = 'scoped memory for tpu_custom_call.1']
    %17 = vsyncpa [#allocation3], 0
    %18 = vsyncpa [#allocation5], 0
    // Predicated region
    $region2: #{tpu_custom_call.1} parent=1 // pred_check
      _
    $region3: #{tpu_custom_call.1} parent=1 // pred_check_branch
      %20 = sbr.rel (0) target = $region5
    $region4: #{tpu_custom_call.1} parent=1 // pred_region
      _
    $region5: #{tpu_custom_call.1} parent=1 // pred_fallthru
      _
    // Predicated region
    $region6: #{tpu_custom_call.1} parent=1 // pred_check
      _
    $region7: #{tpu_custom_call.1} parent=1 // pred_check_branch
      %22 = sbr.rel (0) target = $region9
    $region8: #{tpu_custom_call.1} parent=1 // pred_region
      _
    $region9: #{tpu_custom_call.1} parent=1 // pred_fallthru
      _
    // Predicated region
    $region10: #{tpu_custom_call.1} parent=1 // pred_check
      _
    $region11: #{tpu_custom_call.1} parent=1 // pred_check_branch
      %24 = sbr.rel (0) target = $region13
    $region12: #{tpu_custom_call.1} parent=1 // pred_region
      _
    $region13: #{tpu_custom_call.1} parent=1 // pred_fallthru
      _
    // Predicated region
    $region14: #{tpu_custom_call.1} parent=1 // pred_check
      _
    $region15: #{tpu_custom_call.1} parent=1 // pred_check_branch
      %26 = sbr.rel (0) target = $region17
    $region16: #{tpu_custom_call.1} parent=1 // pred_region
      _
    $region17: #{tpu_custom_call.1} parent=1 // pred_fallthru
      _
    // Predicated region
    $region18: #{tpu_custom_call.1} parent=1 // pred_check
      _
    $region19: #{tpu_custom_call.1} parent=1 // pred_check_branch
      %28 = sbr.rel (0) target = $region21
    $region20: #{tpu_custom_call.1} parent=1 // pred_region
      _
    $region21: #{tpu_custom_call.1} parent=1 // pred_fallthru
      _
    // Predicated region
    $region22: #{tpu_custom_call.1} parent=1 // pred_check
      _
    $region23: #{tpu_custom_call.1} parent=1 // pred_check_branch
      %30 = sbr.rel (0) target = $region25
    $region24: #{tpu_custom_call.1} parent=1 // pred_region
      _
    $region25: #{tpu_custom_call.1} parent=1 // pred_fallthru
      _
    // Predicated region
    $region26: #{tpu_custom_call.1} parent=1 // pred_check
      _
    $region27: #{tpu_custom_call.1} parent=1 // pred_check_branch
      %32 = sbr.rel (0) target = $region29
    $region28: #{tpu_custom_call.1} parent=1 // pred_region
      _
    $region29: #{tpu_custom_call.1} parent=1 // pred_fallthru
      _
    // Predicated region
    $region30: #{tpu_custom_call.1} parent=1 // pred_check
      _
    $region31: #{tpu_custom_call.1} parent=1 // pred_check_branch
      %34 = sbr.rel (0) target = $region33
    $region32: #{tpu_custom_call.1} parent=1 // pred_region
      _
    $region33: #{tpu_custom_call.1} parent=1 // pred_fallthru
      _
    // Predicated region
    $region34: #{tpu_custom_call.1} parent=1 // pred_check
      _
    $region35: #{tpu_custom_call.1} parent=1 // pred_check_branch
      %36 = sbr.rel (0) target = $region37
    $region36: #{tpu_custom_call.1} parent=1 // pred_region
      _
    $region37: #{tpu_custom_call.1} parent=1 // pred_fallthru
      _
    // Predicated region
    $region38: #{tpu_custom_call.1} parent=1 // pred_check
      _
    $region39: #{tpu_custom_call.1} parent=1 // pred_check_branch
      %38 = sbr.rel (0) target = $region41
    $region40: #{tpu_custom_call.1} parent=1 // pred_region
      _
    $region41: #{tpu_custom_call.1} parent=1 // pred_fallthru
      _
    %v40 = vld [vmem:[%s0] sm:$0xff]
    %v41 = vld [vmem:[%s0 + $0x8] sm:$0xff]
    %v42 = vld [vmem:[%s0 + $0x10] sm:$0xff]
    %v43 = vld [vmem:[%s0 + $0x18] sm:$0xf]
    %v44 = vld [vmem:[%s1] sm:$0xff]
    %v45 = vld [vmem:[%s2] sm:$0xff]
    %v46 = vld [vmem:[%s2 + $0x8] sm:$0xff]
    %v47 = vld [vmem:[%s2 + $0x10] sm:$0xff]
    %v48 = vld [vmem:[%s2 + $0x18] sm:$0xff]
    %v49 = vld [vmem:[%s2 + $0x20] sm:$0xff]
    %v50 = vld [vmem:[%s2 + $0x28] sm:$0xff]
    %v51 = vld [vmem:[%s2 + $0x30] sm:$0xff]
    %v52 = vld [vmem:[%s2 + $0x38] sm:$0xff]
    %v53 = vld [vmem:[%s2 + $0x40] sm:$0xff]
    %v54 = vld [vmem:[%s2 + $0x48] sm:$0xff]
    %v55 = vld [vmem:[%s2 + $0x50] sm:$0xff]
    %v56 = vld [vmem:[%s2 + $0x58] sm:$0xff]
    %v57 = vld [vmem:[%s2 + $0x60] sm:$0xff]
    %v58 = vld [vmem:[%s2 + $0x68] sm:$0xff]
    %v59 = vld [vmem:[%s2 + $0x70] sm:$0xff]
    %v60 = vld [vmem:[%s2 + $0x78] sm:$0xff]
    %v61 = vld [vmem:[%s2 + $0x80] sm:$0xff]
    %v62 = vld [vmem:[%s2 + $0x88] sm:$0xff]
    %v63 = vld [vmem:[%s2 + $0x90] sm:$0xff]
    %v64 = vld [vmem:[%s2 + $0x98] sm:$0xff]
    %v65 = vld [vmem:[%s2 + $0xa0] sm:$0xff]
    %v66 = vld [vmem:[%s2 + $0xa8] sm:$0xff]
    %v67 = vld [vmem:[%s2 + $0xb0] sm:$0xff]
    %v68 = vld [vmem:[%s2 + $0xb8] sm:$0xff]
    %v69 = vld [vmem:[%s2 + $0xc0] sm:$0xff]
    %v70 = vld [vmem:[%s2 + $0xc8] sm:$0xff]
    %v71 = vld [vmem:[%s2 + $0xd0] sm:$0xff]
    %v72 = vld [vmem:[%s2 + $0xd8] sm:$0xff]
    %v73 = vld [vmem:[%s2 + $0xe0] sm:$0xff]
    %v74 = vld [vmem:[%s2 + $0xe8] sm:$0xff]
    %v75 = vld [vmem:[%s2 + $0xf0] sm:$0xff]
    %v76 = vld [vmem:[%s2 + $0xf8] sm:$0xff]
    %v77 = vld [vmem:[%s2 + $0x100] sm:$0xff]
    %v78 = vld [vmem:[%s2 + $0x108] sm:$0xff]
    %v79 = vld [vmem:[%s2 + $0x110] sm:$0xff]
    %v80 = vld [vmem:[%s2 + $0x118] sm:$0xff]
    %v81 = vld [vmem:[%s2 + $0x120] sm:$0xff]
    %v82 = vld [vmem:[%s2 + $0x128] sm:$0xff]
    %v83 = vld [vmem:[%s2 + $0x130] sm:$0xff]
    %v84 = vld [vmem:[%s2 + $0x138] sm:$0xff]
    %v85 = vld [vmem:[%s2 + $0x140] sm:$0xff]
    %v86 = vld [vmem:[%s2 + $0x148] sm:$0xff]
    %v87 = vld [vmem:[%s2 + $0x150] sm:$0xff]
    %v88 = vld [vmem:[%s2 + $0x158] sm:$0xff]
    %v89 = vld [vmem:[%s2 + $0x160] sm:$0xff]
    %v90 = vld [vmem:[%s2 + $0x168] sm:$0xff]
    %v91 = vld [vmem:[%s2 + $0x170] sm:$0xff]
    %v92 = vld [vmem:[%s2 + $0x178] sm:$0xff]
    %v93 = vld [vmem:[%s2 + $0x180] sm:$0xff]
    %v94 = vld [vmem:[%s2 + $0x188] sm:$0xff]
    %v95 = vld [vmem:[%s2 + $0x190] sm:$0xff]
    %v96 = vld [vmem:[%s2 + $0x198] sm:$0xff]
    %v97 = vld [vmem:[%s2 + $0x1a0] sm:$0xff]
    %v98 = vld [vmem:[%s2 + $0x1a8] sm:$0xff]
    %v99 = vld [vmem:[%s2 + $0x1b0] sm:$0xff]
    %v100 = vld [vmem:[%s2 + $0x1b8] sm:$0xff]
    %v101 = vld [vmem:[%s2 + $0x1c0] sm:$0xff]
    %v102 = vld [vmem:[%s2 + $0x1c8] sm:$0xff]
    %v103 = vld [vmem:[%s2 + $0x1d0] sm:$0xff]
    %v104 = vld [vmem:[%s2 + $0x1d8] sm:$0xff]
    %v105 = vld [vmem:[%s2 + $0x1e0] sm:$0xff]
    %v106 = vld [vmem:[%s2 + $0x1e8] sm:$0xff]
    %v107 = vld [vmem:[%s2 + $0x1f0] sm:$0xff]
    %v108 = vld [vmem:[%s2 + $0x1f8] sm:$0xff]
    %v109 = vld [vmem:[%s2 + $0x200] sm:$0xff]
    %v110 = vld [vmem:[%s2 + $0x208] sm:$0xff]
    %v111 = vld [vmem:[%s2 + $0x210] sm:$0xff]
    %v112 = vld [vmem:[%s2 + $0x218] sm:$0xff]
    %v113 = vld [vmem:[%s2 + $0x220] sm:$0xff]
    %v114 = vld [vmem:[%s2 + $0x228] sm:$0xff]
    %v115 = vld [vmem:[%s2 + $0x230] sm:$0xff]
    %v116 = vld [vmem:[%s2 + $0x238] sm:$0xff]
    %v117 = vld [vmem:[%s2 + $0x240] sm:$0xff]
    %v118 = vld [vmem:[%s2 + $0x248] sm:$0xff]
    %v119 = vld [vmem:[%s2 + $0x250] sm:$0xff]
    %v120 = vld [vmem:[%s2 + $0x258] sm:$0xff]
    %v121 = vld [vmem:[%s2 + $0x260] sm:$0xff]
    %v122 = vld [vmem:[%s2 + $0x268] sm:$0xff]
    %v123 = vld [vmem:[%s2 + $0x270] sm:$0xff]
    %v124 = vld [vmem:[%s2 + $0x278] sm:$0xff]
    %v125 = vld [vmem:[%s2 + $0x280] sm:$0xff]
    %v126 = vld [vmem:[%s2 + $0x288] sm:$0xff]
    %v127 = vld [vmem:[%s2 + $0x290] sm:$0xff]
    %v128 = vld [vmem:[%s2 + $0x298] sm:$0xff]
    %v129 = vld [vmem:[%s2 + $0x2a0] sm:$0xff]
    %v130 = vld [vmem:[%s2 + $0x2a8] sm:$0xff]
    %v131 = vld [vmem:[%s2 + $0x2b0] sm:$0xff]
    %v132 = vld [vmem:[%s2 + $0x2b8] sm:$0xff]
    %v133 = vld [vmem:[%s2 + $0x2c0] sm:$0xff]
    %v134 = vld [vmem:[%s2 + $0x2c8] sm:$0xff]
    %v135 = vld [vmem:[%s2 + $0x2d0] sm:$0xff]
    %v136 = vld [vmem:[%s2 + $0x2d8] sm:$0xff]
    %v137 = vld [vmem:[%s2 + $0x2e0] sm:$0xff]
    %v138 = vld [vmem:[%s2 + $0x2e8] sm:$0xff]
    %v139 = vld [vmem:[%s2 + $0x2f0] sm:$0xff]
    %v140 = vld [vmem:[%s2 + $0x2f8] sm:$0xff]
    %v141 = vld [vmem:[%s2 + $0x300] sm:$0xff]
    %v142 = vld [vmem:[%s2 + $0x308] sm:$0xff]
    %v143 = vld [vmem:[%s2 + $0x310] sm:$0xff]
    %v144 = vld [vmem:[%s2 + $0x318] sm:$0xff]
    %v145 = vld [vmem:[%s2 + $0x320] sm:$0xff]
    %v146 = vld [vmem:[%s2 + $0x328] sm:$0xff]
    %v147 = vld [vmem:[%s2 + $0x330] sm:$0xff]
    %v148 = vld [vmem:[%s2 + $0x338] sm:$0xff]
    %v149 = vld [vmem:[%s2 + $0x340] sm:$0xff]
    %v150 = vld [vmem:[%s2 + $0x348] sm:$0xff]
    %v151 = vld [vmem:[%s2 + $0x350] sm:$0xff]
    %v152 = vld [vmem:[%s2 + $0x358] sm:$0xff]
    %v153 = vld [vmem:[%s2 + $0x360] sm:$0xff]
    %v154 = vld [vmem:[%s2 + $0x368] sm:$0xff]
    %v155 = vld [vmem:[%s2 + $0x370] sm:$0xff]
    %v156 = vld [vmem:[%s2 + $0x378] sm:$0xff]
    %v157 = vld [vmem:[%s2 + $0x380] sm:$0xff]
    %v158 = vld [vmem:[%s2 + $0x388] sm:$0xff]
    %v159 = vld [vmem:[%s2 + $0x390] sm:$0xff]
    %v160 = vld [vmem:[%s2 + $0x398] sm:$0xff]
    %v161 = vld [vmem:[%s2 + $0x3a0] sm:$0xff]
    %v162 = vld [vmem:[%s2 + $0x3a8] sm:$0xff]
    %v163 = vld [vmem:[%s2 + $0x3b0] sm:$0xff]
    %v164 = vld [vmem:[%s2 + $0x3b8] sm:$0xff]
    %v165 = vld [vmem:[%s2 + $0x3c0] sm:$0xff]
    %v166 = vld [vmem:[%s2 + $0x3c8] sm:$0xff]
    %v167 = vld [vmem:[%s2 + $0x3d0] sm:$0xff]
    %v168 = vld [vmem:[%s2 + $0x3d8] sm:$0xff]
    %v169 = vld [vmem:[%s2 + $0x3e0] sm:$0xff]
    %v170 = vld [vmem:[%s2 + $0x3e8] sm:$0xff]
    %v171 = vld [vmem:[%s2 + $0x3f0] sm:$0xff]
    %v172 = vld [vmem:[%s2 + $0x3f8] sm:$0xff]
    %v173 = vld [vmem:[%s2 + $0x400] sm:$0xff]
    %v174 = vld [vmem:[%s2 + $0x408] sm:$0xff]
    %v175 = vld [vmem:[%s2 + $0x410] sm:$0xff]
    %v176 = vld [vmem:[%s2 + $0x418] sm:$0xff]
    %v177 = vld [vmem:[%s2 + $0x420] sm:$0xff]
    %v178 = vld [vmem:[%s2 + $0x428] sm:$0xff]
    %v179 = vld [vmem:[%s2 + $0x430] sm:$0xff]
    %v180 = vld [vmem:[%s2 + $0x438] sm:$0xff]
    %v181 = vld [vmem:[%s2 + $0x440] sm:$0xff]
    %v182 = vld [vmem:[%s2 + $0x448] sm:$0xff]
    %v183 = vld [vmem:[%s2 + $0x450] sm:$0xff]
    %v184 = vld [vmem:[%s2 + $0x458] sm:$0xff]
    %v185 = vld [vmem:[%s2 + $0x460] sm:$0xff]
    %v186 = vld [vmem:[%s2 + $0x468] sm:$0xff]
    %v187 = vld [vmem:[%s2 + $0x470] sm:$0xff]
    %v188 = vld [vmem:[%s2 + $0x478] sm:$0xff]
    %v189 = vld [vmem:[%s2 + $0x480] sm:$0xff]
    %v190 = vld [vmem:[%s2 + $0x488] sm:$0xff]
    %v191 = vld [vmem:[%s2 + $0x490] sm:$0xff]
    %v192 = vld [vmem:[%s2 + $0x498] sm:$0xff]
    %v193 = vld [vmem:[%s2 + $0x4a0] sm:$0xff]
    %v194 = vld [vmem:[%s2 + $0x4a8] sm:$0xff]
    %v195 = vld [vmem:[%s2 + $0x4b0] sm:$0xff]
    %v196 = vld [vmem:[%s2 + $0x4b8] sm:$0xff]
    %v197 = vld [vmem:[%s2 + $0x4c0] sm:$0xff]
    %v198 = vld [vmem:[%s2 + $0x4c8] sm:$0xff]
    %v199 = vld [vmem:[%s2 + $0x4d0] sm:$0xff]
    %v200 = vld [vmem:[%s2 + $0x4d8] sm:$0xff]
    %v201 = vld [vmem:[%s2 + $0x4e0] sm:$0xff]
    %v202 = vld [vmem:[%s2 + $0x4e8] sm:$0xff]
    %v203 = vld [vmem:[%s2 + $0x4f0] sm:$0xff]
    %v204 = vld [vmem:[%s2 + $0x4f8] sm:$0xff]
    %v205 = vld [vmem:[%s2 + $0x500] sm:$0xff]
    %v206 = vld [vmem:[%s2 + $0x508] sm:$0xff]
    %v207 = vld [vmem:[%s2 + $0x510] sm:$0xff]
    %v208 = vld [vmem:[%s2 + $0x518] sm:$0xff]
    %v209 = vld [vmem:[%s2 + $0x520] sm:$0xff]
    %v210 = vld [vmem:[%s2 + $0x528] sm:$0xff]
    %v211 = vld [vmem:[%s2 + $0x530] sm:$0xff]
    %v212 = vld [vmem:[%s2 + $0x538] sm:$0xff]
    %v213 = vld [vmem:[%s2 + $0x540] sm:$0xff]
    %v214 = vld [vmem:[%s2 + $0x548] sm:$0xff]
    %v215 = vld [vmem:[%s2 + $0x550] sm:$0xff]
    %v216 = vld [vmem:[%s2 + $0x558] sm:$0xff]
    %v217 = vld [vmem:[%s2 + $0x560] sm:$0xff]
    %v218 = vld [vmem:[%s2 + $0x568] sm:$0xff]
    %v219 = vld [vmem:[%s2 + $0x570] sm:$0xff]
    %v220 = vld [vmem:[%s2 + $0x578] sm:$0xff]
    %v221 = vld [vmem:[%s2 + $0x580] sm:$0xff]
    %v222 = vld [vmem:[%s2 + $0x588] sm:$0xff]
    %v223 = vld [vmem:[%s2 + $0x590] sm:$0xff]
    %v224 = vld [vmem:[%s2 + $0x598] sm:$0xff]
    %v225 = vld [vmem:[%s2 + $0x5a0] sm:$0xff]
    %v226 = vld [vmem:[%s2 + $0x5a8] sm:$0xff]
    %v227 = vld [vmem:[%s2 + $0x5b0] sm:$0xff]
    %v228 = vld [vmem:[%s2 + $0x5b8] sm:$0xff]
    %v229 = vld [vmem:[%s2 + $0x5c0] sm:$0xff]
    %v230 = vld [vmem:[%s2 + $0x5c8] sm:$0xff]
    %v231 = vld [vmem:[%s2 + $0x5d0] sm:$0xff]
    %v232 = vld [vmem:[%s2 + $0x5d8] sm:$0xff]
    %v233 = vld [vmem:[%s2 + $0x5e0] sm:$0xff]
    %v234 = vld [vmem:[%s2 + $0x5e8] sm:$0xff]
    %v235 = vld [vmem:[%s2 + $0x5f0] sm:$0xff]
    %v236 = vld [vmem:[%s2 + $0x5f8] sm:$0xff]
    %v237 = vld [vmem:[%s2 + $0x600] sm:$0xff]
    %v238 = vld [vmem:[%s2 + $0x608] sm:$0xff]
    %v239 = vld [vmem:[%s2 + $0x610] sm:$0xff]
    %v240 = vld [vmem:[%s2 + $0x618] sm:$0xff]
    %v241 = vld [vmem:[%s3] sm:$0xf]
    %v243 = vlaneseq
    %v244 = vshrl.u32 %v243, 7
    %v245 = vsub.s32 0, %v244
    %v246 = vrot.slane %v241, %v245
    %v247 = vlaneseq
    %v248 = vshrl.u32 %v247, 7
    %v249 = vsub.s32 1, %v248
    %v250 = vrot.slane %v241, %v249
    %v251 = vlaneseq
    %v252 = vshrl.u32 %v251, 7
    %v253 = vsub.s32 2, %v252
    %v254 = vrot.slane %v241, %v253
    %v255 = vlaneseq
    %v256 = vshrl.u32 %v255, 7
    %v257 = vsub.s32 3, %v256
    %v258 = vrot.slane %v241, %v257
    %v267 = vunpack.c.l.b16 %v40
    %v268 = vunpack.c.h.b16 %v40
    %v269 = vunpack.c.l.b16 %v41
    %v270 = vunpack.c.h.b16 %v41
    %v271 = vunpack.c.l.b16 %v42
    %v272 = vunpack.c.h.b16 %v42
    %v273 = vunpack.c.l.b16 %v43
    %v274 = vpack.c.b16 %v267, %v267
    %v275 = vpack.c.b16 %v268, %v268
    %v276 = vpack.c.b16 %v269, %v269
    %v277 = vpack.c.b16 %v270, %v270
    %v278 = vpack.c.b16 %v271, %v271
    %v279 = vpack.c.b16 %v272, %v272
    %v280 = vpack.c.b16 %v273, %v273
    %v483 = vunpack.c.l.b16 %v45
    %v484 = vunpack.c.h.b16 %v45
    %v485 = vunpack.c.l.b16 %v46
    %v486 = vunpack.c.h.b16 %v46
    %v487 = vunpack.c.l.b16 %v47
    %v488 = vunpack.c.h.b16 %v47
    %v489 = vunpack.c.l.b16 %v48
    %v490 = vunpack.c.h.b16 %v48
    %v491 = vunpack.c.l.b16 %v49
    %v492 = vunpack.c.h.b16 %v49
    %v493 = vunpack.c.l.b16 %v50
    %v494 = vunpack.c.h.b16 %v50
    %v495 = vunpack.c.l.b16 %v51
    %v496 = vunpack.c.h.b16 %v51
    %v497 = vunpack.c.l.b16 %v52
    %v498 = vunpack.c.h.b16 %v52
    %v499 = vunpack.c.l.b16 %v53
    %v500 = vunpack.c.h.b16 %v53
    %v501 = vunpack.c.l.b16 %v54
    %v502 = vunpack.c.h.b16 %v54
    %v503 = vunpack.c.l.b16 %v55
    %v504 = vunpack.c.h.b16 %v55
    %v505 = vunpack.c.l.b16 %v56
    %v506 = vunpack.c.h.b16 %v56
    %v507 = vunpack.c.l.b16 %v57
    %v508 = vunpack.c.h.b16 %v57
    %v509 = vunpack.c.l.b16 %v58
    %v510 = vunpack.c.h.b16 %v58
    %v511 = vunpack.c.l.b16 %v59
    %v512 = vunpack.c.h.b16 %v59
    %v513 = vunpack.c.l.b16 %v60
    %v514 = vunpack.c.h.b16 %v60
    %v515 = vunpack.c.l.b16 %v61
    %v516 = vunpack.c.h.b16 %v61
    %v517 = vunpack.c.l.b16 %v62
    %v518 = vunpack.c.h.b16 %v62
    %v519 = vunpack.c.l.b16 %v63
    %v520 = vunpack.c.h.b16 %v63
    %v521 = vunpack.c.l.b16 %v64
    %v522 = vunpack.c.h.b16 %v64
    %v523 = vunpack.c.l.b16 %v65
    %v524 = vunpack.c.h.b16 %v65
    %v525 = vunpack.c.l.b16 %v66
    %v526 = vunpack.c.h.b16 %v66
    %v527 = vunpack.c.l.b16 %v67
    %v528 = vunpack.c.h.b16 %v67
    %v529 = vunpack.c.l.b16 %v68
    %v530 = vunpack.c.h.b16 %v68
    %v531 = vunpack.c.l.b16 %v69
    %v532 = vunpack.c.h.b16 %v69
    %v533 = vunpack.c.l.b16 %v70
    %v534 = vunpack.c.h.b16 %v70
    %v535 = vunpack.c.l.b16 %v71
    %v536 = vunpack.c.h.b16 %v71
    %v537 = vunpack.c.l.b16 %v72
    %v538 = vunpack.c.h.b16 %v72
    %v539 = vunpack.c.l.b16 %v73
    %v540 = vunpack.c.h.b16 %v73
    %v541 = vunpack.c.l.b16 %v74
    %v542 = vunpack.c.h.b16 %v74
    %v543 = vunpack.c.l.b16 %v75
    %v544 = vunpack.c.h.b16 %v75
    %v545 = vunpack.c.l.b16 %v76
    %v546 = vunpack.c.h.b16 %v76
    %v547 = vunpack.c.l.b16 %v77
    %v548 = vunpack.c.h.b16 %v77
    %v549 = vunpack.c.l.b16 %v78
    %v550 = vunpack.c.h.b16 %v78
    %v551 = vunpack.c.l.b16 %v79
    %v552 = vunpack.c.h.b16 %v79
    %v553 = vunpack.c.l.b16 %v80
    %v554 = vunpack.c.h.b16 %v80
    %v555 = vunpack.c.l.b16 %v81
    %v556 = vunpack.c.h.b16 %v81
    %v557 = vunpack.c.l.b16 %v82
    %v558 = vunpack.c.h.b16 %v82
    %v559 = vunpack.c.l.b16 %v83
    %v560 = vunpack.c.h.b16 %v83
    %v561 = vunpack.c.l.b16 %v84
    %v562 = vunpack.c.h.b16 %v84
    %v563 = vunpack.c.l.b16 %v85
    %v564 = vunpack.c.h.b16 %v85
    %v565 = vunpack.c.l.b16 %v86
    %v566 = vunpack.c.h.b16 %v86
    %v567 = vunpack.c.l.b16 %v87
    %v568 = vunpack.c.h.b16 %v87
    %v569 = vunpack.c.l.b16 %v88
    %v570 = vunpack.c.h.b16 %v88
    %v571 = vunpack.c.l.b16 %v89
    %v572 = vunpack.c.h.b16 %v89
    %v573 = vunpack.c.l.b16 %v90
    %v574 = vunpack.c.h.b16 %v90
    %v575 = vunpack.c.l.b16 %v91
    %v576 = vunpack.c.h.b16 %v91
    %v577 = vunpack.c.l.b16 %v92
    %v578 = vunpack.c.h.b16 %v92
    %v579 = vunpack.c.l.b16 %v93
    %v580 = vunpack.c.h.b16 %v93
    %v581 = vunpack.c.l.b16 %v94
    %v582 = vunpack.c.h.b16 %v94
    %v583 = vunpack.c.l.b16 %v95
    %v584 = vunpack.c.h.b16 %v95
    %v585 = vunpack.c.l.b16 %v96
    %v586 = vunpack.c.h.b16 %v96
    %v587 = vunpack.c.l.b16 %v97
    %v588 = vunpack.c.h.b16 %v97
    %v589 = vunpack.c.l.b16 %v98
    %v590 = vunpack.c.h.b16 %v98
    %v591 = vunpack.c.l.b16 %v99
    %v592 = vunpack.c.h.b16 %v99
    %v593 = vunpack.c.l.b16 %v100
    %v594 = vunpack.c.h.b16 %v100
    %v595 = vunpack.c.l.b16 %v101
    %v596 = vunpack.c.h.b16 %v101
    %v597 = vunpack.c.l.b16 %v102
    %v598 = vunpack.c.h.b16 %v102
    %v599 = vunpack.c.l.b16 %v103
    %v600 = vunpack.c.h.b16 %v103
    %v601 = vunpack.c.l.b16 %v104
    %v602 = vunpack.c.h.b16 %v104
    %v603 = vunpack.c.l.b16 %v105
    %v604 = vunpack.c.h.b16 %v105
    %v605 = vunpack.c.l.b16 %v106
    %v606 = vunpack.c.h.b16 %v106
    %v607 = vunpack.c.l.b16 %v107
    %v608 = vunpack.c.h.b16 %v107
    %v609 = vunpack.c.l.b16 %v108
    %v610 = vunpack.c.h.b16 %v108
    %v611 = vunpack.c.l.b16 %v109
    %v612 = vunpack.c.h.b16 %v109
    %v613 = vunpack.c.l.b16 %v110
    %v614 = vunpack.c.h.b16 %v110
    %v615 = vunpack.c.l.b16 %v111
    %v616 = vunpack.c.h.b16 %v111
    %v617 = vunpack.c.l.b16 %v112
    %v618 = vunpack.c.h.b16 %v112
    %v619 = vunpack.c.l.b16 %v113
    %v620 = vunpack.c.h.b16 %v113
    %v621 = vunpack.c.l.b16 %v114
    %v622 = vunpack.c.h.b16 %v114
    %v623 = vunpack.c.l.b16 %v115
    %v624 = vunpack.c.h.b16 %v115
    %v625 = vunpack.c.l.b16 %v116
    %v626 = vunpack.c.h.b16 %v116
    %v627 = vunpack.c.l.b16 %v117
    %v628 = vunpack.c.h.b16 %v117
    %v629 = vunpack.c.l.b16 %v118
    %v630 = vunpack.c.h.b16 %v118
    %v631 = vunpack.c.l.b16 %v119
    %v632 = vunpack.c.h.b16 %v119
    %v633 = vunpack.c.l.b16 %v120
    %v634 = vunpack.c.h.b16 %v120
    %v635 = vunpack.c.l.b16 %v121
    %v636 = vunpack.c.h.b16 %v121
    %v637 = vunpack.c.l.b16 %v122
    %v638 = vunpack.c.h.b16 %v122
    %v639 = vunpack.c.l.b16 %v123
    %v640 = vunpack.c.h.b16 %v123
    %v641 = vunpack.c.l.b16 %v124
    %v642 = vunpack.c.h.b16 %v124
    %v643 = vunpack.c.l.b16 %v125
    %v644 = vunpack.c.h.b16 %v125
    %v645 = vunpack.c.l.b16 %v126
    %v646 = vunpack.c.h.b16 %v126
    %v647 = vunpack.c.l.b16 %v127
    %v648 = vunpack.c.h.b16 %v127
    %v649 = vunpack.c.l.b16 %v128
    %v650 = vunpack.c.h.b16 %v128
    %v651 = vunpack.c.l.b16 %v129
    %v652 = vunpack.c.h.b16 %v129
    %v653 = vunpack.c.l.b16 %v130
    %v654 = vunpack.c.h.b16 %v130
    %v655 = vunpack.c.l.b16 %v131
    %v656 = vunpack.c.h.b16 %v131
    %v657 = vunpack.c.l.b16 %v132
    %v658 = vunpack.c.h.b16 %v132
    %v659 = vunpack.c.l.b16 %v133
    %v660 = vunpack.c.h.b16 %v133
    %v661 = vunpack.c.l.b16 %v134
    %v662 = vunpack.c.h.b16 %v134
    %v663 = vunpack.c.l.b16 %v135
    %v664 = vunpack.c.h.b16 %v135
    %v665 = vunpack.c.l.b16 %v136
    %v666 = vunpack.c.h.b16 %v136
    %v667 = vunpack.c.l.b16 %v137
    %v668 = vunpack.c.h.b16 %v137
    %v669 = vunpack.c.l.b16 %v138
    %v670 = vunpack.c.h.b16 %v138
    %v671 = vunpack.c.l.b16 %v139
    %v672 = vunpack.c.h.b16 %v139
    %v673 = vunpack.c.l.b16 %v140
    %v674 = vunpack.c.h.b16 %v140
    %v675 = vunpack.c.l.b16 %v141
    %v676 = vunpack.c.h.b16 %v141
    %v677 = vunpack.c.l.b16 %v142
    %v678 = vunpack.c.h.b16 %v142
    %v679 = vunpack.c.l.b16 %v143
    %v680 = vunpack.c.h.b16 %v143
    %v681 = vunpack.c.l.b16 %v144
    %v682 = vunpack.c.h.b16 %v144
    %v683 = vunpack.c.l.b16 %v145
    %v684 = vunpack.c.h.b16 %v145
    %v685 = vunpack.c.l.b16 %v146
    %v686 = vunpack.c.h.b16 %v146
    %v687 = vunpack.c.l.b16 %v147
    %v688 = vunpack.c.h.b16 %v147
    %v689 = vunpack.c.l.b16 %v148
    %v690 = vunpack.c.h.b16 %v148
    %v691 = vunpack.c.l.b16 %v149
    %v692 = vunpack.c.h.b16 %v149
    %v693 = vunpack.c.l.b16 %v150
    %v694 = vunpack.c.h.b16 %v150
    %v695 = vunpack.c.l.b16 %v151
    %v696 = vunpack.c.h.b16 %v151
    %v697 = vunpack.c.l.b16 %v152
    %v698 = vunpack.c.h.b16 %v152
    %v699 = vunpack.c.l.b16 %v153
    %v700 = vunpack.c.h.b16 %v153
    %v701 = vunpack.c.l.b16 %v154
    %v702 = vunpack.c.h.b16 %v154
    %v703 = vunpack.c.l.b16 %v155
    %v704 = vunpack.c.h.b16 %v155
    %v705 = vunpack.c.l.b16 %v156
    %v706 = vunpack.c.h.b16 %v156
    %v707 = vunpack.c.l.b16 %v157
    %v708 = vunpack.c.h.b16 %v157
    %v709 = vunpack.c.l.b16 %v158
    %v710 = vunpack.c.h.b16 %v158
    %v711 = vunpack.c.l.b16 %v159
    %v712 = vunpack.c.h.b16 %v159
    %v713 = vunpack.c.l.b16 %v160
    %v714 = vunpack.c.h.b16 %v160
    %v715 = vunpack.c.l.b16 %v161
    %v716 = vunpack.c.h.b16 %v161
    %v717 = vunpack.c.l.b16 %v162
    %v718 = vunpack.c.h.b16 %v162
    %v719 = vunpack.c.l.b16 %v163
    %v720 = vunpack.c.h.b16 %v163
    %v721 = vunpack.c.l.b16 %v164
    %v722 = vunpack.c.h.b16 %v164
    %v723 = vunpack.c.l.b16 %v165
    %v724 = vunpack.c.h.b16 %v165
    %v725 = vunpack.c.l.b16 %v166
    %v726 = vunpack.c.h.b16 %v166
    %v727 = vunpack.c.l.b16 %v167
    %v728 = vunpack.c.h.b16 %v167
    %v729 = vunpack.c.l.b16 %v168
    %v730 = vunpack.c.h.b16 %v168
    %v731 = vunpack.c.l.b16 %v169
    %v732 = vunpack.c.h.b16 %v169
    %v733 = vunpack.c.l.b16 %v170
    %v734 = vunpack.c.h.b16 %v170
    %v735 = vunpack.c.l.b16 %v171
    %v736 = vunpack.c.h.b16 %v171
    %v737 = vunpack.c.l.b16 %v172
    %v738 = vunpack.c.h.b16 %v172
    %v739 = vunpack.c.l.b16 %v173
    %v740 = vunpack.c.h.b16 %v173
    %v741 = vunpack.c.l.b16 %v174
    %v742 = vunpack.c.h.b16 %v174
    %v743 = vunpack.c.l.b16 %v175
    %v744 = vunpack.c.h.b16 %v175
    %v745 = vunpack.c.l.b16 %v176
    %v746 = vunpack.c.h.b16 %v176
    %v747 = vunpack.c.l.b16 %v177
    %v748 = vunpack.c.h.b16 %v177
    %v749 = vunpack.c.l.b16 %v178
    %v750 = vunpack.c.h.b16 %v178
    %v751 = vunpack.c.l.b16 %v179
    %v752 = vunpack.c.h.b16 %v179
    %v753 = vunpack.c.l.b16 %v180
    %v754 = vunpack.c.h.b16 %v180
    %v755 = vunpack.c.l.b16 %v181
    %v756 = vunpack.c.h.b16 %v181
    %v757 = vunpack.c.l.b16 %v182
    %v758 = vunpack.c.h.b16 %v182
    %v759 = vunpack.c.l.b16 %v183
    %v760 = vunpack.c.h.b16 %v183
    %v761 = vunpack.c.l.b16 %v184
    %v762 = vunpack.c.h.b16 %v184
    %v763 = vunpack.c.l.b16 %v185
    %v764 = vunpack.c.h.b16 %v185
    %v765 = vunpack.c.l.b16 %v186
    %v766 = vunpack.c.h.b16 %v186
    %v767 = vunpack.c.l.b16 %v187
    %v768 = vunpack.c.h.b16 %v187
    %v769 = vunpack.c.l.b16 %v188
    %v770 = vunpack.c.h.b16 %v188
    %v771 = vunpack.c.l.b16 %v189
    %v772 = vunpack.c.h.b16 %v189
    %v773 = vunpack.c.l.b16 %v190
    %v774 = vunpack.c.h.b16 %v190
    %v775 = vunpack.c.l.b16 %v191
    %v776 = vunpack.c.h.b16 %v191
    %v777 = vunpack.c.l.b16 %v192
    %v778 = vunpack.c.h.b16 %v192
    %v779 = vunpack.c.l.b16 %v193
    %v780 = vunpack.c.h.b16 %v193
    %v781 = vunpack.c.l.b16 %v194
    %v782 = vunpack.c.h.b16 %v194
    %v783 = vunpack.c.l.b16 %v195
    %v784 = vunpack.c.h.b16 %v195
    %v785 = vunpack.c.l.b16 %v196
    %v786 = vunpack.c.h.b16 %v196
    %v787 = vunpack.c.l.b16 %v197
    %v788 = vunpack.c.h.b16 %v197
    %v789 = vunpack.c.l.b16 %v198
    %v790 = vunpack.c.h.b16 %v198
    %v791 = vunpack.c.l.b16 %v199
    %v792 = vunpack.c.h.b16 %v199
    %v793 = vunpack.c.l.b16 %v200
    %v794 = vunpack.c.h.b16 %v200
    %v795 = vunpack.c.l.b16 %v201
    %v796 = vunpack.c.h.b16 %v201
    %v797 = vunpack.c.l.b16 %v202
    %v798 = vunpack.c.h.b16 %v202
    %v799 = vunpack.c.l.b16 %v203
    %v800 = vunpack.c.h.b16 %v203
    %v801 = vunpack.c.l.b16 %v204
    %v802 = vunpack.c.h.b16 %v204
    %v803 = vunpack.c.l.b16 %v205
    %v804 = vunpack.c.h.b16 %v205
    %v805 = vunpack.c.l.b16 %v206
    %v806 = vunpack.c.h.b16 %v206
    %v807 = vunpack.c.l.b16 %v207
    %v808 = vunpack.c.h.b16 %v207
    %v809 = vunpack.c.l.b16 %v208
    %v810 = vunpack.c.h.b16 %v208
    %v811 = vunpack.c.l.b16 %v209
    %v812 = vunpack.c.h.b16 %v209
    %v813 = vunpack.c.l.b16 %v210
    %v814 = vunpack.c.h.b16 %v210
    %v815 = vunpack.c.l.b16 %v211
    %v816 = vunpack.c.h.b16 %v211
    %v817 = vunpack.c.l.b16 %v212
    %v818 = vunpack.c.h.b16 %v212
    %v819 = vunpack.c.l.b16 %v213
    %v820 = vunpack.c.h.b16 %v213
    %v821 = vunpack.c.l.b16 %v214
    %v822 = vunpack.c.h.b16 %v214
    %v823 = vunpack.c.l.b16 %v215
    %v824 = vunpack.c.h.b16 %v215
    %v825 = vunpack.c.l.b16 %v216
    %v826 = vunpack.c.h.b16 %v216
    %v827 = vunpack.c.l.b16 %v217
    %v828 = vunpack.c.h.b16 %v217
    %v829 = vunpack.c.l.b16 %v218
    %v830 = vunpack.c.h.b16 %v218
    %v831 = vunpack.c.l.b16 %v219
    %v832 = vunpack.c.h.b16 %v219
    %v833 = vunpack.c.l.b16 %v220
    %v834 = vunpack.c.h.b16 %v220
    %v835 = vunpack.c.l.b16 %v221
    %v836 = vunpack.c.h.b16 %v221
    %v837 = vunpack.c.l.b16 %v222
    %v838 = vunpack.c.h.b16 %v222
    %v839 = vunpack.c.l.b16 %v223
    %v840 = vunpack.c.h.b16 %v223
    %v841 = vunpack.c.l.b16 %v224
    %v842 = vunpack.c.h.b16 %v224
    %v843 = vunpack.c.l.b16 %v225
    %v844 = vunpack.c.h.b16 %v225
    %v845 = vunpack.c.l.b16 %v226
    %v846 = vunpack.c.h.b16 %v226
    %v847 = vunpack.c.l.b16 %v227
    %v848 = vunpack.c.h.b16 %v227
    %v849 = vunpack.c.l.b16 %v228
    %v850 = vunpack.c.h.b16 %v228
    %v851 = vunpack.c.l.b16 %v229
    %v852 = vunpack.c.h.b16 %v229
    %v853 = vunpack.c.l.b16 %v230
    %v854 = vunpack.c.h.b16 %v230
    %v855 = vunpack.c.l.b16 %v231
    %v856 = vunpack.c.h.b16 %v231
    %v857 = vunpack.c.l.b16 %v232
    %v858 = vunpack.c.h.b16 %v232
    %v859 = vunpack.c.l.b16 %v233
    %v860 = vunpack.c.h.b16 %v233
    %v861 = vunpack.c.l.b16 %v234
    %v862 = vunpack.c.h.b16 %v234
    %v863 = vunpack.c.l.b16 %v235
    %v864 = vunpack.c.h.b16 %v235
    %v865 = vunpack.c.l.b16 %v236
    %v866 = vunpack.c.h.b16 %v236
    %v867 = vunpack.c.l.b16 %v237
    %v868 = vunpack.c.h.b16 %v237
    %v869 = vunpack.c.l.b16 %v238
    %v870 = vunpack.c.h.b16 %v238
    %v871 = vunpack.c.l.b16 %v239
    %v872 = vunpack.c.h.b16 %v239
    %v873 = vunpack.c.l.b16 %v240
    %v874 = vunpack.c.h.b16 %v240
    %v875 = vpack.c.b16 %v487, %v483
    %v876 = vpack.c.b16 %v488, %v484
    %v877 = vpack.c.b16 %v489, %v485
    %v878 = vpack.c.b16 %v490, %v486
    %v879 = vpack.c.b16 %v495, %v491
    %v880 = vpack.c.b16 %v496, %v492
    %v881 = vpack.c.b16 %v497, %v493
    %v882 = vpack.c.b16 %v498, %v494
    %v883 = vpack.c.b16 %v503, %v499
    %v884 = vpack.c.b16 %v504, %v500
    %v885 = vpack.c.b16 %v505, %v501
    %v886 = vpack.c.b16 %v506, %v502
    %v887 = vpack.c.b16 %v511, %v507
    %v888 = vpack.c.b16 %v512, %v508
    %v889 = vpack.c.b16 %v513, %v509
    %v890 = vpack.c.b16 %v514, %v510
    %v891 = vpack.c.b16 %v519, %v515
    %v892 = vpack.c.b16 %v520, %v516
    %v893 = vpack.c.b16 %v521, %v517
    %v894 = vpack.c.b16 %v522, %v518
    %v895 = vpack.c.b16 %v527, %v523
    %v896 = vpack.c.b16 %v528, %v524
    %v897 = vpack.c.b16 %v529, %v525
    %v898 = vpack.c.b16 %v530, %v526
    %v899 = vpack.c.b16 %v535, %v531
    %v900 = vpack.c.b16 %v536, %v532
    %v901 = vpack.c.b16 %v537, %v533
    %v902 = vpack.c.b16 %v538, %v534
    %v903 = vpack.c.b16 %v543, %v539
    %v904 = vpack.c.b16 %v544, %v540
    %v905 = vpack.c.b16 %v545, %v541
    %v906 = vpack.c.b16 %v546, %v542
    %v907 = vpack.c.b16 %v551, %v547
    %v908 = vpack.c.b16 %v552, %v548
    %v909 = vpack.c.b16 %v553, %v549
    %v910 = vpack.c.b16 %v554, %v550
    %v911 = vpack.c.b16 %v559, %v555
    %v912 = vpack.c.b16 %v560, %v556
    %v913 = vpack.c.b16 %v561, %v557
    %v914 = vpack.c.b16 %v562, %v558
    %v915 = vpack.c.b16 %v567, %v563
    %v916 = vpack.c.b16 %v568, %v564
    %v917 = vpack.c.b16 %v569, %v565
    %v918 = vpack.c.b16 %v570, %v566
    %v919 = vpack.c.b16 %v575, %v571
    %v920 = vpack.c.b16 %v576, %v572
    %v921 = vpack.c.b16 %v577, %v573
    %v922 = vpack.c.b16 %v578, %v574
    %v923 = vpack.c.b16 %v583, %v579
    %v924 = vpack.c.b16 %v584, %v580
    %v925 = vpack.c.b16 %v585, %v581
    %v926 = vpack.c.b16 %v586, %v582
    %v927 = vpack.c.b16 %v591, %v587
    %v928 = vpack.c.b16 %v592, %v588
    %v929 = vpack.c.b16 %v593, %v589
    %v930 = vpack.c.b16 %v594, %v590
    %v931 = vpack.c.b16 %v599, %v595
    %v932 = vpack.c.b16 %v600, %v596
    %v933 = vpack.c.b16 %v601, %v597
    %v934 = vpack.c.b16 %v602, %v598
    %v935 = vpack.c.b16 %v607, %v603
    %v936 = vpack.c.b16 %v608, %v604
    %v937 = vpack.c.b16 %v609, %v605
    %v938 = vpack.c.b16 %v610, %v606
    %v939 = vpack.c.b16 %v615, %v611
    %v940 = vpack.c.b16 %v616, %v612
    %v941 = vpack.c.b16 %v617, %v613
    %v942 = vpack.c.b16 %v618, %v614
    %v943 = vpack.c.b16 %v623, %v619
    %v944 = vpack.c.b16 %v624, %v620
    %v945 = vpack.c.b16 %v625, %v621
    %v946 = vpack.c.b16 %v626, %v622
    %v947 = vpack.c.b16 %v631, %v627
    %v948 = vpack.c.b16 %v632, %v628
    %v949 = vpack.c.b16 %v633, %v629
    %v950 = vpack.c.b16 %v634, %v630
    %v951 = vpack.c.b16 %v639, %v635
    %v952 = vpack.c.b16 %v640, %v636
    %v953 = vpack.c.b16 %v641, %v637
    %v954 = vpack.c.b16 %v642, %v638
    %v955 = vpack.c.b16 %v647, %v643
    %v956 = vpack.c.b16 %v648, %v644
    %v957 = vpack.c.b16 %v649, %v645
    %v958 = vpack.c.b16 %v650, %v646
    %v959 = vpack.c.b16 %v655, %v651
    %v960 = vpack.c.b16 %v656, %v652
    %v961 = vpack.c.b16 %v657, %v653
    %v962 = vpack.c.b16 %v658, %v654
    %v963 = vpack.c.b16 %v663, %v659
    %v964 = vpack.c.b16 %v664, %v660
    %v965 = vpack.c.b16 %v665, %v661
    %v966 = vpack.c.b16 %v666, %v662
    %v967 = vpack.c.b16 %v671, %v667
    %v968 = vpack.c.b16 %v672, %v668
    %v969 = vpack.c.b16 %v673, %v669
    %v970 = vpack.c.b16 %v674, %v670
    %v971 = vpack.c.b16 %v679, %v675
    %v972 = vpack.c.b16 %v680, %v676
    %v973 = vpack.c.b16 %v681, %v677
    %v974 = vpack.c.b16 %v682, %v678
    %v975 = vpack.c.b16 %v687, %v683
    %v976 = vpack.c.b16 %v688, %v684
    %v977 = vpack.c.b16 %v689, %v685
    %v978 = vpack.c.b16 %v690, %v686
    %v979 = vpack.c.b16 %v695, %v691
    %v980 = vpack.c.b16 %v696, %v692
    %v981 = vpack.c.b16 %v697, %v693
    %v982 = vpack.c.b16 %v698, %v694
    %v983 = vpack.c.b16 %v703, %v699
    %v984 = vpack.c.b16 %v704, %v700
    %v985 = vpack.c.b16 %v705, %v701
    %v986 = vpack.c.b16 %v706, %v702
    %v987 = vpack.c.b16 %v711, %v707
    %v988 = vpack.c.b16 %v712, %v708
    %v989 = vpack.c.b16 %v713, %v709
    %v990 = vpack.c.b16 %v714, %v710
    %v991 = vpack.c.b16 %v719, %v715
    %v992 = vpack.c.b16 %v720, %v716
    %v993 = vpack.c.b16 %v721, %v717
    %v994 = vpack.c.b16 %v722, %v718
    %v995 = vpack.c.b16 %v727, %v723
    %v996 = vpack.c.b16 %v728, %v724
    %v997 = vpack.c.b16 %v729, %v725
    %v998 = vpack.c.b16 %v730, %v726
    %v999 = vpack.c.b16 %v735, %v731
    %v1000 = vpack.c.b16 %v736, %v732
    %v1001 = vpack.c.b16 %v737, %v733
    %v1002 = vpack.c.b16 %v738, %v734
    %v1003 = vpack.c.b16 %v743, %v739
    %v1004 = vpack.c.b16 %v744, %v740
    %v1005 = vpack.c.b16 %v745, %v741
    %v1006 = vpack.c.b16 %v746, %v742
    %v1007 = vpack.c.b16 %v751, %v747
    %v1008 = vpack.c.b16 %v752, %v748
    %v1009 = vpack.c.b16 %v753, %v749
    %v1010 = vpack.c.b16 %v754, %v750
    %v1011 = vpack.c.b16 %v759, %v755
    %v1012 = vpack.c.b16 %v760, %v756
    %v1013 = vpack.c.b16 %v761, %v757
    %v1014 = vpack.c.b16 %v762, %v758
    %v1015 = vpack.c.b16 %v767, %v763
    %v1016 = vpack.c.b16 %v768, %v764
    %v1017 = vpack.c.b16 %v769, %v765
    %v1018 = vpack.c.b16 %v770, %v766
    %v1019 = vpack.c.b16 %v775, %v771
    %v1020 = vpack.c.b16 %v776, %v772
    %v1021 = vpack.c.b16 %v777, %v773
    %v1022 = vpack.c.b16 %v778, %v774
    %v1023 = vpack.c.b16 %v783, %v779
    %v1024 = vpack.c.b16 %v784, %v780
    %v1025 = vpack.c.b16 %v785, %v781
    %v1026 = vpack.c.b16 %v786, %v782
    %v1027 = vpack.c.b16 %v791, %v787
    %v1028 = vpack.c.b16 %v792, %v788
    %v1029 = vpack.c.b16 %v793, %v789
    %v1030 = vpack.c.b16 %v794, %v790
    %v1031 = vpack.c.b16 %v799, %v795
    %v1032 = vpack.c.b16 %v800, %v796
    %v1033 = vpack.c.b16 %v801, %v797
    %v1034 = vpack.c.b16 %v802, %v798
    %v1035 = vpack.c.b16 %v807, %v803
    %v1036 = vpack.c.b16 %v808, %v804
    %v1037 = vpack.c.b16 %v809, %v805
    %v1038 = vpack.c.b16 %v810, %v806
    %v1039 = vpack.c.b16 %v815, %v811
    %v1040 = vpack.c.b16 %v816, %v812
    %v1041 = vpack.c.b16 %v817, %v813
    %v1042 = vpack.c.b16 %v818, %v814
    %v1043 = vpack.c.b16 %v823, %v819
    %v1044 = vpack.c.b16 %v824, %v820
    %v1045 = vpack.c.b16 %v825, %v821
    %v1046 = vpack.c.b16 %v826, %v822
    %v1047 = vpack.c.b16 %v831, %v827
    %v1048 = vpack.c.b16 %v832, %v828
    %v1049 = vpack.c.b16 %v833, %v829
    %v1050 = vpack.c.b16 %v834, %v830
    %v1051 = vpack.c.b16 %v839, %v835
    %v1052 = vpack.c.b16 %v840, %v836
    %v1053 = vpack.c.b16 %v841, %v837
    %v1054 = vpack.c.b16 %v842, %v838
    %v1055 = vpack.c.b16 %v847, %v843
    %v1056 = vpack.c.b16 %v848, %v844
    %v1057 = vpack.c.b16 %v849, %v845
    %v1058 = vpack.c.b16 %v850, %v846
    %v1059 = vpack.c.b16 %v855, %v851
    %v1060 = vpack.c.b16 %v856, %v852
    %v1061 = vpack.c.b16 %v857, %v853
    %v1062 = vpack.c.b16 %v858, %v854
    %v1063 = vpack.c.b16 %v863, %v859
    %v1064 = vpack.c.b16 %v864, %v860
    %v1065 = vpack.c.b16 %v865, %v861
    %v1066 = vpack.c.b16 %v866, %v862
    %v1067 = vpack.c.b16 %v871, %v867
    %v1068 = vpack.c.b16 %v872, %v868
    %v1069 = vpack.c.b16 %v873, %v869
    %v1070 = vpack.c.b16 %v874, %v870
    %vm1267 = vcmask 130048
    %v1269 = vsel %vm1267, %v280, 0
    %1271 = vmatprep.subr.bf16.mxu0 %v876
    %1272 = vmatpush1.bf16.msra.mxu0 %v875
    %1273 = vmatprep.subr.bf16.mxu0 %v880
    %1274 = vmatpush1.bf16.msra.mxu0 %v879
    %1275 = vmatprep.subr.bf16.mxu0 %v884
    %1276 = vmatpush1.bf16.msra.mxu0 %v883
    %1277 = vmatprep.subr.bf16.mxu0 %v888
    %1278 = vmatpush1.bf16.msra.mxu0 %v887
    %1279 = vmatprep.subr.bf16.mxu0 %v892
    %1280 = vmatpush1.bf16.msra.mxu0 %v891
    %1281 = vmatprep.subr.bf16.mxu0 %v896
    %1282 = vmatpush1.bf16.msra.mxu0 %v895
    %1283 = vmatprep.subr.bf16.mxu0 %v900
    %1284 = vmatpush1.bf16.msra.mxu0 %v899
    %1285 = vmatprep.subr.bf16.mxu0 %v904
    %1286 = vmatpush1.bf16.msra.mxu0 %v903
    %1287 = vmatprep.subr.bf16.mxu0 %v908
    %1288 = vmatpush1.bf16.msra.mxu0 %v907
    %1289 = vmatprep.subr.bf16.mxu0 %v912
    %1290 = vmatpush1.bf16.msra.mxu0 %v911
    %1291 = vmatprep.subr.bf16.mxu0 %v916
    %1292 = vmatpush1.bf16.msra.mxu0 %v915
    %1293 = vmatprep.subr.bf16.mxu0 %v920
    %1294 = vmatpush1.bf16.msra.mxu0 %v919
    %1295 = vmatprep.subr.bf16.mxu0 %v924
    %1296 = vmatpush1.bf16.msra.mxu0 %v923
    %1297 = vmatprep.subr.bf16.mxu0 %v928
    %1298 = vmatpush1.bf16.msra.mxu0 %v927
    %1299 = vmatprep.subr.bf16.mxu0 %v932
    %1300 = vmatpush1.bf16.msra.mxu0 %v931
    %1301 = vmatprep.subr.bf16.mxu0 %v936
    %1302 = vmatpush1.bf16.msra.mxu0 %v935
    %1303 = vmatprep.mubr.bf16.mxu0 %v275
    %1304 = vmatmul.mubr.bf16.gmra.mrb[0].mxu0 %v274
    %v1305 = vpop.f32.mrb[0].mxu0
    %v1306 = vadd.f32 %v246, %v1305
    %v1307 = vpop.f32.mrb[0].mxu0
    %v1308 = vadd.f32 %v250, %v1307
    %v1309 = vpop.f32.mrb[0].mxu0
    %v1310 = vpop.f32.mrb[0].mxu0
    %1311 = vdwg.mxu0
    %1312 = vmatprep.subr.bf16.mxu0 %v940
    %1313 = vmatpush1.bf16.msra.mxu0 %v939
    %1314 = vmatprep.subr.bf16.mxu0 %v944
    %1315 = vmatpush1.bf16.msra.mxu0 %v943
    %1316 = vmatprep.subr.bf16.mxu0 %v948
    %1317 = vmatpush1.bf16.msra.mxu0 %v947
    %1318 = vmatprep.subr.bf16.mxu0 %v952
    %1319 = vmatpush1.bf16.msra.mxu0 %v951
    %1320 = vmatprep.subr.bf16.mxu0 %v956
    %1321 = vmatpush1.bf16.msra.mxu0 %v955
    %1322 = vmatprep.subr.bf16.mxu0 %v960
    %1323 = vmatpush1.bf16.msra.mxu0 %v959
    %1324 = vmatprep.subr.bf16.mxu0 %v964
    %1325 = vmatpush1.bf16.msra.mxu0 %v963
    %1326 = vmatprep.subr.bf16.mxu0 %v968
    %1327 = vmatpush1.bf16.msra.mxu0 %v967
    %1328 = vmatprep.subr.bf16.mxu0 %v972
    %1329 = vmatpush1.bf16.msra.mxu0 %v971
    %1330 = vmatprep.subr.bf16.mxu0 %v976
    %1331 = vmatpush1.bf16.msra.mxu0 %v975
    %1332 = vmatprep.subr.bf16.mxu0 %v980
    %1333 = vmatpush1.bf16.msra.mxu0 %v979
    %1334 = vmatprep.subr.bf16.mxu0 %v984
    %1335 = vmatpush1.bf16.msra.mxu0 %v983
    %1336 = vmatprep.subr.bf16.mxu0 %v988
    %1337 = vmatpush1.bf16.msra.mxu0 %v987
    %1338 = vmatprep.subr.bf16.mxu0 %v992
    %1339 = vmatpush1.bf16.msra.mxu0 %v991
    %1340 = vmatprep.subr.bf16.mxu0 %v996
    %1341 = vmatpush1.bf16.msra.mxu0 %v995
    %1342 = vmatprep.subr.bf16.mxu0 %v1000
    %1343 = vmatpush1.bf16.msra.mxu0 %v999
    %1344 = vmatprep.mubr.bf16.mxu0 %v277
    %1345 = vmatmul.mubr.bf16.gmra.mrb[0].mxu0 %v276
    %v1346 = vpop.f32.mrb[0].mxu0
    %v1347 = vadd.f32 %v1306, %v1346
    %v1348 = vpop.f32.mrb[0].mxu0
    %v1349 = vadd.f32 %v1308, %v1348
    %v1350 = vpop.f32.mrb[0].mxu0
    %v1351 = vpop.f32.mrb[0].mxu0
    %1352 = vdwg.mxu0
    %1353 = vmatprep.subr.bf16.mxu0 %v1004
    %1354 = vmatpush1.bf16.msra.mxu0 %v1003
    %1355 = vmatprep.subr.bf16.mxu0 %v1008
    %1356 = vmatpush1.bf16.msra.mxu0 %v1007
    %1357 = vmatprep.subr.bf16.mxu0 %v1012
    %1358 = vmatpush1.bf16.msra.mxu0 %v1011
    %1359 = vmatprep.subr.bf16.mxu0 %v1016
    %1360 = vmatpush1.bf16.msra.mxu0 %v1015
    %1361 = vmatprep.subr.bf16.mxu0 %v1020
    %1362 = vmatpush1.bf16.msra.mxu0 %v1019
    %1363 = vmatprep.subr.bf16.mxu0 %v1024
    %1364 = vmatpush1.bf16.msra.mxu0 %v1023
    %1365 = vmatprep.subr.bf16.mxu0 %v1028
    %1366 = vmatpush1.bf16.msra.mxu0 %v1027
    %1367 = vmatprep.subr.bf16.mxu0 %v1032
    %1368 = vmatpush1.bf16.msra.mxu0 %v1031
    %1369 = vmatprep.subr.bf16.mxu0 %v1036
    %1370 = vmatpush1.bf16.msra.mxu0 %v1035
    %1371 = vmatprep.subr.bf16.mxu0 %v1040
    %1372 = vmatpush1.bf16.msra.mxu0 %v1039
    %1373 = vmatprep.subr.bf16.mxu0 %v1044
    %1374 = vmatpush1.bf16.msra.mxu0 %v1043
    %1375 = vmatprep.subr.bf16.mxu0 %v1048
    %1376 = vmatpush1.bf16.msra.mxu0 %v1047
    %1377 = vmatprep.subr.bf16.mxu0 %v1052
    %1378 = vmatpush1.bf16.msra.mxu0 %v1051
    %1379 = vmatprep.subr.bf16.mxu0 %v1056
    %1380 = vmatpush1.bf16.msra.mxu0 %v1055
    %1381 = vmatprep.subr.bf16.mxu0 %v1060
    %1382 = vmatpush1.bf16.msra.mxu0 %v1059
    %1383 = vmatprep.subr.bf16.mxu0 %v1064
    %1384 = vmatpush1.bf16.msra.mxu0 %v1063
    %1385 = vmatprep.mubr.bf16.mxu0 %v279
    %1386 = vmatmul.mubr.bf16.gmra.mrb[0].mxu0 %v278
    %v1387 = vpop.f32.mrb[0].mxu0
    %v1388 = vadd.f32 %v1347, %v1387
    %v1389 = vpop.f32.mrb[0].mxu0
    %v1390 = vadd.f32 %v1349, %v1389
    %v1391 = vpop.f32.mrb[0].mxu0
    %v1392 = vpop.f32.mrb[0].mxu0
    %1393 = vdwg.mxu0
    %1394 = vmatprep.subr.bf16.mxu0 %v1068
    %1395 = vmatpush1.bf16.msra.mxu0 %v1067
    %1396 = vmatprep.subr.bf16.mxu0 0
    %1397 = vmatpush1.bf16.msra.mxu0 0
    %1398 = vmatprep.subr.bf16.mxu0 0
    %1399 = vmatpush1.bf16.msra.mxu0 0
    %1400 = vmatprep.subr.bf16.mxu0 0
    %1401 = vmatpush1.bf16.msra.mxu0 0
    %1402 = vmatprep.subr.bf16.mxu0 0
    %1403 = vmatpush1.bf16.msra.mxu0 0
    %1404 = vmatprep.subr.bf16.mxu0 0
    %1405 = vmatpush1.bf16.msra.mxu0 0
    %1406 = vmatprep.subr.bf16.mxu0 0
    %1407 = vmatpush1.bf16.msra.mxu0 0
    %1408 = vmatprep.subr.bf16.mxu0 0
    %1409 = vmatpush1.bf16.msra.mxu0 0
    %1410 = vmatprep.subr.bf16.mxu0 0
    %1411 = vmatpush1.bf16.msra.mxu0 0
    %1412 = vmatprep.subr.bf16.mxu0 0
    %1413 = vmatpush1.bf16.msra.mxu0 0
    %1414 = vmatprep.subr.bf16.mxu0 0
    %1415 = vmatpush1.bf16.msra.mxu0 0
    %1416 = vmatprep.subr.bf16.mxu0 0
    %1417 = vmatpush1.bf16.msra.mxu0 0
    %1418 = vmatprep.subr.bf16.mxu0 0
    %1419 = vmatpush1.bf16.msra.mxu0 0
    %1420 = vmatprep.subr.bf16.mxu0 0
    %1421 = vmatpush1.bf16.msra.mxu0 0
    %1422 = vmatprep.subr.bf16.mxu0 0
    %1423 = vmatpush1.bf16.msra.mxu0 0
    %1424 = vmatprep.subr.bf16.mxu0 0
    %1425 = vmatpush1.bf16.msra.mxu0 0
    %1426 = vmatprep.mubr.bf16.mxu0 0
    %1427 = vmatmul.mubr.bf16.gmra.mrb[0].mxu0 %v1269
    %v1428 = vpop.f32.mrb[0].mxu0
    %v1429 = vadd.f32 %v1388, %v1428
    %v1430 = vpop.f32.mrb[0].mxu0
    %v1431 = vadd.f32 %v1390, %v1430
    %v1432 = vpop.f32.mrb[0].mxu0
    %v1433 = vpop.f32.mrb[0].mxu0
    %1434 = vdwg.mxu0
    %1435 = vmatprep.subr.bf16.mxu0 %v878
    %1436 = vmatpush1.bf16.msra.mxu0 %v877
    %1437 = vmatprep.subr.bf16.mxu0 %v882
    %1438 = vmatpush1.bf16.msra.mxu0 %v881
    %1439 = vmatprep.subr.bf16.mxu0 %v886
    %1440 = vmatpush1.bf16.msra.mxu0 %v885
    %1441 = vmatprep.subr.bf16.mxu0 %v890
    %1442 = vmatpush1.bf16.msra.mxu0 %v889
    %1443 = vmatprep.subr.bf16.mxu0 %v894
    %1444 = vmatpush1.bf16.msra.mxu0 %v893
    %1445 = vmatprep.subr.bf16.mxu0 %v898
    %1446 = vmatpush1.bf16.msra.mxu0 %v897
    %1447 = vmatprep.subr.bf16.mxu0 %v902
    %1448 = vmatpush1.bf16.msra.mxu0 %v901
    %1449 = vmatprep.subr.bf16.mxu0 %v906
    %1450 = vmatpush1.bf16.msra.mxu0 %v905
    %1451 = vmatprep.subr.bf16.mxu0 %v910
    %1452 = vmatpush1.bf16.msra.mxu0 %v909
    %1453 = vmatprep.subr.bf16.mxu0 %v914
    %1454 = vmatpush1.bf16.msra.mxu0 %v913
    %1455 = vmatprep.subr.bf16.mxu0 %v918
    %1456 = vmatpush1.bf16.msra.mxu0 %v917
    %1457 = vmatprep.subr.bf16.mxu0 %v922
    %1458 = vmatpush1.bf16.msra.mxu0 %v921
    %1459 = vmatprep.subr.bf16.mxu0 %v926
    %1460 = vmatpush1.bf16.msra.mxu0 %v925
    %1461 = vmatprep.subr.bf16.mxu0 %v930
    %1462 = vmatpush1.bf16.msra.mxu0 %v929
    %1463 = vmatprep.subr.bf16.mxu0 %v934
    %1464 = vmatpush1.bf16.msra.mxu0 %v933
    %1465 = vmatprep.subr.bf16.mxu0 %v938
    %1466 = vmatpush1.bf16.msra.mxu0 %v937
    %1467 = vmatprep.mubr.bf16.mxu0 %v275
    %1468 = vmatmul.mubr.bf16.gmra.mrb[0].mxu0 %v274
    %v1469 = vpop.f32.mrb[0].mxu0
    %v1470 = vadd.f32 %v254, %v1469
    %v1471 = vpop.f32.mrb[0].mxu0
    %v1472 = vadd.f32 %v258, %v1471
    %v1473 = vpop.f32.mrb[0].mxu0
    %v1474 = vpop.f32.mrb[0].mxu0
    %1475 = vdwg.mxu0
    %1476 = vmatprep.subr.bf16.mxu0 %v942
    %1477 = vmatpush1.bf16.msra.mxu0 %v941
    %1478 = vmatprep.subr.bf16.mxu0 %v946
    %1479 = vmatpush1.bf16.msra.mxu0 %v945
    %1480 = vmatprep.subr.bf16.mxu0 %v950
    %1481 = vmatpush1.bf16.msra.mxu0 %v949
    %1482 = vmatprep.subr.bf16.mxu0 %v954
    %1483 = vmatpush1.bf16.msra.mxu0 %v953
    %1484 = vmatprep.subr.bf16.mxu0 %v958
    %1485 = vmatpush1.bf16.msra.mxu0 %v957
    %1486 = vmatprep.subr.bf16.mxu0 %v962
    %1487 = vmatpush1.bf16.msra.mxu0 %v961
    %1488 = vmatprep.subr.bf16.mxu0 %v966
    %1489 = vmatpush1.bf16.msra.mxu0 %v965
    %1490 = vmatprep.subr.bf16.mxu0 %v970
    %1491 = vmatpush1.bf16.msra.mxu0 %v969
    %1492 = vmatprep.subr.bf16.mxu0 %v974
    %1493 = vmatpush1.bf16.msra.mxu0 %v973
    %1494 = vmatprep.subr.bf16.mxu0 %v978
    %1495 = vmatpush1.bf16.msra.mxu0 %v977
    %1496 = vmatprep.subr.bf16.mxu0 %v982
    %1497 = vmatpush1.bf16.msra.mxu0 %v981
    %1498 = vmatprep.subr.bf16.mxu0 %v986
    %1499 = vmatpush1.bf16.msra.mxu0 %v985
    %1500 = vmatprep.subr.bf16.mxu0 %v990
    %1501 = vmatpush1.bf16.msra.mxu0 %v989
    %1502 = vmatprep.subr.bf16.mxu0 %v994
    %1503 = vmatpush1.bf16.msra.mxu0 %v993
    %1504 = vmatprep.subr.bf16.mxu0 %v998
    %1505 = vmatpush1.bf16.msra.mxu0 %v997
    %1506 = vmatprep.subr.bf16.mxu0 %v1002
    %1507 = vmatpush1.bf16.msra.mxu0 %v1001
    %1508 = vmatprep.mubr.bf16.mxu0 %v277
    %1509 = vmatmul.mubr.bf16.gmra.mrb[0].mxu0 %v276
    %v1510 = vpop.f32.mrb[0].mxu0
    %v1511 = vadd.f32 %v1470, %v1510
    %v1512 = vpop.f32.mrb[0].mxu0
    %v1513 = vadd.f32 %v1472, %v1512
    %v1514 = vpop.f32.mrb[0].mxu0
    %v1515 = vpop.f32.mrb[0].mxu0
    %1516 = vdwg.mxu0
    %1517 = vmatprep.subr.bf16.mxu0 %v1006
    %1518 = vmatpush1.bf16.msra.mxu0 %v1005
    %1519 = vmatprep.subr.bf16.mxu0 %v1010
    %1520 = vmatpush1.bf16.msra.mxu0 %v1009
    %1521 = vmatprep.subr.bf16.mxu0 %v1014
    %1522 = vmatpush1.bf16.msra.mxu0 %v1013
    %1523 = vmatprep.subr.bf16.mxu0 %v1018
    %1524 = vmatpush1.bf16.msra.mxu0 %v1017
    %1525 = vmatprep.subr.bf16.mxu0 %v1022
    %1526 = vmatpush1.bf16.msra.mxu0 %v1021
    %1527 = vmatprep.subr.bf16.mxu0 %v1026
    %1528 = vmatpush1.bf16.msra.mxu0 %v1025
    %1529 = vmatprep.subr.bf16.mxu0 %v1030
    %1530 = vmatpush1.bf16.msra.mxu0 %v1029
    %1531 = vmatprep.subr.bf16.mxu0 %v1034
    %1532 = vmatpush1.bf16.msra.mxu0 %v1033
    %1533 = vmatprep.subr.bf16.mxu0 %v1038
    %1534 = vmatpush1.bf16.msra.mxu0 %v1037
    %1535 = vmatprep.subr.bf16.mxu0 %v1042
    %1536 = vmatpush1.bf16.msra.mxu0 %v1041
    %1537 = vmatprep.subr.bf16.mxu0 %v1046
    %1538 = vmatpush1.bf16.msra.mxu0 %v1045
    %1539 = vmatprep.subr.bf16.mxu0 %v1050
    %1540 = vmatpush1.bf16.msra.mxu0 %v1049
    %1541 = vmatprep.subr.bf16.mxu0 %v1054
    %1542 = vmatpush1.bf16.msra.mxu0 %v1053
    %1543 = vmatprep.subr.bf16.mxu0 %v1058
    %1544 = vmatpush1.bf16.msra.mxu0 %v1057
    %1545 = vmatprep.subr.bf16.mxu0 %v1062
    %1546 = vmatpush1.bf16.msra.mxu0 %v1061
    %1547 = vmatprep.subr.bf16.mxu0 %v1066
    %1548 = vmatpush1.bf16.msra.mxu0 %v1065
    %1549 = vmatprep.mubr.bf16.mxu0 %v279
    %1550 = vmatmul.mubr.bf16.gmra.mrb[0].mxu0 %v278
    %v1551 = vpop.f32.mrb[0].mxu0
    %v1552 = vadd.f32 %v1511, %v1551
    %v1553 = vpop.f32.mrb[0].mxu0
    %v1554 = vadd.f32 %v1513, %v1553
    %v1555 = vpop.f32.mrb[0].mxu0
    %v1556 = vpop.f32.mrb[0].mxu0
    %1557 = vdwg.mxu0
    %1558 = vmatprep.subr.bf16.mxu0 %v1070
    %1559 = vmatpush1.bf16.msra.mxu0 %v1069
    %1560 = vmatprep.subr.bf16.mxu0 0
    %1561 = vmatpush1.bf16.msra.mxu0 0
    %1562 = vmatprep.subr.bf16.mxu0 0
    %1563 = vmatpush1.bf16.msra.mxu0 0
    %1564 = vmatprep.subr.bf16.mxu0 0
    %1565 = vmatpush1.bf16.msra.mxu0 0
    %1566 = vmatprep.subr.bf16.mxu0 0
    %1567 = vmatpush1.bf16.msra.mxu0 0
    %1568 = vmatprep.subr.bf16.mxu0 0
    %1569 = vmatpush1.bf16.msra.mxu0 0
    %1570 = vmatprep.subr.bf16.mxu0 0
    %1571 = vmatpush1.bf16.msra.mxu0 0
    %1572 = vmatprep.subr.bf16.mxu0 0
    %1573 = vmatpush1.bf16.msra.mxu0 0
    %1574 = vmatprep.subr.bf16.mxu0 0
    %1575 = vmatpush1.bf16.msra.mxu0 0
    %1576 = vmatprep.subr.bf16.mxu0 0
    %1577 = vmatpush1.bf16.msra.mxu0 0
    %1578 = vmatprep.subr.bf16.mxu0 0
    %1579 = vmatpush1.bf16.msra.mxu0 0
    %1580 = vmatprep.subr.bf16.mxu0 0
    %1581 = vmatpush1.bf16.msra.mxu0 0
    %1582 = vmatprep.subr.bf16.mxu0 0
    %1583 = vmatpush1.bf16.msra.mxu0 0
    %1584 = vmatprep.subr.bf16.mxu0 0
    %1585 = vmatpush1.bf16.msra.mxu0 0
    %1586 = vmatprep.subr.bf16.mxu0 0
    %1587 = vmatpush1.bf16.msra.mxu0 0
    %1588 = vmatprep.subr.bf16.mxu0 0
    %1589 = vmatpush1.bf16.msra.mxu0 0
    %1590 = vmatprep.mubr.bf16.mxu0 0
    %1591 = vmatmul.mubr.bf16.gmra.mrb[0].mxu0 %v1269
    %v1592 = vpop.f32.mrb[0].mxu0
    %v1593 = vadd.f32 %v1552, %v1592
    %v1594 = vpop.f32.mrb[0].mxu0
    %v1595 = vadd.f32 %v1554, %v1594
    %v1596 = vpop.f32.mrb[0].mxu0
    %v1597 = vpop.f32.mrb[0].mxu0
    %1598 = vdwg.mxu0
    %v1599 = vmax.f32 %v1429, 0.0
    %v1600 = vmax.f32 %v1431, 0.0
    %v1601 = vmax.f32 %v1593, 0.0
    %v1602 = vmax.f32 %v1595, 0.0
    %v1603 = vpack.c.bf16 %v1599, %v1599
    %v1604 = vpack.c.bf16 %v1600, %v1600
    %v1605 = vpack.c.bf16 %v1601, %v1601
    %v1606 = vpack.c.bf16 %v1602, %v1602
    %v1607 = vld [vmem:[%s4] sm:$0xff]
    %v1608 = vld [vmem:[%s4 + $0x8] sm:$0xff]
    %v1609 = vld [vmem:[%s4 + $0x10] sm:$0xff]
    %v1610 = vld [vmem:[%s4 + $0x18] sm:$0xff]
    %v1611 = vld [vmem:[%s4 + $0x20] sm:$0xff]
    %v1612 = vld [vmem:[%s4 + $0x28] sm:$0xff]
    %v1613 = vld [vmem:[%s4 + $0x30] sm:$0xff]
    %v1614 = vld [vmem:[%s4 + $0x38] sm:$0xff]
    %v1615 = vld [vmem:[%s4 + $0x40] sm:$0xff]
    %v1616 = vld [vmem:[%s4 + $0x48] sm:$0xff]
    %v1617 = vld [vmem:[%s4 + $0x50] sm:$0xff]
    %v1618 = vld [vmem:[%s4 + $0x58] sm:$0xff]
    %v1619 = vld [vmem:[%s4 + $0x60] sm:$0xff]
    %v1620 = vld [vmem:[%s4 + $0x68] sm:$0xff]
    %v1621 = vld [vmem:[%s4 + $0x70] sm:$0xff]
    %v1622 = vld [vmem:[%s4 + $0x78] sm:$0xff]
    %v1623 = vld [vmem:[%s4 + $0x80] sm:$0xff]
    %v1624 = vld [vmem:[%s4 + $0x88] sm:$0xff]
    %v1625 = vld [vmem:[%s4 + $0x90] sm:$0xff]
    %v1626 = vld [vmem:[%s4 + $0x98] sm:$0xff]
    %v1627 = vld [vmem:[%s4 + $0xa0] sm:$0xff]
    %v1628 = vld [vmem:[%s4 + $0xa8] sm:$0xff]
    %v1629 = vld [vmem:[%s4 + $0xb0] sm:$0xff]
    %v1630 = vld [vmem:[%s4 + $0xb8] sm:$0xff]
    %v1631 = vld [vmem:[%s4 + $0xc0] sm:$0xff]
    %v1632 = vld [vmem:[%s4 + $0xc8] sm:$0xff]
    %v1633 = vld [vmem:[%s4 + $0xd0] sm:$0xff]
    %v1634 = vld [vmem:[%s4 + $0xd8] sm:$0xff]
    %v1635 = vld [vmem:[%s4 + $0xe0] sm:$0xff]
    %v1636 = vld [vmem:[%s4 + $0xe8] sm:$0xff]
    %v1637 = vld [vmem:[%s4 + $0xf0] sm:$0xff]
    %v1638 = vld [vmem:[%s4 + $0xf8] sm:$0xff]
    %v1639 = vld [vmem:[%s4 + $0x100] sm:$0xff]
    %v1640 = vld [vmem:[%s4 + $0x108] sm:$0xff]
    %v1641 = vld [vmem:[%s4 + $0x110] sm:$0xff]
    %v1642 = vld [vmem:[%s4 + $0x118] sm:$0xff]
    %v1643 = vld [vmem:[%s4 + $0x120] sm:$0xff]
    %v1644 = vld [vmem:[%s4 + $0x128] sm:$0xff]
    %v1645 = vld [vmem:[%s4 + $0x130] sm:$0xff]
    %v1646 = vld [vmem:[%s4 + $0x138] sm:$0xff]
    %v1647 = vld [vmem:[%s4 + $0x140] sm:$0xff]
    %v1648 = vld [vmem:[%s4 + $0x148] sm:$0xff]
    %v1649 = vld [vmem:[%s4 + $0x150] sm:$0xff]
    %v1650 = vld [vmem:[%s4 + $0x158] sm:$0xff]
    %v1651 = vld [vmem:[%s4 + $0x160] sm:$0xff]
    %v1652 = vld [vmem:[%s4 + $0x168] sm:$0xff]
    %v1653 = vld [vmem:[%s4 + $0x170] sm:$0xff]
    %v1654 = vld [vmem:[%s4 + $0x178] sm:$0xff]
    %v1655 = vld [vmem:[%s4 + $0x180] sm:$0xff]
    %v1656 = vld [vmem:[%s4 + $0x188] sm:$0xff]
    %v1657 = vld [vmem:[%s5] sm:$0x3]
    %v1659 = vlaneseq
    %v1660 = vshrl.u32 %v1659, 7
    %v1661 = vsub.s32 0, %v1660
    %v1662 = vrot.slane %v1657, %v1661
    %v1663 = vlaneseq
    %v1664 = vshrl.u32 %v1663, 7
    %v1665 = vsub.s32 1, %v1664
    %v1666 = vrot.slane %v1657, %v1665
    %v1719 = vunpack.c.l.b16 %v1607
    %v1720 = vunpack.c.h.b16 %v1607
    %v1721 = vunpack.c.l.b16 %v1608
    %v1722 = vunpack.c.h.b16 %v1608
    %v1723 = vunpack.c.l.b16 %v1609
    %v1724 = vunpack.c.h.b16 %v1609
    %v1725 = vunpack.c.l.b16 %v1610
    %v1726 = vunpack.c.h.b16 %v1610
    %v1727 = vunpack.c.l.b16 %v1611
    %v1728 = vunpack.c.h.b16 %v1611
    %v1729 = vunpack.c.l.b16 %v1612
    %v1730 = vunpack.c.h.b16 %v1612
    %v1731 = vunpack.c.l.b16 %v1613
    %v1732 = vunpack.c.h.b16 %v1613
    %v1733 = vunpack.c.l.b16 %v1614
    %v1734 = vunpack.c.h.b16 %v1614
    %v1735 = vunpack.c.l.b16 %v1615
    %v1736 = vunpack.c.h.b16 %v1615
    %v1737 = vunpack.c.l.b16 %v1616
    %v1738 = vunpack.c.h.b16 %v1616
    %v1739 = vunpack.c.l.b16 %v1617
    %v1740 = vunpack.c.h.b16 %v1617
    %v1741 = vunpack.c.l.b16 %v1618
    %v1742 = vunpack.c.h.b16 %v1618
    %v1743 = vunpack.c.l.b16 %v1619
    %v1744 = vunpack.c.h.b16 %v1619
    %v1745 = vunpack.c.l.b16 %v1620
    %v1746 = vunpack.c.h.b16 %v1620
    %v1747 = vunpack.c.l.b16 %v1621
    %v1748 = vunpack.c.h.b16 %v1621
    %v1749 = vunpack.c.l.b16 %v1622
    %v1750 = vunpack.c.h.b16 %v1622
    %v1751 = vunpack.c.l.b16 %v1623
    %v1752 = vunpack.c.h.b16 %v1623
    %v1753 = vunpack.c.l.b16 %v1624
    %v1754 = vunpack.c.h.b16 %v1624
    %v1755 = vunpack.c.l.b16 %v1625
    %v1756 = vunpack.c.h.b16 %v1625
    %v1757 = vunpack.c.l.b16 %v1626
    %v1758 = vunpack.c.h.b16 %v1626
    %v1759 = vunpack.c.l.b16 %v1627
    %v1760 = vunpack.c.h.b16 %v1627
    %v1761 = vunpack.c.l.b16 %v1628
    %v1762 = vunpack.c.h.b16 %v1628
    %v1763 = vunpack.c.l.b16 %v1629
    %v1764 = vunpack.c.h.b16 %v1629
    %v1765 = vunpack.c.l.b16 %v1630
    %v1766 = vunpack.c.h.b16 %v1630
    %v1767 = vunpack.c.l.b16 %v1631
    %v1768 = vunpack.c.h.b16 %v1631
    %v1769 = vunpack.c.l.b16 %v1632
    %v1770 = vunpack.c.h.b16 %v1632
    %v1771 = vunpack.c.l.b16 %v1633
    %v1772 = vunpack.c.h.b16 %v1633
    %v1773 = vunpack.c.l.b16 %v1634
    %v1774 = vunpack.c.h.b16 %v1634
    %v1775 = vunpack.c.l.b16 %v1635
    %v1776 = vunpack.c.h.b16 %v1635
    %v1777 = vunpack.c.l.b16 %v1636
    %v1778 = vunpack.c.h.b16 %v1636
    %v1779 = vunpack.c.l.b16 %v1637
    %v1780 = vunpack.c.h.b16 %v1637
    %v1781 = vunpack.c.l.b16 %v1638
    %v1782 = vunpack.c.h.b16 %v1638
    %v1783 = vunpack.c.l.b16 %v1639
    %v1784 = vunpack.c.h.b16 %v1639
    %v1785 = vunpack.c.l.b16 %v1640
    %v1786 = vunpack.c.h.b16 %v1640
    %v1787 = vunpack.c.l.b16 %v1641
    %v1788 = vunpack.c.h.b16 %v1641
    %v1789 = vunpack.c.l.b16 %v1642
    %v1790 = vunpack.c.h.b16 %v1642
    %v1791 = vunpack.c.l.b16 %v1643
    %v1792 = vunpack.c.h.b16 %v1643
    %v1793 = vunpack.c.l.b16 %v1644
    %v1794 = vunpack.c.h.b16 %v1644
    %v1795 = vunpack.c.l.b16 %v1645
    %v1796 = vunpack.c.h.b16 %v1645
    %v1797 = vunpack.c.l.b16 %v1646
    %v1798 = vunpack.c.h.b16 %v1646
    %v1799 = vunpack.c.l.b16 %v1647
    %v1800 = vunpack.c.h.b16 %v1647
    %v1801 = vunpack.c.l.b16 %v1648
    %v1802 = vunpack.c.h.b16 %v1648
    %v1803 = vunpack.c.l.b16 %v1649
    %v1804 = vunpack.c.h.b16 %v1649
    %v1805 = vunpack.c.l.b16 %v1650
    %v1806 = vunpack.c.h.b16 %v1650
    %v1807 = vunpack.c.l.b16 %v1651
    %v1808 = vunpack.c.h.b16 %v1651
    %v1809 = vunpack.c.l.b16 %v1652
    %v1810 = vunpack.c.h.b16 %v1652
    %v1811 = vunpack.c.l.b16 %v1653
    %v1812 = vunpack.c.h.b16 %v1653
    %v1813 = vunpack.c.l.b16 %v1654
    %v1814 = vunpack.c.h.b16 %v1654
    %v1815 = vunpack.c.l.b16 %v1655
    %v1816 = vunpack.c.h.b16 %v1655
    %v1817 = vunpack.c.l.b16 %v1656
    %v1818 = vunpack.c.h.b16 %v1656
    %v1819 = vpack.c.b16 %v1721, %v1719
    %v1820 = vpack.c.b16 %v1722, %v1720
    %v1821 = vpack.c.b16 %v1725, %v1723
    %v1822 = vpack.c.b16 %v1726, %v1724
    %v1823 = vpack.c.b16 %v1729, %v1727
    %v1824 = vpack.c.b16 %v1730, %v1728
    %v1825 = vpack.c.b16 %v1733, %v1731
    %v1826 = vpack.c.b16 %v1734, %v1732
    %v1827 = vpack.c.b16 %v1737, %v1735
    %v1828 = vpack.c.b16 %v1738, %v1736
    %v1829 = vpack.c.b16 %v1741, %v1739
    %v1830 = vpack.c.b16 %v1742, %v1740
    %v1831 = vpack.c.b16 %v1745, %v1743
    %v1832 = vpack.c.b16 %v1746, %v1744
    %v1833 = vpack.c.b16 %v1749, %v1747
    %v1834 = vpack.c.b16 %v1750, %v1748
    %v1835 = vpack.c.b16 %v1753, %v1751
    %v1836 = vpack.c.b16 %v1754, %v1752
    %v1837 = vpack.c.b16 %v1757, %v1755
    %v1838 = vpack.c.b16 %v1758, %v1756
    %v1839 = vpack.c.b16 %v1761, %v1759
    %v1840 = vpack.c.b16 %v1762, %v1760
    %v1841 = vpack.c.b16 %v1765, %v1763
    %v1842 = vpack.c.b16 %v1766, %v1764
    %v1843 = vpack.c.b16 %v1769, %v1767
    %v1844 = vpack.c.b16 %v1770, %v1768
    %v1845 = vpack.c.b16 %v1773, %v1771
    %v1846 = vpack.c.b16 %v1774, %v1772
    %v1847 = vpack.c.b16 %v1777, %v1775
    %v1848 = vpack.c.b16 %v1778, %v1776
    %v1849 = vpack.c.b16 %v1781, %v1779
    %v1850 = vpack.c.b16 %v1782, %v1780
    %v1851 = vpack.c.b16 %v1785, %v1783
    %v1852 = vpack.c.b16 %v1786, %v1784
    %v1853 = vpack.c.b16 %v1789, %v1787
    %v1854 = vpack.c.b16 %v1790, %v1788
    %v1855 = vpack.c.b16 %v1793, %v1791
    %v1856 = vpack.c.b16 %v1794, %v1792
    %v1857 = vpack.c.b16 %v1797, %v1795
    %v1858 = vpack.c.b16 %v1798, %v1796
    %v1859 = vpack.c.b16 %v1801, %v1799
    %v1860 = vpack.c.b16 %v1802, %v1800
    %v1861 = vpack.c.b16 %v1805, %v1803
    %v1862 = vpack.c.b16 %v1806, %v1804
    %v1863 = vpack.c.b16 %v1809, %v1807
    %v1864 = vpack.c.b16 %v1810, %v1808
    %v1865 = vpack.c.b16 %v1813, %v1811
    %v1866 = vpack.c.b16 %v1814, %v1812
    %v1867 = vpack.c.b16 %v1817, %v1815
    %v1868 = vpack.c.b16 %v1818, %v1816
    %v1920 = vsel %vm1267, %v1606, 0
    %1922 = vmatprep.subr.bf16.mxu0 %v1820
    %1923 = vmatpush1.bf16.msra.mxu0 %v1819
    %1924 = vmatprep.subr.bf16.mxu0 %v1822
    %1925 = vmatpush1.bf16.msra.mxu0 %v1821
    %1926 = vmatprep.subr.bf16.mxu0 %v1824
    %1927 = vmatpush1.bf16.msra.mxu0 %v1823
    %1928 = vmatprep.subr.bf16.mxu0 %v1826
    %1929 = vmatpush1.bf16.msra.mxu0 %v1825
    %1930 = vmatprep.subr.bf16.mxu0 %v1828
    %1931 = vmatpush1.bf16.msra.mxu0 %v1827
    %1932 = vmatprep.subr.bf16.mxu0 %v1830
    %1933 = vmatpush1.bf16.msra.mxu0 %v1829
    %1934 = vmatprep.subr.bf16.mxu0 %v1832
    %1935 = vmatpush1.bf16.msra.mxu0 %v1831
    %1936 = vmatprep.subr.bf16.mxu0 %v1834
    %1937 = vmatpush1.bf16.msra.mxu0 %v1833
    %1938 = vmatprep.subr.bf16.mxu0 %v1836
    %1939 = vmatpush1.bf16.msra.mxu0 %v1835
    %1940 = vmatprep.subr.bf16.mxu0 %v1838
    %1941 = vmatpush1.bf16.msra.mxu0 %v1837
    %1942 = vmatprep.subr.bf16.mxu0 %v1840
    %1943 = vmatpush1.bf16.msra.mxu0 %v1839
    %1944 = vmatprep.subr.bf16.mxu0 %v1842
    %1945 = vmatpush1.bf16.msra.mxu0 %v1841
    %1946 = vmatprep.subr.bf16.mxu0 %v1844
    %1947 = vmatpush1.bf16.msra.mxu0 %v1843
    %1948 = vmatprep.subr.bf16.mxu0 %v1846
    %1949 = vmatpush1.bf16.msra.mxu0 %v1845
    %1950 = vmatprep.subr.bf16.mxu0 %v1848
    %1951 = vmatpush1.bf16.msra.mxu0 %v1847
    %1952 = vmatprep.subr.bf16.mxu0 %v1850
    %1953 = vmatpush1.bf16.msra.mxu0 %v1849
    %1954 = vmatprep.mubr.bf16.mxu0 %v1604
    %1955 = vmatmul.mubr.bf16.gmra.mrb[0].mxu0 %v1603
    %v1956 = vpop.f32.mrb[0].mxu0
    %v1957 = vadd.f32 %v1662, %v1956
    %v1958 = vpop.f32.mrb[0].mxu0
    %v1959 = vadd.f32 %v1666, %v1958
    %v1960 = vpop.f32.mrb[0].mxu0
    %v1961 = vpop.f32.mrb[0].mxu0
    %1962 = vdwg.mxu0
    %1963 = vmatprep.subr.bf16.mxu0 %v1852
    %1964 = vmatpush1.bf16.msra.mxu0 %v1851
    %1965 = vmatprep.subr.bf16.mxu0 %v1854
    %1966 = vmatpush1.bf16.msra.mxu0 %v1853
    %1967 = vmatprep.subr.bf16.mxu0 %v1856
    %1968 = vmatpush1.bf16.msra.mxu0 %v1855
    %1969 = vmatprep.subr.bf16.mxu0 %v1858
    %1970 = vmatpush1.bf16.msra.mxu0 %v1857
    %1971 = vmatprep.subr.bf16.mxu0 %v1860
    %1972 = vmatpush1.bf16.msra.mxu0 %v1859
    %1973 = vmatprep.subr.bf16.mxu0 %v1862
    %1974 = vmatpush1.bf16.msra.mxu0 %v1861
    %1975 = vmatprep.subr.bf16.mxu0 %v1864
    %1976 = vmatpush1.bf16.msra.mxu0 %v1863
    %1977 = vmatprep.subr.bf16.mxu0 %v1866
    %1978 = vmatpush1.bf16.msra.mxu0 %v1865
    %1979 = vmatprep.subr.bf16.mxu0 %v1868
    %1980 = vmatpush1.bf16.msra.mxu0 %v1867
    %1981 = vmatprep.subr.bf16.mxu0 0
    %1982 = vmatpush1.bf16.msra.mxu0 0
    %1983 = vmatprep.subr.bf16.mxu0 0
    %1984 = vmatpush1.bf16.msra.mxu0 0
    %1985 = vmatprep.subr.bf16.mxu0 0
    %1986 = vmatpush1.bf16.msra.mxu0 0
    %1987 = vmatprep.subr.bf16.mxu0 0
    %1988 = vmatpush1.bf16.msra.mxu0 0
    %1989 = vmatprep.subr.bf16.mxu0 0
    %1990 = vmatpush1.bf16.msra.mxu0 0
    %1991 = vmatprep.subr.bf16.mxu0 0
    %1992 = vmatpush1.bf16.msra.mxu0 0
    %1993 = vmatprep.subr.bf16.mxu0 0
    %1994 = vmatpush1.bf16.msra.mxu0 0
    %1995 = vmatprep.mubr.bf16.mxu0 %v1920
    %1996 = vmatmul.mubr.bf16.gmra.mrb[0].mxu0 %v1605
    %v1997 = vpop.f32.mrb[0].mxu0
    %v1998 = vadd.f32 %v1957, %v1997
    %v1999 = vpop.f32.mrb[0].mxu0
    %v2000 = vadd.f32 %v1959, %v1999
    %v2001 = vpop.f32.mrb[0].mxu0
    %v2002 = vpop.f32.mrb[0].mxu0
    %2003 = vdwg.mxu0
    %v2004 = vmul.f32 %v2000, 0.5
    %v2005 = vmul.f32 %v2004, 1.442695
    %v2006 = vpow.pop %v2005
    %v2007 = vmul.f32 %v44, %v2006
    %v2008 = vadd.f32 %v1998, %v2007
    %v2009 = vpack.c.bf16 %v2008, %v2008
    %v2010 = vld [vmem:[%s6] sm:$0xff]
    %v2011 = vld [vmem:[%s6 + $0x8] sm:$0xff]
    %v2012 = vld [vmem:[%s6 + $0x10] sm:$0xff]
    %v2013 = vld [vmem:[%s6 + $0x18] sm:$0xff]
    %v2014 = vld [vmem:[%s6 + $0x20] sm:$0xff]
    %v2015 = vld [vmem:[%s6 + $0x28] sm:$0xff]
    %v2016 = vld [vmem:[%s6 + $0x30] sm:$0xff]
    %v2017 = vld [vmem:[%s6 + $0x38] sm:$0xff]
    %v2018 = vld [vmem:[%s6 + $0x40] sm:$0xff]
    %v2019 = vld [vmem:[%s6 + $0x48] sm:$0xff]
    %v2020 = vld [vmem:[%s6 + $0x50] sm:$0xff]
    %v2021 = vld [vmem:[%s6 + $0x58] sm:$0xff]
    %v2022 = vld [vmem:[%s6 + $0x60] sm:$0xff]
    %v2023 = vld [vmem:[%s6 + $0x68] sm:$0xff]
    %v2024 = vld [vmem:[%s6 + $0x70] sm:$0xff]
    %v2025 = vld [vmem:[%s6 + $0x78] sm:$0xff]
    %v2026 = vld [vmem:[%s6 + $0x80] sm:$0xff]
    %v2027 = vld [vmem:[%s6 + $0x88] sm:$0xff]
    %v2028 = vld [vmem:[%s6 + $0x90] sm:$0xff]
    %v2029 = vld [vmem:[%s6 + $0x98] sm:$0xff]
    %v2030 = vld [vmem:[%s6 + $0xa0] sm:$0xff]
    %v2031 = vld [vmem:[%s6 + $0xa8] sm:$0xff]
    %v2032 = vld [vmem:[%s6 + $0xb0] sm:$0xff]
    %v2033 = vld [vmem:[%s6 + $0xb8] sm:$0xff]
    %v2034 = vld [vmem:[%s6 + $0xc0] sm:$0xff]
    %v2035 = vld [vmem:[%s6 + $0xc8] sm:$0xff]
    %v2036 = vld [vmem:[%s6 + $0xd0] sm:$0xff]
    %v2037 = vld [vmem:[%s6 + $0xd8] sm:$0xff]
    %v2038 = vld [vmem:[%s6 + $0xe0] sm:$0xff]
    %v2039 = vld [vmem:[%s6 + $0xe8] sm:$0xff]
    %v2040 = vld [vmem:[%s6 + $0xf0] sm:$0xff]
    %v2041 = vld [vmem:[%s6 + $0xf8] sm:$0xff]
    %v2042 = vld [vmem:[%s7] sm:$0xf]
    %v2044 = vlaneseq
    %v2045 = vshrl.u32 %v2044, 7
    %v2046 = vsub.s32 0, %v2045
    %v2047 = vrot.slane %v2042, %v2046
    %v2048 = vlaneseq
    %v2049 = vshrl.u32 %v2048, 7
    %v2050 = vsub.s32 1, %v2049
    %v2051 = vrot.slane %v2042, %v2050
    %v2052 = vlaneseq
    %v2053 = vshrl.u32 %v2052, 7
    %v2054 = vsub.s32 2, %v2053
    %v2055 = vrot.slane %v2042, %v2054
    %v2056 = vlaneseq
    %v2057 = vshrl.u32 %v2056, 7
    %v2058 = vsub.s32 3, %v2057
    %v2059 = vrot.slane %v2042, %v2058
    %v2096 = vunpack.c.l.b16 %v2010
    %v2097 = vunpack.c.h.b16 %v2010
    %v2098 = vunpack.c.l.b16 %v2011
    %v2099 = vunpack.c.h.b16 %v2011
    %v2100 = vunpack.c.l.b16 %v2012
    %v2101 = vunpack.c.h.b16 %v2012
    %v2102 = vunpack.c.l.b16 %v2013
    %v2103 = vunpack.c.h.b16 %v2013
    %v2104 = vunpack.c.l.b16 %v2014
    %v2105 = vunpack.c.h.b16 %v2014
    %v2106 = vunpack.c.l.b16 %v2015
    %v2107 = vunpack.c.h.b16 %v2015
    %v2108 = vunpack.c.l.b16 %v2016
    %v2109 = vunpack.c.h.b16 %v2016
    %v2110 = vunpack.c.l.b16 %v2017
    %v2111 = vunpack.c.h.b16 %v2017
    %v2112 = vunpack.c.l.b16 %v2018
    %v2113 = vunpack.c.h.b16 %v2018
    %v2114 = vunpack.c.l.b16 %v2019
    %v2115 = vunpack.c.h.b16 %v2019
    %v2116 = vunpack.c.l.b16 %v2020
    %v2117 = vunpack.c.h.b16 %v2020
    %v2118 = vunpack.c.l.b16 %v2021
    %v2119 = vunpack.c.h.b16 %v2021
    %v2120 = vunpack.c.l.b16 %v2022
    %v2121 = vunpack.c.h.b16 %v2022
    %v2122 = vunpack.c.l.b16 %v2023
    %v2123 = vunpack.c.h.b16 %v2023
    %v2124 = vunpack.c.l.b16 %v2024
    %v2125 = vunpack.c.h.b16 %v2024
    %v2126 = vunpack.c.l.b16 %v2025
    %v2127 = vunpack.c.h.b16 %v2025
    %v2128 = vunpack.c.l.b16 %v2026
    %v2129 = vunpack.c.h.b16 %v2026
    %v2130 = vunpack.c.l.b16 %v2027
    %v2131 = vunpack.c.h.b16 %v2027
    %v2132 = vunpack.c.l.b16 %v2028
    %v2133 = vunpack.c.h.b16 %v2028
    %v2134 = vunpack.c.l.b16 %v2029
    %v2135 = vunpack.c.h.b16 %v2029
    %v2136 = vunpack.c.l.b16 %v2030
    %v2137 = vunpack.c.h.b16 %v2030
    %v2138 = vunpack.c.l.b16 %v2031
    %v2139 = vunpack.c.h.b16 %v2031
    %v2140 = vunpack.c.l.b16 %v2032
    %v2141 = vunpack.c.h.b16 %v2032
    %v2142 = vunpack.c.l.b16 %v2033
    %v2143 = vunpack.c.h.b16 %v2033
    %v2144 = vunpack.c.l.b16 %v2034
    %v2145 = vunpack.c.h.b16 %v2034
    %v2146 = vunpack.c.l.b16 %v2035
    %v2147 = vunpack.c.h.b16 %v2035
    %v2148 = vunpack.c.l.b16 %v2036
    %v2149 = vunpack.c.h.b16 %v2036
    %v2150 = vunpack.c.l.b16 %v2037
    %v2151 = vunpack.c.h.b16 %v2037
    %v2152 = vunpack.c.l.b16 %v2038
    %v2153 = vunpack.c.h.b16 %v2038
    %v2154 = vunpack.c.l.b16 %v2039
    %v2155 = vunpack.c.h.b16 %v2039
    %v2156 = vunpack.c.l.b16 %v2040
    %v2157 = vunpack.c.h.b16 %v2040
    %v2158 = vunpack.c.l.b16 %v2041
    %v2159 = vunpack.c.h.b16 %v2041
    %v2160 = vpack.c.b16 %v2100, %v2096
    %v2161 = vpack.c.b16 %v2101, %v2097
    %v2162 = vpack.c.b16 %v2102, %v2098
    %v2163 = vpack.c.b16 %v2103, %v2099
    %v2164 = vpack.c.b16 %v2108, %v2104
    %v2165 = vpack.c.b16 %v2109, %v2105
    %v2166 = vpack.c.b16 %v2110, %v2106
    %v2167 = vpack.c.b16 %v2111, %v2107
    %v2168 = vpack.c.b16 %v2116, %v2112
    %v2169 = vpack.c.b16 %v2117, %v2113
    %v2170 = vpack.c.b16 %v2118, %v2114
    %v2171 = vpack.c.b16 %v2119, %v2115
    %v2172 = vpack.c.b16 %v2124, %v2120
    %v2173 = vpack.c.b16 %v2125, %v2121
    %v2174 = vpack.c.b16 %v2126, %v2122
    %v2175 = vpack.c.b16 %v2127, %v2123
    %v2176 = vpack.c.b16 %v2132, %v2128
    %v2177 = vpack.c.b16 %v2133, %v2129
    %v2178 = vpack.c.b16 %v2134, %v2130
    %v2179 = vpack.c.b16 %v2135, %v2131
    %v2180 = vpack.c.b16 %v2140, %v2136
    %v2181 = vpack.c.b16 %v2141, %v2137
    %v2182 = vpack.c.b16 %v2142, %v2138
    %v2183 = vpack.c.b16 %v2143, %v2139
    %v2184 = vpack.c.b16 %v2148, %v2144
    %v2185 = vpack.c.b16 %v2149, %v2145
    %v2186 = vpack.c.b16 %v2150, %v2146
    %v2187 = vpack.c.b16 %v2151, %v2147
    %v2188 = vpack.c.b16 %v2156, %v2152
    %v2189 = vpack.c.b16 %v2157, %v2153
    %v2190 = vpack.c.b16 %v2158, %v2154
    %v2191 = vpack.c.b16 %v2159, %v2155
    %2224 = vmatprep.subr.bf16.mxu0 %v2161
    %2225 = vmatpush1.bf16.msra.mxu0 %v2160
    %2226 = vmatprep.subr.bf16.mxu0 %v2165
    %2227 = vmatpush1.bf16.msra.mxu0 %v2164
    %2228 = vmatprep.subr.bf16.mxu0 %v2169
    %2229 = vmatpush1.bf16.msra.mxu0 %v2168
    %2230 = vmatprep.subr.bf16.mxu0 %v2173
    %2231 = vmatpush1.bf16.msra.mxu0 %v2172
    %2232 = vmatprep.subr.bf16.mxu0 %v2177
    %2233 = vmatpush1.bf16.msra.mxu0 %v2176
    %2234 = vmatprep.subr.bf16.mxu0 %v2181
    %2235 = vmatpush1.bf16.msra.mxu0 %v2180
    %2236 = vmatprep.subr.bf16.mxu0 %v2185
    %2237 = vmatpush1.bf16.msra.mxu0 %v2184
    %2238 = vmatprep.subr.bf16.mxu0 %v2189
    %2239 = vmatpush1.bf16.msra.mxu0 %v2188
    %2240 = vmatprep.subr.bf16.mxu0 0
    %2241 = vmatpush1.bf16.msra.mxu0 0
    %2242 = vmatprep.subr.bf16.mxu0 0
    %2243 = vmatpush1.bf16.msra.mxu0 0
    %2244 = vmatprep.subr.bf16.mxu0 0
    %2245 = vmatpush1.bf16.msra.mxu0 0
    %2246 = vmatprep.subr.bf16.mxu0 0
    %2247 = vmatpush1.bf16.msra.mxu0 0
    %2248 = vmatprep.subr.bf16.mxu0 0
    %2249 = vmatpush1.bf16.msra.mxu0 0
    %2250 = vmatprep.subr.bf16.mxu0 0
    %2251 = vmatpush1.bf16.msra.mxu0 0
    %2252 = vmatprep.subr.bf16.mxu0 0
    %2253 = vmatpush1.bf16.msra.mxu0 0
    %2254 = vmatprep.subr.bf16.mxu0 0
    %2255 = vmatpush1.bf16.msra.mxu0 0
    %2256 = vmatprep.mubr.bf16.mxu0 0
    %2257 = vmatmul.mubr.bf16.gmra.mrb[0].mxu0 %v2009
    %v2258 = vpop.f32.mrb[0].mxu0
    %v2259 = vadd.f32 %v2047, %v2258
    %v2260 = vpop.f32.mrb[0].mxu0
    %v2261 = vadd.f32 %v2051, %v2260
    %v2262 = vpop.f32.mrb[0].mxu0
    %v2263 = vpop.f32.mrb[0].mxu0
    %2264 = vdwg.mxu0
    %2265 = vmatprep.subr.bf16.mxu0 %v2163
    %2266 = vmatpush1.bf16.msra.mxu0 %v2162
    %2267 = vmatprep.subr.bf16.mxu0 %v2167
    %2268 = vmatpush1.bf16.msra.mxu0 %v2166
    %2269 = vmatprep.subr.bf16.mxu0 %v2171
    %2270 = vmatpush1.bf16.msra.mxu0 %v2170
    %2271 = vmatprep.subr.bf16.mxu0 %v2175
    %2272 = vmatpush1.bf16.msra.mxu0 %v2174
    %2273 = vmatprep.subr.bf16.mxu0 %v2179
    %2274 = vmatpush1.bf16.msra.mxu0 %v2178
    %2275 = vmatprep.subr.bf16.mxu0 %v2183
    %2276 = vmatpush1.bf16.msra.mxu0 %v2182
    %2277 = vmatprep.subr.bf16.mxu0 %v2187
    %2278 = vmatpush1.bf16.msra.mxu0 %v2186
    %2279 = vmatprep.subr.bf16.mxu0 %v2191
    %2280 = vmatpush1.bf16.msra.mxu0 %v2190
    %2281 = vmatprep.subr.bf16.mxu0 0
    %2282 = vmatpush1.bf16.msra.mxu0 0
    %2283 = vmatprep.subr.bf16.mxu0 0
    %2284 = vmatpush1.bf16.msra.mxu0 0
    %2285 = vmatprep.subr.bf16.mxu0 0
    %2286 = vmatpush1.bf16.msra.mxu0 0
    %2287 = vmatprep.subr.bf16.mxu0 0
    %2288 = vmatpush1.bf16.msra.mxu0 0
    %2289 = vmatprep.subr.bf16.mxu0 0
    %2290 = vmatpush1.bf16.msra.mxu0 0
    %2291 = vmatprep.subr.bf16.mxu0 0
    %2292 = vmatpush1.bf16.msra.mxu0 0
    %2293 = vmatprep.subr.bf16.mxu0 0
    %2294 = vmatpush1.bf16.msra.mxu0 0
    %2295 = vmatprep.subr.bf16.mxu0 0
    %2296 = vmatpush1.bf16.msra.mxu0 0
    %2297 = vmatprep.mubr.bf16.mxu0 0
    %2298 = vmatmul.mubr.bf16.gmra.mrb[0].mxu0 %v2009
    %v2299 = vpop.f32.mrb[0].mxu0
    %v2300 = vadd.f32 %v2055, %v2299
    %v2301 = vpop.f32.mrb[0].mxu0
    %v2302 = vadd.f32 %v2059, %v2301
    %v2303 = vpop.f32.mrb[0].mxu0
    %v2304 = vpop.f32.mrb[0].mxu0
    %2305 = vdwg.mxu0
    %v2306 = vmax.f32 %v2259, 0.0
    %v2307 = vmax.f32 %v2261, 0.0
    %v2308 = vmax.f32 %v2300, 0.0
    %v2309 = vmax.f32 %v2302, 0.0
    %v2310 = vpack.c.bf16 %v2306, %v2306
    %v2311 = vpack.c.bf16 %v2307, %v2307
    %v2312 = vpack.c.bf16 %v2308, %v2308
    %v2313 = vpack.c.bf16 %v2309, %v2309
    %v2314 = vld [vmem:[%s8] sm:$0xff]
    %v2315 = vld [vmem:[%s8 + $0x8] sm:$0xff]
    %v2316 = vld [vmem:[%s8 + $0x10] sm:$0xff]
    %v2317 = vld [vmem:[%s8 + $0x18] sm:$0xf]
    %v2318 = vld [vmem:[%s8 + $0x1c] sm:$0xff]
    %v2319 = vld [vmem:[%s8 + $0x24] sm:$0xff]
    %v2320 = vld [vmem:[%s8 + $0x2c] sm:$0xff]
    %v2321 = vld [vmem:[%s8 + $0x34] sm:$0xf]
    %v2322 = vld [vmem:[%s8 + $0x38] sm:$0xff]
    %v2323 = vld [vmem:[%s8 + $0x40] sm:$0xff]
    %v2324 = vld [vmem:[%s8 + $0x48] sm:$0xff]
    %v2325 = vld [vmem:[%s8 + $0x50] sm:$0xf]
    %v2326 = vld [vmem:[%s8 + $0x54] sm:$0xff]
    %v2327 = vld [vmem:[%s8 + $0x5c] sm:$0xff]
    %v2328 = vld [vmem:[%s8 + $0x64] sm:$0xff]
    %v2329 = vld [vmem:[%s8 + $0x6c] sm:$0xf]
    %v2330 = vld [vmem:[%s8 + $0x70] sm:$0xff]
    %v2331 = vld [vmem:[%s8 + $0x78] sm:$0xff]
    %v2332 = vld [vmem:[%s8 + $0x80] sm:$0xff]
    %v2333 = vld [vmem:[%s8 + $0x88] sm:$0xf]
    %v2334 = vld [vmem:[%s8 + $0x8c] sm:$0xff]
    %v2335 = vld [vmem:[%s8 + $0x94] sm:$0xff]
    %v2336 = vld [vmem:[%s8 + $0x9c] sm:$0xff]
    %v2337 = vld [vmem:[%s8 + $0xa4] sm:$0xf]
    %v2338 = vld [vmem:[%s8 + $0xa8] sm:$0xff]
    %v2339 = vld [vmem:[%s8 + $0xb0] sm:$0xff]
    %v2340 = vld [vmem:[%s8 + $0xb8] sm:$0xff]
    %v2341 = vld [vmem:[%s8 + $0xc0] sm:$0xf]
    %v2342 = vld [vmem:[%s8 + $0xc4] sm:$0xff]
    %v2343 = vld [vmem:[%s8 + $0xcc] sm:$0xff]
    %v2344 = vld [vmem:[%s8 + $0xd4] sm:$0xff]
    %v2345 = vld [vmem:[%s8 + $0xdc] sm:$0xf]
    %v2346 = vld [vmem:[%s8 + $0xe0] sm:$0xff]
    %v2347 = vld [vmem:[%s8 + $0xe8] sm:$0xff]
    %v2348 = vld [vmem:[%s8 + $0xf0] sm:$0xff]
    %v2349 = vld [vmem:[%s8 + $0xf8] sm:$0xf]
    %v2350 = vld [vmem:[%s8 + $0xfc] sm:$0xff]
    %v2351 = vld [vmem:[%s8 + $0x104] sm:$0xff]
    %v2352 = vld [vmem:[%s8 + $0x10c] sm:$0xff]
    %v2353 = vld [vmem:[%s8 + $0x114] sm:$0xf]
    %v2354 = vld [vmem:[%s8 + $0x118] sm:$0xff]
    %v2355 = vld [vmem:[%s8 + $0x120] sm:$0xff]
    %v2356 = vld [vmem:[%s8 + $0x128] sm:$0xff]
    %v2357 = vld [vmem:[%s8 + $0x130] sm:$0xf]
    %v2358 = vld [vmem:[%s8 + $0x134] sm:$0xff]
    %v2359 = vld [vmem:[%s8 + $0x13c] sm:$0xff]
    %v2360 = vld [vmem:[%s8 + $0x144] sm:$0xff]
    %v2361 = vld [vmem:[%s8 + $0x14c] sm:$0xf]
    %v2362 = vld [vmem:[%s8 + $0x150] sm:$0xff]
    %v2363 = vld [vmem:[%s8 + $0x158] sm:$0xff]
    %v2364 = vld [vmem:[%s8 + $0x160] sm:$0xff]
    %v2365 = vld [vmem:[%s8 + $0x168] sm:$0xf]
    %v2366 = vld [vmem:[%s8 + $0x16c] sm:$0xff]
    %v2367 = vld [vmem:[%s8 + $0x174] sm:$0xff]
    %v2368 = vld [vmem:[%s8 + $0x17c] sm:$0xff]
    %v2369 = vld [vmem:[%s8 + $0x184] sm:$0xf]
    %v2370 = vld [vmem:[%s8 + $0x188] sm:$0xff]
    %v2371 = vld [vmem:[%s8 + $0x190] sm:$0xff]
    %v2372 = vld [vmem:[%s8 + $0x198] sm:$0xff]
    %v2373 = vld [vmem:[%s8 + $0x1a0] sm:$0xf]
    %v2374 = vld [vmem:[%s8 + $0x1a4] sm:$0xff]
    %v2375 = vld [vmem:[%s8 + $0x1ac] sm:$0xff]
    %v2376 = vld [vmem:[%s8 + $0x1b4] sm:$0xff]
    %v2377 = vld [vmem:[%s8 + $0x1bc] sm:$0xf]
    %v2378 = vld [vmem:[%s8 + $0x1c0] sm:$0xff]
    %v2379 = vld [vmem:[%s8 + $0x1c8] sm:$0xff]
    %v2380 = vld [vmem:[%s8 + $0x1d0] sm:$0xff]
    %v2381 = vld [vmem:[%s8 + $0x1d8] sm:$0xf]
    %v2382 = vld [vmem:[%s8 + $0x1dc] sm:$0xff]
    %v2383 = vld [vmem:[%s8 + $0x1e4] sm:$0xff]
    %v2384 = vld [vmem:[%s8 + $0x1ec] sm:$0xff]
    %v2385 = vld [vmem:[%s8 + $0x1f4] sm:$0xf]
    %v2386 = vld [vmem:[%s8 + $0x1f8] sm:$0xff]
    %v2387 = vld [vmem:[%s8 + $0x200] sm:$0xff]
    %v2388 = vld [vmem:[%s8 + $0x208] sm:$0xff]
    %v2389 = vld [vmem:[%s8 + $0x210] sm:$0xf]
    %v2390 = vld [vmem:[%s8 + $0x214] sm:$0xff]
    %v2391 = vld [vmem:[%s8 + $0x21c] sm:$0xff]
    %v2392 = vld [vmem:[%s8 + $0x224] sm:$0xff]
    %v2393 = vld [vmem:[%s8 + $0x22c] sm:$0xf]
    %v2394 = vld [vmem:[%s8 + $0x230] sm:$0xff]
    %v2395 = vld [vmem:[%s8 + $0x238] sm:$0xff]
    %v2396 = vld [vmem:[%s8 + $0x240] sm:$0xff]
    %v2397 = vld [vmem:[%s8 + $0x248] sm:$0xf]
    %v2398 = vld [vmem:[%s8 + $0x24c] sm:$0xff]
    %v2399 = vld [vmem:[%s8 + $0x254] sm:$0xff]
    %v2400 = vld [vmem:[%s8 + $0x25c] sm:$0xff]
    %v2401 = vld [vmem:[%s8 + $0x264] sm:$0xf]
    %v2402 = vld [vmem:[%s8 + $0x268] sm:$0xff]
    %v2403 = vld [vmem:[%s8 + $0x270] sm:$0xff]
    %v2404 = vld [vmem:[%s8 + $0x278] sm:$0xff]
    %v2405 = vld [vmem:[%s8 + $0x280] sm:$0xf]
    %v2406 = vld [vmem:[%s8 + $0x284] sm:$0xff]
    %v2407 = vld [vmem:[%s8 + $0x28c] sm:$0xff]
    %v2408 = vld [vmem:[%s8 + $0x294] sm:$0xff]
    %v2409 = vld [vmem:[%s8 + $0x29c] sm:$0xf]
    %v2410 = vld [vmem:[%s8 + $0x2a0] sm:$0xff]
    %v2411 = vld [vmem:[%s8 + $0x2a8] sm:$0xff]
    %v2412 = vld [vmem:[%s8 + $0x2b0] sm:$0xff]
    %v2413 = vld [vmem:[%s8 + $0x2b8] sm:$0xf]
    %v2414 = vld [vmem:[%s8 + $0x2bc] sm:$0xff]
    %v2415 = vld [vmem:[%s8 + $0x2c4] sm:$0xff]
    %v2416 = vld [vmem:[%s8 + $0x2cc] sm:$0xff]
    %v2417 = vld [vmem:[%s8 + $0x2d4] sm:$0xf]
    %v2418 = vld [vmem:[%s8 + $0x2d8] sm:$0xff]
    %v2419 = vld [vmem:[%s8 + $0x2e0] sm:$0xff]
    %v2420 = vld [vmem:[%s8 + $0x2e8] sm:$0xff]
    %v2421 = vld [vmem:[%s8 + $0x2f0] sm:$0xf]
    %v2422 = vld [vmem:[%s8 + $0x2f4] sm:$0xff]
    %v2423 = vld [vmem:[%s8 + $0x2fc] sm:$0xff]
    %v2424 = vld [vmem:[%s8 + $0x304] sm:$0xff]
    %v2425 = vld [vmem:[%s8 + $0x30c] sm:$0xf]
    %v2426 = vld [vmem:[%s8 + $0x310] sm:$0xff]
    %v2427 = vld [vmem:[%s8 + $0x318] sm:$0xff]
    %v2428 = vld [vmem:[%s8 + $0x320] sm:$0xff]
    %v2429 = vld [vmem:[%s8 + $0x328] sm:$0xf]
    %v2430 = vld [vmem:[%s8 + $0x32c] sm:$0xff]
    %v2431 = vld [vmem:[%s8 + $0x334] sm:$0xff]
    %v2432 = vld [vmem:[%s8 + $0x33c] sm:$0xff]
    %v2433 = vld [vmem:[%s8 + $0x344] sm:$0xf]
    %v2434 = vld [vmem:[%s8 + $0x348] sm:$0xff]
    %v2435 = vld [vmem:[%s8 + $0x350] sm:$0xff]
    %v2436 = vld [vmem:[%s8 + $0x358] sm:$0xff]
    %v2437 = vld [vmem:[%s8 + $0x360] sm:$0xf]
    %v2438 = vld [vmem:[%s8 + $0x364] sm:$0xff]
    %v2439 = vld [vmem:[%s8 + $0x36c] sm:$0xff]
    %v2440 = vld [vmem:[%s8 + $0x374] sm:$0xff]
    %v2441 = vld [vmem:[%s8 + $0x37c] sm:$0xf]
    %v2442 = vld [vmem:[%s8 + $0x380] sm:$0xff]
    %v2443 = vld [vmem:[%s8 + $0x388] sm:$0xff]
    %v2444 = vld [vmem:[%s8 + $0x390] sm:$0xff]
    %v2445 = vld [vmem:[%s8 + $0x398] sm:$0xf]
    %v2446 = vld [vmem:[%s8 + $0x39c] sm:$0xff]
    %v2447 = vld [vmem:[%s8 + $0x3a4] sm:$0xff]
    %v2448 = vld [vmem:[%s8 + $0x3ac] sm:$0xff]
    %v2449 = vld [vmem:[%s8 + $0x3b4] sm:$0xf]
    %v2450 = vld [vmem:[%s8 + $0x3b8] sm:$0xff]
    %v2451 = vld [vmem:[%s8 + $0x3c0] sm:$0xff]
    %v2452 = vld [vmem:[%s8 + $0x3c8] sm:$0xff]
    %v2453 = vld [vmem:[%s8 + $0x3d0] sm:$0xf]
    %v2454 = vld [vmem:[%s8 + $0x3d4] sm:$0xff]
    %v2455 = vld [vmem:[%s8 + $0x3dc] sm:$0xff]
    %v2456 = vld [vmem:[%s8 + $0x3e4] sm:$0xff]
    %v2457 = vld [vmem:[%s8 + $0x3ec] sm:$0xf]
    %v2458 = vld [vmem:[%s8 + $0x3f0] sm:$0xff]
    %v2459 = vld [vmem:[%s8 + $0x3f8] sm:$0xff]
    %v2460 = vld [vmem:[%s8 + $0x400] sm:$0xff]
    %v2461 = vld [vmem:[%s8 + $0x408] sm:$0xf]
    %v2462 = vld [vmem:[%s8 + $0x40c] sm:$0xff]
    %v2463 = vld [vmem:[%s8 + $0x414] sm:$0xff]
    %v2464 = vld [vmem:[%s8 + $0x41c] sm:$0xff]
    %v2465 = vld [vmem:[%s8 + $0x424] sm:$0xf]
    %v2466 = vld [vmem:[%s8 + $0x428] sm:$0xff]
    %v2467 = vld [vmem:[%s8 + $0x430] sm:$0xff]
    %v2468 = vld [vmem:[%s8 + $0x438] sm:$0xff]
    %v2469 = vld [vmem:[%s8 + $0x440] sm:$0xf]
    %v2470 = vld [vmem:[%s8 + $0x444] sm:$0xff]
    %v2471 = vld [vmem:[%s8 + $0x44c] sm:$0xff]
    %v2472 = vld [vmem:[%s8 + $0x454] sm:$0xff]
    %v2473 = vld [vmem:[%s8 + $0x45c] sm:$0xf]
    %v2474 = vld [vmem:[%s8 + $0x460] sm:$0xff]
    %v2475 = vld [vmem:[%s8 + $0x468] sm:$0xff]
    %v2476 = vld [vmem:[%s8 + $0x470] sm:$0xff]
    %v2477 = vld [vmem:[%s8 + $0x478] sm:$0xf]
    %v2478 = vld [vmem:[%s8 + $0x47c] sm:$0xff]
    %v2479 = vld [vmem:[%s8 + $0x484] sm:$0xff]
    %v2480 = vld [vmem:[%s8 + $0x48c] sm:$0xff]
    %v2481 = vld [vmem:[%s8 + $0x494] sm:$0xf]
    %v2482 = vld [vmem:[%s8 + $0x498] sm:$0xff]
    %v2483 = vld [vmem:[%s8 + $0x4a0] sm:$0xff]
    %v2484 = vld [vmem:[%s8 + $0x4a8] sm:$0xff]
    %v2485 = vld [vmem:[%s8 + $0x4b0] sm:$0xf]
    %v2486 = vld [vmem:[%s8 + $0x4b4] sm:$0xff]
    %v2487 = vld [vmem:[%s8 + $0x4bc] sm:$0xff]
    %v2488 = vld [vmem:[%s8 + $0x4c4] sm:$0xff]
    %v2489 = vld [vmem:[%s8 + $0x4cc] sm:$0xf]
    %v2490 = vld [vmem:[%s8 + $0x4d0] sm:$0xff]
    %v2491 = vld [vmem:[%s8 + $0x4d8] sm:$0xff]
    %v2492 = vld [vmem:[%s8 + $0x4e0] sm:$0xff]
    %v2493 = vld [vmem:[%s8 + $0x4e8] sm:$0xf]
    %v2494 = vld [vmem:[%s8 + $0x4ec] sm:$0xff]
    %v2495 = vld [vmem:[%s8 + $0x4f4] sm:$0xff]
    %v2496 = vld [vmem:[%s8 + $0x4fc] sm:$0xff]
    %v2497 = vld [vmem:[%s8 + $0x504] sm:$0xf]
    %v2498 = vld [vmem:[%s8 + $0x508] sm:$0xff]
    %v2499 = vld [vmem:[%s8 + $0x510] sm:$0xff]
    %v2500 = vld [vmem:[%s8 + $0x518] sm:$0xff]
    %v2501 = vld [vmem:[%s8 + $0x520] sm:$0xf]
    %v2502 = vld [vmem:[%s8 + $0x524] sm:$0xff]
    %v2503 = vld [vmem:[%s8 + $0x52c] sm:$0xff]
    %v2504 = vld [vmem:[%s8 + $0x534] sm:$0xff]
    %v2505 = vld [vmem:[%s8 + $0x53c] sm:$0xf]
    %v2506 = vld [vmem:[%s8 + $0x540] sm:$0xff]
    %v2507 = vld [vmem:[%s8 + $0x548] sm:$0xff]
    %v2508 = vld [vmem:[%s8 + $0x550] sm:$0xff]
    %v2509 = vld [vmem:[%s8 + $0x558] sm:$0xf]
    %v2510 = vld [vmem:[%s8 + $0x55c] sm:$0xff]
    %v2511 = vld [vmem:[%s8 + $0x564] sm:$0xff]
    %v2512 = vld [vmem:[%s8 + $0x56c] sm:$0xff]
    %v2513 = vld [vmem:[%s8 + $0x574] sm:$0xf]
    %v2514 = vld [vmem:[%s9] sm:$0x7f]
    %v2516 = vlaneseq
    %v2517 = vshrl.u32 %v2516, 7
    %v2518 = vsub.s32 0, %v2517
    %v2519 = vrot.slane %v2514, %v2518
    %v2520 = vlaneseq
    %v2521 = vshrl.u32 %v2520, 7
    %v2522 = vsub.s32 1, %v2521
    %v2523 = vrot.slane %v2514, %v2522
    %v2524 = vlaneseq
    %v2525 = vshrl.u32 %v2524, 7
    %v2526 = vsub.s32 2, %v2525
    %v2527 = vrot.slane %v2514, %v2526
    %v2528 = vlaneseq
    %v2529 = vshrl.u32 %v2528, 7
    %v2530 = vsub.s32 3, %v2529
    %v2531 = vrot.slane %v2514, %v2530
    %v2532 = vlaneseq
    %v2533 = vshrl.u32 %v2532, 7
    %v2534 = vsub.s32 4, %v2533
    %v2535 = vrot.slane %v2514, %v2534
    %v2536 = vlaneseq
    %v2537 = vshrl.u32 %v2536, 7
    %v2538 = vsub.s32 5, %v2537
    %v2539 = vrot.slane %v2514, %v2538
    %v2540 = vlaneseq
    %v2541 = vshrl.u32 %v2540, 7
    %v2542 = vsub.s32 6, %v2541
    %v2543 = vrot.slane %v2514, %v2542
    %v2751 = vunpack.c.l.b16 %v2314
    %v2752 = vunpack.c.h.b16 %v2314
    %v2753 = vunpack.c.l.b16 %v2315
    %v2754 = vunpack.c.h.b16 %v2315
    %v2755 = vunpack.c.l.b16 %v2316
    %v2756 = vunpack.c.h.b16 %v2316
    %v2757 = vunpack.c.l.b16 %v2317
    %v2758 = vunpack.c.l.b16 %v2318
    %v2759 = vunpack.c.h.b16 %v2318
    %v2760 = vunpack.c.l.b16 %v2319
    %v2761 = vunpack.c.h.b16 %v2319
    %v2762 = vunpack.c.l.b16 %v2320
    %v2763 = vunpack.c.h.b16 %v2320
    %v2764 = vunpack.c.l.b16 %v2321
    %v2765 = vunpack.c.l.b16 %v2322
    %v2766 = vunpack.c.h.b16 %v2322
    %v2767 = vunpack.c.l.b16 %v2323
    %v2768 = vunpack.c.h.b16 %v2323
    %v2769 = vunpack.c.l.b16 %v2324
    %v2770 = vunpack.c.h.b16 %v2324
    %v2771 = vunpack.c.l.b16 %v2325
    %v2772 = vunpack.c.l.b16 %v2326
    %v2773 = vunpack.c.h.b16 %v2326
    %v2774 = vunpack.c.l.b16 %v2327
    %v2775 = vunpack.c.h.b16 %v2327
    %v2776 = vunpack.c.l.b16 %v2328
    %v2777 = vunpack.c.h.b16 %v2328
    %v2778 = vunpack.c.l.b16 %v2329
    %v2779 = vunpack.c.l.b16 %v2330
    %v2780 = vunpack.c.h.b16 %v2330
    %v2781 = vunpack.c.l.b16 %v2331
    %v2782 = vunpack.c.h.b16 %v2331
    %v2783 = vunpack.c.l.b16 %v2332
    %v2784 = vunpack.c.h.b16 %v2332
    %v2785 = vunpack.c.l.b16 %v2333
    %v2786 = vunpack.c.l.b16 %v2334
    %v2787 = vunpack.c.h.b16 %v2334
    %v2788 = vunpack.c.l.b16 %v2335
    %v2789 = vunpack.c.h.b16 %v2335
    %v2790 = vunpack.c.l.b16 %v2336
    %v2791 = vunpack.c.h.b16 %v2336
    %v2792 = vunpack.c.l.b16 %v2337
    %v2793 = vunpack.c.l.b16 %v2338
    %v2794 = vunpack.c.h.b16 %v2338
    %v2795 = vunpack.c.l.b16 %v2339
    %v2796 = vunpack.c.h.b16 %v2339
    %v2797 = vunpack.c.l.b16 %v2340
    %v2798 = vunpack.c.h.b16 %v2340
    %v2799 = vunpack.c.l.b16 %v2341
    %v2800 = vunpack.c.l.b16 %v2342
    %v2801 = vunpack.c.h.b16 %v2342
    %v2802 = vunpack.c.l.b16 %v2343
    %v2803 = vunpack.c.h.b16 %v2343
    %v2804 = vunpack.c.l.b16 %v2344
    %v2805 = vunpack.c.h.b16 %v2344
    %v2806 = vunpack.c.l.b16 %v2345
    %v2807 = vunpack.c.l.b16 %v2346
    %v2808 = vunpack.c.h.b16 %v2346
    %v2809 = vunpack.c.l.b16 %v2347
    %v2810 = vunpack.c.h.b16 %v2347
    %v2811 = vunpack.c.l.b16 %v2348
    %v2812 = vunpack.c.h.b16 %v2348
    %v2813 = vunpack.c.l.b16 %v2349
    %v2814 = vunpack.c.l.b16 %v2350
    %v2815 = vunpack.c.h.b16 %v2350
    %v2816 = vunpack.c.l.b16 %v2351
    %v2817 = vunpack.c.h.b16 %v2351
    %v2818 = vunpack.c.l.b16 %v2352
    %v2819 = vunpack.c.h.b16 %v2352
    %v2820 = vunpack.c.l.b16 %v2353
    %v2821 = vunpack.c.l.b16 %v2354
    %v2822 = vunpack.c.h.b16 %v2354
    %v2823 = vunpack.c.l.b16 %v2355
    %v2824 = vunpack.c.h.b16 %v2355
    %v2825 = vunpack.c.l.b16 %v2356
    %v2826 = vunpack.c.h.b16 %v2356
    %v2827 = vunpack.c.l.b16 %v2357
    %v2828 = vunpack.c.l.b16 %v2358
    %v2829 = vunpack.c.h.b16 %v2358
    %v2830 = vunpack.c.l.b16 %v2359
    %v2831 = vunpack.c.h.b16 %v2359
    %v2832 = vunpack.c.l.b16 %v2360
    %v2833 = vunpack.c.h.b16 %v2360
    %v2834 = vunpack.c.l.b16 %v2361
    %v2835 = vunpack.c.l.b16 %v2362
    %v2836 = vunpack.c.h.b16 %v2362
    %v2837 = vunpack.c.l.b16 %v2363
    %v2838 = vunpack.c.h.b16 %v2363
    %v2839 = vunpack.c.l.b16 %v2364
    %v2840 = vunpack.c.h.b16 %v2364
    %v2841 = vunpack.c.l.b16 %v2365
    %v2842 = vunpack.c.l.b16 %v2366
    %v2843 = vunpack.c.h.b16 %v2366
    %v2844 = vunpack.c.l.b16 %v2367
    %v2845 = vunpack.c.h.b16 %v2367
    %v2846 = vunpack.c.l.b16 %v2368
    %v2847 = vunpack.c.h.b16 %v2368
    %v2848 = vunpack.c.l.b16 %v2369
    %v2849 = vunpack.c.l.b16 %v2370
    %v2850 = vunpack.c.h.b16 %v2370
    %v2851 = vunpack.c.l.b16 %v2371
    %v2852 = vunpack.c.h.b16 %v2371
    %v2853 = vunpack.c.l.b16 %v2372
    %v2854 = vunpack.c.h.b16 %v2372
    %v2855 = vunpack.c.l.b16 %v2373
    %v2856 = vunpack.c.l.b16 %v2374
    %v2857 = vunpack.c.h.b16 %v2374
    %v2858 = vunpack.c.l.b16 %v2375
    %v2859 = vunpack.c.h.b16 %v2375
    %v2860 = vunpack.c.l.b16 %v2376
    %v2861 = vunpack.c.h.b16 %v2376
    %v2862 = vunpack.c.l.b16 %v2377
    %v2863 = vunpack.c.l.b16 %v2378
    %v2864 = vunpack.c.h.b16 %v2378
    %v2865 = vunpack.c.l.b16 %v2379
    %v2866 = vunpack.c.h.b16 %v2379
    %v2867 = vunpack.c.l.b16 %v2380
    %v2868 = vunpack.c.h.b16 %v2380
    %v2869 = vunpack.c.l.b16 %v2381
    %v2870 = vunpack.c.l.b16 %v2382
    %v2871 = vunpack.c.h.b16 %v2382
    %v2872 = vunpack.c.l.b16 %v2383
    %v2873 = vunpack.c.h.b16 %v2383
    %v2874 = vunpack.c.l.b16 %v2384
    %v2875 = vunpack.c.h.b16 %v2384
    %v2876 = vunpack.c.l.b16 %v2385
    %v2877 = vunpack.c.l.b16 %v2386
    %v2878 = vunpack.c.h.b16 %v2386
    %v2879 = vunpack.c.l.b16 %v2387
    %v2880 = vunpack.c.h.b16 %v2387
    %v2881 = vunpack.c.l.b16 %v2388
    %v2882 = vunpack.c.h.b16 %v2388
    %v2883 = vunpack.c.l.b16 %v2389
    %v2884 = vunpack.c.l.b16 %v2390
    %v2885 = vunpack.c.h.b16 %v2390
    %v2886 = vunpack.c.l.b16 %v2391
    %v2887 = vunpack.c.h.b16 %v2391
    %v2888 = vunpack.c.l.b16 %v2392
    %v2889 = vunpack.c.h.b16 %v2392
    %v2890 = vunpack.c.l.b16 %v2393
    %v2891 = vunpack.c.l.b16 %v2394
    %v2892 = vunpack.c.h.b16 %v2394
    %v2893 = vunpack.c.l.b16 %v2395
    %v2894 = vunpack.c.h.b16 %v2395
    %v2895 = vunpack.c.l.b16 %v2396
    %v2896 = vunpack.c.h.b16 %v2396
    %v2897 = vunpack.c.l.b16 %v2397
    %v2898 = vunpack.c.l.b16 %v2398
    %v2899 = vunpack.c.h.b16 %v2398
    %v2900 = vunpack.c.l.b16 %v2399
    %v2901 = vunpack.c.h.b16 %v2399
    %v2902 = vunpack.c.l.b16 %v2400
    %v2903 = vunpack.c.h.b16 %v2400
    %v2904 = vunpack.c.l.b16 %v2401
    %v2905 = vunpack.c.l.b16 %v2402
    %v2906 = vunpack.c.h.b16 %v2402
    %v2907 = vunpack.c.l.b16 %v2403
    %v2908 = vunpack.c.h.b16 %v2403
    %v2909 = vunpack.c.l.b16 %v2404
    %v2910 = vunpack.c.h.b16 %v2404
    %v2911 = vunpack.c.l.b16 %v2405
    %v2912 = vunpack.c.l.b16 %v2406
    %v2913 = vunpack.c.h.b16 %v2406
    %v2914 = vunpack.c.l.b16 %v2407
    %v2915 = vunpack.c.h.b16 %v2407
    %v2916 = vunpack.c.l.b16 %v2408
    %v2917 = vunpack.c.h.b16 %v2408
    %v2918 = vunpack.c.l.b16 %v2409
    %v2919 = vunpack.c.l.b16 %v2410
    %v2920 = vunpack.c.h.b16 %v2410
    %v2921 = vunpack.c.l.b16 %v2411
    %v2922 = vunpack.c.h.b16 %v2411
    %v2923 = vunpack.c.l.b16 %v2412
    %v2924 = vunpack.c.h.b16 %v2412
    %v2925 = vunpack.c.l.b16 %v2413
    %v2926 = vunpack.c.l.b16 %v2414
    %v2927 = vunpack.c.h.b16 %v2414
    %v2928 = vunpack.c.l.b16 %v2415
    %v2929 = vunpack.c.h.b16 %v2415
    %v2930 = vunpack.c.l.b16 %v2416
    %v2931 = vunpack.c.h.b16 %v2416
    %v2932 = vunpack.c.l.b16 %v2417
    %v2933 = vunpack.c.l.b16 %v2418
    %v2934 = vunpack.c.h.b16 %v2418
    %v2935 = vunpack.c.l.b16 %v2419
    %v2936 = vunpack.c.h.b16 %v2419
    %v2937 = vunpack.c.l.b16 %v2420
    %v2938 = vunpack.c.h.b16 %v2420
    %v2939 = vunpack.c.l.b16 %v2421
    %v2940 = vunpack.c.l.b16 %v2422
    %v2941 = vunpack.c.h.b16 %v2422
    %v2942 = vunpack.c.l.b16 %v2423
    %v2943 = vunpack.c.h.b16 %v2423
    %v2944 = vunpack.c.l.b16 %v2424
    %v2945 = vunpack.c.h.b16 %v2424
    %v2946 = vunpack.c.l.b16 %v2425
    %v2947 = vunpack.c.l.b16 %v2426
    %v2948 = vunpack.c.h.b16 %v2426
    %v2949 = vunpack.c.l.b16 %v2427
    %v2950 = vunpack.c.h.b16 %v2427
    %v2951 = vunpack.c.l.b16 %v2428
    %v2952 = vunpack.c.h.b16 %v2428
    %v2953 = vunpack.c.l.b16 %v2429
    %v2954 = vunpack.c.l.b16 %v2430
    %v2955 = vunpack.c.h.b16 %v2430
    %v2956 = vunpack.c.l.b16 %v2431
    %v2957 = vunpack.c.h.b16 %v2431
    %v2958 = vunpack.c.l.b16 %v2432
    %v2959 = vunpack.c.h.b16 %v2432
    %v2960 = vunpack.c.l.b16 %v2433
    %v2961 = vunpack.c.l.b16 %v2434
    %v2962 = vunpack.c.h.b16 %v2434
    %v2963 = vunpack.c.l.b16 %v2435
    %v2964 = vunpack.c.h.b16 %v2435
    %v2965 = vunpack.c.l.b16 %v2436
    %v2966 = vunpack.c.h.b16 %v2436
    %v2967 = vunpack.c.l.b16 %v2437
    %v2968 = vunpack.c.l.b16 %v2438
    %v2969 = vunpack.c.h.b16 %v2438
    %v2970 = vunpack.c.l.b16 %v2439
    %v2971 = vunpack.c.h.b16 %v2439
    %v2972 = vunpack.c.l.b16 %v2440
    %v2973 = vunpack.c.h.b16 %v2440
    %v2974 = vunpack.c.l.b16 %v2441
    %v2975 = vunpack.c.l.b16 %v2442
    %v2976 = vunpack.c.h.b16 %v2442
    %v2977 = vunpack.c.l.b16 %v2443
    %v2978 = vunpack.c.h.b16 %v2443
    %v2979 = vunpack.c.l.b16 %v2444
    %v2980 = vunpack.c.h.b16 %v2444
    %v2981 = vunpack.c.l.b16 %v2445
    %v2982 = vunpack.c.l.b16 %v2446
    %v2983 = vunpack.c.h.b16 %v2446
    %v2984 = vunpack.c.l.b16 %v2447
    %v2985 = vunpack.c.h.b16 %v2447
    %v2986 = vunpack.c.l.b16 %v2448
    %v2987 = vunpack.c.h.b16 %v2448
    %v2988 = vunpack.c.l.b16 %v2449
    %v2989 = vunpack.c.l.b16 %v2450
    %v2990 = vunpack.c.h.b16 %v2450
    %v2991 = vunpack.c.l.b16 %v2451
    %v2992 = vunpack.c.h.b16 %v2451
    %v2993 = vunpack.c.l.b16 %v2452
    %v2994 = vunpack.c.h.b16 %v2452
    %v2995 = vunpack.c.l.b16 %v2453
    %v2996 = vunpack.c.l.b16 %v2454
    %v2997 = vunpack.c.h.b16 %v2454
    %v2998 = vunpack.c.l.b16 %v2455
    %v2999 = vunpack.c.h.b16 %v2455
    %v3000 = vunpack.c.l.b16 %v2456
    %v3001 = vunpack.c.h.b16 %v2456
    %v3002 = vunpack.c.l.b16 %v2457
    %v3003 = vunpack.c.l.b16 %v2458
    %v3004 = vunpack.c.h.b16 %v2458
    %v3005 = vunpack.c.l.b16 %v2459
    %v3006 = vunpack.c.h.b16 %v2459
    %v3007 = vunpack.c.l.b16 %v2460
    %v3008 = vunpack.c.h.b16 %v2460
    %v3009 = vunpack.c.l.b16 %v2461
    %v3010 = vunpack.c.l.b16 %v2462
    %v3011 = vunpack.c.h.b16 %v2462
    %v3012 = vunpack.c.l.b16 %v2463
    %v3013 = vunpack.c.h.b16 %v2463
    %v3014 = vunpack.c.l.b16 %v2464
    %v3015 = vunpack.c.h.b16 %v2464
    %v3016 = vunpack.c.l.b16 %v2465
    %v3017 = vunpack.c.l.b16 %v2466
    %v3018 = vunpack.c.h.b16 %v2466
    %v3019 = vunpack.c.l.b16 %v2467
    %v3020 = vunpack.c.h.b16 %v2467
    %v3021 = vunpack.c.l.b16 %v2468
    %v3022 = vunpack.c.h.b16 %v2468
    %v3023 = vunpack.c.l.b16 %v2469
    %v3024 = vunpack.c.l.b16 %v2470
    %v3025 = vunpack.c.h.b16 %v2470
    %v3026 = vunpack.c.l.b16 %v2471
    %v3027 = vunpack.c.h.b16 %v2471
    %v3028 = vunpack.c.l.b16 %v2472
    %v3029 = vunpack.c.h.b16 %v2472
    %v3030 = vunpack.c.l.b16 %v2473
    %v3031 = vunpack.c.l.b16 %v2474
    %v3032 = vunpack.c.h.b16 %v2474
    %v3033 = vunpack.c.l.b16 %v2475
    %v3034 = vunpack.c.h.b16 %v2475
    %v3035 = vunpack.c.l.b16 %v2476
    %v3036 = vunpack.c.h.b16 %v2476
    %v3037 = vunpack.c.l.b16 %v2477
    %v3038 = vunpack.c.l.b16 %v2478
    %v3039 = vunpack.c.h.b16 %v2478
    %v3040 = vunpack.c.l.b16 %v2479
    %v3041 = vunpack.c.h.b16 %v2479
    %v3042 = vunpack.c.l.b16 %v2480
    %v3043 = vunpack.c.h.b16 %v2480
    %v3044 = vunpack.c.l.b16 %v2481
    %v3045 = vunpack.c.l.b16 %v2482
    %v3046 = vunpack.c.h.b16 %v2482
    %v3047 = vunpack.c.l.b16 %v2483
    %v3048 = vunpack.c.h.b16 %v2483
    %v3049 = vunpack.c.l.b16 %v2484
    %v3050 = vunpack.c.h.b16 %v2484
    %v3051 = vunpack.c.l.b16 %v2485
    %v3052 = vunpack.c.l.b16 %v2486
    %v3053 = vunpack.c.h.b16 %v2486
    %v3054 = vunpack.c.l.b16 %v2487
    %v3055 = vunpack.c.h.b16 %v2487
    %v3056 = vunpack.c.l.b16 %v2488
    %v3057 = vunpack.c.h.b16 %v2488
    %v3058 = vunpack.c.l.b16 %v2489
    %v3059 = vunpack.c.l.b16 %v2490
    %v3060 = vunpack.c.h.b16 %v2490
    %v3061 = vunpack.c.l.b16 %v2491
    %v3062 = vunpack.c.h.b16 %v2491
    %v3063 = vunpack.c.l.b16 %v2492
    %v3064 = vunpack.c.h.b16 %v2492
    %v3065 = vunpack.c.l.b16 %v2493
    %v3066 = vunpack.c.l.b16 %v2494
    %v3067 = vunpack.c.h.b16 %v2494
    %v3068 = vunpack.c.l.b16 %v2495
    %v3069 = vunpack.c.h.b16 %v2495
    %v3070 = vunpack.c.l.b16 %v2496
    %v3071 = vunpack.c.h.b16 %v2496
    %v3072 = vunpack.c.l.b16 %v2497
    %v3073 = vunpack.c.l.b16 %v2498
    %v3074 = vunpack.c.h.b16 %v2498
    %v3075 = vunpack.c.l.b16 %v2499
    %v3076 = vunpack.c.h.b16 %v2499
    %v3077 = vunpack.c.l.b16 %v2500
    %v3078 = vunpack.c.h.b16 %v2500
    %v3079 = vunpack.c.l.b16 %v2501
    %v3080 = vunpack.c.l.b16 %v2502
    %v3081 = vunpack.c.h.b16 %v2502
    %v3082 = vunpack.c.l.b16 %v2503
    %v3083 = vunpack.c.h.b16 %v2503
    %v3084 = vunpack.c.l.b16 %v2504
    %v3085 = vunpack.c.h.b16 %v2504
    %v3086 = vunpack.c.l.b16 %v2505
    %v3087 = vunpack.c.l.b16 %v2506
    %v3088 = vunpack.c.h.b16 %v2506
    %v3089 = vunpack.c.l.b16 %v2507
    %v3090 = vunpack.c.h.b16 %v2507
    %v3091 = vunpack.c.l.b16 %v2508
    %v3092 = vunpack.c.h.b16 %v2508
    %v3093 = vunpack.c.l.b16 %v2509
    %v3094 = vunpack.c.l.b16 %v2510
    %v3095 = vunpack.c.h.b16 %v2510
    %v3096 = vunpack.c.l.b16 %v2511
    %v3097 = vunpack.c.h.b16 %v2511
    %v3098 = vunpack.c.l.b16 %v2512
    %v3099 = vunpack.c.h.b16 %v2512
    %v3100 = vunpack.c.l.b16 %v2513
    %v3101 = vpack.c.b16 %v2758, %v2751
    %v3102 = vpack.c.b16 %v2759, %v2752
    %v3103 = vpack.c.b16 %v2760, %v2753
    %v3104 = vpack.c.b16 %v2761, %v2754
    %v3105 = vpack.c.b16 %v2762, %v2755
    %v3106 = vpack.c.b16 %v2763, %v2756
    %v3107 = vpack.c.b16 %v2764, %v2757
    %v3108 = vpack.c.b16 %v2772, %v2765
    %v3109 = vpack.c.b16 %v2773, %v2766
    %v3110 = vpack.c.b16 %v2774, %v2767
    %v3111 = vpack.c.b16 %v2775, %v2768
    %v3112 = vpack.c.b16 %v2776, %v2769
    %v3113 = vpack.c.b16 %v2777, %v2770
    %v3114 = vpack.c.b16 %v2778, %v2771
    %v3115 = vpack.c.b16 %v2786, %v2779
    %v3116 = vpack.c.b16 %v2787, %v2780
    %v3117 = vpack.c.b16 %v2788, %v2781
    %v3118 = vpack.c.b16 %v2789, %v2782
    %v3119 = vpack.c.b16 %v2790, %v2783
    %v3120 = vpack.c.b16 %v2791, %v2784
    %v3121 = vpack.c.b16 %v2792, %v2785
    %v3122 = vpack.c.b16 %v2800, %v2793
    %v3123 = vpack.c.b16 %v2801, %v2794
    %v3124 = vpack.c.b16 %v2802, %v2795
    %v3125 = vpack.c.b16 %v2803, %v2796
    %v3126 = vpack.c.b16 %v2804, %v2797
    %v3127 = vpack.c.b16 %v2805, %v2798
    %v3128 = vpack.c.b16 %v2806, %v2799
    %v3129 = vpack.c.b16 %v2814, %v2807
    %v3130 = vpack.c.b16 %v2815, %v2808
    %v3131 = vpack.c.b16 %v2816, %v2809
    %v3132 = vpack.c.b16 %v2817, %v2810
    %v3133 = vpack.c.b16 %v2818, %v2811
    %v3134 = vpack.c.b16 %v2819, %v2812
    %v3135 = vpack.c.b16 %v2820, %v2813
    %v3136 = vpack.c.b16 %v2828, %v2821
    %v3137 = vpack.c.b16 %v2829, %v2822
    %v3138 = vpack.c.b16 %v2830, %v2823
    %v3139 = vpack.c.b16 %v2831, %v2824
    %v3140 = vpack.c.b16 %v2832, %v2825
    %v3141 = vpack.c.b16 %v2833, %v2826
    %v3142 = vpack.c.b16 %v2834, %v2827
    %v3143 = vpack.c.b16 %v2842, %v2835
    %v3144 = vpack.c.b16 %v2843, %v2836
    %v3145 = vpack.c.b16 %v2844, %v2837
    %v3146 = vpack.c.b16 %v2845, %v2838
    %v3147 = vpack.c.b16 %v2846, %v2839
    %v3148 = vpack.c.b16 %v2847, %v2840
    %v3149 = vpack.c.b16 %v2848, %v2841
    %v3150 = vpack.c.b16 %v2856, %v2849
    %v3151 = vpack.c.b16 %v2857, %v2850
    %v3152 = vpack.c.b16 %v2858, %v2851
    %v3153 = vpack.c.b16 %v2859, %v2852
    %v3154 = vpack.c.b16 %v2860, %v2853
    %v3155 = vpack.c.b16 %v2861, %v2854
    %v3156 = vpack.c.b16 %v2862, %v2855
    %v3157 = vpack.c.b16 %v2870, %v2863
    %v3158 = vpack.c.b16 %v2871, %v2864
    %v3159 = vpack.c.b16 %v2872, %v2865
    %v3160 = vpack.c.b16 %v2873, %v2866
    %v3161 = vpack.c.b16 %v2874, %v2867
    %v3162 = vpack.c.b16 %v2875, %v2868
    %v3163 = vpack.c.b16 %v2876, %v2869
    %v3164 = vpack.c.b16 %v2884, %v2877
    %v3165 = vpack.c.b16 %v2885, %v2878
    %v3166 = vpack.c.b16 %v2886, %v2879
    %v3167 = vpack.c.b16 %v2887, %v2880
    %v3168 = vpack.c.b16 %v2888, %v2881
    %v3169 = vpack.c.b16 %v2889, %v2882
    %v3170 = vpack.c.b16 %v2890, %v2883
    %v3171 = vpack.c.b16 %v2898, %v2891
    %v3172 = vpack.c.b16 %v2899, %v2892
    %v3173 = vpack.c.b16 %v2900, %v2893
    %v3174 = vpack.c.b16 %v2901, %v2894
    %v3175 = vpack.c.b16 %v2902, %v2895
    %v3176 = vpack.c.b16 %v2903, %v2896
    %v3177 = vpack.c.b16 %v2904, %v2897
    %v3178 = vpack.c.b16 %v2912, %v2905
    %v3179 = vpack.c.b16 %v2913, %v2906
    %v3180 = vpack.c.b16 %v2914, %v2907
    %v3181 = vpack.c.b16 %v2915, %v2908
    %v3182 = vpack.c.b16 %v2916, %v2909
    %v3183 = vpack.c.b16 %v2917, %v2910
    %v3184 = vpack.c.b16 %v2918, %v2911
    %v3185 = vpack.c.b16 %v2926, %v2919
    %v3186 = vpack.c.b16 %v2927, %v2920
    %v3187 = vpack.c.b16 %v2928, %v2921
    %v3188 = vpack.c.b16 %v2929, %v2922
    %v3189 = vpack.c.b16 %v2930, %v2923
    %v3190 = vpack.c.b16 %v2931, %v2924
    %v3191 = vpack.c.b16 %v2932, %v2925
    %v3192 = vpack.c.b16 %v2940, %v2933
    %v3193 = vpack.c.b16 %v2941, %v2934
    %v3194 = vpack.c.b16 %v2942, %v2935
    %v3195 = vpack.c.b16 %v2943, %v2936
    %v3196 = vpack.c.b16 %v2944, %v2937
    %v3197 = vpack.c.b16 %v2945, %v2938
    %v3198 = vpack.c.b16 %v2946, %v2939
    %v3199 = vpack.c.b16 %v2954, %v2947
    %v3200 = vpack.c.b16 %v2955, %v2948
    %v3201 = vpack.c.b16 %v2956, %v2949
    %v3202 = vpack.c.b16 %v2957, %v2950
    %v3203 = vpack.c.b16 %v2958, %v2951
    %v3204 = vpack.c.b16 %v2959, %v2952
    %v3205 = vpack.c.b16 %v2960, %v2953
    %v3206 = vpack.c.b16 %v2968, %v2961
    %v3207 = vpack.c.b16 %v2969, %v2962
    %v3208 = vpack.c.b16 %v2970, %v2963
    %v3209 = vpack.c.b16 %v2971, %v2964
    %v3210 = vpack.c.b16 %v2972, %v2965
    %v3211 = vpack.c.b16 %v2973, %v2966
    %v3212 = vpack.c.b16 %v2974, %v2967
    %v3213 = vpack.c.b16 %v2982, %v2975
    %v3214 = vpack.c.b16 %v2983, %v2976
    %v3215 = vpack.c.b16 %v2984, %v2977
    %v3216 = vpack.c.b16 %v2985, %v2978
    %v3217 = vpack.c.b16 %v2986, %v2979
    %v3218 = vpack.c.b16 %v2987, %v2980
    %v3219 = vpack.c.b16 %v2988, %v2981
    %v3220 = vpack.c.b16 %v2996, %v2989
    %v3221 = vpack.c.b16 %v2997, %v2990
    %v3222 = vpack.c.b16 %v2998, %v2991
    %v3223 = vpack.c.b16 %v2999, %v2992
    %v3224 = vpack.c.b16 %v3000, %v2993
    %v3225 = vpack.c.b16 %v3001, %v2994
    %v3226 = vpack.c.b16 %v3002, %v2995
    %v3227 = vpack.c.b16 %v3010, %v3003
    %v3228 = vpack.c.b16 %v3011, %v3004
    %v3229 = vpack.c.b16 %v3012, %v3005
    %v3230 = vpack.c.b16 %v3013, %v3006
    %v3231 = vpack.c.b16 %v3014, %v3007
    %v3232 = vpack.c.b16 %v3015, %v3008
    %v3233 = vpack.c.b16 %v3016, %v3009
    %v3234 = vpack.c.b16 %v3024, %v3017
    %v3235 = vpack.c.b16 %v3025, %v3018
    %v3236 = vpack.c.b16 %v3026, %v3019
    %v3237 = vpack.c.b16 %v3027, %v3020
    %v3238 = vpack.c.b16 %v3028, %v3021
    %v3239 = vpack.c.b16 %v3029, %v3022
    %v3240 = vpack.c.b16 %v3030, %v3023
    %v3241 = vpack.c.b16 %v3038, %v3031
    %v3242 = vpack.c.b16 %v3039, %v3032
    %v3243 = vpack.c.b16 %v3040, %v3033
    %v3244 = vpack.c.b16 %v3041, %v3034
    %v3245 = vpack.c.b16 %v3042, %v3035
    %v3246 = vpack.c.b16 %v3043, %v3036
    %v3247 = vpack.c.b16 %v3044, %v3037
    %v3248 = vpack.c.b16 %v3052, %v3045
    %v3249 = vpack.c.b16 %v3053, %v3046
    %v3250 = vpack.c.b16 %v3054, %v3047
    %v3251 = vpack.c.b16 %v3055, %v3048
    %v3252 = vpack.c.b16 %v3056, %v3049
    %v3253 = vpack.c.b16 %v3057, %v3050
    %v3254 = vpack.c.b16 %v3058, %v3051
    %v3255 = vpack.c.b16 %v3066, %v3059
    %v3256 = vpack.c.b16 %v3067, %v3060
    %v3257 = vpack.c.b16 %v3068, %v3061
    %v3258 = vpack.c.b16 %v3069, %v3062
    %v3259 = vpack.c.b16 %v3070, %v3063
    %v3260 = vpack.c.b16 %v3071, %v3064
    %v3261 = vpack.c.b16 %v3072, %v3065
    %v3262 = vpack.c.b16 %v3080, %v3073
    %v3263 = vpack.c.b16 %v3081, %v3074
    %v3264 = vpack.c.b16 %v3082, %v3075
    %v3265 = vpack.c.b16 %v3083, %v3076
    %v3266 = vpack.c.b16 %v3084, %v3077
    %v3267 = vpack.c.b16 %v3085, %v3078
    %v3268 = vpack.c.b16 %v3086, %v3079
    %v3269 = vpack.c.b16 %v3094, %v3087
    %v3270 = vpack.c.b16 %v3095, %v3088
    %v3271 = vpack.c.b16 %v3096, %v3089
    %v3272 = vpack.c.b16 %v3097, %v3090
    %v3273 = vpack.c.b16 %v3098, %v3091
    %v3274 = vpack.c.b16 %v3099, %v3092
    %v3275 = vpack.c.b16 %v3100, %v3093
    %v3452 = vsel %vm1267, %v2313, 0
    %3454 = vmatprep.subr.bf16.mxu0 %v3102
    %3455 = vmatpush1.bf16.msra.mxu0 %v3101
    %3456 = vmatprep.subr.bf16.mxu0 %v3109
    %3457 = vmatpush1.bf16.msra.mxu0 %v3108
    %3458 = vmatprep.subr.bf16.mxu0 %v3116
    %3459 = vmatpush1.bf16.msra.mxu0 %v3115
    %3460 = vmatprep.subr.bf16.mxu0 %v3123
    %3461 = vmatpush1.bf16.msra.mxu0 %v3122
    %3462 = vmatprep.subr.bf16.mxu0 %v3130
    %3463 = vmatpush1.bf16.msra.mxu0 %v3129
    %3464 = vmatprep.subr.bf16.mxu0 %v3137
    %3465 = vmatpush1.bf16.msra.mxu0 %v3136
    %3466 = vmatprep.subr.bf16.mxu0 %v3144
    %3467 = vmatpush1.bf16.msra.mxu0 %v3143
    %3468 = vmatprep.subr.bf16.mxu0 %v3151
    %3469 = vmatpush1.bf16.msra.mxu0 %v3150
    %3470 = vmatprep.subr.bf16.mxu0 %v3158
    %3471 = vmatpush1.bf16.msra.mxu0 %v3157
    %3472 = vmatprep.subr.bf16.mxu0 %v3165
    %3473 = vmatpush1.bf16.msra.mxu0 %v3164
    %3474 = vmatprep.subr.bf16.mxu0 %v3172
    %3475 = vmatpush1.bf16.msra.mxu0 %v3171
    %3476 = vmatprep.subr.bf16.mxu0 %v3179
    %3477 = vmatpush1.bf16.msra.mxu0 %v3178
    %3478 = vmatprep.subr.bf16.mxu0 %v3186
    %3479 = vmatpush1.bf16.msra.mxu0 %v3185
    %3480 = vmatprep.subr.bf16.mxu0 %v3193
    %3481 = vmatpush1.bf16.msra.mxu0 %v3192
    %3482 = vmatprep.subr.bf16.mxu0 %v3200
    %3483 = vmatpush1.bf16.msra.mxu0 %v3199
    %3484 = vmatprep.subr.bf16.mxu0 %v3207
    %3485 = vmatpush1.bf16.msra.mxu0 %v3206
    %3486 = vmatprep.mubr.bf16.mxu0 %v2311
    %3487 = vmatmul.mubr.bf16.gmra.mrb[0].mxu0 %v2310
    %v3488 = vpop.f32.mrb[0].mxu0
    %v3489 = vadd.f32 %v2519, %v3488
    %v3490 = vpop.f32.mrb[0].mxu0
    %v3491 = vadd.f32 %v2523, %v3490
    %v3492 = vpop.f32.mrb[0].mxu0
    %v3493 = vpop.f32.mrb[0].mxu0
    %3494 = vdwg.mxu0
    %3495 = vmatprep.subr.bf16.mxu0 %v3214
    %3496 = vmatpush1.bf16.msra.mxu0 %v3213
    %3497 = vmatprep.subr.bf16.mxu0 %v3221
    %3498 = vmatpush1.bf16.msra.mxu0 %v3220
    %3499 = vmatprep.subr.bf16.mxu0 %v3228
    %3500 = vmatpush1.bf16.msra.mxu0 %v3227
    %3501 = vmatprep.subr.bf16.mxu0 %v3235
    %3502 = vmatpush1.bf16.msra.mxu0 %v3234
    %3503 = vmatprep.subr.bf16.mxu0 %v3242
    %3504 = vmatpush1.bf16.msra.mxu0 %v3241
    %3505 = vmatprep.subr.bf16.mxu0 %v3249
    %3506 = vmatpush1.bf16.msra.mxu0 %v3248
    %3507 = vmatprep.subr.bf16.mxu0 %v3256
    %3508 = vmatpush1.bf16.msra.mxu0 %v3255
    %3509 = vmatprep.subr.bf16.mxu0 %v3263
    %3510 = vmatpush1.bf16.msra.mxu0 %v3262
    %3511 = vmatprep.subr.bf16.mxu0 %v3270
    %3512 = vmatpush1.bf16.msra.mxu0 %v3269
    %3513 = vmatprep.subr.bf16.mxu0 0
    %3514 = vmatpush1.bf16.msra.mxu0 0
    %3515 = vmatprep.subr.bf16.mxu0 0
    %3516 = vmatpush1.bf16.msra.mxu0 0
    %3517 = vmatprep.subr.bf16.mxu0 0
    %3518 = vmatpush1.bf16.msra.mxu0 0
    %3519 = vmatprep.subr.bf16.mxu0 0
    %3520 = vmatpush1.bf16.msra.mxu0 0
    %3521 = vmatprep.subr.bf16.mxu0 0
    %3522 = vmatpush1.bf16.msra.mxu0 0
    %3523 = vmatprep.subr.bf16.mxu0 0
    %3524 = vmatpush1.bf16.msra.mxu0 0
    %3525 = vmatprep.subr.bf16.mxu0 0
    %3526 = vmatpush1.bf16.msra.mxu0 0
    %3527 = vmatprep.mubr.bf16.mxu0 %v3452
    %3528 = vmatmul.mubr.bf16.gmra.mrb[0].mxu0 %v2312
    %v3529 = vpop.f32.mrb[0].mxu0
    %v3530 = vadd.f32 %v3489, %v3529
    %v3531 = vpop.f32.mrb[0].mxu0
    %v3532 = vadd.f32 %v3491, %v3531
    %v3533 = vpop.f32.mrb[0].mxu0
    %v3534 = vpop.f32.mrb[0].mxu0
    %3535 = vdwg.mxu0
    %3536 = vmatprep.subr.bf16.mxu0 %v3104
    %3537 = vmatpush1.bf16.msra.mxu0 %v3103
    %3538 = vmatprep.subr.bf16.mxu0 %v3111
    %3539 = vmatpush1.bf16.msra.mxu0 %v3110
    %3540 = vmatprep.subr.bf16.mxu0 %v3118
    %3541 = vmatpush1.bf16.msra.mxu0 %v3117
    %3542 = vmatprep.subr.bf16.mxu0 %v3125
    %3543 = vmatpush1.bf16.msra.mxu0 %v3124
    %3544 = vmatprep.subr.bf16.mxu0 %v3132
    %3545 = vmatpush1.bf16.msra.mxu0 %v3131
    %3546 = vmatprep.subr.bf16.mxu0 %v3139
    %3547 = vmatpush1.bf16.msra.mxu0 %v3138
    %3548 = vmatprep.subr.bf16.mxu0 %v3146
    %3549 = vmatpush1.bf16.msra.mxu0 %v3145
    %3550 = vmatprep.subr.bf16.mxu0 %v3153
    %3551 = vmatpush1.bf16.msra.mxu0 %v3152
    %3552 = vmatprep.subr.bf16.mxu0 %v3160
    %3553 = vmatpush1.bf16.msra.mxu0 %v3159
    %3554 = vmatprep.subr.bf16.mxu0 %v3167
    %3555 = vmatpush1.bf16.msra.mxu0 %v3166
    %3556 = vmatprep.subr.bf16.mxu0 %v3174
    %3557 = vmatpush1.bf16.msra.mxu0 %v3173
    %3558 = vmatprep.subr.bf16.mxu0 %v3181
    %3559 = vmatpush1.bf16.msra.mxu0 %v3180
    %3560 = vmatprep.subr.bf16.mxu0 %v3188
    %3561 = vmatpush1.bf16.msra.mxu0 %v3187
    %3562 = vmatprep.subr.bf16.mxu0 %v3195
    %3563 = vmatpush1.bf16.msra.mxu0 %v3194
    %3564 = vmatprep.subr.bf16.mxu0 %v3202
    %3565 = vmatpush1.bf16.msra.mxu0 %v3201
    %3566 = vmatprep.subr.bf16.mxu0 %v3209
    %3567 = vmatpush1.bf16.msra.mxu0 %v3208
    %3568 = vmatprep.mubr.bf16.mxu0 %v2311
    %3569 = vmatmul.mubr.bf16.gmra.mrb[0].mxu0 %v2310
    %v3570 = vpop.f32.mrb[0].mxu0
    %v3571 = vadd.f32 %v2527, %v3570
    %v3572 = vpop.f32.mrb[0].mxu0
    %v3573 = vadd.f32 %v2531, %v3572
    %v3574 = vpop.f32.mrb[0].mxu0
    %v3575 = vpop.f32.mrb[0].mxu0
    %3576 = vdwg.mxu0
    %3577 = vmatprep.subr.bf16.mxu0 %v3216
    %3578 = vmatpush1.bf16.msra.mxu0 %v3215
    %3579 = vmatprep.subr.bf16.mxu0 %v3223
    %3580 = vmatpush1.bf16.msra.mxu0 %v3222
    %3581 = vmatprep.subr.bf16.mxu0 %v3230
    %3582 = vmatpush1.bf16.msra.mxu0 %v3229
    %3583 = vmatprep.subr.bf16.mxu0 %v3237
    %3584 = vmatpush1.bf16.msra.mxu0 %v3236
    %3585 = vmatprep.subr.bf16.mxu0 %v3244
    %3586 = vmatpush1.bf16.msra.mxu0 %v3243
    %3587 = vmatprep.subr.bf16.mxu0 %v3251
    %3588 = vmatpush1.bf16.msra.mxu0 %v3250
    %3589 = vmatprep.subr.bf16.mxu0 %v3258
    %3590 = vmatpush1.bf16.msra.mxu0 %v3257
    %3591 = vmatprep.subr.bf16.mxu0 %v3265
    %3592 = vmatpush1.bf16.msra.mxu0 %v3264
    %3593 = vmatprep.subr.bf16.mxu0 %v3272
    %3594 = vmatpush1.bf16.msra.mxu0 %v3271
    %3595 = vmatprep.subr.bf16.mxu0 0
    %3596 = vmatpush1.bf16.msra.mxu0 0
    %3597 = vmatprep.subr.bf16.mxu0 0
    %3598 = vmatpush1.bf16.msra.mxu0 0
    %3599 = vmatprep.subr.bf16.mxu0 0
    %3600 = vmatpush1.bf16.msra.mxu0 0
    %3601 = vmatprep.subr.bf16.mxu0 0
    %3602 = vmatpush1.bf16.msra.mxu0 0
    %3603 = vmatprep.subr.bf16.mxu0 0
    %3604 = vmatpush1.bf16.msra.mxu0 0
    %3605 = vmatprep.subr.bf16.mxu0 0
    %3606 = vmatpush1.bf16.msra.mxu0 0
    %3607 = vmatprep.subr.bf16.mxu0 0
    %3608 = vmatpush1.bf16.msra.mxu0 0
    %3609 = vmatprep.mubr.bf16.mxu0 %v3452
    %3610 = vmatmul.mubr.bf16.gmra.mrb[0].mxu0 %v2312
    %v3611 = vpop.f32.mrb[0].mxu0
    %v3612 = vadd.f32 %v3571, %v3611
    %v3613 = vpop.f32.mrb[0].mxu0
    %v3614 = vadd.f32 %v3573, %v3613
    %v3615 = vpop.f32.mrb[0].mxu0
    %v3616 = vpop.f32.mrb[0].mxu0
    %3617 = vdwg.mxu0
    %3618 = vmatprep.subr.bf16.mxu0 %v3106
    %3619 = vmatpush1.bf16.msra.mxu0 %v3105
    %3620 = vmatprep.subr.bf16.mxu0 %v3113
    %3621 = vmatpush1.bf16.msra.mxu0 %v3112
    %3622 = vmatprep.subr.bf16.mxu0 %v3120
    %3623 = vmatpush1.bf16.msra.mxu0 %v3119
    %3624 = vmatprep.subr.bf16.mxu0 %v3127
    %3625 = vmatpush1.bf16.msra.mxu0 %v3126
    %3626 = vmatprep.subr.bf16.mxu0 %v3134
    %3627 = vmatpush1.bf16.msra.mxu0 %v3133
    %3628 = vmatprep.subr.bf16.mxu0 %v3141
    %3629 = vmatpush1.bf16.msra.mxu0 %v3140
    %3630 = vmatprep.subr.bf16.mxu0 %v3148
    %3631 = vmatpush1.bf16.msra.mxu0 %v3147
    %3632 = vmatprep.subr.bf16.mxu0 %v3155
    %3633 = vmatpush1.bf16.msra.mxu0 %v3154
    %3634 = vmatprep.subr.bf16.mxu0 %v3162
    %3635 = vmatpush1.bf16.msra.mxu0 %v3161
    %3636 = vmatprep.subr.bf16.mxu0 %v3169
    %3637 = vmatpush1.bf16.msra.mxu0 %v3168
    %3638 = vmatprep.subr.bf16.mxu0 %v3176
    %3639 = vmatpush1.bf16.msra.mxu0 %v3175
    %3640 = vmatprep.subr.bf16.mxu0 %v3183
    %3641 = vmatpush1.bf16.msra.mxu0 %v3182
    %3642 = vmatprep.subr.bf16.mxu0 %v3190
    %3643 = vmatpush1.bf16.msra.mxu0 %v3189
    %3644 = vmatprep.subr.bf16.mxu0 %v3197
    %3645 = vmatpush1.bf16.msra.mxu0 %v3196
    %3646 = vmatprep.subr.bf16.mxu0 %v3204
    %3647 = vmatpush1.bf16.msra.mxu0 %v3203
    %3648 = vmatprep.subr.bf16.mxu0 %v3211
    %3649 = vmatpush1.bf16.msra.mxu0 %v3210
    %3650 = vmatprep.mubr.bf16.mxu0 %v2311
    %3651 = vmatmul.mubr.bf16.gmra.mrb[0].mxu0 %v2310
    %v3652 = vpop.f32.mrb[0].mxu0
    %v3653 = vadd.f32 %v2535, %v3652
    %v3654 = vpop.f32.mrb[0].mxu0
    %v3655 = vadd.f32 %v2539, %v3654
    %v3656 = vpop.f32.mrb[0].mxu0
    %v3657 = vpop.f32.mrb[0].mxu0
    %3658 = vdwg.mxu0
    %3659 = vmatprep.subr.bf16.mxu0 %v3218
    %3660 = vmatpush1.bf16.msra.mxu0 %v3217
    %3661 = vmatprep.subr.bf16.mxu0 %v3225
    %3662 = vmatpush1.bf16.msra.mxu0 %v3224
    %3663 = vmatprep.subr.bf16.mxu0 %v3232
    %3664 = vmatpush1.bf16.msra.mxu0 %v3231
    %3665 = vmatprep.subr.bf16.mxu0 %v3239
    %3666 = vmatpush1.bf16.msra.mxu0 %v3238
    %3667 = vmatprep.subr.bf16.mxu0 %v3246
    %3668 = vmatpush1.bf16.msra.mxu0 %v3245
    %3669 = vmatprep.subr.bf16.mxu0 %v3253
    %3670 = vmatpush1.bf16.msra.mxu0 %v3252
    %3671 = vmatprep.subr.bf16.mxu0 %v3260
    %3672 = vmatpush1.bf16.msra.mxu0 %v3259
    %3673 = vmatprep.subr.bf16.mxu0 %v3267
    %3674 = vmatpush1.bf16.msra.mxu0 %v3266
    %3675 = vmatprep.subr.bf16.mxu0 %v3274
    %3676 = vmatpush1.bf16.msra.mxu0 %v3273
    %3677 = vmatprep.subr.bf16.mxu0 0
    %3678 = vmatpush1.bf16.msra.mxu0 0
    %3679 = vmatprep.subr.bf16.mxu0 0
    %3680 = vmatpush1.bf16.msra.mxu0 0
    %3681 = vmatprep.subr.bf16.mxu0 0
    %3682 = vmatpush1.bf16.msra.mxu0 0
    %3683 = vmatprep.subr.bf16.mxu0 0
    %3684 = vmatpush1.bf16.msra.mxu0 0
    %3685 = vmatprep.subr.bf16.mxu0 0
    %3686 = vmatpush1.bf16.msra.mxu0 0
    %3687 = vmatprep.subr.bf16.mxu0 0
    %3688 = vmatpush1.bf16.msra.mxu0 0
    %3689 = vmatprep.subr.bf16.mxu0 0
    %3690 = vmatpush1.bf16.msra.mxu0 0
    %3691 = vmatprep.mubr.bf16.mxu0 %v3452
    %3692 = vmatmul.mubr.bf16.gmra.mrb[0].mxu0 %v2312
    %v3693 = vpop.f32.mrb[0].mxu0
    %v3694 = vadd.f32 %v3653, %v3693
    %v3695 = vpop.f32.mrb[0].mxu0
    %v3696 = vadd.f32 %v3655, %v3695
    %v3697 = vpop.f32.mrb[0].mxu0
    %v3698 = vpop.f32.mrb[0].mxu0
    %3699 = vdwg.mxu0
    %3700 = vmatprep.subr.bf16.mxu0 0
    %3701 = vmatpush1.bf16.msra.mxu0 %v3107
    %3702 = vmatprep.subr.bf16.mxu0 0
    %3703 = vmatpush1.bf16.msra.mxu0 %v3114
    %3704 = vmatprep.subr.bf16.mxu0 0
    %3705 = vmatpush1.bf16.msra.mxu0 %v3121
    %3706 = vmatprep.subr.bf16.mxu0 0
    %3707 = vmatpush1.bf16.msra.mxu0 %v3128
    %3708 = vmatprep.subr.bf16.mxu0 0
    %3709 = vmatpush1.bf16.msra.mxu0 %v3135
    %3710 = vmatprep.subr.bf16.mxu0 0
    %3711 = vmatpush1.bf16.msra.mxu0 %v3142
    %3712 = vmatprep.subr.bf16.mxu0 0
    %3713 = vmatpush1.bf16.msra.mxu0 %v3149
    %3714 = vmatprep.subr.bf16.mxu0 0
    %3715 = vmatpush1.bf16.msra.mxu0 %v3156
    %3716 = vmatprep.subr.bf16.mxu0 0
    %3717 = vmatpush1.bf16.msra.mxu0 %v3163
    %3718 = vmatprep.subr.bf16.mxu0 0
    %3719 = vmatpush1.bf16.msra.mxu0 %v3170
    %3720 = vmatprep.subr.bf16.mxu0 0
    %3721 = vmatpush1.bf16.msra.mxu0 %v3177
    %3722 = vmatprep.subr.bf16.mxu0 0
    %3723 = vmatpush1.bf16.msra.mxu0 %v3184
    %3724 = vmatprep.subr.bf16.mxu0 0
    %3725 = vmatpush1.bf16.msra.mxu0 %v3191
    %3726 = vmatprep.subr.bf16.mxu0 0
    %3727 = vmatpush1.bf16.msra.mxu0 %v3198
    %3728 = vmatprep.subr.bf16.mxu0 0
    %3729 = vmatpush1.bf16.msra.mxu0 %v3205
    %3730 = vmatprep.subr.bf16.mxu0 0
    %3731 = vmatpush1.bf16.msra.mxu0 %v3212
    %3732 = vmatprep.mubr.bf16.mxu0 %v2311
    %3733 = vmatmul.mubr.bf16.gmra.mrb[0].mxu0 %v2310
    %v3734 = vpop.f32.mrb[0].mxu0
    %v3735 = vadd.f32 %v2543, %v3734
    %v3736 = vpop.f32.mrb[0].mxu0
    %v3737 = vpop.f32.mrb[0].mxu0
    %v3738 = vpop.f32.mrb[0].mxu0
    %3739 = vdwg.mxu0
    %3740 = vmatprep.subr.bf16.mxu0 0
    %3741 = vmatpush1.bf16.msra.mxu0 %v3219
    %3742 = vmatprep.subr.bf16.mxu0 0
    %3743 = vmatpush1.bf16.msra.mxu0 %v3226
    %3744 = vmatprep.subr.bf16.mxu0 0
    %3745 = vmatpush1.bf16.msra.mxu0 %v3233
    %3746 = vmatprep.subr.bf16.mxu0 0
    %3747 = vmatpush1.bf16.msra.mxu0 %v3240
    %3748 = vmatprep.subr.bf16.mxu0 0
    %3749 = vmatpush1.bf16.msra.mxu0 %v3247
    %3750 = vmatprep.subr.bf16.mxu0 0
    %3751 = vmatpush1.bf16.msra.mxu0 %v3254
    %3752 = vmatprep.subr.bf16.mxu0 0
    %3753 = vmatpush1.bf16.msra.mxu0 %v3261
    %3754 = vmatprep.subr.bf16.mxu0 0
    %3755 = vmatpush1.bf16.msra.mxu0 %v3268
    %3756 = vmatprep.subr.bf16.mxu0 0
    %3757 = vmatpush1.bf16.msra.mxu0 %v3275
    %3758 = vmatprep.subr.bf16.mxu0 0
    %3759 = vmatpush1.bf16.msra.mxu0 0
    %3760 = vmatprep.subr.bf16.mxu0 0
    %3761 = vmatpush1.bf16.msra.mxu0 0
    %3762 = vmatprep.subr.bf16.mxu0 0
    %3763 = vmatpush1.bf16.msra.mxu0 0
    %3764 = vmatprep.subr.bf16.mxu0 0
    %3765 = vmatpush1.bf16.msra.mxu0 0
    %3766 = vmatprep.subr.bf16.mxu0 0
    %3767 = vmatpush1.bf16.msra.mxu0 0
    %3768 = vmatprep.subr.bf16.mxu0 0
    %3769 = vmatpush1.bf16.msra.mxu0 0
    %3770 = vmatprep.subr.bf16.mxu0 0
    %3771 = vmatpush1.bf16.msra.mxu0 0
    %3772 = vmatprep.mubr.bf16.mxu0 %v3452
    %3773 = vmatmul.mubr.bf16.gmra.mrb[0].mxu0 %v2312
    %v3774 = vpop.f32.mrb[0].mxu0
    %v3775 = vadd.f32 %v3735, %v3774
    %v3776 = vpop.f32.mrb[0].mxu0
    %v3777 = vpop.f32.mrb[0].mxu0
    %v3778 = vpop.f32.mrb[0].mxu0
    %3779 = vdwg.mxu0
    %v3780 = vxor.u32 %v3530, 2147483648
    %v3781 = vxor.u32 %v3532, 2147483648
    %v3782 = vxor.u32 %v3612, 2147483648
    %v3783 = vxor.u32 %v3614, 2147483648
    %v3784 = vxor.u32 %v3694, 2147483648
    %v3785 = vxor.u32 %v3696, 2147483648
    %v3786 = vxor.u32 %v3775, 2147483648
    %v3787 = vmul.f32 %v3780, 1.442695
    %v3788 = vpow.pop %v3787
    %v3789 = vmul.f32 %v3781, 1.442695
    %v3790 = vpow.pop %v3789
    %v3791 = vmul.f32 %v3782, 1.442695
    %v3792 = vpow.pop %v3791
    %v3793 = vmul.f32 %v3783, 1.442695
    %v3794 = vpow.pop %v3793
    %v3795 = vmul.f32 %v3784, 1.442695
    %v3796 = vpow.pop %v3795
    %v3797 = vmul.f32 %v3785, 1.442695
    %v3798 = vpow.pop %v3797
    %v3799 = vmul.f32 %v3786, 1.442695
    %v3800 = vpow.pop %v3799
    %v3801 = vadd.f32 %v3788, 1.0
    %v3802 = vadd.f32 %v3790, 1.0
    %v3803 = vadd.f32 %v3792, 1.0
    %v3804 = vadd.f32 %v3794, 1.0
    %v3805 = vadd.f32 %v3796, 1.0
    %v3806 = vadd.f32 %v3798, 1.0
    %v3807 = vadd.f32 %v3800, 1.0
    %v3808 = vrcp.pop %v3801
    %v3809 = vmul.f32 1.0, %v3808
    %v3810 = vrcp.pop %v3802
    %v3811 = vmul.f32 1.0, %v3810
    %v3812 = vrcp.pop %v3803
    %v3813 = vmul.f32 1.0, %v3812
    %v3814 = vrcp.pop %v3804
    %v3815 = vmul.f32 1.0, %v3814
    %v3816 = vrcp.pop %v3805
    %v3817 = vmul.f32 1.0, %v3816
    %v3818 = vrcp.pop %v3806
    %v3819 = vmul.f32 1.0, %v3818
    %v3820 = vrcp.pop %v3807
    %v3821 = vmul.f32 1.0, %v3820
    %v3822 = vpack.c.bf16 %v3809, %v3809
    %v3823 = vpack.c.bf16 %v3811, %v3811
    %v3824 = vpack.c.bf16 %v3813, %v3813
    %v3825 = vpack.c.bf16 %v3815, %v3815
    %v3826 = vpack.c.bf16 %v3817, %v3817
    %v3827 = vpack.c.bf16 %v3819, %v3819
    %v3828 = vpack.c.bf16 %v3821, %v3821
    %v3836 = vunpack.c.l.b16 %v3822
    %v3837 = vunpack.c.l.b16 %v3823
    %v3838 = vunpack.c.l.b16 %v3824
    %v3839 = vunpack.c.l.b16 %v3825
    %v3840 = vunpack.c.l.b16 %v3826
    %v3841 = vunpack.c.l.b16 %v3827
    %v3842 = vunpack.c.l.b16 %v3828
    %v3843 = vpack.c.b16 %v3837, %v3836
    %v3844 = vpack.c.b16 %v3839, %v3838
    %v3845 = vpack.c.b16 %v3841, %v3840
    %v3846 = vpack.c.b16 %v3842, %v3842
    %3851 = vst [vmem:[#allocation2] sm:$0xff] %v3843
    %3852 = vst [vmem:[#allocation2 + $0x8] sm:$0xff] %v3844
    %3853 = vst [vmem:[#allocation2 + $0x10] sm:$0xff] %v3845
    %vm3854 = vcmask 125952
    %3855 = vst.msk [vmem:[#allocation2 + $0x18] sm:$0xf] %vm3854, %v3846
    %3856 = vst [vmem:[#allocation4] sm:$0xff] %v1998
    %3857 = vst [vmem:[#allocation4 + $0x8] sm:$0xff] %v2000
    // Predicated region
    $region42: #{tpu_custom_call.1} parent=1 // pred_check
      _
    $region43: #{tpu_custom_call.1} parent=1 // pred_check_branch
      %3859 = sbr.rel (0) target = $region45
    $region44: #{tpu_custom_call.1} parent=1 // pred_region
      %s3861 = ssub.s32 448, 448
      %3862 = vsyncadd [#allocation3], %s3861
      %s3864 = sshll.u32 [#allocation2], 4
      %s3865 = int_to_ptr.vmem [resolvable:$true] %s3864
      %3867 = dma.vmem_to_hbm [thread:$0]  %s3865, 448, %s10, [#allocation3]
    $region45: #{tpu_custom_call.1} parent=1 // pred_fallthru
      _
    // Predicated region
    $region46: #{tpu_custom_call.1} parent=1 // pred_check
      _
    $region47: #{tpu_custom_call.1} parent=1 // pred_check_branch
      %3869 = sbr.rel (0) target = $region49
    $region48: #{tpu_custom_call.1} parent=1 // pred_region
      %s3871 = ssub.s32 256, 256
      %3872 = vsyncadd [#allocation5], %s3871
      %s3874 = sshll.u32 [#allocation4], 4
      %s3875 = int_to_ptr.vmem [resolvable:$true] %s3874
      %3877 = dma.vmem_to_hbm [thread:$0]  %s3875, 256, %s11, [#allocation5]
    $region49: #{tpu_custom_call.1} parent=1 // pred_fallthru
      _
    // Predicated region
    $region50: #{tpu_custom_call.1} parent=1 // pred_check
      _
    $region51: #{tpu_custom_call.1} parent=1 // pred_check_branch
      %3879 = sbr.rel (0) target = $region53
    $region52: #{tpu_custom_call.1} parent=1 // pred_region
      %3880 = dma.done [#allocation3], 448
    $region53: #{tpu_custom_call.1} parent=1 // pred_fallthru
      _
    // Predicated region
    $region54: #{tpu_custom_call.1} parent=1 // pred_check
      _
    $region55: #{tpu_custom_call.1} parent=1 // pred_check_branch
      %3882 = sbr.rel (0) target = $region57
    $region56: #{tpu_custom_call.1} parent=1 // pred_region
      %3883 = dma.done [#allocation5], 256
    $region57: #{tpu_custom_call.1} parent=1 // pred_fallthru
      _
    %3884 = vsyncpa [#allocation3], 1
    %3885 = vsyncpa [#allocation5], 1

</llo_original>
